<compile_context>
chip_gen: v7x
topology: tpu7x:2x2x1
jax: 0.10.0
libtpu: 0.0.40
codegen_flags: <defaults>
</compile_context>

<pallas_src>
import functools

import jax
import jax.numpy as jnp
from jax import lax
from jax.experimental import pallas as pl
from jax.experimental.pallas import tpu as pltpu

CP = 128                        # lane-dense channel padding (TPU lane width)
VMEM_LIMIT = 32 * 1024 * 1024   # explicit scoped-VMEM budget (safe on v5e/v6e/v7x)


# --------------------------------------------------------------------------
# small helpers
# --------------------------------------------------------------------------
def _h_tile(H):
    return 8 if H % 8 == 0 else H


def _row_tile(M):
    for t in (512, 256, 128, 64, 32, 16, 8):
        if M % t == 0:
            return t
    return M


def _pad_last(x, size):
    pad = [(0, 0)] * x.ndim
    pad[-1] = (0, size - x.shape[-1])
    return jnp.pad(x, pad)


# --------------------------------------------------------------------------
# Pallas kernels
# --------------------------------------------------------------------------
def _conv3x3_kernel(x_ref, w_ref, b_ref, o_ref, *, th, W):
    """3x3 conv (pad already applied) -- taps streamed in-kernel, f32 accum."""
    CPo = o_ref.shape[-1]
    hi = pl.program_id(1)
    row0 = pl.multiple_of(hi * th, th)
    win = x_ref[0, pl.ds(row0, th + 2), :, :]          # (th+2, W+2, CPi) bf16
    acc = jnp.zeros((th * W, CPo), jnp.float32)
    for di in range(3):
        for dj in range(3):
            patch = win[di:di + th, dj:dj + W, :].reshape(th * W, -1)
            acc = acc + jnp.dot(patch, w_ref[di * 3 + dj],
                                preferred_element_type=jnp.float32)
    acc = acc + b_ref[...]
    o_ref[0] = acc.reshape(th, W, CPo).astype(o_ref.dtype)


def conv3x3(x_sp, w9, b, H, W, out_dtype=jnp.bfloat16):
    """x_sp: (N, H+2, W+2, CPi) bf16;  w9: (9, CPi, CPo) bf16;  b: (1, CPo) f32."""
    N = x_sp.shape[0]
    CPi, CPo = w9.shape[1], w9.shape[2]
    assert W % 8 == 0, "W must be a multiple of 8 for the in-kernel reshapes"
    th = _h_tile(H)
    kernel = functools.partial(_conv3x3_kernel, th=th, W=W)
    return pl.pallas_call(
        kernel,
        out_shape=jax.ShapeDtypeStruct((N, H, W, CPo), out_dtype),
        grid=(N, H // th),
        in_specs=[
            pl.BlockSpec((1, H + 2, W + 2, CPi), lambda n, hi: (n, 0, 0, 0)),
            pl.BlockSpec((9, CPi, CPo), lambda n, hi: (0, 0, 0)),
            pl.BlockSpec((1, CPo), lambda n, hi: (0, 0)),
        ],
        out_specs=pl.BlockSpec((1, th, W, CPo), lambda n, hi: (n, hi, 0, 0)),
        compiler_params=pltpu.CompilerParams(
            dimension_semantics=("parallel", "parallel"),
            vmem_limit_bytes=VMEM_LIMIT),
    )(x_sp, w9, b)


def _gate_kernel(tc_ref, tw_ref, ph_ref, pw_ref, pb_ref, psiw_ref, psib_ref, o_ref):
    """sigmoid( psi( relu(theta_x + phi_g) ) )  -- psi is a VPU lane reduction."""
    acc = jnp.dot(tc_ref[...], tw_ref[...], preferred_element_type=jnp.float32)
    acc = acc + jnp.dot(ph_ref[...], pw_ref[...], preferred_element_type=jnp.float32)
    acc = acc + pb_ref[...]
    f = jnp.maximum(acc, 0.0)
    s = jnp.sum(f * psiw_ref[...], axis=-1, keepdims=True) + psib_ref[...]
    o_ref[...] = jax.nn.sigmoid(s).astype(o_ref.dtype)


def fused_gate(theta_cols, theta_w, phi_in, phi_w, phi_b, psi_w, psi_b):
    M2, K1 = theta_cols.shape
    CPi, CPo = phi_w.shape
    tm = _row_tile(M2)
    return pl.pallas_call(
        _gate_kernel,
        out_shape=jax.ShapeDtypeStruct((M2, 1), jnp.float32),
        grid=(M2 // tm,),
        in_specs=[
            pl.BlockSpec((tm, K1), lambda i: (i, 0)),
            pl.BlockSpec((K1, CPo), lambda i: (0, 0)),
            pl.BlockSpec((tm, CPi), lambda i: (i, 0)),
            pl.BlockSpec((CPi, CPo), lambda i: (0, 0)),
            pl.BlockSpec((1, CPo), lambda i: (0, 0)),
            pl.BlockSpec((1, CPo), lambda i: (0, 0)),
            pl.BlockSpec((1, 1), lambda i: (0, 0)),
        ],
        out_specs=pl.BlockSpec((tm, 1), lambda i: (i, 0)),
        compiler_params=pltpu.CompilerParams(
            dimension_semantics=("parallel",), vmem_limit_bytes=VMEM_LIMIT),
    )(theta_cols, theta_w, phi_in, phi_w, phi_b, psi_w, psi_b)


def _attn_apply_kernel(g_ref, u_ref, x_ref, lf_ref, ow_ref, ob_ref, o_ref, *, th, W):
    """Fused: bilinear-upsample gate -> * x -> out_transform(1x1+BN)
              + bilinear-upsample(last_block)  -> channel-concatenated output."""
    CPo = o_ref.shape[-1]
    u = u_ref[...]                                        # (th*W, h*w) f32, 4 nz/row
    gate = jnp.sum(u * g_ref[0], axis=-1, keepdims=True)  # (th*W, 1) upsampled gate
    x = x_ref[0].reshape(th * W, -1).astype(jnp.float32)
    y = (x * gate).astype(jnp.bfloat16)                   # gated features (bf16 for MXU)
    acc = jnp.dot(y, ow_ref[...], preferred_element_type=jnp.float32)
    acc = acc + ob_ref[...]                               # out_transform -> lanes [Cl:Cl+Ci)
    acc = acc + jnp.dot(u.astype(jnp.bfloat16), lf_ref[0],
                        preferred_element_type=jnp.float32)  # upsampled last -> lanes [0:Cl)
    o_ref[0] = acc.reshape(th, W, CPo).astype(o_ref.dtype)


def attn_apply(gate_row, U, x_pad, last_flat, ow, ob, H, W):
    N, _, _, CPx = x_pad.shape
    hw = gate_row.shape[-1]
    CPo = ow.shape[-1]
    assert W % 8 == 0
    th = _h_tile(H)
    kernel = functools.partial(_attn_apply_kernel, th=th, W=W)
    return pl.pallas_call(
        kernel,
        out_shape=jax.ShapeDtypeStruct((N, H, W, CPo), jnp.bfloat16),
        grid=(N, H // th),
        in_specs=[
            pl.BlockSpec((1, 1, hw), lambda n, hi: (n, 0, 0)),           # gate row (per n)
            pl.BlockSpec((th * W, hw), lambda n, hi: (hi, 0)),           # upsample matrix tile
            pl.BlockSpec((1, th, W, CPx), lambda n, hi: (n, hi, 0, 0)),  # x_down tile
            pl.BlockSpec((1, hw, CPx), lambda n, hi: (n, 0, 0)),         # last_block (per n)
            pl.BlockSpec((CPx, CPo), lambda n, hi: (0, 0)),              # out_transform w
            pl.BlockSpec((1, CPo), lambda n, hi: (0, 0)),                # out_transform b
        ],
        out_specs=pl.BlockSpec((1, th, W, CPo), lambda n, hi: (n, hi, 0, 0)),
        compiler_params=pltpu.CompilerParams(
            dimension_semantics=("parallel", "parallel"),
            vmem_limit_bytes=VMEM_LIMIT),
    )(gate_row, U, x_pad, last_flat, ow, ob)


# --------------------------------------------------------------------------
# parameter preparation (done once: BN folding, padding, bf16 rounding)
# --------------------------------------------------------------------------
def fold_bn(w, b, bn, eps=1e-5):
    gamma, beta, mean, var = bn
    scale = gamma / jnp.sqrt(var + eps)
    return w * scale[:, None, None, None], (b - mean) * scale + beta


def _pack_conv_w(w_oihw, *, out_offset=0):
    """PyTorch (O,I,kh,kw) -> (kh*kw, CP, CP) bf16; real block at [:, :I, off:off+O]."""
    O, I, kh, kw = w_oihw.shape
    w = jnp.transpose(w_oihw, (2, 3, 1, 0)).reshape(kh * kw, I, O)
    w = jnp.pad(w, ((0, 0), (0, CP - I), (out_offset, CP - O - out_offset)))
    return w.astype(jnp.bfloat16)


def _pack_theta_w(w_oihw):
    """(O,I,2,2) -> (CP, CP) bf16 matching the (di,dj,c)-ordered theta columns."""
    O, I, kh, kw = w_oihw.shape
    wf = jnp.transpose(w_oihw, (2, 3, 1, 0)).reshape(kh * kw * I, O)
    wf = jnp.pad(wf, ((0, CP - kh * kw * I), (0, CP - O)))
    return wf.astype(jnp.bfloat16)


def _pack_bias(b, *, out_offset=0):
    b = jnp.asarray(b, jnp.float32).reshape(-1)
    return jnp.pad(b, (out_offset, CP - b.shape[0] - out_offset)).reshape(1, CP)


def prepare_params(raw, last_ch, out_ch):
    Cl = last_ch
    gw, gb = fold_bn(raw["gating"]["w"], raw["gating"]["b"], raw["gating"]["bn"])
    ow, ob = fold_bn(raw["outt"]["w"], raw["outt"]["b"], raw["outt"]["bn"])
    cb = [fold_bn(l["w"], l["b"], l["bn"]) for l in raw["conv_block"]]

    # bf16-round the matmul weights once (shared by kernel path and reference).
    rnd = lambda a: a.astype(jnp.bfloat16).astype(jnp.float32)
    gw, ow = rnd(gw), rnd(ow)
    tw, pw = rnd(raw["theta_w"]), rnd(raw["phi_w"])
    cb = [(rnd(w), b) for w, b in cb]

    refp = dict(gating_w=gw, gating_b=gb, theta_w=tw,
                phi_w=pw, phi_b=raw["phi_b"],
                psi_w=raw["psi_w"], psi_b=raw["psi_b"],
                outt_w=ow, outt_b=ob, conv_block=cb)

    Ci = raw["phi_w"].shape[0]
    prep = dict(
        gating_w=_pack_conv_w(gw), gating_b=_pack_bias(gb),
        theta_w=_pack_theta_w(tw),
        phi_w=_pack_conv_w(pw)[0], phi_b=_pack_bias(raw["phi_b"]),
        psi_w=jnp.pad(raw["psi_w"].reshape(1, Ci),
                      ((0, 0), (0, CP - Ci))).astype(jnp.float32),
        psi_b=raw["psi_b"].reshape(1, 1).astype(jnp.float32),
        # out_transform's output channels are placed at lanes [Cl:Cl+Ci) so the
        # fused kernel writes the concat(last_up, attention_x) layout directly.
        outt_w=_pack_conv_w(ow, out_offset=Cl)[0],
        outt_b=_pack_bias(ob, out_offset=Cl),
        conv_block=[(_pack_conv_w(w), _pack_bias(b)) for w, b in cb],
        out_ch=int(out_ch),
    )
    return prep, refp


# --------------------------------------------------------------------------
# bilinear (align_corners=True) interpolation matrices
# --------------------------------------------------------------------------
def _interp_matrix(out_size, in_size):
    if in_size == 1:
        return jnp.ones((out_size, 1), jnp.float32)
    src = jnp.arange(out_size, dtype=jnp.float32) * (in_size - 1) / (out_size - 1)
    i0 = jnp.clip(jnp.floor(src).astype(jnp.int32), 0, in_size - 2)
    frac = src - i0.astype(jnp.float32)
    oh0 = jax.nn.one_hot(i0, in_size, dtype=jnp.float32)
    oh1 = jax.nn.one_hot(i0 + 1, in_size, dtype=jnp.float32)
    return oh0 * (1.0 - frac)[:, None] + oh1 * frac[:, None]


def _build_upsample_matrix(H, W, h, w):
    Ah = _interp_matrix(H, h)
    Aw = _interp_matrix(W, w)
    return jnp.einsum("Yh,Xw->YXhw", Ah, Aw).reshape(H * W, h * w)  # 4 nz / row


# --------------------------------------------------------------------------
# AttentionUpBlock forward (Pallas path)
# --------------------------------------------------------------------------
def attention_up_block_forward(prep, down_nchw, last_nchw):
    xd = jnp.transpose(down_nchw, (0, 2, 3, 1)).astype(jnp.bfloat16)   # (N,H,W,Cd)
    xl = jnp.transpose(last_nchw, (0, 2, 3, 1)).astype(jnp.bfloat16)   # (N,h,w,Cl)
    N, H, W, Cd = xd.shape
    _, h, w, Cl = xl.shape
    assert (H, W) == (2 * h, 2 * w) and 4 * Cd <= CP and Cl <= CP

    # ---- gating ConvBlock: 3x3 conv + folded BN ----------------------------
    xl_p = _pad_last(xl, CP)                                           # (N,h,w,CP)
    xl_sp = jnp.pad(xl_p, ((0, 0), (1, 1), (1, 1), (0, 0)))
    gating = conv3x3(xl_sp, prep["gating_w"], prep["gating_b"], h, w)  # (N,h,w,CP) bf16

    # ---- fused theta(2x2,s2) + phi(1x1) + relu + psi + sigmoid -> gate map --
    theta_cols = xd.reshape(N, h, 2, w, 2, Cd).transpose(0, 1, 3, 2, 4, 5)
    theta_cols = theta_cols.reshape(N * h * w, 4 * Cd)
    theta_cols = jnp.pad(theta_cols, ((0, 0), (0, CP - 4 * Cd)))
    phi_in = gating.reshape(N * h * w, CP)
    gate = fused_gate(theta_cols, prep["theta_w"], phi_in,
                      prep["phi_w"], prep["phi_b"], prep["psi_w"], prep["psi_b"])
    gate_row = gate.reshape(N, 1, h * w)                               # f32

    # ---- fused [upsample gate -> *x -> out_transform] + [upsample last] -----
    # One kernel writes the channel-concatenated (lane-padded) tensor directly.
    U = _build_upsample_matrix(H, W, h, w)                             # (H*W, h*w) f32
    xd_p = _pad_last(xd, CP)                                           # (N,H,W,CP) bf16
    last_flat = xl_p.reshape(N, h * w, CP)                             # bf16
    x = attn_apply(gate_row, U, xd_p, last_flat,
                   prep["outt_w"], prep["outt_b"], H, W)               # (N,H,W,CP) bf16

    # ---- conv_block: jump x (3x3 conv + folded BN) --------------------------
    n_layers = len(prep["conv_block"])
    for idx, (wk, bk) in enumerate(prep["conv_block"]):
        x_sp = jnp.pad(x, ((0, 0), (1, 1), (1, 1), (0, 0)))
        out_dtype = jnp.float32 if idx == n_layers - 1 else jnp.bfloat16
        x = conv3x3(x_sp, wk, bk, H, W, out_dtype=out_dtype)

    out = x[..., :prep["out_ch"]]
    return jnp.transpose(out, (0, 3, 1, 2))                            # NCHW


# --------------------------------------------------------------------------
# pure-JAX f32 reference (faithful module semantics; uses same bf16-rounded
# weights / inputs so only kernel-side numerics are being validated)
# --------------------------------------------------------------------------
def _conv_ref(x, w_oihw, b, stride=1, padding=0):
    w = jnp.transpose(w_oihw, (2, 3, 1, 0)).astype(jnp.float32)        # HWIO
    out = lax.conv_general_dilated(
        x.astype(jnp.float32), w, (stride, stride),
        [(padding, padding), (padding, padding)],
        dimension_numbers=("NHWC", "HWIO", "NHWC"),
        precision=lax.Precision.HIGHEST)
    if b is not None:
        out = out + b.reshape(1, 1, 1, -1)
    return out


def _bilinear_ref(x, Ho, Wo):
    _, h, w, _ = x.shape
    Ah = _interp_matrix(Ho, h)
    Aw = _interp_matrix(Wo, w)
    return jnp.einsum("Yh,Xw,nhwc->nYXc", Ah, Aw, x.astype(jnp.float32),
                      precision=lax.Precision.HIGHEST)


def ref_forward(refp, down_nchw, last_nchw):
    xd = jnp.transpose(down_nchw, (0, 2, 3, 1)).astype(jnp.bfloat16).astype(jnp.float32)
    xl = jnp.transpose(last_nchw, (0, 2, 3, 1)).astype(jnp.bfloat16).astype(jnp.float32)
    _, H, W, _ = xd.shape
    g = _conv_ref(xl, refp["gating_w"], refp["gating_b"], 1, 1)
    theta = _conv_ref(xd, refp["theta_w"], None, 2, 0)
    phi = _conv_ref(g, refp["phi_w"], refp["phi_b"], 1, 0)
    f = jax.nn.relu(theta + phi)
    sig = jax.nn.sigmoid(_conv_ref(f, refp["psi_w"], refp["psi_b"], 1, 0))
    sig_up = _bilinear_ref(sig, H, W)
    att = _conv_ref(sig_up * xd, refp["outt_w"], refp["outt_b"], 1, 0)
    last_up = _bilinear_ref(xl, H, W)
    x = jnp.concatenate([last_up, att], axis=-1)
    for wk, bk in refp["conv_block"]:
        x = _conv_ref(x, wk, bk, 1, 1)
    return jnp.transpose(x, (0, 3, 1, 2))


# --------------------------------------------------------------------------
if __name__ == "__main__":
    key = jax.random.PRNGKey(0)
    keys = iter(jax.random.split(key, 48))

    def nrm(shape, s=0.2):
        return s * jax.random.normal(next(keys), shape, dtype=jnp.float32)

    def bn_params(c):
        return (1.0 + nrm((c,), 0.1),            # gamma
                nrm((c,), 0.1),                  # beta
                nrm((c,), 0.1),                  # running_mean
                1.0 + jnp.abs(nrm((c,), 0.1)))   # running_var

    # AttentionUpBlock(last_channels=8, down_channels=4, out_channels=4, jump=2)
    N, down_ch, last_ch, out_ch = 2, 4, 8, 4
    H = W = 16          # down_block spatial
    h = w = 8           # last_block spatial (one level deeper)
    inter = last_ch // 2

    raw = {
        "gating": {"w": nrm((inter, last_ch, 3, 3)), "b": nrm((inter,)),
                   "bn": bn_params(inter)},
        "theta_w": nrm((inter, down_ch, 2, 2)),               # bias=False, bn=False
        "phi_w": nrm((inter, inter, 1, 1)), "phi_b": nrm((inter,)),
        "psi_w": nrm((1, inter, 1, 1)), "psi_b": nrm((1,)),
        "outt": {"w": nrm((inter, inter, 1, 1)), "b": nrm((inter,)),
                 "bn": bn_params(inter)},
        "conv_block": [
            {"w": nrm((out_ch, last_ch + down_ch, 3, 3)), "b": nrm((out_ch,)),
             "bn": bn_params(out_ch)},
            {"w": nrm((out_ch, out_ch, 3, 3)), "b": nrm((out_ch,)),
             "bn": bn_params(out_ch)},
        ],
    }

    down_block = jax.random.normal(next(keys), (N, down_ch, H, W), dtype=jnp.float32)
    last_block = jax.random.normal(next(keys), (N, last_ch, h, w), dtype=jnp.float32)

    prep, refp = prepare_params(raw, last_ch, out_ch)

    fwd = jax.jit(lambda d, l: attention_up_block_forward(prep, d, l))
    out = jax.block_until_ready(fwd(down_block, last_block))

    ref = ref_forward(refp, down_block, last_block)

    assert out.shape == (N, out_ch, H, W), out.shape
    assert bool(jnp.all(jnp.isfinite(out)))
    err = float(jnp.max(jnp.abs(out - ref)) / (jnp.max(jnp.abs(ref)) + 1e-6))
    assert err < 2e-2, f"normalized max error too large: {err}"
    print("KERNEL_OK")
</pallas_src>

<mosaic_0001>
module attributes {stable_mosaic.version = 11 : i64} {
  func.func @_conv3x3_kernel(%arg0: i32, %arg1: i32, %arg2: memref<1x10x10x128xbf16, #tpu.memory_space<vmem>>, %arg3: memref<9x128x128xbf16, #tpu.memory_space<vmem>>, %arg4: memref<1x128xf32, #tpu.memory_space<vmem>>, %arg5: memref<1x8x8x128xbf16, #tpu.memory_space<vmem>>) attributes {dimension_semantics = [#tpu.dimension_semantics<parallel>, #tpu.dimension_semantics<parallel>], iteration_bounds = array<i64: 2, 1>, scalar_prefetch = 0 : i64, scratch_operands = 0 : i64, tpu.core_type = #tpu.core_type<tc>, window_params = [{transform_indices = @transform_0, window_bounds = array<i64: 1, 10, 10, 128>}, {pipeline_mode = #tpu.pipeline_mode<synchronous>, transform_indices = @transform_1, window_bounds = array<i64: 9, 128, 128>}, {pipeline_mode = #tpu.pipeline_mode<synchronous>, transform_indices = @transform_2, window_bounds = array<i64: 1, 128>}, {transform_indices = @transform_3, window_bounds = array<i64: 1, 8, 8, 128>}]} {
    %c8_i32 = arith.constant 8 : i32
    %0 = arith.muli %arg1, %c8_i32 : i32
    %1 = tpu.assume_multiple %0, 8 : i32
    %c0 = arith.constant 0 : index
    %2 = arith.index_cast %1 : i32 to index
    %c0_0 = arith.constant 0 : index
    %c0_1 = arith.constant 0 : index
    %3 = vector.load %arg2[%c0, %2, %c0_0, %c0_1] : memref<1x10x10x128xbf16, #tpu.memory_space<vmem>>, vector<1x10x10x128xbf16>
    %4 = vector.shape_cast %3 : vector<1x10x10x128xbf16> to vector<10x10x128xbf16>
    %cst = arith.constant 0.000000e+00 : f32
    %5 = vector.broadcast %cst : f32 to vector<64x128xf32>
    %6 = vector.extract_strided_slice %4 {offsets = [0, 0, 0], sizes = [8, 8, 128], strides = [1, 1, 1]} : vector<10x10x128xbf16> to vector<8x8x128xbf16>
    %7 = vector.shape_cast %6 : vector<8x8x128xbf16> to vector<64x128xbf16>
    %c0_2 = arith.constant 0 : index
    %c0_3 = arith.constant 0 : index
    %c0_4 = arith.constant 0 : index
    %8 = vector.load %arg3[%c0_2, %c0_3, %c0_4] : memref<9x128x128xbf16, #tpu.memory_space<vmem>>, vector<1x128x128xbf16>
    %9 = vector.shape_cast %8 : vector<1x128x128xbf16> to vector<128x128xbf16>
    %cst_5 = arith.constant dense<0.000000e+00> : vector<64x128xf32>
    %10 = tpu.matmul %7, %9, %cst_5 {dimension_numbers = #tpu.dot_dimension_numbers<[1], [0], [0], [1], [0, 0, 1, 1], [], []>} : vector<64x128xbf16>, vector<128x128xbf16>, vector<64x128xf32> -> vector<64x128xf32>
    %11 = arith.addf %5, %10 : vector<64x128xf32>
    %12 = vector.extract_strided_slice %4 {offsets = [0, 1, 0], sizes = [8, 8, 128], strides = [1, 1, 1]} : vector<10x10x128xbf16> to vector<8x8x128xbf16>
    %13 = vector.shape_cast %12 : vector<8x8x128xbf16> to vector<64x128xbf16>
    %c1 = arith.constant 1 : index
    %c0_6 = arith.constant 0 : index
    %c0_7 = arith.constant 0 : index
    %14 = vector.load %arg3[%c1, %c0_6, %c0_7] : memref<9x128x128xbf16, #tpu.memory_space<vmem>>, vector<1x128x128xbf16>
    %15 = vector.shape_cast %14 : vector<1x128x128xbf16> to vector<128x128xbf16>
    %cst_8 = arith.constant dense<0.000000e+00> : vector<64x128xf32>
    %16 = tpu.matmul %13, %15, %cst_8 {dimension_numbers = #tpu.dot_dimension_numbers<[1], [0], [0], [1], [0, 0, 1, 1], [], []>} : vector<64x128xbf16>, vector<128x128xbf16>, vector<64x128xf32> -> vector<64x128xf32>
    %17 = arith.addf %11, %16 : vector<64x128xf32>
    %18 = vector.extract_strided_slice %4 {offsets = [0, 2, 0], sizes = [8, 8, 128], strides = [1, 1, 1]} : vector<10x10x128xbf16> to vector<8x8x128xbf16>
    %19 = vector.shape_cast %18 : vector<8x8x128xbf16> to vector<64x128xbf16>
    %c2 = arith.constant 2 : index
    %c0_9 = arith.constant 0 : index
    %c0_10 = arith.constant 0 : index
    %20 = vector.load %arg3[%c2, %c0_9, %c0_10] : memref<9x128x128xbf16, #tpu.memory_space<vmem>>, vector<1x128x128xbf16>
    %21 = vector.shape_cast %20 : vector<1x128x128xbf16> to vector<128x128xbf16>
    %cst_11 = arith.constant dense<0.000000e+00> : vector<64x128xf32>
    %22 = tpu.matmul %19, %21, %cst_11 {dimension_numbers = #tpu.dot_dimension_numbers<[1], [0], [0], [1], [0, 0, 1, 1], [], []>} : vector<64x128xbf16>, vector<128x128xbf16>, vector<64x128xf32> -> vector<64x128xf32>
    %23 = arith.addf %17, %22 : vector<64x128xf32>
    %24 = vector.extract_strided_slice %4 {offsets = [1, 0, 0], sizes = [8, 8, 128], strides = [1, 1, 1]} : vector<10x10x128xbf16> to vector<8x8x128xbf16>
    %25 = vector.shape_cast %24 : vector<8x8x128xbf16> to vector<64x128xbf16>
    %c3 = arith.constant 3 : index
    %c0_12 = arith.constant 0 : index
    %c0_13 = arith.constant 0 : index
    %26 = vector.load %arg3[%c3, %c0_12, %c0_13] : memref<9x128x128xbf16, #tpu.memory_space<vmem>>, vector<1x128x128xbf16>
    %27 = vector.shape_cast %26 : vector<1x128x128xbf16> to vector<128x128xbf16>
    %cst_14 = arith.constant dense<0.000000e+00> : vector<64x128xf32>
    %28 = tpu.matmul %25, %27, %cst_14 {dimension_numbers = #tpu.dot_dimension_numbers<[1], [0], [0], [1], [0, 0, 1, 1], [], []>} : vector<64x128xbf16>, vector<128x128xbf16>, vector<64x128xf32> -> vector<64x128xf32>
    %29 = arith.addf %23, %28 : vector<64x128xf32>
    %30 = vector.extract_strided_slice %4 {offsets = [1, 1, 0], sizes = [8, 8, 128], strides = [1, 1, 1]} : vector<10x10x128xbf16> to vector<8x8x128xbf16>
    %31 = vector.shape_cast %30 : vector<8x8x128xbf16> to vector<64x128xbf16>
    %c4 = arith.constant 4 : index
    %c0_15 = arith.constant 0 : index
    %c0_16 = arith.constant 0 : index
    %32 = vector.load %arg3[%c4, %c0_15, %c0_16] : memref<9x128x128xbf16, #tpu.memory_space<vmem>>, vector<1x128x128xbf16>
    %33 = vector.shape_cast %32 : vector<1x128x128xbf16> to vector<128x128xbf16>
    %cst_17 = arith.constant dense<0.000000e+00> : vector<64x128xf32>
    %34 = tpu.matmul %31, %33, %cst_17 {dimension_numbers = #tpu.dot_dimension_numbers<[1], [0], [0], [1], [0, 0, 1, 1], [], []>} : vector<64x128xbf16>, vector<128x128xbf16>, vector<64x128xf32> -> vector<64x128xf32>
    %35 = arith.addf %29, %34 : vector<64x128xf32>
    %36 = vector.extract_strided_slice %4 {offsets = [1, 2, 0], sizes = [8, 8, 128], strides = [1, 1, 1]} : vector<10x10x128xbf16> to vector<8x8x128xbf16>
    %37 = vector.shape_cast %36 : vector<8x8x128xbf16> to vector<64x128xbf16>
    %c5 = arith.constant 5 : index
    %c0_18 = arith.constant 0 : index
    %c0_19 = arith.constant 0 : index
    %38 = vector.load %arg3[%c5, %c0_18, %c0_19] : memref<9x128x128xbf16, #tpu.memory_space<vmem>>, vector<1x128x128xbf16>
    %39 = vector.shape_cast %38 : vector<1x128x128xbf16> to vector<128x128xbf16>
    %cst_20 = arith.constant dense<0.000000e+00> : vector<64x128xf32>
    %40 = tpu.matmul %37, %39, %cst_20 {dimension_numbers = #tpu.dot_dimension_numbers<[1], [0], [0], [1], [0, 0, 1, 1], [], []>} : vector<64x128xbf16>, vector<128x128xbf16>, vector<64x128xf32> -> vector<64x128xf32>
    %41 = arith.addf %35, %40 : vector<64x128xf32>
    %42 = vector.extract_strided_slice %4 {offsets = [2, 0, 0], sizes = [8, 8, 128], strides = [1, 1, 1]} : vector<10x10x128xbf16> to vector<8x8x128xbf16>
    %43 = vector.shape_cast %42 : vector<8x8x128xbf16> to vector<64x128xbf16>
    %c6 = arith.constant 6 : index
    %c0_21 = arith.constant 0 : index
    %c0_22 = arith.constant 0 : index
    %44 = vector.load %arg3[%c6, %c0_21, %c0_22] : memref<9x128x128xbf16, #tpu.memory_space<vmem>>, vector<1x128x128xbf16>
    %45 = vector.shape_cast %44 : vector<1x128x128xbf16> to vector<128x128xbf16>
    %cst_23 = arith.constant dense<0.000000e+00> : vector<64x128xf32>
    %46 = tpu.matmul %43, %45, %cst_23 {dimension_numbers = #tpu.dot_dimension_numbers<[1], [0], [0], [1], [0, 0, 1, 1], [], []>} : vector<64x128xbf16>, vector<128x128xbf16>, vector<64x128xf32> -> vector<64x128xf32>
    %47 = arith.addf %41, %46 : vector<64x128xf32>
    %48 = vector.extract_strided_slice %4 {offsets = [2, 1, 0], sizes = [8, 8, 128], strides = [1, 1, 1]} : vector<10x10x128xbf16> to vector<8x8x128xbf16>
    %49 = vector.shape_cast %48 : vector<8x8x128xbf16> to vector<64x128xbf16>
    %c7 = arith.constant 7 : index
    %c0_24 = arith.constant 0 : index
    %c0_25 = arith.constant 0 : index
    %50 = vector.load %arg3[%c7, %c0_24, %c0_25] : memref<9x128x128xbf16, #tpu.memory_space<vmem>>, vector<1x128x128xbf16>
    %51 = vector.shape_cast %50 : vector<1x128x128xbf16> to vector<128x128xbf16>
    %cst_26 = arith.constant dense<0.000000e+00> : vector<64x128xf32>
    %52 = tpu.matmul %49, %51, %cst_26 {dimension_numbers = #tpu.dot_dimension_numbers<[1], [0], [0], [1], [0, 0, 1, 1], [], []>} : vector<64x128xbf16>, vector<128x128xbf16>, vector<64x128xf32> -> vector<64x128xf32>
    %53 = arith.addf %47, %52 : vector<64x128xf32>
    %54 = vector.extract_strided_slice %4 {offsets = [2, 2, 0], sizes = [8, 8, 128], strides = [1, 1, 1]} : vector<10x10x128xbf16> to vector<8x8x128xbf16>
    %55 = vector.shape_cast %54 : vector<8x8x128xbf16> to vector<64x128xbf16>
    %c8 = arith.constant 8 : index
    %c0_27 = arith.constant 0 : index
    %c0_28 = arith.constant 0 : index
    %56 = vector.load %arg3[%c8, %c0_27, %c0_28] : memref<9x128x128xbf16, #tpu.memory_space<vmem>>, vector<1x128x128xbf16>
    %57 = vector.shape_cast %56 : vector<1x128x128xbf16> to vector<128x128xbf16>
    %cst_29 = arith.constant dense<0.000000e+00> : vector<64x128xf32>
    %58 = tpu.matmul %55, %57, %cst_29 {dimension_numbers = #tpu.dot_dimension_numbers<[1], [0], [0], [1], [0, 0, 1, 1], [], []>} : vector<64x128xbf16>, vector<128x128xbf16>, vector<64x128xf32> -> vector<64x128xf32>
    %59 = arith.addf %53, %58 : vector<64x128xf32>
    %c0_30 = arith.constant 0 : index
    %c0_31 = arith.constant 0 : index
    %60 = vector.load %arg4[%c0_30, %c0_31] : memref<1x128xf32, #tpu.memory_space<vmem>>, vector<1x128xf32>
    %61 = vector.broadcast %60 : vector<1x128xf32> to vector<64x128xf32>
    %62 = arith.addf %59, %61 : vector<64x128xf32>
    %63 = vector.shape_cast %62 : vector<64x128xf32> to vector<8x8x128xf32>
    %64 = arith.truncf %63 : vector<8x8x128xf32> to vector<8x8x128xbf16>
    %c0_32 = arith.constant 0 : index
    %c0_33 = arith.constant 0 : index
    %c0_34 = arith.constant 0 : index
    %c0_35 = arith.constant 0 : index
    %65 = vector.load %arg5[%c0_32, %c0_33, %c0_34, %c0_35] : memref<1x8x8x128xbf16, #tpu.memory_space<vmem>>, vector<1x8x8x128xbf16>
    %66 = vector.shape_cast %65 : vector<1x8x8x128xbf16> to vector<8x8x128xbf16>
    %67 = vector.shape_cast %64 : vector<8x8x128xbf16> to vector<1x8x8x128xbf16>
    tpu.vector_store %arg5[%c0_32, %c0_33, %c0_34, %c0_35], %67 {strides = array<i32>} : memref<1x8x8x128xbf16, #tpu.memory_space<vmem>>, vector<1x8x8x128xbf16>,
    return
  }
  func.func @transform_0(%arg0: i32, %arg1: i32) -> (i32, i32, i32, i32) {
    %c0_i32 = arith.constant 0 : i32
    %c0_i32_0 = arith.constant 0 : i32
    %c0_i32_1 = arith.constant 0 : i32
    %c0_i32_2 = arith.constant 0 : i32
    return %arg0, %c0_i32, %c0_i32_0, %c0_i32_1 : i32, i32, i32, i32
  }
  func.func @transform_1(%arg0: i32, %arg1: i32) -> (i32, i32, i32) {
    %c0_i32 = arith.constant 0 : i32
    %c0_i32_0 = arith.constant 0 : i32
    %c0_i32_1 = arith.constant 0 : i32
    %c0_i32_2 = arith.constant 0 : i32
    return %c0_i32, %c0_i32_0, %c0_i32_1 : i32, i32, i32
  }
  func.func @transform_2(%arg0: i32, %arg1: i32) -> (i32, i32) {
    %c0_i32 = arith.constant 0 : i32
    %c0_i32_0 = arith.constant 0 : i32
    %c0_i32_1 = arith.constant 0 : i32
    return %c0_i32, %c0_i32_0 : i32, i32
  }
  func.func @transform_3(%arg0: i32, %arg1: i32) -> (i32, i32, i32, i32) {
    %c0_i32 = arith.constant 0 : i32
    %c0_i32_0 = arith.constant 0 : i32
    %c0_i32_1 = arith.constant 0 : i32
    return %arg0, %arg1, %c0_i32, %c0_i32_0 : i32, i32, i32, i32
  }
}

module attributes {stable_mosaic.version = 11 : i64} {
  func.func @_gate_kernel(%arg0: i32, %arg1: memref<128x128xbf16, #tpu.memory_space<vmem>>, %arg2: memref<128x128xbf16, #tpu.memory_space<vmem>>, %arg3: memref<128x128xbf16, #tpu.memory_space<vmem>>, %arg4: memref<128x128xbf16, #tpu.memory_space<vmem>>, %arg5: memref<1x128xf32, #tpu.memory_space<vmem>>, %arg6: memref<1x128xf32, #tpu.memory_space<vmem>>, %arg7: memref<1x1xf32, #tpu.memory_space<vmem>>, %arg8: memref<128x1xf32, #tpu.memory_space<vmem>>) attributes {dimension_semantics = [#tpu.dimension_semantics<parallel>], iteration_bounds = array<i64: 1>, scalar_prefetch = 0 : i64, scratch_operands = 0 : i64, tpu.core_type = #tpu.core_type<tc>, window_params = [{transform_indices = @transform_0, window_bounds = array<i64: 128, 128>}, {pipeline_mode = #tpu.pipeline_mode<synchronous>, transform_indices = @transform_1, window_bounds = array<i64: 128, 128>}, {transform_indices = @transform_2, window_bounds = array<i64: 128, 128>}, {pipeline_mode = #tpu.pipeline_mode<synchronous>, transform_indices = @transform_3, window_bounds = array<i64: 128, 128>}, {pipeline_mode = #tpu.pipeline_mode<synchronous>, transform_indices = @transform_4, window_bounds = array<i64: 1, 128>}, {pipeline_mode = #tpu.pipeline_mode<synchronous>, transform_indices = @transform_5, window_bounds = array<i64: 1, 128>}, {pipeline_mode = #tpu.pipeline_mode<synchronous>, transform_indices = @transform_6, window_bounds = array<i64: 1, 1>}, {transform_indices = @transform_7, window_bounds = array<i64: 128, 1>}]} {
    %c0 = arith.constant 0 : index
    %c0_0 = arith.constant 0 : index
    %0 = vector.load %arg1[%c0, %c0_0] : memref<128x128xbf16, #tpu.memory_space<vmem>>, vector<128x128xbf16>
    %c0_1 = arith.constant 0 : index
    %c0_2 = arith.constant 0 : index
    %1 = vector.load %arg2[%c0_1, %c0_2] : memref<128x128xbf16, #tpu.memory_space<vmem>>, vector<128x128xbf16>
    %cst = arith.constant dense<0.000000e+00> : vector<128x128xf32>
    %2 = tpu.matmul %0, %1, %cst {dimension_numbers = #tpu.dot_dimension_numbers<[1], [0], [0], [1], [0, 0, 1, 1], [], []>} : vector<128x128xbf16>, vector<128x128xbf16>, vector<128x128xf32> -> vector<128x128xf32>
    %c0_3 = arith.constant 0 : index
    %c0_4 = arith.constant 0 : index
    %3 = vector.load %arg3[%c0_3, %c0_4] : memref<128x128xbf16, #tpu.memory_space<vmem>>, vector<128x128xbf16>
    %c0_5 = arith.constant 0 : index
    %c0_6 = arith.constant 0 : index
    %4 = vector.load %arg4[%c0_5, %c0_6] : memref<128x128xbf16, #tpu.memory_space<vmem>>, vector<128x128xbf16>
    %cst_7 = arith.constant dense<0.000000e+00> : vector<128x128xf32>
    %5 = tpu.matmul %3, %4, %cst_7 {dimension_numbers = #tpu.dot_dimension_numbers<[1], [0], [0], [1], [0, 0, 1, 1], [], []>} : vector<128x128xbf16>, vector<128x128xbf16>, vector<128x128xf32> -> vector<128x128xf32>
    %6 = arith.addf %2, %5 : vector<128x128xf32>
    %c0_8 = arith.constant 0 : index
    %c0_9 = arith.constant 0 : index
    %7 = vector.load %arg5[%c0_8, %c0_9] : memref<1x128xf32, #tpu.memory_space<vmem>>, vector<1x128xf32>
    %8 = vector.broadcast %7 : vector<1x128xf32> to vector<128x128xf32>
    %9 = arith.addf %6, %8 : vector<128x128xf32>
    %cst_10 = arith.constant 0.000000e+00 : f32
    %10 = vector.broadcast %cst_10 : f32 to vector<128x128xf32>
    %11 = arith.maximumf %9, %10 : vector<128x128xf32>
    %c0_11 = arith.constant 0 : index
    %c0_12 = arith.constant 0 : index
    %12 = vector.load %arg6[%c0_11, %c0_12] : memref<1x128xf32, #tpu.memory_space<vmem>>, vector<1x128xf32>
    %13 = vector.broadcast %12 : vector<1x128xf32> to vector<128x128xf32>
    %14 = arith.mulf %11, %13 : vector<128x128xf32>
    %cst_13 = arith.constant dense<0.000000e+00> : vector<128xf32>
    %15 = vector.multi_reduction <add>, %14, %cst_13 [1] : vector<128x128xf32> to vector<128xf32>
    %16 = vector.shape_cast %15 : vector<128xf32> to vector<128x1xf32>
    %c0_14 = arith.constant 0 : index
    %c0_15 = arith.constant 0 : index
    %17 = vector.load %arg7[%c0_14, %c0_15] : memref<1x1xf32, #tpu.memory_space<vmem>>, vector<1x1xf32>
    %18 = vector.broadcast %17 : vector<1x1xf32> to vector<128x1xf32>
    %19 = arith.addf %16, %18 : vector<128x1xf32>
    %20 = arith.negf %19 : vector<128x1xf32>
    %21 = math.exp %20 : vector<128x1xf32>
    %cst_16 = arith.constant 1.000000e+00 : f32
    %22 = vector.broadcast %cst_16 : f32 to vector<128x1xf32>
    %23 = arith.addf %22, %21 : vector<128x1xf32>
    %24 = arith.divf %22, %23 : vector<128x1xf32>
    %c0_17 = arith.constant 0 : index
    %c0_18 = arith.constant 0 : index
    %25 = vector.load %arg8[%c0_17, %c0_18] : memref<128x1xf32, #tpu.memory_space<vmem>>, vector<128x1xf32>
    tpu.vector_store %arg8[%c0_17, %c0_18], %24 {strides = array<i32>} : memref<128x1xf32, #tpu.memory_space<vmem>>, vector<128x1xf32>,
    return
  }
  func.func @transform_0(%arg0: i32) -> (i32, i32) {
    %c0_i32 = arith.constant 0 : i32
    %c0_i32_0 = arith.constant 0 : i32
    return %arg0, %c0_i32 : i32, i32
  }
  func.func @transform_1(%arg0: i32) -> (i32, i32) {
    %c0_i32 = arith.constant 0 : i32
    %c0_i32_0 = arith.constant 0 : i32
    %c0_i32_1 = arith.constant 0 : i32
    return %c0_i32, %c0_i32_0 : i32, i32
  }
  func.func @transform_2(%arg0: i32) -> (i32, i32) {
    %c0_i32 = arith.constant 0 : i32
    %c0_i32_0 = arith.constant 0 : i32
    return %arg0, %c0_i32 : i32, i32
  }
  func.func @transform_3(%arg0: i32) -> (i32, i32) {
    %c0_i32 = arith.constant 0 : i32
    %c0_i32_0 = arith.constant 0 : i32
    %c0_i32_1 = arith.constant 0 : i32
    return %c0_i32, %c0_i32_0 : i32, i32
  }
  func.func @transform_4(%arg0: i32) -> (i32, i32) {
    %c0_i32 = arith.constant 0 : i32
    %c0_i32_0 = arith.constant 0 : i32
    %c0_i32_1 = arith.constant 0 : i32
    return %c0_i32, %c0_i32_0 : i32, i32
  }
  func.func @transform_5(%arg0: i32) -> (i32, i32) {
    %c0_i32 = arith.constant 0 : i32
    %c0_i32_0 = arith.constant 0 : i32
    %c0_i32_1 = arith.constant 0 : i32
    return %c0_i32, %c0_i32_0 : i32, i32
  }
  func.func @transform_6(%arg0: i32) -> (i32, i32) {
    %c0_i32 = arith.constant 0 : i32
    %c0_i32_0 = arith.constant 0 : i32
    %c0_i32_1 = arith.constant 0 : i32
    return %c0_i32, %c0_i32_0 : i32, i32
  }
  func.func @transform_7(%arg0: i32) -> (i32, i32) {
    %c0_i32 = arith.constant 0 : i32
    %c0_i32_0 = arith.constant 0 : i32
    return %arg0, %c0_i32 : i32, i32
  }
}

module attributes {stable_mosaic.version = 11 : i64} {
  func.func @_attn_apply_kernel(%arg0: i32, %arg1: i32, %arg2: memref<1x1x64xf32, #tpu.memory_space<vmem>>, %arg3: memref<128x64xf32, #tpu.memory_space<vmem>>, %arg4: memref<1x8x16x128xbf16, #tpu.memory_space<vmem>>, %arg5: memref<1x64x128xbf16, #tpu.memory_space<vmem>>, %arg6: memref<128x128xbf16, #tpu.memory_space<vmem>>, %arg7: memref<1x128xf32, #tpu.memory_space<vmem>>, %arg8: memref<1x8x16x128xbf16, #tpu.memory_space<vmem>>) attributes {dimension_semantics = [#tpu.dimension_semantics<parallel>, #tpu.dimension_semantics<parallel>], iteration_bounds = array<i64: 2, 2>, scalar_prefetch = 0 : i64, scratch_operands = 0 : i64, tpu.core_type = #tpu.core_type<tc>, window_params = [{transform_indices = @transform_0, window_bounds = array<i64: 1, 1, 64>}, {transform_indices = @transform_1, window_bounds = array<i64: 128, 64>}, {transform_indices = @transform_2, window_bounds = array<i64: 1, 8, 16, 128>}, {transform_indices = @transform_3, window_bounds = array<i64: 1, 64, 128>}, {pipeline_mode = #tpu.pipeline_mode<synchronous>, transform_indices = @transform_4, window_bounds = array<i64: 128, 128>}, {pipeline_mode = #tpu.pipeline_mode<synchronous>, transform_indices = @transform_5, window_bounds = array<i64: 1, 128>}, {transform_indices = @transform_6, window_bounds = array<i64: 1, 8, 16, 128>}]} {
    %c0 = arith.constant 0 : index
    %c0_0 = arith.constant 0 : index
    %0 = vector.load %arg3[%c0, %c0_0] : memref<128x64xf32, #tpu.memory_space<vmem>>, vector<128x64xf32>
    %c0_1 = arith.constant 0 : index
    %c0_2 = arith.constant 0 : index
    %c0_3 = arith.constant 0 : index
    %1 = vector.load %arg2[%c0_1, %c0_2, %c0_3] : memref<1x1x64xf32, #tpu.memory_space<vmem>>, vector<1x1x64xf32>
    %2 = vector.shape_cast %1 : vector<1x1x64xf32> to vector<1x64xf32>
    %3 = vector.broadcast %2 : vector<1x64xf32> to vector<128x64xf32>
    %4 = arith.mulf %0, %3 : vector<128x64xf32>
    %cst = arith.constant dense<0.000000e+00> : vector<128xf32>
    %5 = vector.multi_reduction <add>, %4, %cst [1] : vector<128x64xf32> to vector<128xf32>
    %6 = vector.shape_cast %5 : vector<128xf32> to vector<128x1xf32>
    %c0_4 = arith.constant 0 : index
    %c0_5 = arith.constant 0 : index
    %c0_6 = arith.constant 0 : index
    %c0_7 = arith.constant 0 : index
    %7 = vector.load %arg4[%c0_4, %c0_5, %c0_6, %c0_7] : memref<1x8x16x128xbf16, #tpu.memory_space<vmem>>, vector<1x8x16x128xbf16>
    %8 = vector.shape_cast %7 : vector<1x8x16x128xbf16> to vector<8x16x128xbf16>
    %9 = vector.shape_cast %8 : vector<8x16x128xbf16> to vector<128x128xbf16>
    %10 = arith.extf %9 : vector<128x128xbf16> to vector<128x128xf32>
    %11 = vector.broadcast %6 : vector<128x1xf32> to vector<128x128xf32>
    %12 = arith.mulf %10, %11 : vector<128x128xf32>
    %13 = arith.truncf %12 : vector<128x128xf32> to vector<128x128xbf16>
    %c0_8 = arith.constant 0 : index
    %c0_9 = arith.constant 0 : index
    %14 = vector.load %arg6[%c0_8, %c0_9] : memref<128x128xbf16, #tpu.memory_space<vmem>>, vector<128x128xbf16>
    %cst_10 = arith.constant dense<0.000000e+00> : vector<128x128xf32>
    %15 = tpu.matmul %13, %14, %cst_10 {dimension_numbers = #tpu.dot_dimension_numbers<[1], [0], [0], [1], [0, 0, 1, 1], [], []>} : vector<128x128xbf16>, vector<128x128xbf16>, vector<128x128xf32> -> vector<128x128xf32>
    %c0_11 = arith.constant 0 : index
    %c0_12 = arith.constant 0 : index
    %16 = vector.load %arg7[%c0_11, %c0_12] : memref<1x128xf32, #tpu.memory_space<vmem>>, vector<1x128xf32>
    %17 = vector.broadcast %16 : vector<1x128xf32> to vector<128x128xf32>
    %18 = arith.addf %15, %17 : vector<128x128xf32>
    %19 = arith.truncf %0 : vector<128x64xf32> to vector<128x64xbf16>
    %c0_13 = arith.constant 0 : index
    %c0_14 = arith.constant 0 : index
    %c0_15 = arith.constant 0 : index
    %20 = vector.load %arg5[%c0_13, %c0_14, %c0_15] : memref<1x64x128xbf16, #tpu.memory_space<vmem>>, vector<1x64x128xbf16>
    %21 = vector.shape_cast %20 : vector<1x64x128xbf16> to vector<64x128xbf16>
    %cst_16 = arith.constant dense<0.000000e+00> : vector<128x128xf32>
    %22 = tpu.matmul %19, %21, %cst_16 {dimension_numbers = #tpu.dot_dimension_numbers<[1], [0], [0], [1], [0, 0, 1, 1], [], []>} : vector<128x64xbf16>, vector<64x128xbf16>, vector<128x128xf32> -> vector<128x128xf32>
    %23 = arith.addf %18, %22 : vector<128x128xf32>
    %24 = vector.shape_cast %23 : vector<128x128xf32> to vector<8x16x128xf32>
    %25 = arith.truncf %24 : vector<8x16x128xf32> to vector<8x16x128xbf16>
    %c0_17 = arith.constant 0 : index
    %c0_18 = arith.constant 0 : index
    %c0_19 = arith.constant 0 : index
    %c0_20 = arith.constant 0 : index
    %26 = vector.load %arg8[%c0_17, %c0_18, %c0_19, %c0_20] : memref<1x8x16x128xbf16, #tpu.memory_space<vmem>>, vector<1x8x16x128xbf16>
    %27 = vector.shape_cast %26 : vector<1x8x16x128xbf16> to vector<8x16x128xbf16>
    %28 = vector.shape_cast %25 : vector<8x16x128xbf16> to vector<1x8x16x128xbf16>
    tpu.vector_store %arg8[%c0_17, %c0_18, %c0_19, %c0_20], %28 {strides = array<i32>} : memref<1x8x16x128xbf16, #tpu.memory_space<vmem>>, vector<1x8x16x128xbf16>,
    return
  }
  func.func @transform_0(%arg0: i32, %arg1: i32) -> (i32, i32, i32) {
    %c0_i32 = arith.constant 0 : i32
    %c0_i32_0 = arith.constant 0 : i32
    %c0_i32_1 = arith.constant 0 : i32
    return %arg0, %c0_i32, %c0_i32_0 : i32, i32, i32
  }
  func.func @transform_1(%arg0: i32, %arg1: i32) -> (i32, i32) {
    %c0_i32 = arith.constant 0 : i32
    %c0_i32_0 = arith.constant 0 : i32
    return %arg1, %c0_i32 : i32, i32
  }
  func.func @transform_2(%arg0: i32, %arg1: i32) -> (i32, i32, i32, i32) {
    %c0_i32 = arith.constant 0 : i32
    %c0_i32_0 = arith.constant 0 : i32
    %c0_i32_1 = arith.constant 0 : i32
    return %arg0, %arg1, %c0_i32, %c0_i32_0 : i32, i32, i32, i32
  }
  func.func @transform_3(%arg0: i32, %arg1: i32) -> (i32, i32, i32) {
    %c0_i32 = arith.constant 0 : i32
    %c0_i32_0 = arith.constant 0 : i32
    %c0_i32_1 = arith.constant 0 : i32
    return %arg0, %c0_i32, %c0_i32_0 : i32, i32, i32
  }
  func.func @transform_4(%arg0: i32, %arg1: i32) -> (i32, i32) {
    %c0_i32 = arith.constant 0 : i32
    %c0_i32_0 = arith.constant 0 : i32
    %c0_i32_1 = arith.constant 0 : i32
    return %c0_i32, %c0_i32_0 : i32, i32
  }
  func.func @transform_5(%arg0: i32, %arg1: i32) -> (i32, i32) {
    %c0_i32 = arith.constant 0 : i32
    %c0_i32_0 = arith.constant 0 : i32
    %c0_i32_1 = arith.constant 0 : i32
    return %c0_i32, %c0_i32_0 : i32, i32
  }
  func.func @transform_6(%arg0: i32, %arg1: i32) -> (i32, i32, i32, i32) {
    %c0_i32 = arith.constant 0 : i32
    %c0_i32_0 = arith.constant 0 : i32
    %c0_i32_1 = arith.constant 0 : i32
    return %arg0, %arg1, %c0_i32, %c0_i32_0 : i32, i32, i32, i32
  }
}

module attributes {stable_mosaic.version = 11 : i64} {
  func.func @_conv3x3_kernel(%arg0: i32, %arg1: i32, %arg2: memref<1x18x18x128xbf16, #tpu.memory_space<vmem>>, %arg3: memref<9x128x128xbf16, #tpu.memory_space<vmem>>, %arg4: memref<1x128xf32, #tpu.memory_space<vmem>>, %arg5: memref<1x8x16x128xbf16, #tpu.memory_space<vmem>>) attributes {dimension_semantics = [#tpu.dimension_semantics<parallel>, #tpu.dimension_semantics<parallel>], iteration_bounds = array<i64: 2, 2>, scalar_prefetch = 0 : i64, scratch_operands = 0 : i64, tpu.core_type = #tpu.core_type<tc>, window_params = [{transform_indices = @transform_0, window_bounds = array<i64: 1, 18, 18, 128>}, {pipeline_mode = #tpu.pipeline_mode<synchronous>, transform_indices = @transform_1, window_bounds = array<i64: 9, 128, 128>}, {pipeline_mode = #tpu.pipeline_mode<synchronous>, transform_indices = @transform_2, window_bounds = array<i64: 1, 128>}, {transform_indices = @transform_3, window_bounds = array<i64: 1, 8, 16, 128>}]} {
    %c8_i32 = arith.constant 8 : i32
    %0 = arith.muli %arg1, %c8_i32 : i32
    %1 = tpu.assume_multiple %0, 8 : i32
    %c0 = arith.constant 0 : index
    %2 = arith.index_cast %1 : i32 to index
    %c0_0 = arith.constant 0 : index
    %c0_1 = arith.constant 0 : index
    %3 = vector.load %arg2[%c0, %2, %c0_0, %c0_1] : memref<1x18x18x128xbf16, #tpu.memory_space<vmem>>, vector<1x10x18x128xbf16>
    %4 = vector.shape_cast %3 : vector<1x10x18x128xbf16> to vector<10x18x128xbf16>
    %cst = arith.constant 0.000000e+00 : f32
    %5 = vector.broadcast %cst : f32 to vector<128x128xf32>
    %6 = vector.extract_strided_slice %4 {offsets = [0, 0, 0], sizes = [8, 16, 128], strides = [1, 1, 1]} : vector<10x18x128xbf16> to vector<8x16x128xbf16>
    %7 = vector.shape_cast %6 : vector<8x16x128xbf16> to vector<128x128xbf16>
    %c0_2 = arith.constant 0 : index
    %c0_3 = arith.constant 0 : index
    %c0_4 = arith.constant 0 : index
    %8 = vector.load %arg3[%c0_2, %c0_3, %c0_4] : memref<9x128x128xbf16, #tpu.memory_space<vmem>>, vector<1x128x128xbf16>
    %9 = vector.shape_cast %8 : vector<1x128x128xbf16> to vector<128x128xbf16>
    %cst_5 = arith.constant dense<0.000000e+00> : vector<128x128xf32>
    %10 = tpu.matmul %7, %9, %cst_5 {dimension_numbers = #tpu.dot_dimension_numbers<[1], [0], [0], [1], [0, 0, 1, 1], [], []>} : vector<128x128xbf16>, vector<128x128xbf16>, vector<128x128xf32> -> vector<128x128xf32>
    %11 = arith.addf %5, %10 : vector<128x128xf32>
    %12 = vector.extract_strided_slice %4 {offsets = [0, 1, 0], sizes = [8, 16, 128], strides = [1, 1, 1]} : vector<10x18x128xbf16> to vector<8x16x128xbf16>
    %13 = vector.shape_cast %12 : vector<8x16x128xbf16> to vector<128x128xbf16>
    %c1 = arith.constant 1 : index
    %c0_6 = arith.constant 0 : index
    %c0_7 = arith.constant 0 : index
    %14 = vector.load %arg3[%c1, %c0_6, %c0_7] : memref<9x128x128xbf16, #tpu.memory_space<vmem>>, vector<1x128x128xbf16>
    %15 = vector.shape_cast %14 : vector<1x128x128xbf16> to vector<128x128xbf16>
    %cst_8 = arith.constant dense<0.000000e+00> : vector<128x128xf32>
    %16 = tpu.matmul %13, %15, %cst_8 {dimension_numbers = #tpu.dot_dimension_numbers<[1], [0], [0], [1], [0, 0, 1, 1], [], []>} : vector<128x128xbf16>, vector<128x128xbf16>, vector<128x128xf32> -> vector<128x128xf32>
    %17 = arith.addf %11, %16 : vector<128x128xf32>
    %18 = vector.extract_strided_slice %4 {offsets = [0, 2, 0], sizes = [8, 16, 128], strides = [1, 1, 1]} : vector<10x18x128xbf16> to vector<8x16x128xbf16>
    %19 = vector.shape_cast %18 : vector<8x16x128xbf16> to vector<128x128xbf16>
    %c2 = arith.constant 2 : index
    %c0_9 = arith.constant 0 : index
    %c0_10 = arith.constant 0 : index
    %20 = vector.load %arg3[%c2, %c0_9, %c0_10] : memref<9x128x128xbf16, #tpu.memory_space<vmem>>, vector<1x128x128xbf16>
    %21 = vector.shape_cast %20 : vector<1x128x128xbf16> to vector<128x128xbf16>
    %cst_11 = arith.constant dense<0.000000e+00> : vector<128x128xf32>
    %22 = tpu.matmul %19, %21, %cst_11 {dimension_numbers = #tpu.dot_dimension_numbers<[1], [0], [0], [1], [0, 0, 1, 1], [], []>} : vector<128x128xbf16>, vector<128x128xbf16>, vector<128x128xf32> -> vector<128x128xf32>
    %23 = arith.addf %17, %22 : vector<128x128xf32>
    %24 = vector.extract_strided_slice %4 {offsets = [1, 0, 0], sizes = [8, 16, 128], strides = [1, 1, 1]} : vector<10x18x128xbf16> to vector<8x16x128xbf16>
    %25 = vector.shape_cast %24 : vector<8x16x128xbf16> to vector<128x128xbf16>
    %c3 = arith.constant 3 : index
    %c0_12 = arith.constant 0 : index
    %c0_13 = arith.constant 0 : index
    %26 = vector.load %arg3[%c3, %c0_12, %c0_13] : memref<9x128x128xbf16, #tpu.memory_space<vmem>>, vector<1x128x128xbf16>
    %27 = vector.shape_cast %26 : vector<1x128x128xbf16> to vector<128x128xbf16>
    %cst_14 = arith.constant dense<0.000000e+00> : vector<128x128xf32>
    %28 = tpu.matmul %25, %27, %cst_14 {dimension_numbers = #tpu.dot_dimension_numbers<[1], [0], [0], [1], [0, 0, 1, 1], [], []>} : vector<128x128xbf16>, vector<128x128xbf16>, vector<128x128xf32> -> vector<128x128xf32>
    %29 = arith.addf %23, %28 : vector<128x128xf32>
    %30 = vector.extract_strided_slice %4 {offsets = [1, 1, 0], sizes = [8, 16, 128], strides = [1, 1, 1]} : vector<10x18x128xbf16> to vector<8x16x128xbf16>
    %31 = vector.shape_cast %30 : vector<8x16x128xbf16> to vector<128x128xbf16>
    %c4 = arith.constant 4 : index
    %c0_15 = arith.constant 0 : index
    %c0_16 = arith.constant 0 : index
    %32 = vector.load %arg3[%c4, %c0_15, %c0_16] : memref<9x128x128xbf16, #tpu.memory_space<vmem>>, vector<1x128x128xbf16>
    %33 = vector.shape_cast %32 : vector<1x128x128xbf16> to vector<128x128xbf16>
    %cst_17 = arith.constant dense<0.000000e+00> : vector<128x128xf32>
    %34 = tpu.matmul %31, %33, %cst_17 {dimension_numbers = #tpu.dot_dimension_numbers<[1], [0], [0], [1], [0, 0, 1, 1], [], []>} : vector<128x128xbf16>, vector<128x128xbf16>, vector<128x128xf32> -> vector<128x128xf32>
    %35 = arith.addf %29, %34 : vector<128x128xf32>
    %36 = vector.extract_strided_slice %4 {offsets = [1, 2, 0], sizes = [8, 16, 128], strides = [1, 1, 1]} : vector<10x18x128xbf16> to vector<8x16x128xbf16>
    %37 = vector.shape_cast %36 : vector<8x16x128xbf16> to vector<128x128xbf16>
    %c5 = arith.constant 5 : index
    %c0_18 = arith.constant 0 : index
    %c0_19 = arith.constant 0 : index
    %38 = vector.load %arg3[%c5, %c0_18, %c0_19] : memref<9x128x128xbf16, #tpu.memory_space<vmem>>, vector<1x128x128xbf16>
    %39 = vector.shape_cast %38 : vector<1x128x128xbf16> to vector<128x128xbf16>
    %cst_20 = arith.constant dense<0.000000e+00> : vector<128x128xf32>
    %40 = tpu.matmul %37, %39, %cst_20 {dimension_numbers = #tpu.dot_dimension_numbers<[1], [0], [0], [1], [0, 0, 1, 1], [], []>} : vector<128x128xbf16>, vector<128x128xbf16>, vector<128x128xf32> -> vector<128x128xf32>
    %41 = arith.addf %35, %40 : vector<128x128xf32>
    %42 = vector.extract_strided_slice %4 {offsets = [2, 0, 0], sizes = [8, 16, 128], strides = [1, 1, 1]} : vector<10x18x128xbf16> to vector<8x16x128xbf16>
    %43 = vector.shape_cast %42 : vector<8x16x128xbf16> to vector<128x128xbf16>
    %c6 = arith.constant 6 : index
    %c0_21 = arith.constant 0 : index
    %c0_22 = arith.constant 0 : index
    %44 = vector.load %arg3[%c6, %c0_21, %c0_22] : memref<9x128x128xbf16, #tpu.memory_space<vmem>>, vector<1x128x128xbf16>
    %45 = vector.shape_cast %44 : vector<1x128x128xbf16> to vector<128x128xbf16>
    %cst_23 = arith.constant dense<0.000000e+00> : vector<128x128xf32>
    %46 = tpu.matmul %43, %45, %cst_23 {dimension_numbers = #tpu.dot_dimension_numbers<[1], [0], [0], [1], [0, 0, 1, 1], [], []>} : vector<128x128xbf16>, vector<128x128xbf16>, vector<128x128xf32> -> vector<128x128xf32>
    %47 = arith.addf %41, %46 : vector<128x128xf32>
    %48 = vector.extract_strided_slice %4 {offsets = [2, 1, 0], sizes = [8, 16, 128], strides = [1, 1, 1]} : vector<10x18x128xbf16> to vector<8x16x128xbf16>
    %49 = vector.shape_cast %48 : vector<8x16x128xbf16> to vector<128x128xbf16>
    %c7 = arith.constant 7 : index
    %c0_24 = arith.constant 0 : index
    %c0_25 = arith.constant 0 : index
    %50 = vector.load %arg3[%c7, %c0_24, %c0_25] : memref<9x128x128xbf16, #tpu.memory_space<vmem>>, vector<1x128x128xbf16>
    %51 = vector.shape_cast %50 : vector<1x128x128xbf16> to vector<128x128xbf16>
    %cst_26 = arith.constant dense<0.000000e+00> : vector<128x128xf32>
    %52 = tpu.matmul %49, %51, %cst_26 {dimension_numbers = #tpu.dot_dimension_numbers<[1], [0], [0], [1], [0, 0, 1, 1], [], []>} : vector<128x128xbf16>, vector<128x128xbf16>, vector<128x128xf32> -> vector<128x128xf32>
    %53 = arith.addf %47, %52 : vector<128x128xf32>
    %54 = vector.extract_strided_slice %4 {offsets = [2, 2, 0], sizes = [8, 16, 128], strides = [1, 1, 1]} : vector<10x18x128xbf16> to vector<8x16x128xbf16>
    %55 = vector.shape_cast %54 : vector<8x16x128xbf16> to vector<128x128xbf16>
    %c8 = arith.constant 8 : index
    %c0_27 = arith.constant 0 : index
    %c0_28 = arith.constant 0 : index
    %56 = vector.load %arg3[%c8, %c0_27, %c0_28] : memref<9x128x128xbf16, #tpu.memory_space<vmem>>, vector<1x128x128xbf16>
    %57 = vector.shape_cast %56 : vector<1x128x128xbf16> to vector<128x128xbf16>
    %cst_29 = arith.constant dense<0.000000e+00> : vector<128x128xf32>
    %58 = tpu.matmul %55, %57, %cst_29 {dimension_numbers = #tpu.dot_dimension_numbers<[1], [0], [0], [1], [0, 0, 1, 1], [], []>} : vector<128x128xbf16>, vector<128x128xbf16>, vector<128x128xf32> -> vector<128x128xf32>
    %59 = arith.addf %53, %58 : vector<128x128xf32>
    %c0_30 = arith.constant 0 : index
    %c0_31 = arith.constant 0 : index
    %60 = vector.load %arg4[%c0_30, %c0_31] : memref<1x128xf32, #tpu.memory_space<vmem>>, vector<1x128xf32>
    %61 = vector.broadcast %60 : vector<1x128xf32> to vector<128x128xf32>
    %62 = arith.addf %59, %61 : vector<128x128xf32>
    %63 = vector.shape_cast %62 : vector<128x128xf32> to vector<8x16x128xf32>
    %64 = arith.truncf %63 : vector<8x16x128xf32> to vector<8x16x128xbf16>
    %c0_32 = arith.constant 0 : index
    %c0_33 = arith.constant 0 : index
    %c0_34 = arith.constant 0 : index
    %c0_35 = arith.constant 0 : index
    %65 = vector.load %arg5[%c0_32, %c0_33, %c0_34, %c0_35] : memref<1x8x16x128xbf16, #tpu.memory_space<vmem>>, vector<1x8x16x128xbf16>
    %66 = vector.shape_cast %65 : vector<1x8x16x128xbf16> to vector<8x16x128xbf16>
    %67 = vector.shape_cast %64 : vector<8x16x128xbf16> to vector<1x8x16x128xbf16>
    tpu.vector_store %arg5[%c0_32, %c0_33, %c0_34, %c0_35], %67 {strides = array<i32>} : memref<1x8x16x128xbf16, #tpu.memory_space<vmem>>, vector<1x8x16x128xbf16>,
    return
  }
  func.func @transform_0(%arg0: i32, %arg1: i32) -> (i32, i32, i32, i32) {
    %c0_i32 = arith.constant 0 : i32
    %c0_i32_0 = arith.constant 0 : i32
    %c0_i32_1 = arith.constant 0 : i32
    %c0_i32_2 = arith.constant 0 : i32
    return %arg0, %c0_i32, %c0_i32_0, %c0_i32_1 : i32, i32, i32, i32
  }
  func.func @transform_1(%arg0: i32, %arg1: i32) -> (i32, i32, i32) {
    %c0_i32 = arith.constant 0 : i32
    %c0_i32_0 = arith.constant 0 : i32
    %c0_i32_1 = arith.constant 0 : i32
    %c0_i32_2 = arith.constant 0 : i32
    return %c0_i32, %c0_i32_0, %c0_i32_1 : i32, i32, i32
  }
  func.func @transform_2(%arg0: i32, %arg1: i32) -> (i32, i32) {
    %c0_i32 = arith.constant 0 : i32
    %c0_i32_0 = arith.constant 0 : i32
    %c0_i32_1 = arith.constant 0 : i32
    return %c0_i32, %c0_i32_0 : i32, i32
  }
  func.func @transform_3(%arg0: i32, %arg1: i32) -> (i32, i32, i32, i32) {
    %c0_i32 = arith.constant 0 : i32
    %c0_i32_0 = arith.constant 0 : i32
    %c0_i32_1 = arith.constant 0 : i32
    return %arg0, %arg1, %c0_i32, %c0_i32_0 : i32, i32, i32, i32
  }
}

module attributes {stable_mosaic.version = 11 : i64} {
  func.func @_conv3x3_kernel(%arg0: i32, %arg1: i32, %arg2: memref<1x18x18x128xbf16, #tpu.memory_space<vmem>>, %arg3: memref<9x128x128xbf16, #tpu.memory_space<vmem>>, %arg4: memref<1x128xf32, #tpu.memory_space<vmem>>, %arg5: memref<1x8x16x128xf32, #tpu.memory_space<vmem>>) attributes {dimension_semantics = [#tpu.dimension_semantics<parallel>, #tpu.dimension_semantics<parallel>], iteration_bounds = array<i64: 2, 2>, scalar_prefetch = 0 : i64, scratch_operands = 0 : i64, tpu.core_type = #tpu.core_type<tc>, window_params = [{transform_indices = @transform_0, window_bounds = array<i64: 1, 18, 18, 128>}, {pipeline_mode = #tpu.pipeline_mode<synchronous>, transform_indices = @transform_1, window_bounds = array<i64: 9, 128, 128>}, {pipeline_mode = #tpu.pipeline_mode<synchronous>, transform_indices = @transform_2, window_bounds = array<i64: 1, 128>}, {transform_indices = @transform_3, window_bounds = array<i64: 1, 8, 16, 128>}]} {
    %c8_i32 = arith.constant 8 : i32
    %0 = arith.muli %arg1, %c8_i32 : i32
    %1 = tpu.assume_multiple %0, 8 : i32
    %c0 = arith.constant 0 : index
    %2 = arith.index_cast %1 : i32 to index
    %c0_0 = arith.constant 0 : index
    %c0_1 = arith.constant 0 : index
    %3 = vector.load %arg2[%c0, %2, %c0_0, %c0_1] : memref<1x18x18x128xbf16, #tpu.memory_space<vmem>>, vector<1x10x18x128xbf16>
    %4 = vector.shape_cast %3 : vector<1x10x18x128xbf16> to vector<10x18x128xbf16>
    %cst = arith.constant 0.000000e+00 : f32
    %5 = vector.broadcast %cst : f32 to vector<128x128xf32>
    %6 = vector.extract_strided_slice %4 {offsets = [0, 0, 0], sizes = [8, 16, 128], strides = [1, 1, 1]} : vector<10x18x128xbf16> to vector<8x16x128xbf16>
    %7 = vector.shape_cast %6 : vector<8x16x128xbf16> to vector<128x128xbf16>
    %c0_2 = arith.constant 0 : index
    %c0_3 = arith.constant 0 : index
    %c0_4 = arith.constant 0 : index
    %8 = vector.load %arg3[%c0_2, %c0_3, %c0_4] : memref<9x128x128xbf16, #tpu.memory_space<vmem>>, vector<1x128x128xbf16>
    %9 = vector.shape_cast %8 : vector<1x128x128xbf16> to vector<128x128xbf16>
    %cst_5 = arith.constant dense<0.000000e+00> : vector<128x128xf32>
    %10 = tpu.matmul %7, %9, %cst_5 {dimension_numbers = #tpu.dot_dimension_numbers<[1], [0], [0], [1], [0, 0, 1, 1], [], []>} : vector<128x128xbf16>, vector<128x128xbf16>, vector<128x128xf32> -> vector<128x128xf32>
    %11 = arith.addf %5, %10 : vector<128x128xf32>
    %12 = vector.extract_strided_slice %4 {offsets = [0, 1, 0], sizes = [8, 16, 128], strides = [1, 1, 1]} : vector<10x18x128xbf16> to vector<8x16x128xbf16>
    %13 = vector.shape_cast %12 : vector<8x16x128xbf16> to vector<128x128xbf16>
    %c1 = arith.constant 1 : index
    %c0_6 = arith.constant 0 : index
    %c0_7 = arith.constant 0 : index
    %14 = vector.load %arg3[%c1, %c0_6, %c0_7] : memref<9x128x128xbf16, #tpu.memory_space<vmem>>, vector<1x128x128xbf16>
    %15 = vector.shape_cast %14 : vector<1x128x128xbf16> to vector<128x128xbf16>
    %cst_8 = arith.constant dense<0.000000e+00> : vector<128x128xf32>
    %16 = tpu.matmul %13, %15, %cst_8 {dimension_numbers = #tpu.dot_dimension_numbers<[1], [0], [0], [1], [0, 0, 1, 1], [], []>} : vector<128x128xbf16>, vector<128x128xbf16>, vector<128x128xf32> -> vector<128x128xf32>
    %17 = arith.addf %11, %16 : vector<128x128xf32>
    %18 = vector.extract_strided_slice %4 {offsets = [0, 2, 0], sizes = [8, 16, 128], strides = [1, 1, 1]} : vector<10x18x128xbf16> to vector<8x16x128xbf16>
    %19 = vector.shape_cast %18 : vector<8x16x128xbf16> to vector<128x128xbf16>
    %c2 = arith.constant 2 : index
    %c0_9 = arith.constant 0 : index
    %c0_10 = arith.constant 0 : index
    %20 = vector.load %arg3[%c2, %c0_9, %c0_10] : memref<9x128x128xbf16, #tpu.memory_space<vmem>>, vector<1x128x128xbf16>
    %21 = vector.shape_cast %20 : vector<1x128x128xbf16> to vector<128x128xbf16>
    %cst_11 = arith.constant dense<0.000000e+00> : vector<128x128xf32>
    %22 = tpu.matmul %19, %21, %cst_11 {dimension_numbers = #tpu.dot_dimension_numbers<[1], [0], [0], [1], [0, 0, 1, 1], [], []>} : vector<128x128xbf16>, vector<128x128xbf16>, vector<128x128xf32> -> vector<128x128xf32>
    %23 = arith.addf %17, %22 : vector<128x128xf32>
    %24 = vector.extract_strided_slice %4 {offsets = [1, 0, 0], sizes = [8, 16, 128], strides = [1, 1, 1]} : vector<10x18x128xbf16> to vector<8x16x128xbf16>
    %25 = vector.shape_cast %24 : vector<8x16x128xbf16> to vector<128x128xbf16>
    %c3 = arith.constant 3 : index
    %c0_12 = arith.constant 0 : index
    %c0_13 = arith.constant 0 : index
    %26 = vector.load %arg3[%c3, %c0_12, %c0_13] : memref<9x128x128xbf16, #tpu.memory_space<vmem>>, vector<1x128x128xbf16>
    %27 = vector.shape_cast %26 : vector<1x128x128xbf16> to vector<128x128xbf16>
    %cst_14 = arith.constant dense<0.000000e+00> : vector<128x128xf32>
    %28 = tpu.matmul %25, %27, %cst_14 {dimension_numbers = #tpu.dot_dimension_numbers<[1], [0], [0], [1], [0, 0, 1, 1], [], []>} : vector<128x128xbf16>, vector<128x128xbf16>, vector<128x128xf32> -> vector<128x128xf32>
    %29 = arith.addf %23, %28 : vector<128x128xf32>
    %30 = vector.extract_strided_slice %4 {offsets = [1, 1, 0], sizes = [8, 16, 128], strides = [1, 1, 1]} : vector<10x18x128xbf16> to vector<8x16x128xbf16>
    %31 = vector.shape_cast %30 : vector<8x16x128xbf16> to vector<128x128xbf16>
    %c4 = arith.constant 4 : index
    %c0_15 = arith.constant 0 : index
    %c0_16 = arith.constant 0 : index
    %32 = vector.load %arg3[%c4, %c0_15, %c0_16] : memref<9x128x128xbf16, #tpu.memory_space<vmem>>, vector<1x128x128xbf16>
    %33 = vector.shape_cast %32 : vector<1x128x128xbf16> to vector<128x128xbf16>
    %cst_17 = arith.constant dense<0.000000e+00> : vector<128x128xf32>
    %34 = tpu.matmul %31, %33, %cst_17 {dimension_numbers = #tpu.dot_dimension_numbers<[1], [0], [0], [1], [0, 0, 1, 1], [], []>} : vector<128x128xbf16>, vector<128x128xbf16>, vector<128x128xf32> -> vector<128x128xf32>
    %35 = arith.addf %29, %34 : vector<128x128xf32>
    %36 = vector.extract_strided_slice %4 {offsets = [1, 2, 0], sizes = [8, 16, 128], strides = [1, 1, 1]} : vector<10x18x128xbf16> to vector<8x16x128xbf16>
    %37 = vector.shape_cast %36 : vector<8x16x128xbf16> to vector<128x128xbf16>
    %c5 = arith.constant 5 : index
    %c0_18 = arith.constant 0 : index
    %c0_19 = arith.constant 0 : index
    %38 = vector.load %arg3[%c5, %c0_18, %c0_19] : memref<9x128x128xbf16, #tpu.memory_space<vmem>>, vector<1x128x128xbf16>
    %39 = vector.shape_cast %38 : vector<1x128x128xbf16> to vector<128x128xbf16>
    %cst_20 = arith.constant dense<0.000000e+00> : vector<128x128xf32>
    %40 = tpu.matmul %37, %39, %cst_20 {dimension_numbers = #tpu.dot_dimension_numbers<[1], [0], [0], [1], [0, 0, 1, 1], [], []>} : vector<128x128xbf16>, vector<128x128xbf16>, vector<128x128xf32> -> vector<128x128xf32>
    %41 = arith.addf %35, %40 : vector<128x128xf32>
    %42 = vector.extract_strided_slice %4 {offsets = [2, 0, 0], sizes = [8, 16, 128], strides = [1, 1, 1]} : vector<10x18x128xbf16> to vector<8x16x128xbf16>
    %43 = vector.shape_cast %42 : vector<8x16x128xbf16> to vector<128x128xbf16>
    %c6 = arith.constant 6 : index
    %c0_21 = arith.constant 0 : index
    %c0_22 = arith.constant 0 : index
    %44 = vector.load %arg3[%c6, %c0_21, %c0_22] : memref<9x128x128xbf16, #tpu.memory_space<vmem>>, vector<1x128x128xbf16>
    %45 = vector.shape_cast %44 : vector<1x128x128xbf16> to vector<128x128xbf16>
    %cst_23 = arith.constant dense<0.000000e+00> : vector<128x128xf32>
    %46 = tpu.matmul %43, %45, %cst_23 {dimension_numbers = #tpu.dot_dimension_numbers<[1], [0], [0], [1], [0, 0, 1, 1], [], []>} : vector<128x128xbf16>, vector<128x128xbf16>, vector<128x128xf32> -> vector<128x128xf32>
    %47 = arith.addf %41, %46 : vector<128x128xf32>
    %48 = vector.extract_strided_slice %4 {offsets = [2, 1, 0], sizes = [8, 16, 128], strides = [1, 1, 1]} : vector<10x18x128xbf16> to vector<8x16x128xbf16>
    %49 = vector.shape_cast %48 : vector<8x16x128xbf16> to vector<128x128xbf16>
    %c7 = arith.constant 7 : index
    %c0_24 = arith.constant 0 : index
    %c0_25 = arith.constant 0 : index
    %50 = vector.load %arg3[%c7, %c0_24, %c0_25] : memref<9x128x128xbf16, #tpu.memory_space<vmem>>, vector<1x128x128xbf16>
    %51 = vector.shape_cast %50 : vector<1x128x128xbf16> to vector<128x128xbf16>
    %cst_26 = arith.constant dense<0.000000e+00> : vector<128x128xf32>
    %52 = tpu.matmul %49, %51, %cst_26 {dimension_numbers = #tpu.dot_dimension_numbers<[1], [0], [0], [1], [0, 0, 1, 1], [], []>} : vector<128x128xbf16>, vector<128x128xbf16>, vector<128x128xf32> -> vector<128x128xf32>
    %53 = arith.addf %47, %52 : vector<128x128xf32>
    %54 = vector.extract_strided_slice %4 {offsets = [2, 2, 0], sizes = [8, 16, 128], strides = [1, 1, 1]} : vector<10x18x128xbf16> to vector<8x16x128xbf16>
    %55 = vector.shape_cast %54 : vector<8x16x128xbf16> to vector<128x128xbf16>
    %c8 = arith.constant 8 : index
    %c0_27 = arith.constant 0 : index
    %c0_28 = arith.constant 0 : index
    %56 = vector.load %arg3[%c8, %c0_27, %c0_28] : memref<9x128x128xbf16, #tpu.memory_space<vmem>>, vector<1x128x128xbf16>
    %57 = vector.shape_cast %56 : vector<1x128x128xbf16> to vector<128x128xbf16>
    %cst_29 = arith.constant dense<0.000000e+00> : vector<128x128xf32>
    %58 = tpu.matmul %55, %57, %cst_29 {dimension_numbers = #tpu.dot_dimension_numbers<[1], [0], [0], [1], [0, 0, 1, 1], [], []>} : vector<128x128xbf16>, vector<128x128xbf16>, vector<128x128xf32> -> vector<128x128xf32>
    %59 = arith.addf %53, %58 : vector<128x128xf32>
    %c0_30 = arith.constant 0 : index
    %c0_31 = arith.constant 0 : index
    %60 = vector.load %arg4[%c0_30, %c0_31] : memref<1x128xf32, #tpu.memory_space<vmem>>, vector<1x128xf32>
    %61 = vector.broadcast %60 : vector<1x128xf32> to vector<128x128xf32>
    %62 = arith.addf %59, %61 : vector<128x128xf32>
    %63 = vector.shape_cast %62 : vector<128x128xf32> to vector<8x16x128xf32>
    %c0_32 = arith.constant 0 : index
    %c0_33 = arith.constant 0 : index
    %c0_34 = arith.constant 0 : index
    %c0_35 = arith.constant 0 : index
    %64 = vector.load %arg5[%c0_32, %c0_33, %c0_34, %c0_35] : memref<1x8x16x128xf32, #tpu.memory_space<vmem>>, vector<1x8x16x128xf32>
    %65 = vector.shape_cast %64 : vector<1x8x16x128xf32> to vector<8x16x128xf32>
    %66 = vector.shape_cast %63 : vector<8x16x128xf32> to vector<1x8x16x128xf32>
    tpu.vector_store %arg5[%c0_32, %c0_33, %c0_34, %c0_35], %66 {strides = array<i32>} : memref<1x8x16x128xf32, #tpu.memory_space<vmem>>, vector<1x8x16x128xf32>,
    return
  }
  func.func @transform_0(%arg0: i32, %arg1: i32) -> (i32, i32, i32, i32) {
    %c0_i32 = arith.constant 0 : i32
    %c0_i32_0 = arith.constant 0 : i32
    %c0_i32_1 = arith.constant 0 : i32
    %c0_i32_2 = arith.constant 0 : i32
    return %arg0, %c0_i32, %c0_i32_0, %c0_i32_1 : i32, i32, i32, i32
  }
  func.func @transform_1(%arg0: i32, %arg1: i32) -> (i32, i32, i32) {
    %c0_i32 = arith.constant 0 : i32
    %c0_i32_0 = arith.constant 0 : i32
    %c0_i32_1 = arith.constant 0 : i32
    %c0_i32_2 = arith.constant 0 : i32
    return %c0_i32, %c0_i32_0, %c0_i32_1 : i32, i32, i32
  }
  func.func @transform_2(%arg0: i32, %arg1: i32) -> (i32, i32) {
    %c0_i32 = arith.constant 0 : i32
    %c0_i32_0 = arith.constant 0 : i32
    %c0_i32_1 = arith.constant 0 : i32
    return %c0_i32, %c0_i32_0 : i32, i32
  }
  func.func @transform_3(%arg0: i32, %arg1: i32) -> (i32, i32, i32, i32) {
    %c0_i32 = arith.constant 0 : i32
    %c0_i32_0 = arith.constant 0 : i32
    %c0_i32_1 = arith.constant 0 : i32
    return %arg0, %arg1, %c0_i32, %c0_i32_0 : i32, i32, i32, i32
  }
}

</mosaic_0001>

<llo_original>
// kernel: _lambda_.6
$region0: #{_lambda_.6}
  #allocation0 [shape = 'u32[]', space=smem, size = 0x4, offset = 0x4, fixed_abs, tag = 'smem constant byte address 0x4 - core index']
  #allocation1 [shape = 'u32[144,128]{1,0:T(1,128)}', space=vmem, size = 0x12000, scoped, tag = 'internal scratch']
  #allocation2 [shape = 'f32[1,1]{1,0:T(1,128)S(1)}', space=vmem, size = 0x200, scoped, tag = 'scoped memory for _lambda_.6']
  %s0 = inlined_call_operand.vmem [shape: bf16[128,128], index: 0, kind: input, shape index: {}]
  %s1 = inlined_call_operand.vmem [shape: bf16[128,128], index: 1, kind: input, shape index: {}]
  %s2 = inlined_call_operand.vmem [shape: bf16[128,128], index: 2, kind: input, shape index: {}]
  %s3 = inlined_call_operand.vmem [shape: bf16[128,128], index: 3, kind: input, shape index: {}]
  %s4 = inlined_call_operand.vmem [shape: f32[1,128], index: 4, kind: input, shape index: {}]
  %s5 = inlined_call_operand.vmem [shape: f32[1,128], index: 5, kind: input, shape index: {}]
  %s6 = inlined_call_operand.<no memory space> [shape: f32[1,1], index: 6, kind: input, shape index: {}]
  %s7 = inlined_call_operand.vmem [shape: f32[128,1], index: 7, kind: output, shape index: {}]
  %s8 = sld [smem:[#allocation0]]
  $region38: #{_lambda_.6} parent=0
    _
  %s10 = ssub.s32 1, %s8
  %s11 = scalar_select 0, %s10, %s8
  %v12 = vstv %s6
  %13 = vst [vmem:[#allocation2] sm:$0x1] %v12
  // Predicated region
  $region2: #{_lambda_.6} parent=0 // pred_check
    _
  $region3: #{_lambda_.6} parent=0 // pred_check_branch
    %15 = sbr.rel (0) target = $region5
  $region4: #{_lambda_.6} parent=0 // pred_region
    _
  $region5: #{_lambda_.6} parent=0 // pred_fallthru
    _
  // Predicated region
  $region6: #{_lambda_.6} parent=0 // pred_check
    _
  $region7: #{_lambda_.6} parent=0 // pred_check_branch
    %17 = sbr.rel (0) target = $region9
  $region8: #{_lambda_.6} parent=0 // pred_region
    _
  $region9: #{_lambda_.6} parent=0 // pred_fallthru
    _
  // Predicated region
  $region10: #{_lambda_.6} parent=0 // pred_check
    _
  $region11: #{_lambda_.6} parent=0 // pred_check_branch
    %19 = sbr.rel (0) target = $region13
  $region12: #{_lambda_.6} parent=0 // pred_region
    _
  $region13: #{_lambda_.6} parent=0 // pred_fallthru
    _
  // Predicated region
  $region14: #{_lambda_.6} parent=0 // pred_check
    _
  $region15: #{_lambda_.6} parent=0 // pred_check_branch
    %21 = sbr.rel (0) target = $region17
  $region16: #{_lambda_.6} parent=0 // pred_region
    _
  $region17: #{_lambda_.6} parent=0 // pred_fallthru
    _
  // Predicated region
  $region18: #{_lambda_.6} parent=0 // pred_check
    _
  $region19: #{_lambda_.6} parent=0 // pred_check_branch
    %23 = sbr.rel (0) target = $region21
  $region20: #{_lambda_.6} parent=0 // pred_region
    _
  $region21: #{_lambda_.6} parent=0 // pred_fallthru
    _
  // Predicated region
  $region22: #{_lambda_.6} parent=0 // pred_check
    _
  $region23: #{_lambda_.6} parent=0 // pred_check_branch
    %25 = sbr.rel (0) target = $region25
  $region24: #{_lambda_.6} parent=0 // pred_region
    _
  $region25: #{_lambda_.6} parent=0 // pred_fallthru
    _
  // Predicated region
  $region26: #{_lambda_.6} parent=0 // pred_check
    _
  $region27: #{_lambda_.6} parent=0 // pred_check_branch
    %27 = sbr.rel (0) target = $region29
  $region28: #{_lambda_.6} parent=0 // pred_region
    _
  $region29: #{_lambda_.6} parent=0 // pred_fallthru
    _
  %v29 = vld [vmem:[%s0] sm:$0xf]
  %v30 = vld [vmem:[%s0 + $0x4] sm:$0xf]
  %v31 = vld [vmem:[%s0 + $0x8] sm:$0xf]
  %v32 = vld [vmem:[%s0 + $0xc] sm:$0xf]
  %v33 = vld [vmem:[%s0 + $0x10] sm:$0xf]
  %v34 = vld [vmem:[%s0 + $0x14] sm:$0xf]
  %v35 = vld [vmem:[%s0 + $0x18] sm:$0xf]
  %v36 = vld [vmem:[%s0 + $0x1c] sm:$0xf]
  %v37 = vld [vmem:[%s0 + $0x20] sm:$0xf]
  %v38 = vld [vmem:[%s0 + $0x24] sm:$0xf]
  %v39 = vld [vmem:[%s0 + $0x28] sm:$0xf]
  %v40 = vld [vmem:[%s0 + $0x2c] sm:$0xf]
  %v41 = vld [vmem:[%s0 + $0x30] sm:$0xf]
  %v42 = vld [vmem:[%s0 + $0x34] sm:$0xf]
  %v43 = vld [vmem:[%s0 + $0x38] sm:$0xf]
  %v44 = vld [vmem:[%s0 + $0x3c] sm:$0xf]
  %v45 = vld [vmem:[%s1] sm:$0xf]
  %v46 = vld [vmem:[%s1 + $0x4] sm:$0xf]
  %v47 = vld [vmem:[%s1 + $0x8] sm:$0xf]
  %v48 = vld [vmem:[%s1 + $0xc] sm:$0xf]
  %v49 = vld [vmem:[%s1 + $0x10] sm:$0xf]
  %v50 = vld [vmem:[%s1 + $0x14] sm:$0xf]
  %v51 = vld [vmem:[%s1 + $0x18] sm:$0xf]
  %v52 = vld [vmem:[%s1 + $0x1c] sm:$0xf]
  %v53 = vld [vmem:[%s1 + $0x20] sm:$0xf]
  %v54 = vld [vmem:[%s1 + $0x24] sm:$0xf]
  %v55 = vld [vmem:[%s1 + $0x28] sm:$0xf]
  %v56 = vld [vmem:[%s1 + $0x2c] sm:$0xf]
  %v57 = vld [vmem:[%s1 + $0x30] sm:$0xf]
  %v58 = vld [vmem:[%s1 + $0x34] sm:$0xf]
  %v59 = vld [vmem:[%s1 + $0x38] sm:$0xf]
  %v60 = vld [vmem:[%s1 + $0x3c] sm:$0xf]
  %v61 = vld [vmem:[%s2] sm:$0xf]
  %v62 = vld [vmem:[%s2 + $0x4] sm:$0xf]
  %v63 = vld [vmem:[%s2 + $0x8] sm:$0xf]
  %v64 = vld [vmem:[%s2 + $0xc] sm:$0xf]
  %v65 = vld [vmem:[%s2 + $0x10] sm:$0xf]
  %v66 = vld [vmem:[%s2 + $0x14] sm:$0xf]
  %v67 = vld [vmem:[%s2 + $0x18] sm:$0xf]
  %v68 = vld [vmem:[%s2 + $0x1c] sm:$0xf]
  %v69 = vld [vmem:[%s2 + $0x20] sm:$0xf]
  %v70 = vld [vmem:[%s2 + $0x24] sm:$0xf]
  %v71 = vld [vmem:[%s2 + $0x28] sm:$0xf]
  %v72 = vld [vmem:[%s2 + $0x2c] sm:$0xf]
  %v73 = vld [vmem:[%s2 + $0x30] sm:$0xf]
  %v74 = vld [vmem:[%s2 + $0x34] sm:$0xf]
  %v75 = vld [vmem:[%s2 + $0x38] sm:$0xf]
  %v76 = vld [vmem:[%s2 + $0x3c] sm:$0xf]
  %v77 = vld [vmem:[%s3] sm:$0xf]
  %v78 = vld [vmem:[%s3 + $0x4] sm:$0xf]
  %v79 = vld [vmem:[%s3 + $0x8] sm:$0xf]
  %v80 = vld [vmem:[%s3 + $0xc] sm:$0xf]
  %v81 = vld [vmem:[%s3 + $0x10] sm:$0xf]
  %v82 = vld [vmem:[%s3 + $0x14] sm:$0xf]
  %v83 = vld [vmem:[%s3 + $0x18] sm:$0xf]
  %v84 = vld [vmem:[%s3 + $0x1c] sm:$0xf]
  %v85 = vld [vmem:[%s3 + $0x20] sm:$0xf]
  %v86 = vld [vmem:[%s3 + $0x24] sm:$0xf]
  %v87 = vld [vmem:[%s3 + $0x28] sm:$0xf]
  %v88 = vld [vmem:[%s3 + $0x2c] sm:$0xf]
  %v89 = vld [vmem:[%s3 + $0x30] sm:$0xf]
  %v90 = vld [vmem:[%s3 + $0x34] sm:$0xf]
  %v91 = vld [vmem:[%s3 + $0x38] sm:$0xf]
  %v92 = vld [vmem:[%s3 + $0x3c] sm:$0xf]
  %v109 = vunpack.c.l.b16 %v61
  %v110 = vunpack.c.l.b16 %v62
  %v111 = vunpack.c.l.b16 %v63
  %v112 = vunpack.c.l.b16 %v64
  %v113 = vunpack.c.l.b16 %v65
  %v114 = vunpack.c.l.b16 %v66
  %v115 = vunpack.c.l.b16 %v67
  %v116 = vunpack.c.l.b16 %v68
  %v117 = vunpack.c.l.b16 %v69
  %v118 = vunpack.c.l.b16 %v70
  %v119 = vunpack.c.l.b16 %v71
  %v120 = vunpack.c.l.b16 %v72
  %v121 = vunpack.c.l.b16 %v73
  %v122 = vunpack.c.l.b16 %v74
  %v123 = vunpack.c.l.b16 %v75
  %v124 = vunpack.c.l.b16 %v76
  %v125 = vpack.c.b16 %v110, %v109
  %v126 = vpack.c.b16 %v112, %v111
  %v127 = vpack.c.b16 %v114, %v113
  %v128 = vpack.c.b16 %v116, %v115
  %v129 = vpack.c.b16 %v118, %v117
  %v130 = vpack.c.b16 %v120, %v119
  %v131 = vpack.c.b16 %v122, %v121
  %v132 = vpack.c.b16 %v124, %v123
  %v157 = vunpack.c.l.b16 %v77
  %v158 = vunpack.c.l.b16 %v78
  %v159 = vunpack.c.l.b16 %v79
  %v160 = vunpack.c.l.b16 %v80
  %v161 = vunpack.c.l.b16 %v81
  %v162 = vunpack.c.l.b16 %v82
  %v163 = vunpack.c.l.b16 %v83
  %v164 = vunpack.c.l.b16 %v84
  %v165 = vunpack.c.l.b16 %v85
  %v166 = vunpack.c.l.b16 %v86
  %v167 = vunpack.c.l.b16 %v87
  %v168 = vunpack.c.l.b16 %v88
  %v169 = vunpack.c.l.b16 %v89
  %v170 = vunpack.c.l.b16 %v90
  %v171 = vunpack.c.l.b16 %v91
  %v172 = vunpack.c.l.b16 %v92
  %v173 = vpack.c.b16 %v158, %v157
  %v174 = vpack.c.b16 %v160, %v159
  %v175 = vpack.c.b16 %v162, %v161
  %v176 = vpack.c.b16 %v164, %v163
  %v177 = vpack.c.b16 %v166, %v165
  %v178 = vpack.c.b16 %v168, %v167
  %v179 = vpack.c.b16 %v170, %v169
  %v180 = vpack.c.b16 %v172, %v171
  %189 = vmatprep.subr.bf16.mxu0 0
  %190 = vmatpush1.bf16.msra.mxu0 %v173
  %191 = vmatprep.subr.bf16.mxu0 0
  %192 = vmatpush1.bf16.msra.mxu0 %v174
  %193 = vmatprep.subr.bf16.mxu0 0
  %194 = vmatpush1.bf16.msra.mxu0 %v175
  %195 = vmatprep.subr.bf16.mxu0 0
  %196 = vmatpush1.bf16.msra.mxu0 %v176
  %197 = vmatprep.subr.bf16.mxu0 0
  %198 = vmatpush1.bf16.msra.mxu0 %v177
  %199 = vmatprep.subr.bf16.mxu0 0
  %200 = vmatpush1.bf16.msra.mxu0 %v178
  %201 = vmatprep.subr.bf16.mxu0 0
  %202 = vmatpush1.bf16.msra.mxu0 %v179
  %203 = vmatprep.subr.bf16.mxu0 0
  %204 = vmatpush1.bf16.msra.mxu0 %v180
  %205 = vmatprep.subr.bf16.mxu0 0
  %206 = vmatpush1.bf16.msra.mxu0 0
  %207 = vmatprep.subr.bf16.mxu0 0
  %208 = vmatpush1.bf16.msra.mxu0 0
  %209 = vmatprep.subr.bf16.mxu0 0
  %210 = vmatpush1.bf16.msra.mxu0 0
  %211 = vmatprep.subr.bf16.mxu0 0
  %212 = vmatpush1.bf16.msra.mxu0 0
  %213 = vmatprep.subr.bf16.mxu0 0
  %214 = vmatpush1.bf16.msra.mxu0 0
  %215 = vmatprep.subr.bf16.mxu0 0
  %216 = vmatpush1.bf16.msra.mxu0 0
  %217 = vmatprep.subr.bf16.mxu0 0
  %218 = vmatpush1.bf16.msra.mxu0 0
  %219 = vmatprep.subr.bf16.mxu0 0
  %220 = vmatpush1.bf16.msra.mxu0 0
  %221 = vmatprep.mubr.bf16.mxu0 0
  %222 = vmatmul.mubr.bf16.gmra.mrb[0].mxu0 %v125
  %v223 = vpop.f32.mrb[0].mxu0
  %v224 = vadd.f32 0.0, %v223
  %v225 = vpop.f32.mrb[0].mxu0
  %v226 = vpop.f32.mrb[0].mxu0
  %v227 = vadd.f32 0.0, %v226
  %v228 = vpop.f32.mrb[0].mxu0
  %229 = vmatprep.mubr.bf16.mxu0 0
  %230 = vmatmul.mubr.bf16.gmra.mrb[0].mxu0 %v126
  %v231 = vpop.f32.mrb[0].mxu0
  %v232 = vadd.f32 0.0, %v231
  %v233 = vpop.f32.mrb[0].mxu0
  %v234 = vpop.f32.mrb[0].mxu0
  %v235 = vadd.f32 0.0, %v234
  %v236 = vpop.f32.mrb[0].mxu0
  %237 = vmatprep.mubr.bf16.mxu0 0
  %238 = vmatmul.mubr.bf16.gmra.mrb[0].mxu0 %v127
  %v239 = vpop.f32.mrb[0].mxu0
  %v240 = vadd.f32 0.0, %v239
  %v241 = vpop.f32.mrb[0].mxu0
  %v242 = vpop.f32.mrb[0].mxu0
  %v243 = vadd.f32 0.0, %v242
  %v244 = vpop.f32.mrb[0].mxu0
  %245 = vmatprep.mubr.bf16.mxu0 0
  %246 = vmatmul.mubr.bf16.gmra.mrb[0].mxu0 %v128
  %v247 = vpop.f32.mrb[0].mxu0
  %v248 = vadd.f32 0.0, %v247
  %v249 = vpop.f32.mrb[0].mxu0
  %v250 = vpop.f32.mrb[0].mxu0
  %v251 = vadd.f32 0.0, %v250
  %v252 = vpop.f32.mrb[0].mxu0
  %253 = vmatprep.mubr.bf16.mxu0 0
  %254 = vmatmul.mubr.bf16.gmra.mrb[0].mxu0 %v129
  %v255 = vpop.f32.mrb[0].mxu0
  %v256 = vadd.f32 0.0, %v255
  %v257 = vpop.f32.mrb[0].mxu0
  %v258 = vpop.f32.mrb[0].mxu0
  %v259 = vadd.f32 0.0, %v258
  %v260 = vpop.f32.mrb[0].mxu0
  %261 = vmatprep.mubr.bf16.mxu0 0
  %262 = vmatmul.mubr.bf16.gmra.mrb[0].mxu0 %v130
  %v263 = vpop.f32.mrb[0].mxu0
  %v264 = vadd.f32 0.0, %v263
  %v265 = vpop.f32.mrb[0].mxu0
  %v266 = vpop.f32.mrb[0].mxu0
  %v267 = vadd.f32 0.0, %v266
  %v268 = vpop.f32.mrb[0].mxu0
  %269 = vmatprep.mubr.bf16.mxu0 0
  %270 = vmatmul.mubr.bf16.gmra.mrb[0].mxu0 %v131
  %v271 = vpop.f32.mrb[0].mxu0
  %v272 = vadd.f32 0.0, %v271
  %v273 = vpop.f32.mrb[0].mxu0
  %v274 = vpop.f32.mrb[0].mxu0
  %v275 = vadd.f32 0.0, %v274
  %v276 = vpop.f32.mrb[0].mxu0
  %277 = vmatprep.mubr.bf16.mxu0 0
  %278 = vmatmul.mubr.bf16.gmra.mrb[0].mxu0 %v132
  %v279 = vpop.f32.mrb[0].mxu0
  %v280 = vadd.f32 0.0, %v279
  %v281 = vpop.f32.mrb[0].mxu0
  %v282 = vpop.f32.mrb[0].mxu0
  %v283 = vadd.f32 0.0, %v282
  %v284 = vpop.f32.mrb[0].mxu0
  %285 = vdwg.mxu0
  %v302 = vunpack.c.l.b16 %v29
  %v303 = vunpack.c.l.b16 %v30
  %v304 = vunpack.c.l.b16 %v31
  %v305 = vunpack.c.l.b16 %v32
  %v306 = vunpack.c.l.b16 %v33
  %v307 = vunpack.c.l.b16 %v34
  %v308 = vunpack.c.l.b16 %v35
  %v309 = vunpack.c.l.b16 %v36
  %v310 = vunpack.c.l.b16 %v37
  %v311 = vunpack.c.l.b16 %v38
  %v312 = vunpack.c.l.b16 %v39
  %v313 = vunpack.c.l.b16 %v40
  %v314 = vunpack.c.l.b16 %v41
  %v315 = vunpack.c.l.b16 %v42
  %v316 = vunpack.c.l.b16 %v43
  %v317 = vunpack.c.l.b16 %v44
  %v318 = vpack.c.b16 %v303, %v302
  %v319 = vpack.c.b16 %v305, %v304
  %v320 = vpack.c.b16 %v307, %v306
  %v321 = vpack.c.b16 %v309, %v308
  %v322 = vpack.c.b16 %v311, %v310
  %v323 = vpack.c.b16 %v313, %v312
  %v324 = vpack.c.b16 %v315, %v314
  %v325 = vpack.c.b16 %v317, %v316
  %v350 = vunpack.c.l.b16 %v45
  %v351 = vunpack.c.l.b16 %v46
  %v352 = vunpack.c.l.b16 %v47
  %v353 = vunpack.c.l.b16 %v48
  %v354 = vunpack.c.l.b16 %v49
  %v355 = vunpack.c.l.b16 %v50
  %v356 = vunpack.c.l.b16 %v51
  %v357 = vunpack.c.l.b16 %v52
  %v358 = vunpack.c.l.b16 %v53
  %v359 = vunpack.c.l.b16 %v54
  %v360 = vunpack.c.l.b16 %v55
  %v361 = vunpack.c.l.b16 %v56
  %v362 = vunpack.c.l.b16 %v57
  %v363 = vunpack.c.l.b16 %v58
  %v364 = vunpack.c.l.b16 %v59
  %v365 = vunpack.c.l.b16 %v60
  %v366 = vpack.c.b16 %v351, %v350
  %v367 = vpack.c.b16 %v353, %v352
  %v368 = vpack.c.b16 %v355, %v354
  %v369 = vpack.c.b16 %v357, %v356
  %v370 = vpack.c.b16 %v359, %v358
  %v371 = vpack.c.b16 %v361, %v360
  %v372 = vpack.c.b16 %v363, %v362
  %v373 = vpack.c.b16 %v365, %v364
  %382 = vmatprep.subr.bf16.mxu0 0
  %383 = vmatpush1.bf16.msra.mxu0 %v366
  %384 = vmatprep.subr.bf16.mxu0 0
  %385 = vmatpush1.bf16.msra.mxu0 %v367
  %386 = vmatprep.subr.bf16.mxu0 0
  %387 = vmatpush1.bf16.msra.mxu0 %v368
  %388 = vmatprep.subr.bf16.mxu0 0
  %389 = vmatpush1.bf16.msra.mxu0 %v369
  %390 = vmatprep.subr.bf16.mxu0 0
  %391 = vmatpush1.bf16.msra.mxu0 %v370
  %392 = vmatprep.subr.bf16.mxu0 0
  %393 = vmatpush1.bf16.msra.mxu0 %v371
  %394 = vmatprep.subr.bf16.mxu0 0
  %395 = vmatpush1.bf16.msra.mxu0 %v372
  %396 = vmatprep.subr.bf16.mxu0 0
  %397 = vmatpush1.bf16.msra.mxu0 %v373
  %398 = vmatprep.subr.bf16.mxu0 0
  %399 = vmatpush1.bf16.msra.mxu0 0
  %400 = vmatprep.subr.bf16.mxu0 0
  %401 = vmatpush1.bf16.msra.mxu0 0
  %402 = vmatprep.subr.bf16.mxu0 0
  %403 = vmatpush1.bf16.msra.mxu0 0
  %404 = vmatprep.subr.bf16.mxu0 0
  %405 = vmatpush1.bf16.msra.mxu0 0
  %406 = vmatprep.subr.bf16.mxu0 0
  %407 = vmatpush1.bf16.msra.mxu0 0
  %408 = vmatprep.subr.bf16.mxu0 0
  %409 = vmatpush1.bf16.msra.mxu0 0
  %410 = vmatprep.subr.bf16.mxu0 0
  %411 = vmatpush1.bf16.msra.mxu0 0
  %412 = vmatprep.subr.bf16.mxu0 0
  %413 = vmatpush1.bf16.msra.mxu0 0
  %414 = vmatprep.mubr.bf16.mxu0 0
  %415 = vmatmul.mubr.bf16.gmra.mrb[0].mxu0 %v318
  %v416 = vpop.f32.mrb[0].mxu0
  %v417 = vadd.f32 %v224, %v416
  %v418 = vpop.f32.mrb[0].mxu0
  %v419 = vpop.f32.mrb[0].mxu0
  %v420 = vadd.f32 %v227, %v419
  %v421 = vpop.f32.mrb[0].mxu0
  %422 = vmatprep.mubr.bf16.mxu0 0
  %423 = vmatmul.mubr.bf16.gmra.mrb[0].mxu0 %v319
  %v424 = vpop.f32.mrb[0].mxu0
  %v425 = vadd.f32 %v232, %v424
  %v426 = vpop.f32.mrb[0].mxu0
  %v427 = vpop.f32.mrb[0].mxu0
  %v428 = vadd.f32 %v235, %v427
  %v429 = vpop.f32.mrb[0].mxu0
  %430 = vmatprep.mubr.bf16.mxu0 0
  %431 = vmatmul.mubr.bf16.gmra.mrb[0].mxu0 %v320
  %v432 = vpop.f32.mrb[0].mxu0
  %v433 = vadd.f32 %v240, %v432
  %v434 = vpop.f32.mrb[0].mxu0
  %v435 = vpop.f32.mrb[0].mxu0
  %v436 = vadd.f32 %v243, %v435
  %v437 = vpop.f32.mrb[0].mxu0
  %438 = vmatprep.mubr.bf16.mxu0 0
  %439 = vmatmul.mubr.bf16.gmra.mrb[0].mxu0 %v321
  %v440 = vpop.f32.mrb[0].mxu0
  %v441 = vadd.f32 %v248, %v440
  %v442 = vpop.f32.mrb[0].mxu0
  %v443 = vpop.f32.mrb[0].mxu0
  %v444 = vadd.f32 %v251, %v443
  %v445 = vpop.f32.mrb[0].mxu0
  %446 = vmatprep.mubr.bf16.mxu0 0
  %447 = vmatmul.mubr.bf16.gmra.mrb[0].mxu0 %v322
  %v448 = vpop.f32.mrb[0].mxu0
  %v449 = vadd.f32 %v256, %v448
  %v450 = vpop.f32.mrb[0].mxu0
  %v451 = vpop.f32.mrb[0].mxu0
  %v452 = vadd.f32 %v259, %v451
  %v453 = vpop.f32.mrb[0].mxu0
  %454 = vmatprep.mubr.bf16.mxu0 0
  %455 = vmatmul.mubr.bf16.gmra.mrb[0].mxu0 %v323
  %v456 = vpop.f32.mrb[0].mxu0
  %v457 = vadd.f32 %v264, %v456
  %v458 = vpop.f32.mrb[0].mxu0
  %v459 = vpop.f32.mrb[0].mxu0
  %v460 = vadd.f32 %v267, %v459
  %v461 = vpop.f32.mrb[0].mxu0
  %462 = vmatprep.mubr.bf16.mxu0 0
  %463 = vmatmul.mubr.bf16.gmra.mrb[0].mxu0 %v324
  %v464 = vpop.f32.mrb[0].mxu0
  %v465 = vadd.f32 %v272, %v464
  %v466 = vpop.f32.mrb[0].mxu0
  %v467 = vpop.f32.mrb[0].mxu0
  %v468 = vadd.f32 %v275, %v467
  %v469 = vpop.f32.mrb[0].mxu0
  %470 = vmatprep.mubr.bf16.mxu0 0
  %471 = vmatmul.mubr.bf16.gmra.mrb[0].mxu0 %v325
  %v472 = vpop.f32.mrb[0].mxu0
  %v473 = vadd.f32 %v280, %v472
  %v474 = vpop.f32.mrb[0].mxu0
  %v475 = vpop.f32.mrb[0].mxu0
  %v476 = vadd.f32 %v283, %v475
  %v477 = vpop.f32.mrb[0].mxu0
  %478 = vdwg.mxu0
  %v479 = vld [vmem:[%s4] sm:$0x1]
  %v481 = vlaneseq
  %v482 = vshrl.u32 %v481, 7
  %v483 = vsub.s32 0, %v482
  %v484 = vrot.slane %v479, %v483
  %v486 = vadd.f32 %v417, %v484
  %v487 = vadd.f32 %v420, %v484
  %v488 = vadd.f32 %v425, %v484
  %v489 = vadd.f32 %v428, %v484
  %v490 = vadd.f32 %v433, %v484
  %v491 = vadd.f32 %v436, %v484
  %v492 = vadd.f32 %v441, %v484
  %v493 = vadd.f32 %v444, %v484
  %v494 = vadd.f32 %v449, %v484
  %v495 = vadd.f32 %v452, %v484
  %v496 = vadd.f32 %v457, %v484
  %v497 = vadd.f32 %v460, %v484
  %v498 = vadd.f32 %v465, %v484
  %v499 = vadd.f32 %v468, %v484
  %v500 = vadd.f32 %v473, %v484
  %v501 = vadd.f32 %v476, %v484
  %v502 = vmax.f32 %v486, 0.0
  %v503 = vmax.f32 %v487, 0.0
  %v504 = vmax.f32 %v488, 0.0
  %v505 = vmax.f32 %v489, 0.0
  %v506 = vmax.f32 %v490, 0.0
  %v507 = vmax.f32 %v491, 0.0
  %v508 = vmax.f32 %v492, 0.0
  %v509 = vmax.f32 %v493, 0.0
  %v510 = vmax.f32 %v494, 0.0
  %v511 = vmax.f32 %v495, 0.0
  %v512 = vmax.f32 %v496, 0.0
  %v513 = vmax.f32 %v497, 0.0
  %v514 = vmax.f32 %v498, 0.0
  %v515 = vmax.f32 %v499, 0.0
  %v516 = vmax.f32 %v500, 0.0
  %v517 = vmax.f32 %v501, 0.0
  %v518 = vld [vmem:[%s5] sm:$0x1]
  %v520 = vlaneseq
  %v521 = vshrl.u32 %v520, 7
  %v522 = vsub.s32 0, %v521
  %v523 = vrot.slane %v518, %v522
  %v525 = vmul.f32 %v502, %v523
  %v526 = vmul.f32 %v503, %v523
  %v527 = vmul.f32 %v504, %v523
  %v528 = vmul.f32 %v505, %v523
  %v529 = vmul.f32 %v506, %v523
  %v530 = vmul.f32 %v507, %v523
  %v531 = vmul.f32 %v508, %v523
  %v532 = vmul.f32 %v509, %v523
  %v533 = vmul.f32 %v510, %v523
  %v534 = vmul.f32 %v511, %v523
  %v535 = vmul.f32 %v512, %v523
  %v536 = vmul.f32 %v513, %v523
  %v537 = vmul.f32 %v514, %v523
  %v538 = vmul.f32 %v515, %v523
  %v539 = vmul.f32 %v516, %v523
  %v540 = vmul.f32 %v517, %v523
  %541 = vadd.xlane.f32.xlu0 %v525
  %v542 = vpop.xlane.xlu0 %541
  %543 = vadd.xlane.f32.xlu0 %v526
  %v544 = vpop.xlane.xlu0 %543
  %545 = vadd.xlane.f32.xlu0 %v527
  %v546 = vpop.xlane.xlu0 %545
  %547 = vadd.xlane.f32.xlu0 %v528
  %v548 = vpop.xlane.xlu0 %547
  %549 = vadd.xlane.f32.xlu0 %v529
  %v550 = vpop.xlane.xlu0 %549
  %551 = vadd.xlane.f32.xlu0 %v530
  %v552 = vpop.xlane.xlu0 %551
  %553 = vadd.xlane.f32.xlu0 %v531
  %v554 = vpop.xlane.xlu0 %553
  %555 = vadd.xlane.f32.xlu0 %v532
  %v556 = vpop.xlane.xlu0 %555
  %557 = vadd.xlane.f32.xlu0 %v533
  %v558 = vpop.xlane.xlu0 %557
  %559 = vadd.xlane.f32.xlu0 %v534
  %v560 = vpop.xlane.xlu0 %559
  %561 = vadd.xlane.f32.xlu0 %v535
  %v562 = vpop.xlane.xlu0 %561
  %563 = vadd.xlane.f32.xlu0 %v536
  %v564 = vpop.xlane.xlu0 %563
  %565 = vadd.xlane.f32.xlu0 %v537
  %v566 = vpop.xlane.xlu0 %565
  %567 = vadd.xlane.f32.xlu0 %v538
  %v568 = vpop.xlane.xlu0 %567
  %569 = vadd.xlane.f32.xlu0 %v539
  %v570 = vpop.xlane.xlu0 %569
  %571 = vadd.xlane.f32.xlu0 %v540
  %v572 = vpop.xlane.xlu0 %571
  %v573 = vld [vmem:[#allocation2] sm:$0x1]
  %v575 = vlaneseq
  %v576 = vshrl.u32 %v575, 7
  %v577 = vsub.s32 0, %v576
  %v578 = vrot.slane %v573, %v577
  %v580 = vadd.f32 %v542, %v578
  %v581 = vadd.f32 %v544, %v578
  %v582 = vadd.f32 %v546, %v578
  %v583 = vadd.f32 %v548, %v578
  %v584 = vadd.f32 %v550, %v578
  %v585 = vadd.f32 %v552, %v578
  %v586 = vadd.f32 %v554, %v578
  %v587 = vadd.f32 %v556, %v578
  %v588 = vadd.f32 %v558, %v578
  %v589 = vadd.f32 %v560, %v578
  %v590 = vadd.f32 %v562, %v578
  %v591 = vadd.f32 %v564, %v578
  %v592 = vadd.f32 %v566, %v578
  %v593 = vadd.f32 %v568, %v578
  %v594 = vadd.f32 %v570, %v578
  %v595 = vadd.f32 %v572, %v578
  %v596 = vxor.u32 %v580, 2147483648
  %v597 = vxor.u32 %v581, 2147483648
  %v598 = vxor.u32 %v582, 2147483648
  %v599 = vxor.u32 %v583, 2147483648
  %v600 = vxor.u32 %v584, 2147483648
  %v601 = vxor.u32 %v585, 2147483648
  %v602 = vxor.u32 %v586, 2147483648
  %v603 = vxor.u32 %v587, 2147483648
  %v604 = vxor.u32 %v588, 2147483648
  %v605 = vxor.u32 %v589, 2147483648
  %v606 = vxor.u32 %v590, 2147483648
  %v607 = vxor.u32 %v591, 2147483648
  %v608 = vxor.u32 %v592, 2147483648
  %v609 = vxor.u32 %v593, 2147483648
  %v610 = vxor.u32 %v594, 2147483648
  %v611 = vxor.u32 %v595, 2147483648
  %v612 = vmul.f32 %v596, 1.442695
  %v613 = vpow.pop %v612
  %v614 = vmul.f32 %v597, 1.442695
  %v615 = vpow.pop %v614
  %v616 = vmul.f32 %v598, 1.442695
  %v617 = vpow.pop %v616
  %v618 = vmul.f32 %v599, 1.442695
  %v619 = vpow.pop %v618
  %v620 = vmul.f32 %v600, 1.442695
  %v621 = vpow.pop %v620
  %v622 = vmul.f32 %v601, 1.442695
  %v623 = vpow.pop %v622
  %v624 = vmul.f32 %v602, 1.442695
  %v625 = vpow.pop %v624
  %v626 = vmul.f32 %v603, 1.442695
  %v627 = vpow.pop %v626
  %v628 = vmul.f32 %v604, 1.442695
  %v629 = vpow.pop %v628
  %v630 = vmul.f32 %v605, 1.442695
  %v631 = vpow.pop %v630
  %v632 = vmul.f32 %v606, 1.442695
  %v633 = vpow.pop %v632
  %v634 = vmul.f32 %v607, 1.442695
  %v635 = vpow.pop %v634
  %v636 = vmul.f32 %v608, 1.442695
  %v637 = vpow.pop %v636
  %v638 = vmul.f32 %v609, 1.442695
  %v639 = vpow.pop %v638
  %v640 = vmul.f32 %v610, 1.442695
  %v641 = vpow.pop %v640
  %v642 = vmul.f32 %v611, 1.442695
  %v643 = vpow.pop %v642
  %v644 = vadd.f32 %v613, 1.0
  %v645 = vadd.f32 %v615, 1.0
  %v646 = vadd.f32 %v617, 1.0
  %v647 = vadd.f32 %v619, 1.0
  %v648 = vadd.f32 %v621, 1.0
  %v649 = vadd.f32 %v623, 1.0
  %v650 = vadd.f32 %v625, 1.0
  %v651 = vadd.f32 %v627, 1.0
  %v652 = vadd.f32 %v629, 1.0
  %v653 = vadd.f32 %v631, 1.0
  %v654 = vadd.f32 %v633, 1.0
  %v655 = vadd.f32 %v635, 1.0
  %v656 = vadd.f32 %v637, 1.0
  %v657 = vadd.f32 %v639, 1.0
  %v658 = vadd.f32 %v641, 1.0
  %v659 = vadd.f32 %v643, 1.0
  %v660 = vrcp.pop %v644
  %v661 = vmul.f32 1.0, %v660
  %v662 = vrcp.pop %v645
  %v663 = vmul.f32 1.0, %v662
  %v664 = vrcp.pop %v646
  %v665 = vmul.f32 1.0, %v664
  %v666 = vrcp.pop %v647
  %v667 = vmul.f32 1.0, %v666
  %v668 = vrcp.pop %v648
  %v669 = vmul.f32 1.0, %v668
  %v670 = vrcp.pop %v649
  %v671 = vmul.f32 1.0, %v670
  %v672 = vrcp.pop %v650
  %v673 = vmul.f32 1.0, %v672
  %v674 = vrcp.pop %v651
  %v675 = vmul.f32 1.0, %v674
  %v676 = vrcp.pop %v652
  %v677 = vmul.f32 1.0, %v676
  %v678 = vrcp.pop %v653
  %v679 = vmul.f32 1.0, %v678
  %v680 = vrcp.pop %v654
  %v681 = vmul.f32 1.0, %v680
  %v682 = vrcp.pop %v655
  %v683 = vmul.f32 1.0, %v682
  %v684 = vrcp.pop %v656
  %v685 = vmul.f32 1.0, %v684
  %v686 = vrcp.pop %v657
  %v687 = vmul.f32 1.0, %v686
  %v688 = vrcp.pop %v658
  %v689 = vmul.f32 1.0, %v688
  %v690 = vrcp.pop %v659
  %v691 = vmul.f32 1.0, %v690
  %vm692 = vcmask 7168
  %693 = vst.msk [vmem:[%s7] sm:$0xff] %vm692, %v661
  %694 = vst.msk [vmem:[%s7 + $0x8] sm:$0xff] %vm692, %v663
  %695 = vst.msk [vmem:[%s7 + $0x10] sm:$0xff] %vm692, %v665
  %696 = vst.msk [vmem:[%s7 + $0x18] sm:$0xff] %vm692, %v667
  %697 = vst.msk [vmem:[%s7 + $0x20] sm:$0xff] %vm692, %v669
  %698 = vst.msk [vmem:[%s7 + $0x28] sm:$0xff] %vm692, %v671
  %699 = vst.msk [vmem:[%s7 + $0x30] sm:$0xff] %vm692, %v673
  %700 = vst.msk [vmem:[%s7 + $0x38] sm:$0xff] %vm692, %v675
  %701 = vst.msk [vmem:[%s7 + $0x40] sm:$0xff] %vm692, %v677
  %702 = vst.msk [vmem:[%s7 + $0x48] sm:$0xff] %vm692, %v679
  %703 = vst.msk [vmem:[%s7 + $0x50] sm:$0xff] %vm692, %v681
  %704 = vst.msk [vmem:[%s7 + $0x58] sm:$0xff] %vm692, %v683
  %705 = vst.msk [vmem:[%s7 + $0x60] sm:$0xff] %vm692, %v685
  %706 = vst.msk [vmem:[%s7 + $0x68] sm:$0xff] %vm692, %v687
  %707 = vst.msk [vmem:[%s7 + $0x70] sm:$0xff] %vm692, %v689
  %708 = vst.msk [vmem:[%s7 + $0x78] sm:$0xff] %vm692, %v691
  // Predicated region
  $region30: #{_lambda_.6} parent=0 // pred_check
    _
  $region31: #{_lambda_.6} parent=0 // pred_check_branch
    %710 = sbr.rel (0) target = $region33
  $region32: #{_lambda_.6} parent=0 // pred_region
    _
  $region33: #{_lambda_.6} parent=0 // pred_fallthru
    _
  // Predicated region
  $region34: #{_lambda_.6} parent=0 // pred_check
    _
  $region35: #{_lambda_.6} parent=0 // pred_check_branch
    %712 = sbr.rel (0) target = $region37
  $region36: #{_lambda_.6} parent=0 // pred_region
    _
  $region37: #{_lambda_.6} parent=0 // pred_fallthru
    _

// kernel: _lambda_.7
$region0: #{_lambda_.7}
  #allocation0 [shape = 'u32[]', space=smem, size = 0x4, offset = 0x4, fixed_abs, tag = 'smem constant byte address 0x4 - core index']
  #allocation1 [shape = 'u32[144,128]{1,0:T(1,128)}', space=vmem, size = 0x12000, scoped, tag = 'internal scratch']
  %s0 = inlined_call_operand.vmem [shape: f32[2,1,64], index: 0, kind: input, shape index: {}]
  %s1 = inlined_call_operand.vmem [shape: f32[256,64], index: 1, kind: input, shape index: {}]
  %s2 = inlined_call_operand.vmem [shape: bf16[2,16,16,128], index: 2, kind: input, shape index: {}]
  %s3 = inlined_call_operand.vmem [shape: bf16[2,64,128], index: 3, kind: input, shape index: {}]
  %s4 = inlined_call_operand.vmem [shape: bf16[128,128], index: 4, kind: input, shape index: {}]
  %s5 = inlined_call_operand.vmem [shape: f32[1,128], index: 5, kind: input, shape index: {}]
  %s6 = inlined_call_operand.vmem [shape: bf16[2,16,16,128], index: 6, kind: output, shape index: {}]
  %s7 = sld [smem:[#allocation0]]
  $region57: #{_lambda_.7} parent=0
    _
  %s9 = ssub.s32 1, %s7
  %s10 = scalar_select 0, %s9, %s7
  loop: start=0, step=1, limit=6
  $region2: #{_lambda_.7} parent=0 // loop_pre_header
    _
  $region3: #{_lambda_.7} parent=0 // loop_header
    %s12 = sphi 0, %s16
    %p13 = scmp.ge.s32.totalorder %s12, 6
    %s19 = sphi 0, %s31
    %s20 = sphi 0, %s27
    %s21 = sphi 0, %s19
    %s22 = sphi 0, %s20
    %s23 = sphi 0, %s21
    %s24 = sphi 0, %s22
    %s34 = sphi 0, %s36
    %s37 = sphi 0, %s34
    %s38 = sphi 0, %s37
    %s54 = sphi 0, %s38
    %s60 = sphi 0, %s62
    %s63 = sphi 0, %s60
    %s64 = sphi 0, %s63
    %s80 = sphi 0, %s64
    %s88 = sphi 0, %s90
    %s91 = sphi 0, %s88
    %s92 = sphi 0, %s91
    %s108 = sphi 0, %s92
    %s114 = sphi 0, %s116
    %s117 = sphi 0, %s114
    %s118 = sphi 0, %s117
    %s134 = sphi 0, %s118
    %s138 = sphi 0, %s138
    %s140 = sphi 0, %s138
    %s141 = sphi 0, %s140
    %s155 = sphi 0, %s141
    %s159 = sphi 0, %s159
    %s161 = sphi 0, %s159
    %s162 = sphi 0, %s161
    %s176 = sphi 0, %s162
    %s184 = sphi 0, %s186
    %s187 = sphi 0, %s184
    %s188 = sphi 0, %s187
    %s204 = sphi 0, %s188
  $region4: #{_lambda_.7} parent=0 // loop_header_branch
    %15 = sbr.rel (%p13) target = $region8
  $region5: #{_lambda_.7} parent=0 // loop_body
    %s17 = ssub.s32 %s12, 1
    %s18 = ssub.s32 %s12, 2
    %s25 = sadd.s32 1, %s20
    %p26 = scmp.ge.s32.totalorder %s25, 2
    %s27 = scalar_select %p26, 0, %s25
    %s28 = sadd.s32 1, %s19
    %s29 = scalar_select %p26, %s28, %s19
    %p30 = scmp.ge.s32.totalorder %s29, 2
    %s31 = scalar_select %p30, 0, %s29
    %s32 = ssub.s32 %s19, %s31
    %p33 = scmp.eq.s32.totalorder %s32, 0
    %s35 = sadd.s32 %s34, 1
    %s36 = scalar_select %p33, %s34, %s35
    %p39 = pneg %p33
    %p40 = scmp.eq.s32.totalorder %s12, 3
    %p41 = por %p39, %p40
    %p42 = scmp.ne.s32.totalorder %s34, %s37
    %p43 = scmp.eq.s32.totalorder %s12, 0
    %p44 = por %p42, %p43
    %p45 = scmp.ne.s32.totalorder %s34, %s37
    %p46 = scmp.eq.s32.totalorder %s17, 3
    %p47 = por %p45, %p46
    %p48 = scmp.ne.s32.totalorder %s37, %s38
    %p49 = scmp.eq.s32.totalorder %s17, 0
    %p50 = por %p48, %p49
    %p51 = scmp.ne.s32.totalorder %s37, %s38
    %p52 = scmp.eq.s32.totalorder %s18, 3
    %p53 = por %p51, %p52
    %p55 = scmp.ne.s32.totalorder %s38, %s54
    %p56 = scmp.eq.s32.totalorder %s18, 0
    %p57 = por %p55, %p56
    %s58 = ssub.s32 %s20, %s27
    %p59 = scmp.eq.s32.totalorder %s58, 0
    %s61 = sadd.s32 %s60, 1
    %s62 = scalar_select %p59, %s60, %s61
    %p65 = pneg %p59
    %p66 = scmp.eq.s32.totalorder %s12, 3
    %p67 = por %p65, %p66
    %p68 = scmp.ne.s32.totalorder %s60, %s63
    %p69 = scmp.eq.s32.totalorder %s12, 0
    %p70 = por %p68, %p69
    %p71 = scmp.ne.s32.totalorder %s60, %s63
    %p72 = scmp.eq.s32.totalorder %s17, 3
    %p73 = por %p71, %p72
    %p74 = scmp.ne.s32.totalorder %s63, %s64
    %p75 = scmp.eq.s32.totalorder %s17, 0
    %p76 = por %p74, %p75
    %p77 = scmp.ne.s32.totalorder %s63, %s64
    %p78 = scmp.eq.s32.totalorder %s18, 3
    %p79 = por %p77, %p78
    %p81 = scmp.ne.s32.totalorder %s64, %s80
    %p82 = scmp.eq.s32.totalorder %s18, 0
    %p83 = por %p81, %p82
    %s84 = ssub.s32 %s19, %s31
    %s85 = ssub.s32 %s20, %s27
    %s86 = sor.u32 %s84, %s85
    %p87 = scmp.eq.s32.totalorder %s86, 0
    %s89 = sadd.s32 %s88, 1
    %s90 = scalar_select %p87, %s88, %s89
    %p93 = pneg %p87
    %p94 = scmp.eq.s32.totalorder %s12, 3
    %p95 = por %p93, %p94
    %p96 = scmp.ne.s32.totalorder %s88, %s91
    %p97 = scmp.eq.s32.totalorder %s12, 0
    %p98 = por %p96, %p97
    %p99 = scmp.ne.s32.totalorder %s88, %s91
    %p100 = scmp.eq.s32.totalorder %s17, 3
    %p101 = por %p99, %p100
    %p102 = scmp.ne.s32.totalorder %s91, %s92
    %p103 = scmp.eq.s32.totalorder %s17, 0
    %p104 = por %p102, %p103
    %p105 = scmp.ne.s32.totalorder %s91, %s92
    %p106 = scmp.eq.s32.totalorder %s18, 3
    %p107 = por %p105, %p106
    %p109 = scmp.ne.s32.totalorder %s92, %s108
    %p110 = scmp.eq.s32.totalorder %s18, 0
    %p111 = por %p109, %p110
    %s112 = ssub.s32 %s19, %s31
    %p113 = scmp.eq.s32.totalorder %s112, 0
    %s115 = sadd.s32 %s114, 1
    %s116 = scalar_select %p113, %s114, %s115
    %p119 = pneg %p113
    %p120 = scmp.eq.s32.totalorder %s12, 3
    %p121 = por %p119, %p120
    %p122 = scmp.ne.s32.totalorder %s114, %s117
    %p123 = scmp.eq.s32.totalorder %s12, 0
    %p124 = por %p122, %p123
    %p125 = scmp.ne.s32.totalorder %s114, %s117
    %p126 = scmp.eq.s32.totalorder %s17, 3
    %p127 = por %p125, %p126
    %p128 = scmp.ne.s32.totalorder %s117, %s118
    %p129 = scmp.eq.s32.totalorder %s17, 0
    %p130 = por %p128, %p129
    %p131 = scmp.ne.s32.totalorder %s117, %s118
    %p132 = scmp.eq.s32.totalorder %s18, 3
    %p133 = por %p131, %p132
    %p135 = scmp.ne.s32.totalorder %s118, %s134
    %p136 = scmp.eq.s32.totalorder %s18, 0
    %p137 = por %p135, %p136
    %s139 = sadd.s32 %s138, 1
    %p142 = scmp.eq.s32.totalorder %s12, 3
    %p143 = scmp.ne.s32.totalorder %s138, %s140
    %p144 = scmp.eq.s32.totalorder %s12, 0
    %p145 = por %p143, %p144
    %p146 = scmp.ne.s32.totalorder %s138, %s140
    %p147 = scmp.eq.s32.totalorder %s17, 3
    %p148 = por %p146, %p147
    %p149 = scmp.ne.s32.totalorder %s140, %s141
    %p150 = scmp.eq.s32.totalorder %s17, 0
    %p151 = por %p149, %p150
    %p152 = scmp.ne.s32.totalorder %s140, %s141
    %p153 = scmp.eq.s32.totalorder %s18, 3
    %p154 = por %p152, %p153
    %p156 = scmp.ne.s32.totalorder %s141, %s155
    %p157 = scmp.eq.s32.totalorder %s18, 0
    %p158 = por %p156, %p157
    %s160 = sadd.s32 %s159, 1
    %p163 = scmp.eq.s32.totalorder %s12, 3
    %p164 = scmp.ne.s32.totalorder %s159, %s161
    %p165 = scmp.eq.s32.totalorder %s12, 0
    %p166 = por %p164, %p165
    %p167 = scmp.ne.s32.totalorder %s159, %s161
    %p168 = scmp.eq.s32.totalorder %s17, 3
    %p169 = por %p167, %p168
    %p170 = scmp.ne.s32.totalorder %s161, %s162
    %p171 = scmp.eq.s32.totalorder %s17, 0
    %p172 = por %p170, %p171
    %p173 = scmp.ne.s32.totalorder %s161, %s162
    %p174 = scmp.eq.s32.totalorder %s18, 3
    %p175 = por %p173, %p174
    %p177 = scmp.ne.s32.totalorder %s162, %s176
    %p178 = scmp.eq.s32.totalorder %s18, 0
    %p179 = por %p177, %p178
    %s180 = ssub.s32 %s19, %s31
    %s181 = ssub.s32 %s20, %s27
    %s182 = sor.u32 %s180, %s181
    %p183 = scmp.eq.s32.totalorder %s182, 0
    %s185 = sadd.s32 %s184, 1
    %s186 = scalar_select %p183, %s184, %s185
    %p189 = pneg %p183
    %p190 = scmp.eq.s32.totalorder %s12, 3
    %p191 = por %p189, %p190
    %p192 = scmp.ne.s32.totalorder %s184, %s187
    %p193 = scmp.eq.s32.totalorder %s12, 0
    %p194 = por %p192, %p193
    %p195 = scmp.ne.s32.totalorder %s184, %s187
    %p196 = scmp.eq.s32.totalorder %s17, 3
    %p197 = por %p195, %p196
    %p198 = scmp.ne.s32.totalorder %s187, %s188
    %p199 = scmp.eq.s32.totalorder %s17, 0
    %p200 = por %p198, %p199
    %p201 = scmp.ne.s32.totalorder %s187, %s188
    %p202 = scmp.eq.s32.totalorder %s18, 3
    %p203 = por %p201, %p202
    %p205 = scmp.ne.s32.totalorder %s188, %s204
    %p206 = scmp.eq.s32.totalorder %s18, 0
    %p207 = por %p205, %p206
    %p208 = scmp.le.s32.totalorder 1, %s12
    %p209 = scmp.lt.s32.totalorder %s12, 5
    %p210 = pnand %p208, %p209
    %p211 = pneg %p210
    // Predicated region
    $region9: #{_lambda_.7} parent=5 // pred_check
      _
    $region10: #{_lambda_.7} parent=5 // pred_check_branch
      %213 = sbr.rel (%p210) target = $region12
    $region11: #{_lambda_.7} parent=5 // pred_region
      %s214 = ssub.s32 %s12, 1
      // Predicated region
      $region13: #{_lambda_.7} parent=11 // pred_check
        %p215 = pneg %p151
      $region14: #{_lambda_.7} parent=11 // pred_check_branch
        %217 = sbr.rel (%p215) target = $region16
      $region15: #{_lambda_.7} parent=11 // pred_region
        _
      $region16: #{_lambda_.7} parent=11 // pred_fallthru
        _
      // Predicated region
      $region17: #{_lambda_.7} parent=11 // pred_check
        %p218 = pneg %p172
      $region18: #{_lambda_.7} parent=11 // pred_check_branch
        %220 = sbr.rel (%p218) target = $region20
      $region19: #{_lambda_.7} parent=11 // pred_region
        _
      $region20: #{_lambda_.7} parent=11 // pred_fallthru
        _
    $region12: #{_lambda_.7} parent=5 // pred_fallthru
      _
    %p221 = scmp.lt.s32.totalorder %s12, 4
    // Predicated region
    $region21: #{_lambda_.7} parent=5 // pred_check
      %p222 = pneg %p221
    $region22: #{_lambda_.7} parent=5 // pred_check_branch
      %224 = sbr.rel (%p222) target = $region24
    $region23: #{_lambda_.7} parent=5 // pred_region
      // Predicated region
      $region25: #{_lambda_.7} parent=23 // pred_check
        %p225 = pneg %p44
      $region26: #{_lambda_.7} parent=23 // pred_check_branch
        %227 = sbr.rel (%p225) target = $region28
      $region27: #{_lambda_.7} parent=23 // pred_region
        %p228 = scmp.lt.s32.totalorder %s19, 1
        %s229 = scalar_select %p228, %s19, 1
        %s230 = scalar_lea.vmem %s0, %s229
      $region28: #{_lambda_.7} parent=23 // pred_fallthru
        _
      // Predicated region
      $region29: #{_lambda_.7} parent=23 // pred_check
        %p231 = pneg %p70
      $region30: #{_lambda_.7} parent=23 // pred_check_branch
        %233 = sbr.rel (%p231) target = $region32
      $region31: #{_lambda_.7} parent=23 // pred_region
        %s234 = smul.u32 16, %s20
        %p235 = scmp.lt.s32.totalorder %s234, 31
        %s236 = scalar_select %p235, %s234, 31
        %s237 = smul.addr %s236, 8
        %s238 = scalar_lea.vmem %s1, %s237
        %s239 = smul.u32 16, %s20
      $region32: #{_lambda_.7} parent=23 // pred_fallthru
        _
      // Predicated region
      $region33: #{_lambda_.7} parent=23 // pred_check
        %p240 = pneg %p98
      $region34: #{_lambda_.7} parent=23 // pred_check_branch
        %242 = sbr.rel (%p240) target = $region36
      $region35: #{_lambda_.7} parent=23 // pred_region
        %s243 = smul.u32 8, %s20
        %p244 = scmp.lt.s32.totalorder %s19, 1
        %s245 = scalar_select %p244, %s19, 1
        %p246 = scmp.lt.s32.totalorder %s243, 15
        %s247 = scalar_select %p246, %s243, 15
        %s248 = smul.addr %s247, 2
        %s249 = smul.addr %s245, 32
        %s250 = sadd.s32 %s248, %s249
        %s251 = smul.addr %s250, 4
        %s252 = scalar_lea.vmem %s2, %s251
        %s253 = smul.u32 8, %s20
      $region36: #{_lambda_.7} parent=23 // pred_fallthru
        _
      // Predicated region
      $region37: #{_lambda_.7} parent=23 // pred_check
        %p254 = pneg %p124
      $region38: #{_lambda_.7} parent=23 // pred_check_branch
        %256 = sbr.rel (%p254) target = $region40
      $region39: #{_lambda_.7} parent=23 // pred_region
        %p257 = scmp.lt.s32.totalorder %s19, 1
        %s258 = scalar_select %p257, %s19, 1
        %s259 = smul.addr %s258, 8
        %s260 = smul.addr %s259, 4
        %s261 = scalar_lea.vmem %s3, %s260
      $region40: #{_lambda_.7} parent=23 // pred_fallthru
        _
    $region24: #{_lambda_.7} parent=5 // pred_fallthru
      _
    %p262 = scmp.le.s32.totalorder 1, %s12
    %p263 = scmp.lt.s32.totalorder %s12, 5
    %p264 = pnand %p262, %p263
    %p265 = pneg %p264
    // Predicated region
    $region41: #{_lambda_.7} parent=5 // pred_check
      _
    $region42: #{_lambda_.7} parent=5 // pred_check_branch
      %267 = sbr.rel (%p264) target = $region44
    $region43: #{_lambda_.7} parent=5 // pred_region
      %s268 = ssub.s32 %s12, 1
      %p269 = scmp.lt.s32.totalorder %s21, 1
      %s270 = scalar_select %p269, %s21, 1
      %s271 = scalar_lea.vmem %s0, %s270
      %p272 = pneg %p50
      %p273 = pneg %p47
      %s274 = smul.u32 16, %s22
      %p275 = scmp.lt.s32.totalorder %s274, 31
      %s276 = scalar_select %p275, %s274, 31
      %s277 = smul.addr %s276, 8
      %s278 = scalar_lea.vmem %s1, %s277
      %p279 = pneg %p76
      %p280 = pneg %p73
      %s281 = smul.u32 8, %s22
      %p282 = scmp.lt.s32.totalorder %s21, 1
      %s283 = scalar_select %p282, %s21, 1
      %p284 = scmp.lt.s32.totalorder %s281, 15
      %s285 = scalar_select %p284, %s281, 15
      %s286 = smul.addr %s285, 2
      %s287 = smul.addr %s283, 32
      %s288 = sadd.s32 %s286, %s287
      %s289 = smul.addr %s288, 4
      %s290 = scalar_lea.vmem %s2, %s289
      %p291 = pneg %p104
      %p292 = pneg %p101
      %p293 = scmp.lt.s32.totalorder %s21, 1
      %s294 = scalar_select %p293, %s21, 1
      %s295 = smul.addr %s294, 8
      %s296 = smul.addr %s295, 4
      %s297 = scalar_lea.vmem %s3, %s296
      %p298 = pneg %p130
      %p299 = pneg %p127
      %p300 = pneg %p151
      %p301 = pneg %p148
      %p302 = pneg %p172
      %p303 = pneg %p169
      %p304 = pneg %p200
      %p305 = pneg %p197
      %s306 = smul.u32 8, %s22
      %p307 = scmp.lt.s32.totalorder %s21, 1
      %s308 = scalar_select %p307, %s21, 1
      %p309 = scmp.lt.s32.totalorder %s306, 15
      %s310 = scalar_select %p309, %s306, 15
      %s311 = smul.addr %s310, 2
      %s312 = smul.addr %s308, 32
      %s313 = sadd.s32 %s311, %s312
      %s314 = smul.addr %s313, 4
      %s315 = scalar_lea.vmem %s6, %s314
      %p316 = scmp.lt.s32.totalorder %s21, 1
      %s317 = scalar_select %p316, %s21, 1
      %s318 = scalar_lea.vmem %s0, %s317
      %s319 = smul.u32 16, %s22
      %p320 = scmp.lt.s32.totalorder %s319, 31
      %s321 = scalar_select %p320, %s319, 31
      %s322 = smul.addr %s321, 8
      %s323 = scalar_lea.vmem %s1, %s322
      %s324 = smul.u32 16, %s22
      %s325 = smul.u32 8, %s22
      %p326 = scmp.lt.s32.totalorder %s21, 1
      %s327 = scalar_select %p326, %s21, 1
      %p328 = scmp.lt.s32.totalorder %s325, 15
      %s329 = scalar_select %p328, %s325, 15
      %s330 = smul.addr %s329, 2
      %s331 = smul.addr %s327, 32
      %s332 = sadd.s32 %s330, %s331
      %s333 = smul.addr %s332, 4
      %s334 = scalar_lea.vmem %s2, %s333
      %s335 = smul.u32 8, %s22
      %p336 = scmp.lt.s32.totalorder %s21, 1
      %s337 = scalar_select %p336, %s21, 1
      %s338 = smul.addr %s337, 8
      %s339 = smul.addr %s338, 4
      %s340 = scalar_lea.vmem %s3, %s339
      %s341 = smul.u32 8, %s22
      %p342 = scmp.lt.s32.totalorder %s21, 1
      %s343 = scalar_select %p342, %s21, 1
      %p344 = scmp.lt.s32.totalorder %s341, 15
      %s345 = scalar_select %p344, %s341, 15
      %s346 = smul.addr %s345, 2
      %s347 = smul.addr %s343, 32
      %s348 = sadd.s32 %s346, %s347
      %s349 = smul.addr %s348, 4
      %s350 = scalar_lea.vmem %s6, %s349
      %s351 = smul.u32 8, %s22
      %v353 = vld [vmem:[%s323] sm:$0xff]
      %v354 = vld [vmem:[%s323 + $0x8] sm:$0xff]
      %v355 = vld [vmem:[%s323 + $0x10] sm:$0xff]
      %v356 = vld [vmem:[%s323 + $0x18] sm:$0xff]
      %v357 = vld [vmem:[%s323 + $0x20] sm:$0xff]
      %v358 = vld [vmem:[%s323 + $0x28] sm:$0xff]
      %v359 = vld [vmem:[%s323 + $0x30] sm:$0xff]
      %v360 = vld [vmem:[%s323 + $0x38] sm:$0xff]
      %v361 = vld [vmem:[%s323 + $0x40] sm:$0xff]
      %v362 = vld [vmem:[%s323 + $0x48] sm:$0xff]
      %v363 = vld [vmem:[%s323 + $0x50] sm:$0xff]
      %v364 = vld [vmem:[%s323 + $0x58] sm:$0xff]
      %v365 = vld [vmem:[%s323 + $0x60] sm:$0xff]
      %v366 = vld [vmem:[%s323 + $0x68] sm:$0xff]
      %v367 = vld [vmem:[%s323 + $0x70] sm:$0xff]
      %v368 = vld [vmem:[%s323 + $0x78] sm:$0xff]
      %v369 = vld [vmem:[%s318] sm:$0x1]
      %v371 = vlaneseq
      %v372 = vshrl.u32 %v371, 7
      %v373 = vsub.s32 0, %v372
      %v374 = vrot.slane %v369, %v373
      %v376 = vmul.f32 %v353, %v374
      %v377 = vmul.f32 %v354, %v374
      %v378 = vmul.f32 %v355, %v374
      %v379 = vmul.f32 %v356, %v374
      %v380 = vmul.f32 %v357, %v374
      %v381 = vmul.f32 %v358, %v374
      %v382 = vmul.f32 %v359, %v374
      %v383 = vmul.f32 %v360, %v374
      %v384 = vmul.f32 %v361, %v374
      %v385 = vmul.f32 %v362, %v374
      %v386 = vmul.f32 %v363, %v374
      %v387 = vmul.f32 %v364, %v374
      %v388 = vmul.f32 %v365, %v374
      %v389 = vmul.f32 %v366, %v374
      %v390 = vmul.f32 %v367, %v374
      %v391 = vmul.f32 %v368, %v374
      %vm392 = vcmask 523264
      %v393 = vsel %vm392, %v376, 0.0
      %394 = vadd.xlane.f32.xlu0 %v393
      %v395 = vpop.xlane.xlu0 %394
      %v396 = vsel %vm392, %v377, 0.0
      %397 = vadd.xlane.f32.xlu0 %v396
      %v398 = vpop.xlane.xlu0 %397
      %v399 = vsel %vm392, %v378, 0.0
      %400 = vadd.xlane.f32.xlu0 %v399
      %v401 = vpop.xlane.xlu0 %400
      %v402 = vsel %vm392, %v379, 0.0
      %403 = vadd.xlane.f32.xlu0 %v402
      %v404 = vpop.xlane.xlu0 %403
      %v405 = vsel %vm392, %v380, 0.0
      %406 = vadd.xlane.f32.xlu0 %v405
      %v407 = vpop.xlane.xlu0 %406
      %v408 = vsel %vm392, %v381, 0.0
      %409 = vadd.xlane.f32.xlu0 %v408
      %v410 = vpop.xlane.xlu0 %409
      %v411 = vsel %vm392, %v382, 0.0
      %412 = vadd.xlane.f32.xlu0 %v411
      %v413 = vpop.xlane.xlu0 %412
      %v414 = vsel %vm392, %v383, 0.0
      %415 = vadd.xlane.f32.xlu0 %v414
      %v416 = vpop.xlane.xlu0 %415
      %v417 = vsel %vm392, %v384, 0.0
      %418 = vadd.xlane.f32.xlu0 %v417
      %v419 = vpop.xlane.xlu0 %418
      %v420 = vsel %vm392, %v385, 0.0
      %421 = vadd.xlane.f32.xlu0 %v420
      %v422 = vpop.xlane.xlu0 %421
      %v423 = vsel %vm392, %v386, 0.0
      %424 = vadd.xlane.f32.xlu0 %v423
      %v425 = vpop.xlane.xlu0 %424
      %v426 = vsel %vm392, %v387, 0.0
      %427 = vadd.xlane.f32.xlu0 %v426
      %v428 = vpop.xlane.xlu0 %427
      %v429 = vsel %vm392, %v388, 0.0
      %430 = vadd.xlane.f32.xlu0 %v429
      %v431 = vpop.xlane.xlu0 %430
      %v432 = vsel %vm392, %v389, 0.0
      %433 = vadd.xlane.f32.xlu0 %v432
      %v434 = vpop.xlane.xlu0 %433
      %v435 = vsel %vm392, %v390, 0.0
      %436 = vadd.xlane.f32.xlu0 %v435
      %v437 = vpop.xlane.xlu0 %436
      %v438 = vsel %vm392, %v391, 0.0
      %439 = vadd.xlane.f32.xlu0 %v438
      %v440 = vpop.xlane.xlu0 %439
      %v441 = vld [vmem:[%s334] sm:$0xf]
      %v442 = vld [vmem:[%s334 + $0x4] sm:$0xf]
      %v443 = vld [vmem:[%s334 + $0x8] sm:$0xf]
      %v444 = vld [vmem:[%s334 + $0xc] sm:$0xf]
      %v445 = vld [vmem:[%s334 + $0x10] sm:$0xf]
      %v446 = vld [vmem:[%s334 + $0x14] sm:$0xf]
      %v447 = vld [vmem:[%s334 + $0x18] sm:$0xf]
      %v448 = vld [vmem:[%s334 + $0x1c] sm:$0xf]
      %v449 = vld [vmem:[%s334 + $0x20] sm:$0xf]
      %v450 = vld [vmem:[%s334 + $0x24] sm:$0xf]
      %v451 = vld [vmem:[%s334 + $0x28] sm:$0xf]
      %v452 = vld [vmem:[%s334 + $0x2c] sm:$0xf]
      %v453 = vld [vmem:[%s334 + $0x30] sm:$0xf]
      %v454 = vld [vmem:[%s334 + $0x34] sm:$0xf]
      %v455 = vld [vmem:[%s334 + $0x38] sm:$0xf]
      %v456 = vld [vmem:[%s334 + $0x3c] sm:$0xf]
      %v457 = vunpack.c.l.bf16 %v441
      %v458 = vunpack.c.l.bf16 %v442
      %v459 = vunpack.c.l.bf16 %v443
      %v460 = vunpack.c.l.bf16 %v444
      %v461 = vunpack.c.l.bf16 %v445
      %v462 = vunpack.c.l.bf16 %v446
      %v463 = vunpack.c.l.bf16 %v447
      %v464 = vunpack.c.l.bf16 %v448
      %v465 = vunpack.c.l.bf16 %v449
      %v466 = vunpack.c.l.bf16 %v450
      %v467 = vunpack.c.l.bf16 %v451
      %v468 = vunpack.c.l.bf16 %v452
      %v469 = vunpack.c.l.bf16 %v453
      %v470 = vunpack.c.l.bf16 %v454
      %v471 = vunpack.c.l.bf16 %v455
      %v472 = vunpack.c.l.bf16 %v456
      %v473 = vmul.f32 %v457, %v395
      %v474 = vmul.f32 %v458, %v398
      %v475 = vmul.f32 %v459, %v401
      %v476 = vmul.f32 %v460, %v404
      %v477 = vmul.f32 %v461, %v407
      %v478 = vmul.f32 %v462, %v410
      %v479 = vmul.f32 %v463, %v413
      %v480 = vmul.f32 %v464, %v416
      %v481 = vmul.f32 %v465, %v419
      %v482 = vmul.f32 %v466, %v422
      %v483 = vmul.f32 %v467, %v425
      %v484 = vmul.f32 %v468, %v428
      %v485 = vmul.f32 %v469, %v431
      %v486 = vmul.f32 %v470, %v434
      %v487 = vmul.f32 %v471, %v437
      %v488 = vmul.f32 %v472, %v440
      %v489 = vpack.c.bf16 %v474, %v473
      %v490 = vpack.c.bf16 %v476, %v475
      %v491 = vpack.c.bf16 %v478, %v477
      %v492 = vpack.c.bf16 %v480, %v479
      %v493 = vpack.c.bf16 %v482, %v481
      %v494 = vpack.c.bf16 %v484, %v483
      %v495 = vpack.c.bf16 %v486, %v485
      %v496 = vpack.c.bf16 %v488, %v487
      %v497 = vld [vmem:[%s4] sm:$0xf]
      %v498 = vld [vmem:[%s4 + $0x4] sm:$0xf]
      %v499 = vld [vmem:[%s4 + $0x8] sm:$0xf]
      %v500 = vld [vmem:[%s4 + $0xc] sm:$0xf]
      %v501 = vld [vmem:[%s4 + $0x10] sm:$0xf]
      %v502 = vld [vmem:[%s4 + $0x14] sm:$0xf]
      %v503 = vld [vmem:[%s4 + $0x18] sm:$0xf]
      %v504 = vld [vmem:[%s4 + $0x1c] sm:$0xf]
      %v505 = vld [vmem:[%s4 + $0x20] sm:$0xf]
      %v506 = vld [vmem:[%s4 + $0x24] sm:$0xf]
      %v507 = vld [vmem:[%s4 + $0x28] sm:$0xf]
      %v508 = vld [vmem:[%s4 + $0x2c] sm:$0xf]
      %v509 = vld [vmem:[%s4 + $0x30] sm:$0xf]
      %v510 = vld [vmem:[%s4 + $0x34] sm:$0xf]
      %v511 = vld [vmem:[%s4 + $0x38] sm:$0xf]
      %v512 = vld [vmem:[%s4 + $0x3c] sm:$0xf]
      %v513 = vld [vmem:[%s5] sm:$0x1]
      %v515 = vlaneseq
      %v516 = vshrl.u32 %v515, 7
      %v517 = vsub.s32 0, %v516
      %v518 = vrot.slane %v513, %v517
      %v536 = vunpack.c.l.b16 %v497
      %v537 = vunpack.c.l.b16 %v498
      %v538 = vunpack.c.l.b16 %v499
      %v539 = vunpack.c.l.b16 %v500
      %v540 = vunpack.c.l.b16 %v501
      %v541 = vunpack.c.l.b16 %v502
      %v542 = vunpack.c.l.b16 %v503
      %v543 = vunpack.c.l.b16 %v504
      %v544 = vunpack.c.l.b16 %v505
      %v545 = vunpack.c.l.b16 %v506
      %v546 = vunpack.c.l.b16 %v507
      %v547 = vunpack.c.l.b16 %v508
      %v548 = vunpack.c.l.b16 %v509
      %v549 = vunpack.c.l.b16 %v510
      %v550 = vunpack.c.l.b16 %v511
      %v551 = vunpack.c.l.b16 %v512
      %v552 = vpack.c.b16 %v537, %v536
      %v553 = vpack.c.b16 %v539, %v538
      %v554 = vpack.c.b16 %v541, %v540
      %v555 = vpack.c.b16 %v543, %v542
      %v556 = vpack.c.b16 %v545, %v544
      %v557 = vpack.c.b16 %v547, %v546
      %v558 = vpack.c.b16 %v549, %v548
      %v559 = vpack.c.b16 %v551, %v550
      %568 = vmatprep.subr.bf16.mxu0 0
      %569 = vmatpush1.bf16.msra.mxu0 %v552
      %570 = vmatprep.subr.bf16.mxu0 0
      %571 = vmatpush1.bf16.msra.mxu0 %v553
      %572 = vmatprep.subr.bf16.mxu0 0
      %573 = vmatpush1.bf16.msra.mxu0 %v554
      %574 = vmatprep.subr.bf16.mxu0 0
      %575 = vmatpush1.bf16.msra.mxu0 %v555
      %576 = vmatprep.subr.bf16.mxu0 0
      %577 = vmatpush1.bf16.msra.mxu0 %v556
      %578 = vmatprep.subr.bf16.mxu0 0
      %579 = vmatpush1.bf16.msra.mxu0 %v557
      %580 = vmatprep.subr.bf16.mxu0 0
      %581 = vmatpush1.bf16.msra.mxu0 %v558
      %582 = vmatprep.subr.bf16.mxu0 0
      %583 = vmatpush1.bf16.msra.mxu0 %v559
      %584 = vmatprep.subr.bf16.mxu0 0
      %585 = vmatpush1.bf16.msra.mxu0 0
      %586 = vmatprep.subr.bf16.mxu0 0
      %587 = vmatpush1.bf16.msra.mxu0 0
      %588 = vmatprep.subr.bf16.mxu0 0
      %589 = vmatpush1.bf16.msra.mxu0 0
      %590 = vmatprep.subr.bf16.mxu0 0
      %591 = vmatpush1.bf16.msra.mxu0 0
      %592 = vmatprep.subr.bf16.mxu0 0
      %593 = vmatpush1.bf16.msra.mxu0 0
      %594 = vmatprep.subr.bf16.mxu0 0
      %595 = vmatpush1.bf16.msra.mxu0 0
      %596 = vmatprep.subr.bf16.mxu0 0
      %597 = vmatpush1.bf16.msra.mxu0 0
      %598 = vmatprep.subr.bf16.mxu0 0
      %599 = vmatpush1.bf16.msra.mxu0 0
      %600 = vmatprep.mubr.bf16.mxu0 0
      %601 = vmatmul.mubr.bf16.gmra.mrb[0].mxu0 %v489
      %v602 = vpop.f32.mrb[0].mxu0
      %v603 = vadd.f32 %v518, %v602
      %v604 = vpop.f32.mrb[0].mxu0
      %v605 = vpop.f32.mrb[0].mxu0
      %v606 = vadd.f32 %v518, %v605
      %v607 = vpop.f32.mrb[0].mxu0
      %608 = vmatprep.mubr.bf16.mxu0 0
      %609 = vmatmul.mubr.bf16.gmra.mrb[0].mxu0 %v490
      %v610 = vpop.f32.mrb[0].mxu0
      %v611 = vadd.f32 %v518, %v610
      %v612 = vpop.f32.mrb[0].mxu0
      %v613 = vpop.f32.mrb[0].mxu0
      %v614 = vadd.f32 %v518, %v613
      %v615 = vpop.f32.mrb[0].mxu0
      %616 = vmatprep.mubr.bf16.mxu0 0
      %617 = vmatmul.mubr.bf16.gmra.mrb[0].mxu0 %v491
      %v618 = vpop.f32.mrb[0].mxu0
      %v619 = vadd.f32 %v518, %v618
      %v620 = vpop.f32.mrb[0].mxu0
      %v621 = vpop.f32.mrb[0].mxu0
      %v622 = vadd.f32 %v518, %v621
      %v623 = vpop.f32.mrb[0].mxu0
      %624 = vmatprep.mubr.bf16.mxu0 0
      %625 = vmatmul.mubr.bf16.gmra.mrb[0].mxu0 %v492
      %v626 = vpop.f32.mrb[0].mxu0
      %v627 = vadd.f32 %v518, %v626
      %v628 = vpop.f32.mrb[0].mxu0
      %v629 = vpop.f32.mrb[0].mxu0
      %v630 = vadd.f32 %v518, %v629
      %v631 = vpop.f32.mrb[0].mxu0
      %632 = vmatprep.mubr.bf16.mxu0 0
      %633 = vmatmul.mubr.bf16.gmra.mrb[0].mxu0 %v493
      %v634 = vpop.f32.mrb[0].mxu0
      %v635 = vadd.f32 %v518, %v634
      %v636 = vpop.f32.mrb[0].mxu0
      %v637 = vpop.f32.mrb[0].mxu0
      %v638 = vadd.f32 %v518, %v637
      %v639 = vpop.f32.mrb[0].mxu0
      %640 = vmatprep.mubr.bf16.mxu0 0
      %641 = vmatmul.mubr.bf16.gmra.mrb[0].mxu0 %v494
      %v642 = vpop.f32.mrb[0].mxu0
      %v643 = vadd.f32 %v518, %v642
      %v644 = vpop.f32.mrb[0].mxu0
      %v645 = vpop.f32.mrb[0].mxu0
      %v646 = vadd.f32 %v518, %v645
      %v647 = vpop.f32.mrb[0].mxu0
      %648 = vmatprep.mubr.bf16.mxu0 0
      %649 = vmatmul.mubr.bf16.gmra.mrb[0].mxu0 %v495
      %v650 = vpop.f32.mrb[0].mxu0
      %v651 = vadd.f32 %v518, %v650
      %v652 = vpop.f32.mrb[0].mxu0
      %v653 = vpop.f32.mrb[0].mxu0
      %v654 = vadd.f32 %v518, %v653
      %v655 = vpop.f32.mrb[0].mxu0
      %656 = vmatprep.mubr.bf16.mxu0 0
      %657 = vmatmul.mubr.bf16.gmra.mrb[0].mxu0 %v496
      %v658 = vpop.f32.mrb[0].mxu0
      %v659 = vadd.f32 %v518, %v658
      %v660 = vpop.f32.mrb[0].mxu0
      %v661 = vpop.f32.mrb[0].mxu0
      %v662 = vadd.f32 %v518, %v661
      %v663 = vpop.f32.mrb[0].mxu0
      %664 = vdwg.mxu0
      %v665 = vpack.c.bf16 %v354, %v353
      %v666 = vpack.c.bf16 %v356, %v355
      %v667 = vpack.c.bf16 %v358, %v357
      %v668 = vpack.c.bf16 %v360, %v359
      %v669 = vpack.c.bf16 %v362, %v361
      %v670 = vpack.c.bf16 %v364, %v363
      %v671 = vpack.c.bf16 %v366, %v365
      %v672 = vpack.c.bf16 %v368, %v367
      %v673 = vld [vmem:[%s340] sm:$0xf]
      %v674 = vld [vmem:[%s340 + $0x4] sm:$0xf]
      %v675 = vld [vmem:[%s340 + $0x8] sm:$0xf]
      %v676 = vld [vmem:[%s340 + $0xc] sm:$0xf]
      %v677 = vld [vmem:[%s340 + $0x10] sm:$0xf]
      %v678 = vld [vmem:[%s340 + $0x14] sm:$0xf]
      %v679 = vld [vmem:[%s340 + $0x18] sm:$0xf]
      %v680 = vld [vmem:[%s340 + $0x1c] sm:$0xf]
      %v689 = vunpack.c.l.b16 %v673
      %v690 = vunpack.c.l.b16 %v674
      %v691 = vunpack.c.l.b16 %v675
      %v692 = vunpack.c.l.b16 %v676
      %v693 = vunpack.c.l.b16 %v677
      %v694 = vunpack.c.l.b16 %v678
      %v695 = vunpack.c.l.b16 %v679
      %v696 = vunpack.c.l.b16 %v680
      %v697 = vpack.c.b16 %v690, %v689
      %v698 = vpack.c.b16 %v692, %v691
      %v699 = vpack.c.b16 %v694, %v693
      %v700 = vpack.c.b16 %v696, %v695
      %v706 = vsel %vm392, %v665, 0
      %v709 = vsel %vm392, %v666, 0
      %v712 = vsel %vm392, %v667, 0
      %v715 = vsel %vm392, %v668, 0
      %v718 = vsel %vm392, %v669, 0
      %v721 = vsel %vm392, %v670, 0
      %v724 = vsel %vm392, %v671, 0
      %v727 = vsel %vm392, %v672, 0
      %729 = vmatprep.subr.bf16.mxu0 0
      %730 = vmatpush1.bf16.msra.mxu0 %v697
      %731 = vmatprep.subr.bf16.mxu0 0
      %732 = vmatpush1.bf16.msra.mxu0 %v698
      %733 = vmatprep.subr.bf16.mxu0 0
      %734 = vmatpush1.bf16.msra.mxu0 %v699
      %735 = vmatprep.subr.bf16.mxu0 0
      %736 = vmatpush1.bf16.msra.mxu0 %v700
      %737 = vmatprep.subr.bf16.mxu0 0
      %738 = vmatpush1.bf16.msra.mxu0 0
      %739 = vmatprep.subr.bf16.mxu0 0
      %740 = vmatpush1.bf16.msra.mxu0 0
      %741 = vmatprep.subr.bf16.mxu0 0
      %742 = vmatpush1.bf16.msra.mxu0 0
      %743 = vmatprep.subr.bf16.mxu0 0
      %744 = vmatpush1.bf16.msra.mxu0 0
      %745 = vmatprep.subr.bf16.mxu0 0
      %746 = vmatpush1.bf16.msra.mxu0 0
      %747 = vmatprep.subr.bf16.mxu0 0
      %748 = vmatpush1.bf16.msra.mxu0 0
      %749 = vmatprep.subr.bf16.mxu0 0
      %750 = vmatpush1.bf16.msra.mxu0 0
      %751 = vmatprep.subr.bf16.mxu0 0
      %752 = vmatpush1.bf16.msra.mxu0 0
      %753 = vmatprep.subr.bf16.mxu0 0
      %754 = vmatpush1.bf16.msra.mxu0 0
      %755 = vmatprep.subr.bf16.mxu0 0
      %756 = vmatpush1.bf16.msra.mxu0 0
      %757 = vmatprep.subr.bf16.mxu0 0
      %758 = vmatpush1.bf16.msra.mxu0 0
      %759 = vmatprep.subr.bf16.mxu0 0
      %760 = vmatpush1.bf16.msra.mxu0 0
      %761 = vmatprep.mubr.bf16.mxu0 0
      %762 = vmatmul.mubr.bf16.gmra.mrb[0].mxu0 %v706
      %v763 = vpop.f32.mrb[0].mxu0
      %v764 = vadd.f32 0.0, %v763
      %v765 = vpop.f32.mrb[0].mxu0
      %v766 = vpop.f32.mrb[0].mxu0
      %v767 = vadd.f32 0.0, %v766
      %v768 = vpop.f32.mrb[0].mxu0
      %769 = vmatprep.mubr.bf16.mxu0 0
      %770 = vmatmul.mubr.bf16.gmra.mrb[0].mxu0 %v709
      %v771 = vpop.f32.mrb[0].mxu0
      %v772 = vadd.f32 0.0, %v771
      %v773 = vpop.f32.mrb[0].mxu0
      %v774 = vpop.f32.mrb[0].mxu0
      %v775 = vadd.f32 0.0, %v774
      %v776 = vpop.f32.mrb[0].mxu0
      %777 = vmatprep.mubr.bf16.mxu0 0
      %778 = vmatmul.mubr.bf16.gmra.mrb[0].mxu0 %v712
      %v779 = vpop.f32.mrb[0].mxu0
      %v780 = vadd.f32 0.0, %v779
      %v781 = vpop.f32.mrb[0].mxu0
      %v782 = vpop.f32.mrb[0].mxu0
      %v783 = vadd.f32 0.0, %v782
      %v784 = vpop.f32.mrb[0].mxu0
      %785 = vmatprep.mubr.bf16.mxu0 0
      %786 = vmatmul.mubr.bf16.gmra.mrb[0].mxu0 %v715
      %v787 = vpop.f32.mrb[0].mxu0
      %v788 = vadd.f32 0.0, %v787
      %v789 = vpop.f32.mrb[0].mxu0
      %v790 = vpop.f32.mrb[0].mxu0
      %v791 = vadd.f32 0.0, %v790
      %v792 = vpop.f32.mrb[0].mxu0
      %793 = vmatprep.mubr.bf16.mxu0 0
      %794 = vmatmul.mubr.bf16.gmra.mrb[0].mxu0 %v718
      %v795 = vpop.f32.mrb[0].mxu0
      %v796 = vadd.f32 0.0, %v795
      %v797 = vpop.f32.mrb[0].mxu0
      %v798 = vpop.f32.mrb[0].mxu0
      %v799 = vadd.f32 0.0, %v798
      %v800 = vpop.f32.mrb[0].mxu0
      %801 = vmatprep.mubr.bf16.mxu0 0
      %802 = vmatmul.mubr.bf16.gmra.mrb[0].mxu0 %v721
      %v803 = vpop.f32.mrb[0].mxu0
      %v804 = vadd.f32 0.0, %v803
      %v805 = vpop.f32.mrb[0].mxu0
      %v806 = vpop.f32.mrb[0].mxu0
      %v807 = vadd.f32 0.0, %v806
      %v808 = vpop.f32.mrb[0].mxu0
      %809 = vmatprep.mubr.bf16.mxu0 0
      %810 = vmatmul.mubr.bf16.gmra.mrb[0].mxu0 %v724
      %v811 = vpop.f32.mrb[0].mxu0
      %v812 = vadd.f32 0.0, %v811
      %v813 = vpop.f32.mrb[0].mxu0
      %v814 = vpop.f32.mrb[0].mxu0
      %v815 = vadd.f32 0.0, %v814
      %v816 = vpop.f32.mrb[0].mxu0
      %817 = vmatprep.mubr.bf16.mxu0 0
      %818 = vmatmul.mubr.bf16.gmra.mrb[0].mxu0 %v727
      %v819 = vpop.f32.mrb[0].mxu0
      %v820 = vadd.f32 0.0, %v819
      %v821 = vpop.f32.mrb[0].mxu0
      %v822 = vpop.f32.mrb[0].mxu0
      %v823 = vadd.f32 0.0, %v822
      %v824 = vpop.f32.mrb[0].mxu0
      %825 = vdwg.mxu0
      %v826 = vadd.f32 %v603, %v764
      %v827 = vadd.f32 %v606, %v767
      %v828 = vadd.f32 %v611, %v772
      %v829 = vadd.f32 %v614, %v775
      %v830 = vadd.f32 %v619, %v780
      %v831 = vadd.f32 %v622, %v783
      %v832 = vadd.f32 %v627, %v788
      %v833 = vadd.f32 %v630, %v791
      %v834 = vadd.f32 %v635, %v796
      %v835 = vadd.f32 %v638, %v799
      %v836 = vadd.f32 %v643, %v804
      %v837 = vadd.f32 %v646, %v807
      %v838 = vadd.f32 %v651, %v812
      %v839 = vadd.f32 %v654, %v815
      %v840 = vadd.f32 %v659, %v820
      %v841 = vadd.f32 %v662, %v823
      %v842 = vpack.c.bf16 %v827, %v826
      %v843 = vpack.c.bf16 %v829, %v828
      %v844 = vpack.c.bf16 %v831, %v830
      %v845 = vpack.c.bf16 %v833, %v832
      %v846 = vpack.c.bf16 %v835, %v834
      %v847 = vpack.c.bf16 %v837, %v836
      %v848 = vpack.c.bf16 %v839, %v838
      %v849 = vpack.c.bf16 %v841, %v840
      %v858 = vunpack.c.l.b16 %v842
      %v859 = vunpack.c.h.b16 %v842
      %v860 = vunpack.c.l.b16 %v843
      %v861 = vunpack.c.h.b16 %v843
      %v862 = vunpack.c.l.b16 %v844
      %v863 = vunpack.c.h.b16 %v844
      %v864 = vunpack.c.l.b16 %v845
      %v865 = vunpack.c.h.b16 %v845
      %v866 = vunpack.c.l.b16 %v846
      %v867 = vunpack.c.h.b16 %v846
      %v868 = vunpack.c.l.b16 %v847
      %v869 = vunpack.c.h.b16 %v847
      %v870 = vunpack.c.l.b16 %v848
      %v871 = vunpack.c.h.b16 %v848
      %v872 = vunpack.c.l.b16 %v849
      %v873 = vunpack.c.h.b16 %v849
      %v874 = vpack.c.b16 %v858, %v858
      %v875 = vpack.c.b16 %v859, %v859
      %v876 = vpack.c.b16 %v860, %v860
      %v877 = vpack.c.b16 %v861, %v861
      %v878 = vpack.c.b16 %v862, %v862
      %v879 = vpack.c.b16 %v863, %v863
      %v880 = vpack.c.b16 %v864, %v864
      %v881 = vpack.c.b16 %v865, %v865
      %v882 = vpack.c.b16 %v866, %v866
      %v883 = vpack.c.b16 %v867, %v867
      %v884 = vpack.c.b16 %v868, %v868
      %v885 = vpack.c.b16 %v869, %v869
      %v886 = vpack.c.b16 %v870, %v870
      %v887 = vpack.c.b16 %v871, %v871
      %v888 = vpack.c.b16 %v872, %v872
      %v889 = vpack.c.b16 %v873, %v873
      %906 = vst [vmem:[%s350] sm:$0xf] %v874
      %907 = vst [vmem:[%s350 + $0x4] sm:$0xf] %v875
      %908 = vst [vmem:[%s350 + $0x8] sm:$0xf] %v876
      %909 = vst [vmem:[%s350 + $0xc] sm:$0xf] %v877
      %910 = vst [vmem:[%s350 + $0x10] sm:$0xf] %v878
      %911 = vst [vmem:[%s350 + $0x14] sm:$0xf] %v879
      %912 = vst [vmem:[%s350 + $0x18] sm:$0xf] %v880
      %913 = vst [vmem:[%s350 + $0x1c] sm:$0xf] %v881
      %914 = vst [vmem:[%s350 + $0x20] sm:$0xf] %v882
      %915 = vst [vmem:[%s350 + $0x24] sm:$0xf] %v883
      %916 = vst [vmem:[%s350 + $0x28] sm:$0xf] %v884
      %917 = vst [vmem:[%s350 + $0x2c] sm:$0xf] %v885
      %918 = vst [vmem:[%s350 + $0x30] sm:$0xf] %v886
      %919 = vst [vmem:[%s350 + $0x34] sm:$0xf] %v887
      %920 = vst [vmem:[%s350 + $0x38] sm:$0xf] %v888
      %921 = vst [vmem:[%s350 + $0x3c] sm:$0xf] %v889
      %s922 = smul.u32 8, %s22
      %p923 = scmp.lt.s32.totalorder %s21, 1
      %s924 = scalar_select %p923, %s21, 1
      %p925 = scmp.lt.s32.totalorder %s922, 15
      %s926 = scalar_select %p925, %s922, 15
      %s927 = smul.addr %s926, 2
      %s928 = smul.addr %s924, 32
      %s929 = sadd.s32 %s927, %s928
      %s930 = smul.addr %s929, 4
      %s931 = scalar_lea.vmem %s6, %s930
      // Predicated region
      $region45: #{_lambda_.7} parent=43 // pred_check
        %p932 = pneg %p197
      $region46: #{_lambda_.7} parent=43 // pred_check_branch
        %934 = sbr.rel (%p932) target = $region48
      $region47: #{_lambda_.7} parent=43 // pred_region
        %s935 = smul.u32 8, %s22
      $region48: #{_lambda_.7} parent=43 // pred_fallthru
        _
    $region44: #{_lambda_.7} parent=5 // pred_fallthru
      _
    %p936 = scmp.le.s32.totalorder 2, %s12
    // Predicated region
    $region49: #{_lambda_.7} parent=5 // pred_check
      %p937 = pneg %p936
    $region50: #{_lambda_.7} parent=5 // pred_check_branch
      %939 = sbr.rel (%p937) target = $region52
    $region51: #{_lambda_.7} parent=5 // pred_region
      %s940 = ssub.s32 %s12, 2
      // Predicated region
      $region53: #{_lambda_.7} parent=51 // pred_check
        %p941 = pneg %p203
      $region54: #{_lambda_.7} parent=51 // pred_check_branch
        %943 = sbr.rel (%p941) target = $region56
      $region55: #{_lambda_.7} parent=51 // pred_region
        %s944 = smul.u32 8, %s24
        %p945 = scmp.lt.s32.totalorder %s23, 1
        %s946 = scalar_select %p945, %s23, 1
        %p947 = scmp.lt.s32.totalorder %s944, 15
        %s948 = scalar_select %p947, %s944, 15
        %s949 = smul.addr %s948, 2
        %s950 = smul.addr %s946, 32
        %s951 = sadd.s32 %s949, %s950
        %s952 = smul.addr %s951, 4
        %s953 = scalar_lea.vmem %s6, %s952
      $region56: #{_lambda_.7} parent=51 // pred_fallthru
        _
    $region52: #{_lambda_.7} parent=5 // pred_fallthru
      _
  $region6: #{_lambda_.7} parent=0 // loop_footer
    %s16 = sadd.s32 1, %s12
  $region7: #{_lambda_.7} parent=0 // loop_footer_branch
    %11 = sbr.rel target = $region3
  $region8: #{_lambda_.7} parent=0 // loop_exit
    _

// kernel: _lambda_.5
$region0: #{_lambda_.5}
  #allocation0 [shape = 'u32[]', space=smem, size = 0x4, offset = 0x4, fixed_abs, tag = 'smem constant byte address 0x4 - core index']
  #allocation1 [shape = 'u32[144,128]{1,0:T(1,128)}', space=vmem, size = 0x12000, scoped, tag = 'internal scratch']
  %s0 = inlined_call_operand.vmem [shape: bf16[2,10,10,128], index: 0, kind: input, shape index: {}]
  %s1 = inlined_call_operand.vmem [shape: bf16[9,128,128], index: 1, kind: input, shape index: {}]
  %s2 = inlined_call_operand.vmem [shape: f32[1,128], index: 2, kind: input, shape index: {}]
  %s3 = inlined_call_operand.vmem [shape: bf16[2,8,8,128], index: 3, kind: output, shape index: {}]
  %s4 = sld [smem:[#allocation0]]
  $region45: #{_lambda_.5} parent=0
    _
  %s6 = ssub.s32 1, %s4
  %s7 = scalar_select 0, %s6, %s4
  loop: start=0, step=1, limit=4
  $region2: #{_lambda_.5} parent=0 // loop_pre_header
    _
  $region3: #{_lambda_.5} parent=0 // loop_header
    %s9 = sphi 0, %s13
    %p10 = scmp.ge.s32.totalorder %s9, 4
    %s16 = sphi 0, %s28
    %s17 = sphi 0, %s24
    %s18 = sphi 0, %s16
    %s19 = sphi 0, %s17
    %s20 = sphi 0, %s18
    %s21 = sphi 0, %s19
    %s31 = sphi 0, %s33
    %s34 = sphi 0, %s31
    %s35 = sphi 0, %s34
    %s51 = sphi 0, %s35
    %s55 = sphi 0, %s55
    %s57 = sphi 0, %s55
    %s58 = sphi 0, %s57
    %s72 = sphi 0, %s58
    %s76 = sphi 0, %s76
    %s78 = sphi 0, %s76
    %s79 = sphi 0, %s78
    %s93 = sphi 0, %s79
    %s101 = sphi 0, %s103
    %s104 = sphi 0, %s101
    %s105 = sphi 0, %s104
    %s121 = sphi 0, %s105
  $region4: #{_lambda_.5} parent=0 // loop_header_branch
    %12 = sbr.rel (%p10) target = $region8
  $region5: #{_lambda_.5} parent=0 // loop_body
    %s14 = ssub.s32 %s9, 1
    %s15 = ssub.s32 %s9, 2
    %s22 = sadd.s32 1, %s17
    %p23 = scmp.ge.s32.totalorder %s22, 1
    %s24 = scalar_select %p23, 0, %s22
    %s25 = sadd.s32 1, %s16
    %s26 = scalar_select %p23, %s25, %s16
    %p27 = scmp.ge.s32.totalorder %s26, 2
    %s28 = scalar_select %p27, 0, %s26
    %s29 = ssub.s32 %s16, %s28
    %p30 = scmp.eq.s32.totalorder %s29, 0
    %s32 = sadd.s32 %s31, 1
    %s33 = scalar_select %p30, %s31, %s32
    %p36 = pneg %p30
    %p37 = scmp.eq.s32.totalorder %s9, 1
    %p38 = por %p36, %p37
    %p39 = scmp.ne.s32.totalorder %s31, %s34
    %p40 = scmp.eq.s32.totalorder %s9, 0
    %p41 = por %p39, %p40
    %p42 = scmp.ne.s32.totalorder %s31, %s34
    %p43 = scmp.eq.s32.totalorder %s14, 1
    %p44 = por %p42, %p43
    %p45 = scmp.ne.s32.totalorder %s34, %s35
    %p46 = scmp.eq.s32.totalorder %s14, 0
    %p47 = por %p45, %p46
    %p48 = scmp.ne.s32.totalorder %s34, %s35
    %p49 = scmp.eq.s32.totalorder %s15, 1
    %p50 = por %p48, %p49
    %p52 = scmp.ne.s32.totalorder %s35, %s51
    %p53 = scmp.eq.s32.totalorder %s15, 0
    %p54 = por %p52, %p53
    %s56 = sadd.s32 %s55, 1
    %p59 = scmp.eq.s32.totalorder %s9, 1
    %p60 = scmp.ne.s32.totalorder %s55, %s57
    %p61 = scmp.eq.s32.totalorder %s9, 0
    %p62 = por %p60, %p61
    %p63 = scmp.ne.s32.totalorder %s55, %s57
    %p64 = scmp.eq.s32.totalorder %s14, 1
    %p65 = por %p63, %p64
    %p66 = scmp.ne.s32.totalorder %s57, %s58
    %p67 = scmp.eq.s32.totalorder %s14, 0
    %p68 = por %p66, %p67
    %p69 = scmp.ne.s32.totalorder %s57, %s58
    %p70 = scmp.eq.s32.totalorder %s15, 1
    %p71 = por %p69, %p70
    %p73 = scmp.ne.s32.totalorder %s58, %s72
    %p74 = scmp.eq.s32.totalorder %s15, 0
    %p75 = por %p73, %p74
    %s77 = sadd.s32 %s76, 1
    %p80 = scmp.eq.s32.totalorder %s9, 1
    %p81 = scmp.ne.s32.totalorder %s76, %s78
    %p82 = scmp.eq.s32.totalorder %s9, 0
    %p83 = por %p81, %p82
    %p84 = scmp.ne.s32.totalorder %s76, %s78
    %p85 = scmp.eq.s32.totalorder %s14, 1
    %p86 = por %p84, %p85
    %p87 = scmp.ne.s32.totalorder %s78, %s79
    %p88 = scmp.eq.s32.totalorder %s14, 0
    %p89 = por %p87, %p88
    %p90 = scmp.ne.s32.totalorder %s78, %s79
    %p91 = scmp.eq.s32.totalorder %s15, 1
    %p92 = por %p90, %p91
    %p94 = scmp.ne.s32.totalorder %s79, %s93
    %p95 = scmp.eq.s32.totalorder %s15, 0
    %p96 = por %p94, %p95
    %s97 = ssub.s32 %s16, %s28
    %s98 = ssub.s32 %s17, %s24
    %s99 = sor.u32 %s97, %s98
    %p100 = scmp.eq.s32.totalorder %s99, 0
    %s102 = sadd.s32 %s101, 1
    %s103 = scalar_select %p100, %s101, %s102
    %p106 = pneg %p100
    %p107 = scmp.eq.s32.totalorder %s9, 1
    %p108 = por %p106, %p107
    %p109 = scmp.ne.s32.totalorder %s101, %s104
    %p110 = scmp.eq.s32.totalorder %s9, 0
    %p111 = por %p109, %p110
    %p112 = scmp.ne.s32.totalorder %s101, %s104
    %p113 = scmp.eq.s32.totalorder %s14, 1
    %p114 = por %p112, %p113
    %p115 = scmp.ne.s32.totalorder %s104, %s105
    %p116 = scmp.eq.s32.totalorder %s14, 0
    %p117 = por %p115, %p116
    %p118 = scmp.ne.s32.totalorder %s104, %s105
    %p119 = scmp.eq.s32.totalorder %s15, 1
    %p120 = por %p118, %p119
    %p122 = scmp.ne.s32.totalorder %s105, %s121
    %p123 = scmp.eq.s32.totalorder %s15, 0
    %p124 = por %p122, %p123
    %p125 = scmp.le.s32.totalorder 1, %s9
    %p126 = scmp.lt.s32.totalorder %s9, 3
    %p127 = pnand %p125, %p126
    %p128 = pneg %p127
    // Predicated region
    $region9: #{_lambda_.5} parent=5 // pred_check
      _
    $region10: #{_lambda_.5} parent=5 // pred_check_branch
      %130 = sbr.rel (%p127) target = $region12
    $region11: #{_lambda_.5} parent=5 // pred_region
      %s131 = ssub.s32 %s9, 1
      // Predicated region
      $region13: #{_lambda_.5} parent=11 // pred_check
        %p132 = pneg %p68
      $region14: #{_lambda_.5} parent=11 // pred_check_branch
        %134 = sbr.rel (%p132) target = $region16
      $region15: #{_lambda_.5} parent=11 // pred_region
        _
      $region16: #{_lambda_.5} parent=11 // pred_fallthru
        _
      // Predicated region
      $region17: #{_lambda_.5} parent=11 // pred_check
        %p135 = pneg %p89
      $region18: #{_lambda_.5} parent=11 // pred_check_branch
        %137 = sbr.rel (%p135) target = $region20
      $region19: #{_lambda_.5} parent=11 // pred_region
        _
      $region20: #{_lambda_.5} parent=11 // pred_fallthru
        _
    $region12: #{_lambda_.5} parent=5 // pred_fallthru
      _
    %p138 = scmp.lt.s32.totalorder %s9, 2
    // Predicated region
    $region21: #{_lambda_.5} parent=5 // pred_check
      %p139 = pneg %p138
    $region22: #{_lambda_.5} parent=5 // pred_check_branch
      %141 = sbr.rel (%p139) target = $region24
    $region23: #{_lambda_.5} parent=5 // pred_region
      // Predicated region
      $region25: #{_lambda_.5} parent=23 // pred_check
        %p142 = pneg %p41
      $region26: #{_lambda_.5} parent=23 // pred_check_branch
        %144 = sbr.rel (%p142) target = $region28
      $region27: #{_lambda_.5} parent=23 // pred_region
        %p145 = scmp.lt.s32.totalorder %s16, 1
        %s146 = scalar_select %p145, %s16, 1
        %s147 = smul.addr %s146, 20
        %s148 = smul.addr %s147, 4
        %s149 = scalar_lea.vmem %s0, %s148
      $region28: #{_lambda_.5} parent=23 // pred_fallthru
        _
    $region24: #{_lambda_.5} parent=5 // pred_fallthru
      _
    %p150 = scmp.le.s32.totalorder 1, %s9
    %p151 = scmp.lt.s32.totalorder %s9, 3
    %p152 = pnand %p150, %p151
    %p153 = pneg %p152
    // Predicated region
    $region29: #{_lambda_.5} parent=5 // pred_check
      _
    $region30: #{_lambda_.5} parent=5 // pred_check_branch
      %155 = sbr.rel (%p152) target = $region32
    $region31: #{_lambda_.5} parent=5 // pred_region
      %s156 = ssub.s32 %s9, 1
      %p157 = scmp.lt.s32.totalorder %s18, 1
      %s158 = scalar_select %p157, %s18, 1
      %s159 = smul.addr %s158, 20
      %s160 = smul.addr %s159, 4
      %s161 = scalar_lea.vmem %s0, %s160
      %p162 = pneg %p47
      %p163 = pneg %p44
      %p164 = pneg %p68
      %p165 = pneg %p65
      %p166 = pneg %p89
      %p167 = pneg %p86
      %p168 = pneg %p117
      %p169 = pneg %p114
      %s170 = smul.u32 8, %s19
      %p171 = scmp.lt.s32.totalorder %s18, 1
      %s172 = scalar_select %p171, %s18, 1
      %p173 = scmp.lt.s32.totalorder %s170, 7
      %s174 = scalar_select %p173, %s170, 7
      %s175 = smul.addr %s172, 8
      %s176 = sadd.s32 %s174, %s175
      %s177 = smul.addr %s176, 4
      %s178 = scalar_lea.vmem %s3, %s177
      %p179 = scmp.lt.s32.totalorder %s18, 1
      %s180 = scalar_select %p179, %s18, 1
      %s181 = smul.addr %s180, 20
      %s182 = smul.addr %s181, 4
      %s183 = scalar_lea.vmem %s0, %s182
      %s184 = smul.u32 8, %s19
      %p185 = scmp.lt.s32.totalorder %s18, 1
      %s186 = scalar_select %p185, %s18, 1
      %p187 = scmp.lt.s32.totalorder %s184, 7
      %s188 = scalar_select %p187, %s184, 7
      %s189 = smul.addr %s186, 8
      %s190 = sadd.s32 %s188, %s189
      %s191 = smul.addr %s190, 4
      %s192 = scalar_lea.vmem %s3, %s191
      %s193 = smul.u32 8, %s19
      %s195 = smul.u32 %s19, 8
      %s196 = smul.u32 %s195, 2
      %s197 = smul.addr %s196, 4
      %s198 = scalar_lea.vmem %s183, %s197
      %v199 = vld [vmem:[%s198] sm:$0xf]
      %v200 = vld [vmem:[%s198 + $0x4] sm:$0x1]
      %v201 = vld [vmem:[%s198 + $0x8] sm:$0xf]
      %v202 = vld [vmem:[%s198 + $0xc] sm:$0x1]
      %v203 = vld [vmem:[%s198 + $0x10] sm:$0xf]
      %v204 = vld [vmem:[%s198 + $0x14] sm:$0x1]
      %v205 = vld [vmem:[%s198 + $0x18] sm:$0xf]
      %v206 = vld [vmem:[%s198 + $0x1c] sm:$0x1]
      %v207 = vld [vmem:[%s198 + $0x20] sm:$0xf]
      %v208 = vld [vmem:[%s198 + $0x24] sm:$0x1]
      %v209 = vld [vmem:[%s198 + $0x28] sm:$0xf]
      %v210 = vld [vmem:[%s198 + $0x2c] sm:$0x1]
      %v211 = vld [vmem:[%s198 + $0x30] sm:$0xf]
      %v212 = vld [vmem:[%s198 + $0x34] sm:$0x1]
      %v213 = vld [vmem:[%s198 + $0x38] sm:$0xf]
      %v214 = vld [vmem:[%s198 + $0x3c] sm:$0x1]
      %v215 = vld [vmem:[%s198 + $0x40] sm:$0xf]
      %v216 = vld [vmem:[%s198 + $0x44] sm:$0x1]
      %v217 = vld [vmem:[%s198 + $0x48] sm:$0xf]
      %v218 = vld [vmem:[%s198 + $0x4c] sm:$0x1]
      %v219 = vld [vmem:[%s1] sm:$0xf]
      %v220 = vld [vmem:[%s1 + $0x4] sm:$0xf]
      %v221 = vld [vmem:[%s1 + $0x8] sm:$0xf]
      %v222 = vld [vmem:[%s1 + $0xc] sm:$0xf]
      %v223 = vld [vmem:[%s1 + $0x10] sm:$0xf]
      %v224 = vld [vmem:[%s1 + $0x14] sm:$0xf]
      %v225 = vld [vmem:[%s1 + $0x18] sm:$0xf]
      %v226 = vld [vmem:[%s1 + $0x1c] sm:$0xf]
      %v227 = vld [vmem:[%s1 + $0x20] sm:$0xf]
      %v228 = vld [vmem:[%s1 + $0x24] sm:$0xf]
      %v229 = vld [vmem:[%s1 + $0x28] sm:$0xf]
      %v230 = vld [vmem:[%s1 + $0x2c] sm:$0xf]
      %v231 = vld [vmem:[%s1 + $0x30] sm:$0xf]
      %v232 = vld [vmem:[%s1 + $0x34] sm:$0xf]
      %v233 = vld [vmem:[%s1 + $0x38] sm:$0xf]
      %v234 = vld [vmem:[%s1 + $0x3c] sm:$0xf]
      %vm235 = vsmask.f32 3328
      %vm236 = vsmask.f32 7440
      %vm237 = vmor %vm235, %vm236
      %v239 = vshrl.u32 %v199, 16
      %v241 = vrot.slane %v239, 4
      %v242 = vshll.u32 %v199, 16
      %v244 = vrot.slane %v242, 5
      %v245 = vor.u32 %v241, %v244
      %v246 = vrot.slane %v245, 4
      %v248 = vshll.u32 %v200, 16
      %v250 = vrot.slane %v248, 5
      %v251 = vsel %vm237, %v246, %v250
      %v253 = vshrl.u32 %v201, 16
      %v255 = vrot.slane %v253, 4
      %v256 = vshll.u32 %v201, 16
      %v258 = vrot.slane %v256, 5
      %v259 = vor.u32 %v255, %v258
      %v260 = vrot.slane %v259, 4
      %v262 = vshll.u32 %v202, 16
      %v264 = vrot.slane %v262, 5
      %v265 = vsel %vm237, %v260, %v264
      %v267 = vshrl.u32 %v203, 16
      %v269 = vrot.slane %v267, 4
      %v270 = vshll.u32 %v203, 16
      %v272 = vrot.slane %v270, 5
      %v273 = vor.u32 %v269, %v272
      %v274 = vrot.slane %v273, 4
      %v276 = vshll.u32 %v204, 16
      %v278 = vrot.slane %v276, 5
      %v279 = vsel %vm237, %v274, %v278
      %v281 = vshrl.u32 %v205, 16
      %v283 = vrot.slane %v281, 4
      %v284 = vshll.u32 %v205, 16
      %v286 = vrot.slane %v284, 5
      %v287 = vor.u32 %v283, %v286
      %v288 = vrot.slane %v287, 4
      %v290 = vshll.u32 %v206, 16
      %v292 = vrot.slane %v290, 5
      %v293 = vsel %vm237, %v288, %v292
      %v295 = vshrl.u32 %v207, 16
      %v297 = vrot.slane %v295, 4
      %v298 = vshll.u32 %v207, 16
      %v300 = vrot.slane %v298, 5
      %v301 = vor.u32 %v297, %v300
      %v302 = vrot.slane %v301, 4
      %v304 = vshll.u32 %v208, 16
      %v306 = vrot.slane %v304, 5
      %v307 = vsel %vm237, %v302, %v306
      %v309 = vshrl.u32 %v209, 16
      %v311 = vrot.slane %v309, 4
      %v312 = vshll.u32 %v209, 16
      %v314 = vrot.slane %v312, 5
      %v315 = vor.u32 %v311, %v314
      %v316 = vrot.slane %v315, 4
      %v318 = vshll.u32 %v210, 16
      %v320 = vrot.slane %v318, 5
      %v321 = vsel %vm237, %v316, %v320
      %v323 = vshrl.u32 %v211, 16
      %v325 = vrot.slane %v323, 4
      %v326 = vshll.u32 %v211, 16
      %v328 = vrot.slane %v326, 5
      %v329 = vor.u32 %v325, %v328
      %v330 = vrot.slane %v329, 4
      %v332 = vshll.u32 %v212, 16
      %v334 = vrot.slane %v332, 5
      %v335 = vsel %vm237, %v330, %v334
      %v337 = vshrl.u32 %v213, 16
      %v339 = vrot.slane %v337, 4
      %v340 = vshll.u32 %v213, 16
      %v342 = vrot.slane %v340, 5
      %v343 = vor.u32 %v339, %v342
      %v344 = vrot.slane %v343, 4
      %v346 = vshll.u32 %v214, 16
      %v348 = vrot.slane %v346, 5
      %v349 = vsel %vm237, %v344, %v348
      %s350 = scalar_lea.vmem %s1, 64
      %v351 = vld [vmem:[%s350] sm:$0xf]
      %v352 = vld [vmem:[%s350 + $0x4] sm:$0xf]
      %v353 = vld [vmem:[%s350 + $0x8] sm:$0xf]
      %v354 = vld [vmem:[%s350 + $0xc] sm:$0xf]
      %v355 = vld [vmem:[%s350 + $0x10] sm:$0xf]
      %v356 = vld [vmem:[%s350 + $0x14] sm:$0xf]
      %v357 = vld [vmem:[%s350 + $0x18] sm:$0xf]
      %v358 = vld [vmem:[%s350 + $0x1c] sm:$0xf]
      %v359 = vld [vmem:[%s350 + $0x20] sm:$0xf]
      %v360 = vld [vmem:[%s350 + $0x24] sm:$0xf]
      %v361 = vld [vmem:[%s350 + $0x28] sm:$0xf]
      %v362 = vld [vmem:[%s350 + $0x2c] sm:$0xf]
      %v363 = vld [vmem:[%s350 + $0x30] sm:$0xf]
      %v364 = vld [vmem:[%s350 + $0x34] sm:$0xf]
      %v365 = vld [vmem:[%s350 + $0x38] sm:$0xf]
      %v366 = vld [vmem:[%s350 + $0x3c] sm:$0xf]
      %v367 = vunpack.c.l.b16 %v251
      %v368 = vunpack.c.l.b16 %v265
      %v369 = vunpack.c.l.b16 %v279
      %v370 = vunpack.c.l.b16 %v293
      %v371 = vunpack.c.l.b16 %v307
      %v372 = vunpack.c.l.b16 %v321
      %v373 = vunpack.c.l.b16 %v335
      %v374 = vunpack.c.l.b16 %v349
      %v375 = vpack.c.b16 %v368, %v367
      %v376 = vpack.c.b16 %v370, %v369
      %v377 = vpack.c.b16 %v372, %v371
      %v378 = vpack.c.b16 %v374, %v373
      %v399 = vunpack.c.l.b16 %v351
      %v400 = vunpack.c.l.b16 %v352
      %v401 = vunpack.c.l.b16 %v353
      %v402 = vunpack.c.l.b16 %v354
      %v403 = vunpack.c.l.b16 %v355
      %v404 = vunpack.c.l.b16 %v356
      %v405 = vunpack.c.l.b16 %v357
      %v406 = vunpack.c.l.b16 %v358
      %v407 = vunpack.c.l.b16 %v359
      %v408 = vunpack.c.l.b16 %v360
      %v409 = vunpack.c.l.b16 %v361
      %v410 = vunpack.c.l.b16 %v362
      %v411 = vunpack.c.l.b16 %v363
      %v412 = vunpack.c.l.b16 %v364
      %v413 = vunpack.c.l.b16 %v365
      %v414 = vunpack.c.l.b16 %v366
      %v415 = vpack.c.b16 %v400, %v399
      %v416 = vpack.c.b16 %v402, %v401
      %v417 = vpack.c.b16 %v404, %v403
      %v418 = vpack.c.b16 %v406, %v405
      %v419 = vpack.c.b16 %v408, %v407
      %v420 = vpack.c.b16 %v410, %v409
      %v421 = vpack.c.b16 %v412, %v411
      %v422 = vpack.c.b16 %v414, %v413
      %431 = vmatprep.subr.bf16.mxu0 0
      %432 = vmatpush1.bf16.msra.mxu0 %v415
      %433 = vmatprep.subr.bf16.mxu0 0
      %434 = vmatpush1.bf16.msra.mxu0 %v416
      %435 = vmatprep.subr.bf16.mxu0 0
      %436 = vmatpush1.bf16.msra.mxu0 %v417
      %437 = vmatprep.subr.bf16.mxu0 0
      %438 = vmatpush1.bf16.msra.mxu0 %v418
      %439 = vmatprep.subr.bf16.mxu0 0
      %440 = vmatpush1.bf16.msra.mxu0 %v419
      %441 = vmatprep.subr.bf16.mxu0 0
      %442 = vmatpush1.bf16.msra.mxu0 %v420
      %443 = vmatprep.subr.bf16.mxu0 0
      %444 = vmatpush1.bf16.msra.mxu0 %v421
      %445 = vmatprep.subr.bf16.mxu0 0
      %446 = vmatpush1.bf16.msra.mxu0 %v422
      %447 = vmatprep.subr.bf16.mxu0 0
      %448 = vmatpush1.bf16.msra.mxu0 0
      %449 = vmatprep.subr.bf16.mxu0 0
      %450 = vmatpush1.bf16.msra.mxu0 0
      %451 = vmatprep.subr.bf16.mxu0 0
      %452 = vmatpush1.bf16.msra.mxu0 0
      %453 = vmatprep.subr.bf16.mxu0 0
      %454 = vmatpush1.bf16.msra.mxu0 0
      %455 = vmatprep.subr.bf16.mxu0 0
      %456 = vmatpush1.bf16.msra.mxu0 0
      %457 = vmatprep.subr.bf16.mxu0 0
      %458 = vmatpush1.bf16.msra.mxu0 0
      %459 = vmatprep.subr.bf16.mxu0 0
      %460 = vmatpush1.bf16.msra.mxu0 0
      %461 = vmatprep.subr.bf16.mxu0 0
      %462 = vmatpush1.bf16.msra.mxu0 0
      %463 = vmatprep.mubr.bf16.mxu0 0
      %464 = vmatmul.mubr.bf16.gmra.mrb[0].mxu0 %v375
      %v465 = vpop.f32.mrb[0].mxu0
      %v466 = vadd.f32 0.0, %v465
      %v467 = vpop.f32.mrb[0].mxu0
      %v468 = vpop.f32.mrb[0].mxu0
      %v469 = vadd.f32 0.0, %v468
      %v470 = vpop.f32.mrb[0].mxu0
      %471 = vmatprep.mubr.bf16.mxu0 0
      %472 = vmatmul.mubr.bf16.gmra.mrb[0].mxu0 %v376
      %v473 = vpop.f32.mrb[0].mxu0
      %v474 = vadd.f32 0.0, %v473
      %v475 = vpop.f32.mrb[0].mxu0
      %v476 = vpop.f32.mrb[0].mxu0
      %v477 = vadd.f32 0.0, %v476
      %v478 = vpop.f32.mrb[0].mxu0
      %479 = vmatprep.mubr.bf16.mxu0 0
      %480 = vmatmul.mubr.bf16.gmra.mrb[0].mxu0 %v377
      %v481 = vpop.f32.mrb[0].mxu0
      %v482 = vadd.f32 0.0, %v481
      %v483 = vpop.f32.mrb[0].mxu0
      %v484 = vpop.f32.mrb[0].mxu0
      %v485 = vadd.f32 0.0, %v484
      %v486 = vpop.f32.mrb[0].mxu0
      %487 = vmatprep.mubr.bf16.mxu0 0
      %488 = vmatmul.mubr.bf16.gmra.mrb[0].mxu0 %v378
      %v489 = vpop.f32.mrb[0].mxu0
      %v490 = vadd.f32 0.0, %v489
      %v491 = vpop.f32.mrb[0].mxu0
      %v492 = vpop.f32.mrb[0].mxu0
      %v493 = vadd.f32 0.0, %v492
      %v494 = vpop.f32.mrb[0].mxu0
      %495 = vdwg.mxu0
      %v504 = vunpack.c.l.b16 %v199
      %v505 = vunpack.c.l.b16 %v201
      %v506 = vunpack.c.l.b16 %v203
      %v507 = vunpack.c.l.b16 %v205
      %v508 = vunpack.c.l.b16 %v207
      %v509 = vunpack.c.l.b16 %v209
      %v510 = vunpack.c.l.b16 %v211
      %v511 = vunpack.c.l.b16 %v213
      %v512 = vpack.c.b16 %v505, %v504
      %v513 = vpack.c.b16 %v507, %v506
      %v514 = vpack.c.b16 %v509, %v508
      %v515 = vpack.c.b16 %v511, %v510
      %v536 = vunpack.c.l.b16 %v219
      %v537 = vunpack.c.l.b16 %v220
      %v538 = vunpack.c.l.b16 %v221
      %v539 = vunpack.c.l.b16 %v222
      %v540 = vunpack.c.l.b16 %v223
      %v541 = vunpack.c.l.b16 %v224
      %v542 = vunpack.c.l.b16 %v225
      %v543 = vunpack.c.l.b16 %v226
      %v544 = vunpack.c.l.b16 %v227
      %v545 = vunpack.c.l.b16 %v228
      %v546 = vunpack.c.l.b16 %v229
      %v547 = vunpack.c.l.b16 %v230
      %v548 = vunpack.c.l.b16 %v231
      %v549 = vunpack.c.l.b16 %v232
      %v550 = vunpack.c.l.b16 %v233
      %v551 = vunpack.c.l.b16 %v234
      %v552 = vpack.c.b16 %v537, %v536
      %v553 = vpack.c.b16 %v539, %v538
      %v554 = vpack.c.b16 %v541, %v540
      %v555 = vpack.c.b16 %v543, %v542
      %v556 = vpack.c.b16 %v545, %v544
      %v557 = vpack.c.b16 %v547, %v546
      %v558 = vpack.c.b16 %v549, %v548
      %v559 = vpack.c.b16 %v551, %v550
      %568 = vmatprep.subr.bf16.mxu0 0
      %569 = vmatpush1.bf16.msra.mxu0 %v552
      %570 = vmatprep.subr.bf16.mxu0 0
      %571 = vmatpush1.bf16.msra.mxu0 %v553
      %572 = vmatprep.subr.bf16.mxu0 0
      %573 = vmatpush1.bf16.msra.mxu0 %v554
      %574 = vmatprep.subr.bf16.mxu0 0
      %575 = vmatpush1.bf16.msra.mxu0 %v555
      %576 = vmatprep.subr.bf16.mxu0 0
      %577 = vmatpush1.bf16.msra.mxu0 %v556
      %578 = vmatprep.subr.bf16.mxu0 0
      %579 = vmatpush1.bf16.msra.mxu0 %v557
      %580 = vmatprep.subr.bf16.mxu0 0
      %581 = vmatpush1.bf16.msra.mxu0 %v558
      %582 = vmatprep.subr.bf16.mxu0 0
      %583 = vmatpush1.bf16.msra.mxu0 %v559
      %584 = vmatprep.subr.bf16.mxu0 0
      %585 = vmatpush1.bf16.msra.mxu0 0
      %586 = vmatprep.subr.bf16.mxu0 0
      %587 = vmatpush1.bf16.msra.mxu0 0
      %588 = vmatprep.subr.bf16.mxu0 0
      %589 = vmatpush1.bf16.msra.mxu0 0
      %590 = vmatprep.subr.bf16.mxu0 0
      %591 = vmatpush1.bf16.msra.mxu0 0
      %592 = vmatprep.subr.bf16.mxu0 0
      %593 = vmatpush1.bf16.msra.mxu0 0
      %594 = vmatprep.subr.bf16.mxu0 0
      %595 = vmatpush1.bf16.msra.mxu0 0
      %596 = vmatprep.subr.bf16.mxu0 0
      %597 = vmatpush1.bf16.msra.mxu0 0
      %598 = vmatprep.subr.bf16.mxu0 0
      %599 = vmatpush1.bf16.msra.mxu0 0
      %600 = vmatprep.mubr.bf16.mxu0 0
      %601 = vmatmul.mubr.bf16.gmra.mrb[0].mxu0 %v512
      %v602 = vpop.f32.mrb[0].mxu0
      %v603 = vadd.f32 %v466, %v602
      %v604 = vpop.f32.mrb[0].mxu0
      %v605 = vpop.f32.mrb[0].mxu0
      %v606 = vadd.f32 %v469, %v605
      %v607 = vpop.f32.mrb[0].mxu0
      %608 = vmatprep.mubr.bf16.mxu0 0
      %609 = vmatmul.mubr.bf16.gmra.mrb[0].mxu0 %v513
      %v610 = vpop.f32.mrb[0].mxu0
      %v611 = vadd.f32 %v474, %v610
      %v612 = vpop.f32.mrb[0].mxu0
      %v613 = vpop.f32.mrb[0].mxu0
      %v614 = vadd.f32 %v477, %v613
      %v615 = vpop.f32.mrb[0].mxu0
      %616 = vmatprep.mubr.bf16.mxu0 0
      %617 = vmatmul.mubr.bf16.gmra.mrb[0].mxu0 %v514
      %v618 = vpop.f32.mrb[0].mxu0
      %v619 = vadd.f32 %v482, %v618
      %v620 = vpop.f32.mrb[0].mxu0
      %v621 = vpop.f32.mrb[0].mxu0
      %v622 = vadd.f32 %v485, %v621
      %v623 = vpop.f32.mrb[0].mxu0
      %624 = vmatprep.mubr.bf16.mxu0 0
      %625 = vmatmul.mubr.bf16.gmra.mrb[0].mxu0 %v515
      %v626 = vpop.f32.mrb[0].mxu0
      %v627 = vadd.f32 %v490, %v626
      %v628 = vpop.f32.mrb[0].mxu0
      %v629 = vpop.f32.mrb[0].mxu0
      %v630 = vadd.f32 %v493, %v629
      %v631 = vpop.f32.mrb[0].mxu0
      %632 = vdwg.mxu0
      %vm641 = vcmask 1042432
      %vm642 = vcmask 1046532
      %vm643 = vmor %vm641, %vm642
      %v644 = vrot.slane %v199, 5
      %v645 = vrot.slane %v644, 4
      %v646 = vrot.slane %v200, 5
      %v647 = vsel %vm643, %v645, %v646
      %v648 = vrot.slane %v201, 5
      %v649 = vrot.slane %v648, 4
      %v650 = vrot.slane %v202, 5
      %v651 = vsel %vm643, %v649, %v650
      %v652 = vrot.slane %v203, 5
      %v653 = vrot.slane %v652, 4
      %v654 = vrot.slane %v204, 5
      %v655 = vsel %vm643, %v653, %v654
      %v656 = vrot.slane %v205, 5
      %v657 = vrot.slane %v656, 4
      %v658 = vrot.slane %v206, 5
      %v659 = vsel %vm643, %v657, %v658
      %v660 = vrot.slane %v207, 5
      %v661 = vrot.slane %v660, 4
      %v662 = vrot.slane %v208, 5
      %v663 = vsel %vm643, %v661, %v662
      %v664 = vrot.slane %v209, 5
      %v665 = vrot.slane %v664, 4
      %v666 = vrot.slane %v210, 5
      %v667 = vsel %vm643, %v665, %v666
      %v668 = vrot.slane %v211, 5
      %v669 = vrot.slane %v668, 4
      %v670 = vrot.slane %v212, 5
      %v671 = vsel %vm643, %v669, %v670
      %v672 = vrot.slane %v213, 5
      %v673 = vrot.slane %v672, 4
      %v674 = vrot.slane %v214, 5
      %v675 = vsel %vm643, %v673, %v674
      %s676 = scalar_lea.vmem %s1, 128
      %v677 = vld [vmem:[%s676] sm:$0xf]
      %v678 = vld [vmem:[%s676 + $0x4] sm:$0xf]
      %v679 = vld [vmem:[%s676 + $0x8] sm:$0xf]
      %v680 = vld [vmem:[%s676 + $0xc] sm:$0xf]
      %v681 = vld [vmem:[%s676 + $0x10] sm:$0xf]
      %v682 = vld [vmem:[%s676 + $0x14] sm:$0xf]
      %v683 = vld [vmem:[%s676 + $0x18] sm:$0xf]
      %v684 = vld [vmem:[%s676 + $0x1c] sm:$0xf]
      %v685 = vld [vmem:[%s676 + $0x20] sm:$0xf]
      %v686 = vld [vmem:[%s676 + $0x24] sm:$0xf]
      %v687 = vld [vmem:[%s676 + $0x28] sm:$0xf]
      %v688 = vld [vmem:[%s676 + $0x2c] sm:$0xf]
      %v689 = vld [vmem:[%s676 + $0x30] sm:$0xf]
      %v690 = vld [vmem:[%s676 + $0x34] sm:$0xf]
      %v691 = vld [vmem:[%s676 + $0x38] sm:$0xf]
      %v692 = vld [vmem:[%s676 + $0x3c] sm:$0xf]
      %v693 = vunpack.c.l.b16 %v647
      %v694 = vunpack.c.l.b16 %v651
      %v695 = vunpack.c.l.b16 %v655
      %v696 = vunpack.c.l.b16 %v659
      %v697 = vunpack.c.l.b16 %v663
      %v698 = vunpack.c.l.b16 %v667
      %v699 = vunpack.c.l.b16 %v671
      %v700 = vunpack.c.l.b16 %v675
      %v701 = vpack.c.b16 %v694, %v693
      %v702 = vpack.c.b16 %v696, %v695
      %v703 = vpack.c.b16 %v698, %v697
      %v704 = vpack.c.b16 %v700, %v699
      %v725 = vunpack.c.l.b16 %v677
      %v726 = vunpack.c.l.b16 %v678
      %v727 = vunpack.c.l.b16 %v679
      %v728 = vunpack.c.l.b16 %v680
      %v729 = vunpack.c.l.b16 %v681
      %v730 = vunpack.c.l.b16 %v682
      %v731 = vunpack.c.l.b16 %v683
      %v732 = vunpack.c.l.b16 %v684
      %v733 = vunpack.c.l.b16 %v685
      %v734 = vunpack.c.l.b16 %v686
      %v735 = vunpack.c.l.b16 %v687
      %v736 = vunpack.c.l.b16 %v688
      %v737 = vunpack.c.l.b16 %v689
      %v738 = vunpack.c.l.b16 %v690
      %v739 = vunpack.c.l.b16 %v691
      %v740 = vunpack.c.l.b16 %v692
      %v741 = vpack.c.b16 %v726, %v725
      %v742 = vpack.c.b16 %v728, %v727
      %v743 = vpack.c.b16 %v730, %v729
      %v744 = vpack.c.b16 %v732, %v731
      %v745 = vpack.c.b16 %v734, %v733
      %v746 = vpack.c.b16 %v736, %v735
      %v747 = vpack.c.b16 %v738, %v737
      %v748 = vpack.c.b16 %v740, %v739
      %757 = vmatprep.subr.bf16.mxu0 0
      %758 = vmatpush1.bf16.msra.mxu0 %v741
      %759 = vmatprep.subr.bf16.mxu0 0
      %760 = vmatpush1.bf16.msra.mxu0 %v742
      %761 = vmatprep.subr.bf16.mxu0 0
      %762 = vmatpush1.bf16.msra.mxu0 %v743
      %763 = vmatprep.subr.bf16.mxu0 0
      %764 = vmatpush1.bf16.msra.mxu0 %v744
      %765 = vmatprep.subr.bf16.mxu0 0
      %766 = vmatpush1.bf16.msra.mxu0 %v745
      %767 = vmatprep.subr.bf16.mxu0 0
      %768 = vmatpush1.bf16.msra.mxu0 %v746
      %769 = vmatprep.subr.bf16.mxu0 0
      %770 = vmatpush1.bf16.msra.mxu0 %v747
      %771 = vmatprep.subr.bf16.mxu0 0
      %772 = vmatpush1.bf16.msra.mxu0 %v748
      %773 = vmatprep.subr.bf16.mxu0 0
      %774 = vmatpush1.bf16.msra.mxu0 0
      %775 = vmatprep.subr.bf16.mxu0 0
      %776 = vmatpush1.bf16.msra.mxu0 0
      %777 = vmatprep.subr.bf16.mxu0 0
      %778 = vmatpush1.bf16.msra.mxu0 0
      %779 = vmatprep.subr.bf16.mxu0 0
      %780 = vmatpush1.bf16.msra.mxu0 0
      %781 = vmatprep.subr.bf16.mxu0 0
      %782 = vmatpush1.bf16.msra.mxu0 0
      %783 = vmatprep.subr.bf16.mxu0 0
      %784 = vmatpush1.bf16.msra.mxu0 0
      %785 = vmatprep.subr.bf16.mxu0 0
      %786 = vmatpush1.bf16.msra.mxu0 0
      %787 = vmatprep.subr.bf16.mxu0 0
      %788 = vmatpush1.bf16.msra.mxu0 0
      %789 = vmatprep.mubr.bf16.mxu0 0
      %790 = vmatmul.mubr.bf16.gmra.mrb[0].mxu0 %v701
      %v791 = vpop.f32.mrb[0].mxu0
      %v792 = vadd.f32 0.0, %v791
      %v793 = vpop.f32.mrb[0].mxu0
      %v794 = vpop.f32.mrb[0].mxu0
      %v795 = vadd.f32 0.0, %v794
      %v796 = vpop.f32.mrb[0].mxu0
      %797 = vmatprep.mubr.bf16.mxu0 0
      %798 = vmatmul.mubr.bf16.gmra.mrb[0].mxu0 %v702
      %v799 = vpop.f32.mrb[0].mxu0
      %v800 = vadd.f32 0.0, %v799
      %v801 = vpop.f32.mrb[0].mxu0
      %v802 = vpop.f32.mrb[0].mxu0
      %v803 = vadd.f32 0.0, %v802
      %v804 = vpop.f32.mrb[0].mxu0
      %805 = vmatprep.mubr.bf16.mxu0 0
      %806 = vmatmul.mubr.bf16.gmra.mrb[0].mxu0 %v703
      %v807 = vpop.f32.mrb[0].mxu0
      %v808 = vadd.f32 0.0, %v807
      %v809 = vpop.f32.mrb[0].mxu0
      %v810 = vpop.f32.mrb[0].mxu0
      %v811 = vadd.f32 0.0, %v810
      %v812 = vpop.f32.mrb[0].mxu0
      %813 = vmatprep.mubr.bf16.mxu0 0
      %814 = vmatmul.mubr.bf16.gmra.mrb[0].mxu0 %v704
      %v815 = vpop.f32.mrb[0].mxu0
      %v816 = vadd.f32 0.0, %v815
      %v817 = vpop.f32.mrb[0].mxu0
      %v818 = vpop.f32.mrb[0].mxu0
      %v819 = vadd.f32 0.0, %v818
      %v820 = vpop.f32.mrb[0].mxu0
      %821 = vdwg.mxu0
      %v822 = vadd.f32 %v603, %v792
      %v823 = vadd.f32 %v606, %v795
      %v824 = vadd.f32 %v611, %v800
      %v825 = vadd.f32 %v614, %v803
      %v826 = vadd.f32 %v619, %v808
      %v827 = vadd.f32 %v622, %v811
      %v828 = vadd.f32 %v627, %v816
      %v829 = vadd.f32 %v630, %v819
      %s830 = scalar_lea.vmem %s1, 192
      %v831 = vld [vmem:[%s830] sm:$0xf]
      %v832 = vld [vmem:[%s830 + $0x4] sm:$0xf]
      %v833 = vld [vmem:[%s830 + $0x8] sm:$0xf]
      %v834 = vld [vmem:[%s830 + $0xc] sm:$0xf]
      %v835 = vld [vmem:[%s830 + $0x10] sm:$0xf]
      %v836 = vld [vmem:[%s830 + $0x14] sm:$0xf]
      %v837 = vld [vmem:[%s830 + $0x18] sm:$0xf]
      %v838 = vld [vmem:[%s830 + $0x1c] sm:$0xf]
      %v839 = vld [vmem:[%s830 + $0x20] sm:$0xf]
      %v840 = vld [vmem:[%s830 + $0x24] sm:$0xf]
      %v841 = vld [vmem:[%s830 + $0x28] sm:$0xf]
      %v842 = vld [vmem:[%s830 + $0x2c] sm:$0xf]
      %v843 = vld [vmem:[%s830 + $0x30] sm:$0xf]
      %v844 = vld [vmem:[%s830 + $0x34] sm:$0xf]
      %v845 = vld [vmem:[%s830 + $0x38] sm:$0xf]
      %v846 = vld [vmem:[%s830 + $0x3c] sm:$0xf]
      %v848 = vunpack.c.l.b16 %v215
      %v849 = vpack.c.b16 %v506, %v505
      %v850 = vpack.c.b16 %v508, %v507
      %v851 = vpack.c.b16 %v510, %v509
      %v852 = vpack.c.b16 %v848, %v511
      %v873 = vunpack.c.l.b16 %v831
      %v874 = vunpack.c.l.b16 %v832
      %v875 = vunpack.c.l.b16 %v833
      %v876 = vunpack.c.l.b16 %v834
      %v877 = vunpack.c.l.b16 %v835
      %v878 = vunpack.c.l.b16 %v836
      %v879 = vunpack.c.l.b16 %v837
      %v880 = vunpack.c.l.b16 %v838
      %v881 = vunpack.c.l.b16 %v839
      %v882 = vunpack.c.l.b16 %v840
      %v883 = vunpack.c.l.b16 %v841
      %v884 = vunpack.c.l.b16 %v842
      %v885 = vunpack.c.l.b16 %v843
      %v886 = vunpack.c.l.b16 %v844
      %v887 = vunpack.c.l.b16 %v845
      %v888 = vunpack.c.l.b16 %v846
      %v889 = vpack.c.b16 %v874, %v873
      %v890 = vpack.c.b16 %v876, %v875
      %v891 = vpack.c.b16 %v878, %v877
      %v892 = vpack.c.b16 %v880, %v879
      %v893 = vpack.c.b16 %v882, %v881
      %v894 = vpack.c.b16 %v884, %v883
      %v895 = vpack.c.b16 %v886, %v885
      %v896 = vpack.c.b16 %v888, %v887
      %905 = vmatprep.subr.bf16.mxu0 0
      %906 = vmatpush1.bf16.msra.mxu0 %v889
      %907 = vmatprep.subr.bf16.mxu0 0
      %908 = vmatpush1.bf16.msra.mxu0 %v890
      %909 = vmatprep.subr.bf16.mxu0 0
      %910 = vmatpush1.bf16.msra.mxu0 %v891
      %911 = vmatprep.subr.bf16.mxu0 0
      %912 = vmatpush1.bf16.msra.mxu0 %v892
      %913 = vmatprep.subr.bf16.mxu0 0
      %914 = vmatpush1.bf16.msra.mxu0 %v893
      %915 = vmatprep.subr.bf16.mxu0 0
      %916 = vmatpush1.bf16.msra.mxu0 %v894
      %917 = vmatprep.subr.bf16.mxu0 0
      %918 = vmatpush1.bf16.msra.mxu0 %v895
      %919 = vmatprep.subr.bf16.mxu0 0
      %920 = vmatpush1.bf16.msra.mxu0 %v896
      %921 = vmatprep.subr.bf16.mxu0 0
      %922 = vmatpush1.bf16.msra.mxu0 0
      %923 = vmatprep.subr.bf16.mxu0 0
      %924 = vmatpush1.bf16.msra.mxu0 0
      %925 = vmatprep.subr.bf16.mxu0 0
      %926 = vmatpush1.bf16.msra.mxu0 0
      %927 = vmatprep.subr.bf16.mxu0 0
      %928 = vmatpush1.bf16.msra.mxu0 0
      %929 = vmatprep.subr.bf16.mxu0 0
      %930 = vmatpush1.bf16.msra.mxu0 0
      %931 = vmatprep.subr.bf16.mxu0 0
      %932 = vmatpush1.bf16.msra.mxu0 0
      %933 = vmatprep.subr.bf16.mxu0 0
      %934 = vmatpush1.bf16.msra.mxu0 0
      %935 = vmatprep.subr.bf16.mxu0 0
      %936 = vmatpush1.bf16.msra.mxu0 0
      %937 = vmatprep.mubr.bf16.mxu0 0
      %938 = vmatmul.mubr.bf16.gmra.mrb[0].mxu0 %v849
      %v939 = vpop.f32.mrb[0].mxu0
      %v940 = vadd.f32 0.0, %v939
      %v941 = vpop.f32.mrb[0].mxu0
      %v942 = vpop.f32.mrb[0].mxu0
      %v943 = vadd.f32 0.0, %v942
      %v944 = vpop.f32.mrb[0].mxu0
      %945 = vmatprep.mubr.bf16.mxu0 0
      %946 = vmatmul.mubr.bf16.gmra.mrb[0].mxu0 %v850
      %v947 = vpop.f32.mrb[0].mxu0
      %v948 = vadd.f32 0.0, %v947
      %v949 = vpop.f32.mrb[0].mxu0
      %v950 = vpop.f32.mrb[0].mxu0
      %v951 = vadd.f32 0.0, %v950
      %v952 = vpop.f32.mrb[0].mxu0
      %953 = vmatprep.mubr.bf16.mxu0 0
      %954 = vmatmul.mubr.bf16.gmra.mrb[0].mxu0 %v851
      %v955 = vpop.f32.mrb[0].mxu0
      %v956 = vadd.f32 0.0, %v955
      %v957 = vpop.f32.mrb[0].mxu0
      %v958 = vpop.f32.mrb[0].mxu0
      %v959 = vadd.f32 0.0, %v958
      %v960 = vpop.f32.mrb[0].mxu0
      %961 = vmatprep.mubr.bf16.mxu0 0
      %962 = vmatmul.mubr.bf16.gmra.mrb[0].mxu0 %v852
      %v963 = vpop.f32.mrb[0].mxu0
      %v964 = vadd.f32 0.0, %v963
      %v965 = vpop.f32.mrb[0].mxu0
      %v966 = vpop.f32.mrb[0].mxu0
      %v967 = vadd.f32 0.0, %v966
      %v968 = vpop.f32.mrb[0].mxu0
      %969 = vdwg.mxu0
      %v970 = vadd.f32 %v822, %v940
      %v971 = vadd.f32 %v823, %v943
      %v972 = vadd.f32 %v824, %v948
      %v973 = vadd.f32 %v825, %v951
      %v974 = vadd.f32 %v826, %v956
      %v975 = vadd.f32 %v827, %v959
      %v976 = vadd.f32 %v828, %v964
      %v977 = vadd.f32 %v829, %v967
      %v979 = vshrl.u32 %v215, 16
      %v981 = vrot.slane %v979, 4
      %v982 = vshll.u32 %v215, 16
      %v984 = vrot.slane %v982, 5
      %v985 = vor.u32 %v981, %v984
      %v986 = vrot.slane %v985, 4
      %v988 = vshll.u32 %v216, 16
      %v990 = vrot.slane %v988, 5
      %v991 = vsel %vm237, %v986, %v990
      %s992 = scalar_lea.vmem %s1, 256
      %v993 = vld [vmem:[%s992] sm:$0xf]
      %v994 = vld [vmem:[%s992 + $0x4] sm:$0xf]
      %v995 = vld [vmem:[%s992 + $0x8] sm:$0xf]
      %v996 = vld [vmem:[%s992 + $0xc] sm:$0xf]
      %v997 = vld [vmem:[%s992 + $0x10] sm:$0xf]
      %v998 = vld [vmem:[%s992 + $0x14] sm:$0xf]
      %v999 = vld [vmem:[%s992 + $0x18] sm:$0xf]
      %v1000 = vld [vmem:[%s992 + $0x1c] sm:$0xf]
      %v1001 = vld [vmem:[%s992 + $0x20] sm:$0xf]
      %v1002 = vld [vmem:[%s992 + $0x24] sm:$0xf]
      %v1003 = vld [vmem:[%s992 + $0x28] sm:$0xf]
      %v1004 = vld [vmem:[%s992 + $0x2c] sm:$0xf]
      %v1005 = vld [vmem:[%s992 + $0x30] sm:$0xf]
      %v1006 = vld [vmem:[%s992 + $0x34] sm:$0xf]
      %v1007 = vld [vmem:[%s992 + $0x38] sm:$0xf]
      %v1008 = vld [vmem:[%s992 + $0x3c] sm:$0xf]
      %v1009 = vunpack.c.l.b16 %v991
      %v1010 = vpack.c.b16 %v369, %v368
      %v1011 = vpack.c.b16 %v371, %v370
      %v1012 = vpack.c.b16 %v373, %v372
      %v1013 = vpack.c.b16 %v1009, %v374
      %v1034 = vunpack.c.l.b16 %v993
      %v1035 = vunpack.c.l.b16 %v994
      %v1036 = vunpack.c.l.b16 %v995
      %v1037 = vunpack.c.l.b16 %v996
      %v1038 = vunpack.c.l.b16 %v997
      %v1039 = vunpack.c.l.b16 %v998
      %v1040 = vunpack.c.l.b16 %v999
      %v1041 = vunpack.c.l.b16 %v1000
      %v1042 = vunpack.c.l.b16 %v1001
      %v1043 = vunpack.c.l.b16 %v1002
      %v1044 = vunpack.c.l.b16 %v1003
      %v1045 = vunpack.c.l.b16 %v1004
      %v1046 = vunpack.c.l.b16 %v1005
      %v1047 = vunpack.c.l.b16 %v1006
      %v1048 = vunpack.c.l.b16 %v1007
      %v1049 = vunpack.c.l.b16 %v1008
      %v1050 = vpack.c.b16 %v1035, %v1034
      %v1051 = vpack.c.b16 %v1037, %v1036
      %v1052 = vpack.c.b16 %v1039, %v1038
      %v1053 = vpack.c.b16 %v1041, %v1040
      %v1054 = vpack.c.b16 %v1043, %v1042
      %v1055 = vpack.c.b16 %v1045, %v1044
      %v1056 = vpack.c.b16 %v1047, %v1046
      %v1057 = vpack.c.b16 %v1049, %v1048
      %1066 = vmatprep.subr.bf16.mxu0 0
      %1067 = vmatpush1.bf16.msra.mxu0 %v1050
      %1068 = vmatprep.subr.bf16.mxu0 0
      %1069 = vmatpush1.bf16.msra.mxu0 %v1051
      %1070 = vmatprep.subr.bf16.mxu0 0
      %1071 = vmatpush1.bf16.msra.mxu0 %v1052
      %1072 = vmatprep.subr.bf16.mxu0 0
      %1073 = vmatpush1.bf16.msra.mxu0 %v1053
      %1074 = vmatprep.subr.bf16.mxu0 0
      %1075 = vmatpush1.bf16.msra.mxu0 %v1054
      %1076 = vmatprep.subr.bf16.mxu0 0
      %1077 = vmatpush1.bf16.msra.mxu0 %v1055
      %1078 = vmatprep.subr.bf16.mxu0 0
      %1079 = vmatpush1.bf16.msra.mxu0 %v1056
      %1080 = vmatprep.subr.bf16.mxu0 0
      %1081 = vmatpush1.bf16.msra.mxu0 %v1057
      %1082 = vmatprep.subr.bf16.mxu0 0
      %1083 = vmatpush1.bf16.msra.mxu0 0
      %1084 = vmatprep.subr.bf16.mxu0 0
      %1085 = vmatpush1.bf16.msra.mxu0 0
      %1086 = vmatprep.subr.bf16.mxu0 0
      %1087 = vmatpush1.bf16.msra.mxu0 0
      %1088 = vmatprep.subr.bf16.mxu0 0
      %1089 = vmatpush1.bf16.msra.mxu0 0
      %1090 = vmatprep.subr.bf16.mxu0 0
      %1091 = vmatpush1.bf16.msra.mxu0 0
      %1092 = vmatprep.subr.bf16.mxu0 0
      %1093 = vmatpush1.bf16.msra.mxu0 0
      %1094 = vmatprep.subr.bf16.mxu0 0
      %1095 = vmatpush1.bf16.msra.mxu0 0
      %1096 = vmatprep.subr.bf16.mxu0 0
      %1097 = vmatpush1.bf16.msra.mxu0 0
      %1098 = vmatprep.mubr.bf16.mxu0 0
      %1099 = vmatmul.mubr.bf16.gmra.mrb[0].mxu0 %v1010
      %v1100 = vpop.f32.mrb[0].mxu0
      %v1101 = vadd.f32 0.0, %v1100
      %v1102 = vpop.f32.mrb[0].mxu0
      %v1103 = vpop.f32.mrb[0].mxu0
      %v1104 = vadd.f32 0.0, %v1103
      %v1105 = vpop.f32.mrb[0].mxu0
      %1106 = vmatprep.mubr.bf16.mxu0 0
      %1107 = vmatmul.mubr.bf16.gmra.mrb[0].mxu0 %v1011
      %v1108 = vpop.f32.mrb[0].mxu0
      %v1109 = vadd.f32 0.0, %v1108
      %v1110 = vpop.f32.mrb[0].mxu0
      %v1111 = vpop.f32.mrb[0].mxu0
      %v1112 = vadd.f32 0.0, %v1111
      %v1113 = vpop.f32.mrb[0].mxu0
      %1114 = vmatprep.mubr.bf16.mxu0 0
      %1115 = vmatmul.mubr.bf16.gmra.mrb[0].mxu0 %v1012
      %v1116 = vpop.f32.mrb[0].mxu0
      %v1117 = vadd.f32 0.0, %v1116
      %v1118 = vpop.f32.mrb[0].mxu0
      %v1119 = vpop.f32.mrb[0].mxu0
      %v1120 = vadd.f32 0.0, %v1119
      %v1121 = vpop.f32.mrb[0].mxu0
      %1122 = vmatprep.mubr.bf16.mxu0 0
      %1123 = vmatmul.mubr.bf16.gmra.mrb[0].mxu0 %v1013
      %v1124 = vpop.f32.mrb[0].mxu0
      %v1125 = vadd.f32 0.0, %v1124
      %v1126 = vpop.f32.mrb[0].mxu0
      %v1127 = vpop.f32.mrb[0].mxu0
      %v1128 = vadd.f32 0.0, %v1127
      %v1129 = vpop.f32.mrb[0].mxu0
      %1130 = vdwg.mxu0
      %v1131 = vadd.f32 %v970, %v1101
      %v1132 = vadd.f32 %v971, %v1104
      %v1133 = vadd.f32 %v972, %v1109
      %v1134 = vadd.f32 %v973, %v1112
      %v1135 = vadd.f32 %v974, %v1117
      %v1136 = vadd.f32 %v975, %v1120
      %v1137 = vadd.f32 %v976, %v1125
      %v1138 = vadd.f32 %v977, %v1128
      %v1140 = vrot.slane %v215, 5
      %v1141 = vrot.slane %v1140, 4
      %v1142 = vrot.slane %v216, 5
      %v1143 = vsel %vm643, %v1141, %v1142
      %s1144 = scalar_lea.vmem %s1, 320
      %v1145 = vld [vmem:[%s1144] sm:$0xf]
      %v1146 = vld [vmem:[%s1144 + $0x4] sm:$0xf]
      %v1147 = vld [vmem:[%s1144 + $0x8] sm:$0xf]
      %v1148 = vld [vmem:[%s1144 + $0xc] sm:$0xf]
      %v1149 = vld [vmem:[%s1144 + $0x10] sm:$0xf]
      %v1150 = vld [vmem:[%s1144 + $0x14] sm:$0xf]
      %v1151 = vld [vmem:[%s1144 + $0x18] sm:$0xf]
      %v1152 = vld [vmem:[%s1144 + $0x1c] sm:$0xf]
      %v1153 = vld [vmem:[%s1144 + $0x20] sm:$0xf]
      %v1154 = vld [vmem:[%s1144 + $0x24] sm:$0xf]
      %v1155 = vld [vmem:[%s1144 + $0x28] sm:$0xf]
      %v1156 = vld [vmem:[%s1144 + $0x2c] sm:$0xf]
      %v1157 = vld [vmem:[%s1144 + $0x30] sm:$0xf]
      %v1158 = vld [vmem:[%s1144 + $0x34] sm:$0xf]
      %v1159 = vld [vmem:[%s1144 + $0x38] sm:$0xf]
      %v1160 = vld [vmem:[%s1144 + $0x3c] sm:$0xf]
      %v1161 = vunpack.c.l.b16 %v1143
      %v1162 = vpack.c.b16 %v695, %v694
      %v1163 = vpack.c.b16 %v697, %v696
      %v1164 = vpack.c.b16 %v699, %v698
      %v1165 = vpack.c.b16 %v1161, %v700
      %v1186 = vunpack.c.l.b16 %v1145
      %v1187 = vunpack.c.l.b16 %v1146
      %v1188 = vunpack.c.l.b16 %v1147
      %v1189 = vunpack.c.l.b16 %v1148
      %v1190 = vunpack.c.l.b16 %v1149
      %v1191 = vunpack.c.l.b16 %v1150
      %v1192 = vunpack.c.l.b16 %v1151
      %v1193 = vunpack.c.l.b16 %v1152
      %v1194 = vunpack.c.l.b16 %v1153
      %v1195 = vunpack.c.l.b16 %v1154
      %v1196 = vunpack.c.l.b16 %v1155
      %v1197 = vunpack.c.l.b16 %v1156
      %v1198 = vunpack.c.l.b16 %v1157
      %v1199 = vunpack.c.l.b16 %v1158
      %v1200 = vunpack.c.l.b16 %v1159
      %v1201 = vunpack.c.l.b16 %v1160
      %v1202 = vpack.c.b16 %v1187, %v1186
      %v1203 = vpack.c.b16 %v1189, %v1188
      %v1204 = vpack.c.b16 %v1191, %v1190
      %v1205 = vpack.c.b16 %v1193, %v1192
      %v1206 = vpack.c.b16 %v1195, %v1194
      %v1207 = vpack.c.b16 %v1197, %v1196
      %v1208 = vpack.c.b16 %v1199, %v1198
      %v1209 = vpack.c.b16 %v1201, %v1200
      %1218 = vmatprep.subr.bf16.mxu0 0
      %1219 = vmatpush1.bf16.msra.mxu0 %v1202
      %1220 = vmatprep.subr.bf16.mxu0 0
      %1221 = vmatpush1.bf16.msra.mxu0 %v1203
      %1222 = vmatprep.subr.bf16.mxu0 0
      %1223 = vmatpush1.bf16.msra.mxu0 %v1204
      %1224 = vmatprep.subr.bf16.mxu0 0
      %1225 = vmatpush1.bf16.msra.mxu0 %v1205
      %1226 = vmatprep.subr.bf16.mxu0 0
      %1227 = vmatpush1.bf16.msra.mxu0 %v1206
      %1228 = vmatprep.subr.bf16.mxu0 0
      %1229 = vmatpush1.bf16.msra.mxu0 %v1207
      %1230 = vmatprep.subr.bf16.mxu0 0
      %1231 = vmatpush1.bf16.msra.mxu0 %v1208
      %1232 = vmatprep.subr.bf16.mxu0 0
      %1233 = vmatpush1.bf16.msra.mxu0 %v1209
      %1234 = vmatprep.subr.bf16.mxu0 0
      %1235 = vmatpush1.bf16.msra.mxu0 0
      %1236 = vmatprep.subr.bf16.mxu0 0
      %1237 = vmatpush1.bf16.msra.mxu0 0
      %1238 = vmatprep.subr.bf16.mxu0 0
      %1239 = vmatpush1.bf16.msra.mxu0 0
      %1240 = vmatprep.subr.bf16.mxu0 0
      %1241 = vmatpush1.bf16.msra.mxu0 0
      %1242 = vmatprep.subr.bf16.mxu0 0
      %1243 = vmatpush1.bf16.msra.mxu0 0
      %1244 = vmatprep.subr.bf16.mxu0 0
      %1245 = vmatpush1.bf16.msra.mxu0 0
      %1246 = vmatprep.subr.bf16.mxu0 0
      %1247 = vmatpush1.bf16.msra.mxu0 0
      %1248 = vmatprep.subr.bf16.mxu0 0
      %1249 = vmatpush1.bf16.msra.mxu0 0
      %1250 = vmatprep.mubr.bf16.mxu0 0
      %1251 = vmatmul.mubr.bf16.gmra.mrb[0].mxu0 %v1162
      %v1252 = vpop.f32.mrb[0].mxu0
      %v1253 = vadd.f32 0.0, %v1252
      %v1254 = vpop.f32.mrb[0].mxu0
      %v1255 = vpop.f32.mrb[0].mxu0
      %v1256 = vadd.f32 0.0, %v1255
      %v1257 = vpop.f32.mrb[0].mxu0
      %1258 = vmatprep.mubr.bf16.mxu0 0
      %1259 = vmatmul.mubr.bf16.gmra.mrb[0].mxu0 %v1163
      %v1260 = vpop.f32.mrb[0].mxu0
      %v1261 = vadd.f32 0.0, %v1260
      %v1262 = vpop.f32.mrb[0].mxu0
      %v1263 = vpop.f32.mrb[0].mxu0
      %v1264 = vadd.f32 0.0, %v1263
      %v1265 = vpop.f32.mrb[0].mxu0
      %1266 = vmatprep.mubr.bf16.mxu0 0
      %1267 = vmatmul.mubr.bf16.gmra.mrb[0].mxu0 %v1164
      %v1268 = vpop.f32.mrb[0].mxu0
      %v1269 = vadd.f32 0.0, %v1268
      %v1270 = vpop.f32.mrb[0].mxu0
      %v1271 = vpop.f32.mrb[0].mxu0
      %v1272 = vadd.f32 0.0, %v1271
      %v1273 = vpop.f32.mrb[0].mxu0
      %1274 = vmatprep.mubr.bf16.mxu0 0
      %1275 = vmatmul.mubr.bf16.gmra.mrb[0].mxu0 %v1165
      %v1276 = vpop.f32.mrb[0].mxu0
      %v1277 = vadd.f32 0.0, %v1276
      %v1278 = vpop.f32.mrb[0].mxu0
      %v1279 = vpop.f32.mrb[0].mxu0
      %v1280 = vadd.f32 0.0, %v1279
      %v1281 = vpop.f32.mrb[0].mxu0
      %1282 = vdwg.mxu0
      %v1283 = vadd.f32 %v1131, %v1253
      %v1284 = vadd.f32 %v1132, %v1256
      %v1285 = vadd.f32 %v1133, %v1261
      %v1286 = vadd.f32 %v1134, %v1264
      %v1287 = vadd.f32 %v1135, %v1269
      %v1288 = vadd.f32 %v1136, %v1272
      %v1289 = vadd.f32 %v1137, %v1277
      %v1290 = vadd.f32 %v1138, %v1280
      %s1291 = scalar_lea.vmem %s1, 384
      %v1292 = vld [vmem:[%s1291] sm:$0xf]
      %v1293 = vld [vmem:[%s1291 + $0x4] sm:$0xf]
      %v1294 = vld [vmem:[%s1291 + $0x8] sm:$0xf]
      %v1295 = vld [vmem:[%s1291 + $0xc] sm:$0xf]
      %v1296 = vld [vmem:[%s1291 + $0x10] sm:$0xf]
      %v1297 = vld [vmem:[%s1291 + $0x14] sm:$0xf]
      %v1298 = vld [vmem:[%s1291 + $0x18] sm:$0xf]
      %v1299 = vld [vmem:[%s1291 + $0x1c] sm:$0xf]
      %v1300 = vld [vmem:[%s1291 + $0x20] sm:$0xf]
      %v1301 = vld [vmem:[%s1291 + $0x24] sm:$0xf]
      %v1302 = vld [vmem:[%s1291 + $0x28] sm:$0xf]
      %v1303 = vld [vmem:[%s1291 + $0x2c] sm:$0xf]
      %v1304 = vld [vmem:[%s1291 + $0x30] sm:$0xf]
      %v1305 = vld [vmem:[%s1291 + $0x34] sm:$0xf]
      %v1306 = vld [vmem:[%s1291 + $0x38] sm:$0xf]
      %v1307 = vld [vmem:[%s1291 + $0x3c] sm:$0xf]
      %v1309 = vunpack.c.l.b16 %v217
      %v1310 = vpack.c.b16 %v1309, %v848
      %v1328 = vunpack.c.l.b16 %v1292
      %v1329 = vunpack.c.l.b16 %v1293
      %v1330 = vunpack.c.l.b16 %v1294
      %v1331 = vunpack.c.l.b16 %v1295
      %v1332 = vunpack.c.l.b16 %v1296
      %v1333 = vunpack.c.l.b16 %v1297
      %v1334 = vunpack.c.l.b16 %v1298
      %v1335 = vunpack.c.l.b16 %v1299
      %v1336 = vunpack.c.l.b16 %v1300
      %v1337 = vunpack.c.l.b16 %v1301
      %v1338 = vunpack.c.l.b16 %v1302
      %v1339 = vunpack.c.l.b16 %v1303
      %v1340 = vunpack.c.l.b16 %v1304
      %v1341 = vunpack.c.l.b16 %v1305
      %v1342 = vunpack.c.l.b16 %v1306
      %v1343 = vunpack.c.l.b16 %v1307
      %v1344 = vpack.c.b16 %v1329, %v1328
      %v1345 = vpack.c.b16 %v1331, %v1330
      %v1346 = vpack.c.b16 %v1333, %v1332
      %v1347 = vpack.c.b16 %v1335, %v1334
      %v1348 = vpack.c.b16 %v1337, %v1336
      %v1349 = vpack.c.b16 %v1339, %v1338
      %v1350 = vpack.c.b16 %v1341, %v1340
      %v1351 = vpack.c.b16 %v1343, %v1342
      %1360 = vmatprep.subr.bf16.mxu0 0
      %1361 = vmatpush1.bf16.msra.mxu0 %v1344
      %1362 = vmatprep.subr.bf16.mxu0 0
      %1363 = vmatpush1.bf16.msra.mxu0 %v1345
      %1364 = vmatprep.subr.bf16.mxu0 0
      %1365 = vmatpush1.bf16.msra.mxu0 %v1346
      %1366 = vmatprep.subr.bf16.mxu0 0
      %1367 = vmatpush1.bf16.msra.mxu0 %v1347
      %1368 = vmatprep.subr.bf16.mxu0 0
      %1369 = vmatpush1.bf16.msra.mxu0 %v1348
      %1370 = vmatprep.subr.bf16.mxu0 0
      %1371 = vmatpush1.bf16.msra.mxu0 %v1349
      %1372 = vmatprep.subr.bf16.mxu0 0
      %1373 = vmatpush1.bf16.msra.mxu0 %v1350
      %1374 = vmatprep.subr.bf16.mxu0 0
      %1375 = vmatpush1.bf16.msra.mxu0 %v1351
      %1376 = vmatprep.subr.bf16.mxu0 0
      %1377 = vmatpush1.bf16.msra.mxu0 0
      %1378 = vmatprep.subr.bf16.mxu0 0
      %1379 = vmatpush1.bf16.msra.mxu0 0
      %1380 = vmatprep.subr.bf16.mxu0 0
      %1381 = vmatpush1.bf16.msra.mxu0 0
      %1382 = vmatprep.subr.bf16.mxu0 0
      %1383 = vmatpush1.bf16.msra.mxu0 0
      %1384 = vmatprep.subr.bf16.mxu0 0
      %1385 = vmatpush1.bf16.msra.mxu0 0
      %1386 = vmatprep.subr.bf16.mxu0 0
      %1387 = vmatpush1.bf16.msra.mxu0 0
      %1388 = vmatprep.subr.bf16.mxu0 0
      %1389 = vmatpush1.bf16.msra.mxu0 0
      %1390 = vmatprep.subr.bf16.mxu0 0
      %1391 = vmatpush1.bf16.msra.mxu0 0
      %1392 = vmatprep.mubr.bf16.mxu0 0
      %1393 = vmatmul.mubr.bf16.gmra.mrb[0].mxu0 %v513
      %v1394 = vpop.f32.mrb[0].mxu0
      %v1395 = vadd.f32 0.0, %v1394
      %v1396 = vpop.f32.mrb[0].mxu0
      %v1397 = vpop.f32.mrb[0].mxu0
      %v1398 = vadd.f32 0.0, %v1397
      %v1399 = vpop.f32.mrb[0].mxu0
      %1400 = vmatprep.mubr.bf16.mxu0 0
      %1401 = vmatmul.mubr.bf16.gmra.mrb[0].mxu0 %v514
      %v1402 = vpop.f32.mrb[0].mxu0
      %v1403 = vadd.f32 0.0, %v1402
      %v1404 = vpop.f32.mrb[0].mxu0
      %v1405 = vpop.f32.mrb[0].mxu0
      %v1406 = vadd.f32 0.0, %v1405
      %v1407 = vpop.f32.mrb[0].mxu0
      %1408 = vmatprep.mubr.bf16.mxu0 0
      %1409 = vmatmul.mubr.bf16.gmra.mrb[0].mxu0 %v515
      %v1410 = vpop.f32.mrb[0].mxu0
      %v1411 = vadd.f32 0.0, %v1410
      %v1412 = vpop.f32.mrb[0].mxu0
      %v1413 = vpop.f32.mrb[0].mxu0
      %v1414 = vadd.f32 0.0, %v1413
      %v1415 = vpop.f32.mrb[0].mxu0
      %1416 = vmatprep.mubr.bf16.mxu0 0
      %1417 = vmatmul.mubr.bf16.gmra.mrb[0].mxu0 %v1310
      %v1418 = vpop.f32.mrb[0].mxu0
      %v1419 = vadd.f32 0.0, %v1418
      %v1420 = vpop.f32.mrb[0].mxu0
      %v1421 = vpop.f32.mrb[0].mxu0
      %v1422 = vadd.f32 0.0, %v1421
      %v1423 = vpop.f32.mrb[0].mxu0
      %1424 = vdwg.mxu0
      %v1425 = vadd.f32 %v1283, %v1395
      %v1426 = vadd.f32 %v1284, %v1398
      %v1427 = vadd.f32 %v1285, %v1403
      %v1428 = vadd.f32 %v1286, %v1406
      %v1429 = vadd.f32 %v1287, %v1411
      %v1430 = vadd.f32 %v1288, %v1414
      %v1431 = vadd.f32 %v1289, %v1419
      %v1432 = vadd.f32 %v1290, %v1422
      %v1434 = vshrl.u32 %v217, 16
      %v1436 = vrot.slane %v1434, 4
      %v1437 = vshll.u32 %v217, 16
      %v1439 = vrot.slane %v1437, 5
      %v1440 = vor.u32 %v1436, %v1439
      %v1441 = vrot.slane %v1440, 4
      %v1443 = vshll.u32 %v218, 16
      %v1445 = vrot.slane %v1443, 5
      %v1446 = vsel %vm237, %v1441, %v1445
      %s1447 = scalar_lea.vmem %s1, 448
      %v1448 = vld [vmem:[%s1447] sm:$0xf]
      %v1449 = vld [vmem:[%s1447 + $0x4] sm:$0xf]
      %v1450 = vld [vmem:[%s1447 + $0x8] sm:$0xf]
      %v1451 = vld [vmem:[%s1447 + $0xc] sm:$0xf]
      %v1452 = vld [vmem:[%s1447 + $0x10] sm:$0xf]
      %v1453 = vld [vmem:[%s1447 + $0x14] sm:$0xf]
      %v1454 = vld [vmem:[%s1447 + $0x18] sm:$0xf]
      %v1455 = vld [vmem:[%s1447 + $0x1c] sm:$0xf]
      %v1456 = vld [vmem:[%s1447 + $0x20] sm:$0xf]
      %v1457 = vld [vmem:[%s1447 + $0x24] sm:$0xf]
      %v1458 = vld [vmem:[%s1447 + $0x28] sm:$0xf]
      %v1459 = vld [vmem:[%s1447 + $0x2c] sm:$0xf]
      %v1460 = vld [vmem:[%s1447 + $0x30] sm:$0xf]
      %v1461 = vld [vmem:[%s1447 + $0x34] sm:$0xf]
      %v1462 = vld [vmem:[%s1447 + $0x38] sm:$0xf]
      %v1463 = vld [vmem:[%s1447 + $0x3c] sm:$0xf]
      %v1464 = vunpack.c.l.b16 %v1446
      %v1465 = vpack.c.b16 %v1464, %v1009
      %v1483 = vunpack.c.l.b16 %v1448
      %v1484 = vunpack.c.l.b16 %v1449
      %v1485 = vunpack.c.l.b16 %v1450
      %v1486 = vunpack.c.l.b16 %v1451
      %v1487 = vunpack.c.l.b16 %v1452
      %v1488 = vunpack.c.l.b16 %v1453
      %v1489 = vunpack.c.l.b16 %v1454
      %v1490 = vunpack.c.l.b16 %v1455
      %v1491 = vunpack.c.l.b16 %v1456
      %v1492 = vunpack.c.l.b16 %v1457
      %v1493 = vunpack.c.l.b16 %v1458
      %v1494 = vunpack.c.l.b16 %v1459
      %v1495 = vunpack.c.l.b16 %v1460
      %v1496 = vunpack.c.l.b16 %v1461
      %v1497 = vunpack.c.l.b16 %v1462
      %v1498 = vunpack.c.l.b16 %v1463
      %v1499 = vpack.c.b16 %v1484, %v1483
      %v1500 = vpack.c.b16 %v1486, %v1485
      %v1501 = vpack.c.b16 %v1488, %v1487
      %v1502 = vpack.c.b16 %v1490, %v1489
      %v1503 = vpack.c.b16 %v1492, %v1491
      %v1504 = vpack.c.b16 %v1494, %v1493
      %v1505 = vpack.c.b16 %v1496, %v1495
      %v1506 = vpack.c.b16 %v1498, %v1497
      %1515 = vmatprep.subr.bf16.mxu0 0
      %1516 = vmatpush1.bf16.msra.mxu0 %v1499
      %1517 = vmatprep.subr.bf16.mxu0 0
      %1518 = vmatpush1.bf16.msra.mxu0 %v1500
      %1519 = vmatprep.subr.bf16.mxu0 0
      %1520 = vmatpush1.bf16.msra.mxu0 %v1501
      %1521 = vmatprep.subr.bf16.mxu0 0
      %1522 = vmatpush1.bf16.msra.mxu0 %v1502
      %1523 = vmatprep.subr.bf16.mxu0 0
      %1524 = vmatpush1.bf16.msra.mxu0 %v1503
      %1525 = vmatprep.subr.bf16.mxu0 0
      %1526 = vmatpush1.bf16.msra.mxu0 %v1504
      %1527 = vmatprep.subr.bf16.mxu0 0
      %1528 = vmatpush1.bf16.msra.mxu0 %v1505
      %1529 = vmatprep.subr.bf16.mxu0 0
      %1530 = vmatpush1.bf16.msra.mxu0 %v1506
      %1531 = vmatprep.subr.bf16.mxu0 0
      %1532 = vmatpush1.bf16.msra.mxu0 0
      %1533 = vmatprep.subr.bf16.mxu0 0
      %1534 = vmatpush1.bf16.msra.mxu0 0
      %1535 = vmatprep.subr.bf16.mxu0 0
      %1536 = vmatpush1.bf16.msra.mxu0 0
      %1537 = vmatprep.subr.bf16.mxu0 0
      %1538 = vmatpush1.bf16.msra.mxu0 0
      %1539 = vmatprep.subr.bf16.mxu0 0
      %1540 = vmatpush1.bf16.msra.mxu0 0
      %1541 = vmatprep.subr.bf16.mxu0 0
      %1542 = vmatpush1.bf16.msra.mxu0 0
      %1543 = vmatprep.subr.bf16.mxu0 0
      %1544 = vmatpush1.bf16.msra.mxu0 0
      %1545 = vmatprep.subr.bf16.mxu0 0
      %1546 = vmatpush1.bf16.msra.mxu0 0
      %1547 = vmatprep.mubr.bf16.mxu0 0
      %1548 = vmatmul.mubr.bf16.gmra.mrb[0].mxu0 %v376
      %v1549 = vpop.f32.mrb[0].mxu0
      %v1550 = vadd.f32 0.0, %v1549
      %v1551 = vpop.f32.mrb[0].mxu0
      %v1552 = vpop.f32.mrb[0].mxu0
      %v1553 = vadd.f32 0.0, %v1552
      %v1554 = vpop.f32.mrb[0].mxu0
      %1555 = vmatprep.mubr.bf16.mxu0 0
      %1556 = vmatmul.mubr.bf16.gmra.mrb[0].mxu0 %v377
      %v1557 = vpop.f32.mrb[0].mxu0
      %v1558 = vadd.f32 0.0, %v1557
      %v1559 = vpop.f32.mrb[0].mxu0
      %v1560 = vpop.f32.mrb[0].mxu0
      %v1561 = vadd.f32 0.0, %v1560
      %v1562 = vpop.f32.mrb[0].mxu0
      %1563 = vmatprep.mubr.bf16.mxu0 0
      %1564 = vmatmul.mubr.bf16.gmra.mrb[0].mxu0 %v378
      %v1565 = vpop.f32.mrb[0].mxu0
      %v1566 = vadd.f32 0.0, %v1565
      %v1567 = vpop.f32.mrb[0].mxu0
      %v1568 = vpop.f32.mrb[0].mxu0
      %v1569 = vadd.f32 0.0, %v1568
      %v1570 = vpop.f32.mrb[0].mxu0
      %1571 = vmatprep.mubr.bf16.mxu0 0
      %1572 = vmatmul.mubr.bf16.gmra.mrb[0].mxu0 %v1465
      %v1573 = vpop.f32.mrb[0].mxu0
      %v1574 = vadd.f32 0.0, %v1573
      %v1575 = vpop.f32.mrb[0].mxu0
      %v1576 = vpop.f32.mrb[0].mxu0
      %v1577 = vadd.f32 0.0, %v1576
      %v1578 = vpop.f32.mrb[0].mxu0
      %1579 = vdwg.mxu0
      %v1580 = vadd.f32 %v1425, %v1550
      %v1581 = vadd.f32 %v1426, %v1553
      %v1582 = vadd.f32 %v1427, %v1558
      %v1583 = vadd.f32 %v1428, %v1561
      %v1584 = vadd.f32 %v1429, %v1566
      %v1585 = vadd.f32 %v1430, %v1569
      %v1586 = vadd.f32 %v1431, %v1574
      %v1587 = vadd.f32 %v1432, %v1577
      %v1589 = vrot.slane %v217, 5
      %v1590 = vrot.slane %v1589, 4
      %v1591 = vrot.slane %v218, 5
      %v1592 = vsel %vm643, %v1590, %v1591
      %s1593 = scalar_lea.vmem %s1, 512
      %v1594 = vld [vmem:[%s1593] sm:$0xf]
      %v1595 = vld [vmem:[%s1593 + $0x4] sm:$0xf]
      %v1596 = vld [vmem:[%s1593 + $0x8] sm:$0xf]
      %v1597 = vld [vmem:[%s1593 + $0xc] sm:$0xf]
      %v1598 = vld [vmem:[%s1593 + $0x10] sm:$0xf]
      %v1599 = vld [vmem:[%s1593 + $0x14] sm:$0xf]
      %v1600 = vld [vmem:[%s1593 + $0x18] sm:$0xf]
      %v1601 = vld [vmem:[%s1593 + $0x1c] sm:$0xf]
      %v1602 = vld [vmem:[%s1593 + $0x20] sm:$0xf]
      %v1603 = vld [vmem:[%s1593 + $0x24] sm:$0xf]
      %v1604 = vld [vmem:[%s1593 + $0x28] sm:$0xf]
      %v1605 = vld [vmem:[%s1593 + $0x2c] sm:$0xf]
      %v1606 = vld [vmem:[%s1593 + $0x30] sm:$0xf]
      %v1607 = vld [vmem:[%s1593 + $0x34] sm:$0xf]
      %v1608 = vld [vmem:[%s1593 + $0x38] sm:$0xf]
      %v1609 = vld [vmem:[%s1593 + $0x3c] sm:$0xf]
      %v1610 = vunpack.c.l.b16 %v1592
      %v1611 = vpack.c.b16 %v1610, %v1161
      %v1629 = vunpack.c.l.b16 %v1594
      %v1630 = vunpack.c.l.b16 %v1595
      %v1631 = vunpack.c.l.b16 %v1596
      %v1632 = vunpack.c.l.b16 %v1597
      %v1633 = vunpack.c.l.b16 %v1598
      %v1634 = vunpack.c.l.b16 %v1599
      %v1635 = vunpack.c.l.b16 %v1600
      %v1636 = vunpack.c.l.b16 %v1601
      %v1637 = vunpack.c.l.b16 %v1602
      %v1638 = vunpack.c.l.b16 %v1603
      %v1639 = vunpack.c.l.b16 %v1604
      %v1640 = vunpack.c.l.b16 %v1605
      %v1641 = vunpack.c.l.b16 %v1606
      %v1642 = vunpack.c.l.b16 %v1607
      %v1643 = vunpack.c.l.b16 %v1608
      %v1644 = vunpack.c.l.b16 %v1609
      %v1645 = vpack.c.b16 %v1630, %v1629
      %v1646 = vpack.c.b16 %v1632, %v1631
      %v1647 = vpack.c.b16 %v1634, %v1633
      %v1648 = vpack.c.b16 %v1636, %v1635
      %v1649 = vpack.c.b16 %v1638, %v1637
      %v1650 = vpack.c.b16 %v1640, %v1639
      %v1651 = vpack.c.b16 %v1642, %v1641
      %v1652 = vpack.c.b16 %v1644, %v1643
      %1661 = vmatprep.subr.bf16.mxu0 0
      %1662 = vmatpush1.bf16.msra.mxu0 %v1645
      %1663 = vmatprep.subr.bf16.mxu0 0
      %1664 = vmatpush1.bf16.msra.mxu0 %v1646
      %1665 = vmatprep.subr.bf16.mxu0 0
      %1666 = vmatpush1.bf16.msra.mxu0 %v1647
      %1667 = vmatprep.subr.bf16.mxu0 0
      %1668 = vmatpush1.bf16.msra.mxu0 %v1648
      %1669 = vmatprep.subr.bf16.mxu0 0
      %1670 = vmatpush1.bf16.msra.mxu0 %v1649
      %1671 = vmatprep.subr.bf16.mxu0 0
      %1672 = vmatpush1.bf16.msra.mxu0 %v1650
      %1673 = vmatprep.subr.bf16.mxu0 0
      %1674 = vmatpush1.bf16.msra.mxu0 %v1651
      %1675 = vmatprep.subr.bf16.mxu0 0
      %1676 = vmatpush1.bf16.msra.mxu0 %v1652
      %1677 = vmatprep.subr.bf16.mxu0 0
      %1678 = vmatpush1.bf16.msra.mxu0 0
      %1679 = vmatprep.subr.bf16.mxu0 0
      %1680 = vmatpush1.bf16.msra.mxu0 0
      %1681 = vmatprep.subr.bf16.mxu0 0
      %1682 = vmatpush1.bf16.msra.mxu0 0
      %1683 = vmatprep.subr.bf16.mxu0 0
      %1684 = vmatpush1.bf16.msra.mxu0 0
      %1685 = vmatprep.subr.bf16.mxu0 0
      %1686 = vmatpush1.bf16.msra.mxu0 0
      %1687 = vmatprep.subr.bf16.mxu0 0
      %1688 = vmatpush1.bf16.msra.mxu0 0
      %1689 = vmatprep.subr.bf16.mxu0 0
      %1690 = vmatpush1.bf16.msra.mxu0 0
      %1691 = vmatprep.subr.bf16.mxu0 0
      %1692 = vmatpush1.bf16.msra.mxu0 0
      %1693 = vmatprep.mubr.bf16.mxu0 0
      %1694 = vmatmul.mubr.bf16.gmra.mrb[0].mxu0 %v702
      %v1695 = vpop.f32.mrb[0].mxu0
      %v1696 = vadd.f32 0.0, %v1695
      %v1697 = vpop.f32.mrb[0].mxu0
      %v1698 = vpop.f32.mrb[0].mxu0
      %v1699 = vadd.f32 0.0, %v1698
      %v1700 = vpop.f32.mrb[0].mxu0
      %1701 = vmatprep.mubr.bf16.mxu0 0
      %1702 = vmatmul.mubr.bf16.gmra.mrb[0].mxu0 %v703
      %v1703 = vpop.f32.mrb[0].mxu0
      %v1704 = vadd.f32 0.0, %v1703
      %v1705 = vpop.f32.mrb[0].mxu0
      %v1706 = vpop.f32.mrb[0].mxu0
      %v1707 = vadd.f32 0.0, %v1706
      %v1708 = vpop.f32.mrb[0].mxu0
      %1709 = vmatprep.mubr.bf16.mxu0 0
      %1710 = vmatmul.mubr.bf16.gmra.mrb[0].mxu0 %v704
      %v1711 = vpop.f32.mrb[0].mxu0
      %v1712 = vadd.f32 0.0, %v1711
      %v1713 = vpop.f32.mrb[0].mxu0
      %v1714 = vpop.f32.mrb[0].mxu0
      %v1715 = vadd.f32 0.0, %v1714
      %v1716 = vpop.f32.mrb[0].mxu0
      %1717 = vmatprep.mubr.bf16.mxu0 0
      %1718 = vmatmul.mubr.bf16.gmra.mrb[0].mxu0 %v1611
      %v1719 = vpop.f32.mrb[0].mxu0
      %v1720 = vadd.f32 0.0, %v1719
      %v1721 = vpop.f32.mrb[0].mxu0
      %v1722 = vpop.f32.mrb[0].mxu0
      %v1723 = vadd.f32 0.0, %v1722
      %v1724 = vpop.f32.mrb[0].mxu0
      %1725 = vdwg.mxu0
      %v1726 = vadd.f32 %v1580, %v1696
      %v1727 = vadd.f32 %v1581, %v1699
      %v1728 = vadd.f32 %v1582, %v1704
      %v1729 = vadd.f32 %v1583, %v1707
      %v1730 = vadd.f32 %v1584, %v1712
      %v1731 = vadd.f32 %v1585, %v1715
      %v1732 = vadd.f32 %v1586, %v1720
      %v1733 = vadd.f32 %v1587, %v1723
      %v1734 = vld [vmem:[%s2] sm:$0x1]
      %v1736 = vlaneseq
      %v1737 = vshrl.u32 %v1736, 7
      %v1738 = vsub.s32 0, %v1737
      %v1739 = vrot.slane %v1734, %v1738
      %v1741 = vadd.f32 %v1726, %v1739
      %v1742 = vadd.f32 %v1727, %v1739
      %v1743 = vadd.f32 %v1728, %v1739
      %v1744 = vadd.f32 %v1729, %v1739
      %v1745 = vadd.f32 %v1730, %v1739
      %v1746 = vadd.f32 %v1731, %v1739
      %v1747 = vadd.f32 %v1732, %v1739
      %v1748 = vadd.f32 %v1733, %v1739
      %v1749 = vpack.c.bf16 %v1741, %v1741
      %v1750 = vpack.c.bf16 %v1742, %v1742
      %v1751 = vpack.c.bf16 %v1743, %v1743
      %v1752 = vpack.c.bf16 %v1744, %v1744
      %v1753 = vpack.c.bf16 %v1745, %v1745
      %v1754 = vpack.c.bf16 %v1746, %v1746
      %v1755 = vpack.c.bf16 %v1747, %v1747
      %v1756 = vpack.c.bf16 %v1748, %v1748
      %1757 = vst [vmem:[%s192] sm:$0xf] %v1749
      %1758 = vst [vmem:[%s192 + $0x4] sm:$0xf] %v1750
      %1759 = vst [vmem:[%s192 + $0x8] sm:$0xf] %v1751
      %1760 = vst [vmem:[%s192 + $0xc] sm:$0xf] %v1752
      %1761 = vst [vmem:[%s192 + $0x10] sm:$0xf] %v1753
      %1762 = vst [vmem:[%s192 + $0x14] sm:$0xf] %v1754
      %1763 = vst [vmem:[%s192 + $0x18] sm:$0xf] %v1755
      %1764 = vst [vmem:[%s192 + $0x1c] sm:$0xf] %v1756
      %s1765 = smul.u32 8, %s19
      %p1766 = scmp.lt.s32.totalorder %s18, 1
      %s1767 = scalar_select %p1766, %s18, 1
      %p1768 = scmp.lt.s32.totalorder %s1765, 7
      %s1769 = scalar_select %p1768, %s1765, 7
      %s1770 = smul.addr %s1767, 8
      %s1771 = sadd.s32 %s1769, %s1770
      %s1772 = smul.addr %s1771, 4
      %s1773 = scalar_lea.vmem %s3, %s1772
      // Predicated region
      $region33: #{_lambda_.5} parent=31 // pred_check
        %p1774 = pneg %p114
      $region34: #{_lambda_.5} parent=31 // pred_check_branch
        %1776 = sbr.rel (%p1774) target = $region36
      $region35: #{_lambda_.5} parent=31 // pred_region
        %s1777 = smul.u32 8, %s19
      $region36: #{_lambda_.5} parent=31 // pred_fallthru
        _
    $region32: #{_lambda_.5} parent=5 // pred_fallthru
      _
    %p1778 = scmp.le.s32.totalorder 2, %s9
    // Predicated region
    $region37: #{_lambda_.5} parent=5 // pred_check
      %p1779 = pneg %p1778
    $region38: #{_lambda_.5} parent=5 // pred_check_branch
      %1781 = sbr.rel (%p1779) target = $region40
    $region39: #{_lambda_.5} parent=5 // pred_region
      %s1782 = ssub.s32 %s9, 2
      // Predicated region
      $region41: #{_lambda_.5} parent=39 // pred_check
        %p1783 = pneg %p120
      $region42: #{_lambda_.5} parent=39 // pred_check_branch
        %1785 = sbr.rel (%p1783) target = $region44
      $region43: #{_lambda_.5} parent=39 // pred_region
        %s1786 = smul.u32 8, %s21
        %p1787 = scmp.lt.s32.totalorder %s20, 1
        %s1788 = scalar_select %p1787, %s20, 1
        %p1789 = scmp.lt.s32.totalorder %s1786, 7
        %s1790 = scalar_select %p1789, %s1786, 7
        %s1791 = smul.addr %s1788, 8
        %s1792 = sadd.s32 %s1790, %s1791
        %s1793 = smul.addr %s1792, 4
        %s1794 = scalar_lea.vmem %s3, %s1793
      $region44: #{_lambda_.5} parent=39 // pred_fallthru
        _
    $region40: #{_lambda_.5} parent=5 // pred_fallthru
      _
  $region6: #{_lambda_.5} parent=0 // loop_footer
    %s13 = sadd.s32 1, %s9
  $region7: #{_lambda_.5} parent=0 // loop_footer_branch
    %8 = sbr.rel target = $region3
  $region8: #{_lambda_.5} parent=0 // loop_exit
    _

// kernel: _lambda_.8
$region0: #{_lambda_.8}
  #allocation0 [shape = 'u32[]', space=smem, size = 0x4, offset = 0x4, fixed_abs, tag = 'smem constant byte address 0x4 - core index']
  #allocation1 [shape = 'u32[144,128]{1,0:T(1,128)}', space=vmem, size = 0x12000, scoped, tag = 'internal scratch']
  %s0 = inlined_call_operand.vmem [shape: bf16[2,18,18,128], index: 0, kind: input, shape index: {}]
  %s1 = inlined_call_operand.vmem [shape: bf16[9,128,128], index: 1, kind: input, shape index: {}]
  %s2 = inlined_call_operand.vmem [shape: f32[1,128], index: 2, kind: input, shape index: {}]
  %s3 = inlined_call_operand.vmem [shape: bf16[2,16,16,128], index: 3, kind: output, shape index: {}]
  %s4 = sld [smem:[#allocation0]]
  $region45: #{_lambda_.8} parent=0
    _
  %s6 = ssub.s32 1, %s4
  %s7 = scalar_select 0, %s6, %s4
  loop: start=0, step=1, limit=6
  $region2: #{_lambda_.8} parent=0 // loop_pre_header
    _
  $region3: #{_lambda_.8} parent=0 // loop_header
    %s9 = sphi 0, %s13
    %p10 = scmp.ge.s32.totalorder %s9, 6
    %s16 = sphi 0, %s28
    %s17 = sphi 0, %s24
    %s18 = sphi 0, %s16
    %s19 = sphi 0, %s17
    %s20 = sphi 0, %s18
    %s21 = sphi 0, %s19
    %s31 = sphi 0, %s33
    %s34 = sphi 0, %s31
    %s35 = sphi 0, %s34
    %s51 = sphi 0, %s35
    %s55 = sphi 0, %s55
    %s57 = sphi 0, %s55
    %s58 = sphi 0, %s57
    %s72 = sphi 0, %s58
    %s76 = sphi 0, %s76
    %s78 = sphi 0, %s76
    %s79 = sphi 0, %s78
    %s93 = sphi 0, %s79
    %s101 = sphi 0, %s103
    %s104 = sphi 0, %s101
    %s105 = sphi 0, %s104
    %s121 = sphi 0, %s105
  $region4: #{_lambda_.8} parent=0 // loop_header_branch
    %12 = sbr.rel (%p10) target = $region8
  $region5: #{_lambda_.8} parent=0 // loop_body
    %s14 = ssub.s32 %s9, 1
    %s15 = ssub.s32 %s9, 2
    %s22 = sadd.s32 1, %s17
    %p23 = scmp.ge.s32.totalorder %s22, 2
    %s24 = scalar_select %p23, 0, %s22
    %s25 = sadd.s32 1, %s16
    %s26 = scalar_select %p23, %s25, %s16
    %p27 = scmp.ge.s32.totalorder %s26, 2
    %s28 = scalar_select %p27, 0, %s26
    %s29 = ssub.s32 %s16, %s28
    %p30 = scmp.eq.s32.totalorder %s29, 0
    %s32 = sadd.s32 %s31, 1
    %s33 = scalar_select %p30, %s31, %s32
    %p36 = pneg %p30
    %p37 = scmp.eq.s32.totalorder %s9, 3
    %p38 = por %p36, %p37
    %p39 = scmp.ne.s32.totalorder %s31, %s34
    %p40 = scmp.eq.s32.totalorder %s9, 0
    %p41 = por %p39, %p40
    %p42 = scmp.ne.s32.totalorder %s31, %s34
    %p43 = scmp.eq.s32.totalorder %s14, 3
    %p44 = por %p42, %p43
    %p45 = scmp.ne.s32.totalorder %s34, %s35
    %p46 = scmp.eq.s32.totalorder %s14, 0
    %p47 = por %p45, %p46
    %p48 = scmp.ne.s32.totalorder %s34, %s35
    %p49 = scmp.eq.s32.totalorder %s15, 3
    %p50 = por %p48, %p49
    %p52 = scmp.ne.s32.totalorder %s35, %s51
    %p53 = scmp.eq.s32.totalorder %s15, 0
    %p54 = por %p52, %p53
    %s56 = sadd.s32 %s55, 1
    %p59 = scmp.eq.s32.totalorder %s9, 3
    %p60 = scmp.ne.s32.totalorder %s55, %s57
    %p61 = scmp.eq.s32.totalorder %s9, 0
    %p62 = por %p60, %p61
    %p63 = scmp.ne.s32.totalorder %s55, %s57
    %p64 = scmp.eq.s32.totalorder %s14, 3
    %p65 = por %p63, %p64
    %p66 = scmp.ne.s32.totalorder %s57, %s58
    %p67 = scmp.eq.s32.totalorder %s14, 0
    %p68 = por %p66, %p67
    %p69 = scmp.ne.s32.totalorder %s57, %s58
    %p70 = scmp.eq.s32.totalorder %s15, 3
    %p71 = por %p69, %p70
    %p73 = scmp.ne.s32.totalorder %s58, %s72
    %p74 = scmp.eq.s32.totalorder %s15, 0
    %p75 = por %p73, %p74
    %s77 = sadd.s32 %s76, 1
    %p80 = scmp.eq.s32.totalorder %s9, 3
    %p81 = scmp.ne.s32.totalorder %s76, %s78
    %p82 = scmp.eq.s32.totalorder %s9, 0
    %p83 = por %p81, %p82
    %p84 = scmp.ne.s32.totalorder %s76, %s78
    %p85 = scmp.eq.s32.totalorder %s14, 3
    %p86 = por %p84, %p85
    %p87 = scmp.ne.s32.totalorder %s78, %s79
    %p88 = scmp.eq.s32.totalorder %s14, 0
    %p89 = por %p87, %p88
    %p90 = scmp.ne.s32.totalorder %s78, %s79
    %p91 = scmp.eq.s32.totalorder %s15, 3
    %p92 = por %p90, %p91
    %p94 = scmp.ne.s32.totalorder %s79, %s93
    %p95 = scmp.eq.s32.totalorder %s15, 0
    %p96 = por %p94, %p95
    %s97 = ssub.s32 %s16, %s28
    %s98 = ssub.s32 %s17, %s24
    %s99 = sor.u32 %s97, %s98
    %p100 = scmp.eq.s32.totalorder %s99, 0
    %s102 = sadd.s32 %s101, 1
    %s103 = scalar_select %p100, %s101, %s102
    %p106 = pneg %p100
    %p107 = scmp.eq.s32.totalorder %s9, 3
    %p108 = por %p106, %p107
    %p109 = scmp.ne.s32.totalorder %s101, %s104
    %p110 = scmp.eq.s32.totalorder %s9, 0
    %p111 = por %p109, %p110
    %p112 = scmp.ne.s32.totalorder %s101, %s104
    %p113 = scmp.eq.s32.totalorder %s14, 3
    %p114 = por %p112, %p113
    %p115 = scmp.ne.s32.totalorder %s104, %s105
    %p116 = scmp.eq.s32.totalorder %s14, 0
    %p117 = por %p115, %p116
    %p118 = scmp.ne.s32.totalorder %s104, %s105
    %p119 = scmp.eq.s32.totalorder %s15, 3
    %p120 = por %p118, %p119
    %p122 = scmp.ne.s32.totalorder %s105, %s121
    %p123 = scmp.eq.s32.totalorder %s15, 0
    %p124 = por %p122, %p123
    %p125 = scmp.le.s32.totalorder 1, %s9
    %p126 = scmp.lt.s32.totalorder %s9, 5
    %p127 = pnand %p125, %p126
    %p128 = pneg %p127
    // Predicated region
    $region9: #{_lambda_.8} parent=5 // pred_check
      _
    $region10: #{_lambda_.8} parent=5 // pred_check_branch
      %130 = sbr.rel (%p127) target = $region12
    $region11: #{_lambda_.8} parent=5 // pred_region
      %s131 = ssub.s32 %s9, 1
      // Predicated region
      $region13: #{_lambda_.8} parent=11 // pred_check
        %p132 = pneg %p68
      $region14: #{_lambda_.8} parent=11 // pred_check_branch
        %134 = sbr.rel (%p132) target = $region16
      $region15: #{_lambda_.8} parent=11 // pred_region
        _
      $region16: #{_lambda_.8} parent=11 // pred_fallthru
        _
      // Predicated region
      $region17: #{_lambda_.8} parent=11 // pred_check
        %p135 = pneg %p89
      $region18: #{_lambda_.8} parent=11 // pred_check_branch
        %137 = sbr.rel (%p135) target = $region20
      $region19: #{_lambda_.8} parent=11 // pred_region
        _
      $region20: #{_lambda_.8} parent=11 // pred_fallthru
        _
    $region12: #{_lambda_.8} parent=5 // pred_fallthru
      _
    %p138 = scmp.lt.s32.totalorder %s9, 4
    // Predicated region
    $region21: #{_lambda_.8} parent=5 // pred_check
      %p139 = pneg %p138
    $region22: #{_lambda_.8} parent=5 // pred_check_branch
      %141 = sbr.rel (%p139) target = $region24
    $region23: #{_lambda_.8} parent=5 // pred_region
      // Predicated region
      $region25: #{_lambda_.8} parent=23 // pred_check
        %p142 = pneg %p41
      $region26: #{_lambda_.8} parent=23 // pred_check_branch
        %144 = sbr.rel (%p142) target = $region28
      $region27: #{_lambda_.8} parent=23 // pred_region
        %p145 = scmp.lt.s32.totalorder %s16, 1
        %s146 = scalar_select %p145, %s16, 1
        %s147 = smul.addr %s146, 54
        %s148 = smul.addr %s147, 4
        %s149 = scalar_lea.vmem %s0, %s148
      $region28: #{_lambda_.8} parent=23 // pred_fallthru
        _
    $region24: #{_lambda_.8} parent=5 // pred_fallthru
      _
    %p150 = scmp.le.s32.totalorder 1, %s9
    %p151 = scmp.lt.s32.totalorder %s9, 5
    %p152 = pnand %p150, %p151
    %p153 = pneg %p152
    // Predicated region
    $region29: #{_lambda_.8} parent=5 // pred_check
      _
    $region30: #{_lambda_.8} parent=5 // pred_check_branch
      %155 = sbr.rel (%p152) target = $region32
    $region31: #{_lambda_.8} parent=5 // pred_region
      %s156 = ssub.s32 %s9, 1
      %p157 = scmp.lt.s32.totalorder %s18, 1
      %s158 = scalar_select %p157, %s18, 1
      %s159 = smul.addr %s158, 54
      %s160 = smul.addr %s159, 4
      %s161 = scalar_lea.vmem %s0, %s160
      %p162 = pneg %p47
      %p163 = pneg %p44
      %p164 = pneg %p68
      %p165 = pneg %p65
      %p166 = pneg %p89
      %p167 = pneg %p86
      %p168 = pneg %p117
      %p169 = pneg %p114
      %s170 = smul.u32 8, %s19
      %p171 = scmp.lt.s32.totalorder %s18, 1
      %s172 = scalar_select %p171, %s18, 1
      %p173 = scmp.lt.s32.totalorder %s170, 15
      %s174 = scalar_select %p173, %s170, 15
      %s175 = smul.addr %s174, 2
      %s176 = smul.addr %s172, 32
      %s177 = sadd.s32 %s175, %s176
      %s178 = smul.addr %s177, 4
      %s179 = scalar_lea.vmem %s3, %s178
      %p180 = scmp.lt.s32.totalorder %s18, 1
      %s181 = scalar_select %p180, %s18, 1
      %s182 = smul.addr %s181, 54
      %s183 = smul.addr %s182, 4
      %s184 = scalar_lea.vmem %s0, %s183
      %s185 = smul.u32 8, %s19
      %p186 = scmp.lt.s32.totalorder %s18, 1
      %s187 = scalar_select %p186, %s18, 1
      %p188 = scmp.lt.s32.totalorder %s185, 15
      %s189 = scalar_select %p188, %s185, 15
      %s190 = smul.addr %s189, 2
      %s191 = smul.addr %s187, 32
      %s192 = sadd.s32 %s190, %s191
      %s193 = smul.addr %s192, 4
      %s194 = scalar_lea.vmem %s3, %s193
      %s195 = smul.u32 8, %s19
      %s197 = smul.u32 %s19, 8
      %s198 = smul.u32 %s197, 3
      %s199 = smul.addr %s198, 4
      %s200 = scalar_lea.vmem %s184, %s199
      %v201 = vld [vmem:[%s200] sm:$0xf]
      %v202 = vld [vmem:[%s200 + $0x4] sm:$0xf]
      %v203 = vld [vmem:[%s200 + $0x8] sm:$0x1]
      %v204 = vld [vmem:[%s200 + $0xc] sm:$0xf]
      %v205 = vld [vmem:[%s200 + $0x10] sm:$0xf]
      %v206 = vld [vmem:[%s200 + $0x14] sm:$0x1]
      %v207 = vld [vmem:[%s200 + $0x18] sm:$0xf]
      %v208 = vld [vmem:[%s200 + $0x1c] sm:$0xf]
      %v209 = vld [vmem:[%s200 + $0x20] sm:$0x1]
      %v210 = vld [vmem:[%s200 + $0x24] sm:$0xf]
      %v211 = vld [vmem:[%s200 + $0x28] sm:$0xf]
      %v212 = vld [vmem:[%s200 + $0x2c] sm:$0x1]
      %v213 = vld [vmem:[%s200 + $0x30] sm:$0xf]
      %v214 = vld [vmem:[%s200 + $0x34] sm:$0xf]
      %v215 = vld [vmem:[%s200 + $0x38] sm:$0x1]
      %v216 = vld [vmem:[%s200 + $0x3c] sm:$0xf]
      %v217 = vld [vmem:[%s200 + $0x40] sm:$0xf]
      %v218 = vld [vmem:[%s200 + $0x44] sm:$0x1]
      %v219 = vld [vmem:[%s200 + $0x48] sm:$0xf]
      %v220 = vld [vmem:[%s200 + $0x4c] sm:$0xf]
      %v221 = vld [vmem:[%s200 + $0x50] sm:$0x1]
      %v222 = vld [vmem:[%s200 + $0x54] sm:$0xf]
      %v223 = vld [vmem:[%s200 + $0x58] sm:$0xf]
      %v224 = vld [vmem:[%s200 + $0x5c] sm:$0x1]
      %v225 = vld [vmem:[%s200 + $0x60] sm:$0xf]
      %v226 = vld [vmem:[%s200 + $0x64] sm:$0xf]
      %v227 = vld [vmem:[%s200 + $0x68] sm:$0x1]
      %v228 = vld [vmem:[%s200 + $0x6c] sm:$0xf]
      %v229 = vld [vmem:[%s200 + $0x70] sm:$0xf]
      %v230 = vld [vmem:[%s200 + $0x74] sm:$0x1]
      %v231 = vld [vmem:[%s1] sm:$0xf]
      %v232 = vld [vmem:[%s1 + $0x4] sm:$0xf]
      %v233 = vld [vmem:[%s1 + $0x8] sm:$0xf]
      %v234 = vld [vmem:[%s1 + $0xc] sm:$0xf]
      %v235 = vld [vmem:[%s1 + $0x10] sm:$0xf]
      %v236 = vld [vmem:[%s1 + $0x14] sm:$0xf]
      %v237 = vld [vmem:[%s1 + $0x18] sm:$0xf]
      %v238 = vld [vmem:[%s1 + $0x1c] sm:$0xf]
      %v239 = vld [vmem:[%s1 + $0x20] sm:$0xf]
      %v240 = vld [vmem:[%s1 + $0x24] sm:$0xf]
      %v241 = vld [vmem:[%s1 + $0x28] sm:$0xf]
      %v242 = vld [vmem:[%s1 + $0x2c] sm:$0xf]
      %v243 = vld [vmem:[%s1 + $0x30] sm:$0xf]
      %v244 = vld [vmem:[%s1 + $0x34] sm:$0xf]
      %v245 = vld [vmem:[%s1 + $0x38] sm:$0xf]
      %v246 = vld [vmem:[%s1 + $0x3c] sm:$0xf]
      %vm247 = vsmask.f32 3328
      %vm248 = vsmask.f32 7440
      %vm249 = vmor %vm247, %vm248
      %v251 = vshrl.u32 %v201, 16
      %v253 = vrot.slane %v251, 4
      %v254 = vshll.u32 %v201, 16
      %v256 = vrot.slane %v254, 5
      %v257 = vor.u32 %v253, %v256
      %v258 = vrot.slane %v257, 4
      %v260 = vshll.u32 %v202, 16
      %v262 = vrot.slane %v260, 5
      %v263 = vsel %vm249, %v258, %v262
      %v264 = vshrl.u32 %v202, 16
      %v266 = vrot.slane %v264, 4
      %v267 = vor.u32 %v266, %v262
      %v268 = vrot.slane %v267, 4
      %v270 = vshll.u32 %v203, 16
      %v272 = vrot.slane %v270, 5
      %v273 = vsel %vm249, %v268, %v272
      %v275 = vshrl.u32 %v204, 16
      %v277 = vrot.slane %v275, 4
      %v278 = vshll.u32 %v204, 16
      %v280 = vrot.slane %v278, 5
      %v281 = vor.u32 %v277, %v280
      %v282 = vrot.slane %v281, 4
      %v284 = vshll.u32 %v205, 16
      %v286 = vrot.slane %v284, 5
      %v287 = vsel %vm249, %v282, %v286
      %v288 = vshrl.u32 %v205, 16
      %v290 = vrot.slane %v288, 4
      %v291 = vor.u32 %v290, %v286
      %v292 = vrot.slane %v291, 4
      %v294 = vshll.u32 %v206, 16
      %v296 = vrot.slane %v294, 5
      %v297 = vsel %vm249, %v292, %v296
      %v299 = vshrl.u32 %v207, 16
      %v301 = vrot.slane %v299, 4
      %v302 = vshll.u32 %v207, 16
      %v304 = vrot.slane %v302, 5
      %v305 = vor.u32 %v301, %v304
      %v306 = vrot.slane %v305, 4
      %v308 = vshll.u32 %v208, 16
      %v310 = vrot.slane %v308, 5
      %v311 = vsel %vm249, %v306, %v310
      %v312 = vshrl.u32 %v208, 16
      %v314 = vrot.slane %v312, 4
      %v315 = vor.u32 %v314, %v310
      %v316 = vrot.slane %v315, 4
      %v318 = vshll.u32 %v209, 16
      %v320 = vrot.slane %v318, 5
      %v321 = vsel %vm249, %v316, %v320
      %v323 = vshrl.u32 %v210, 16
      %v325 = vrot.slane %v323, 4
      %v326 = vshll.u32 %v210, 16
      %v328 = vrot.slane %v326, 5
      %v329 = vor.u32 %v325, %v328
      %v330 = vrot.slane %v329, 4
      %v332 = vshll.u32 %v211, 16
      %v334 = vrot.slane %v332, 5
      %v335 = vsel %vm249, %v330, %v334
      %v336 = vshrl.u32 %v211, 16
      %v338 = vrot.slane %v336, 4
      %v339 = vor.u32 %v338, %v334
      %v340 = vrot.slane %v339, 4
      %v342 = vshll.u32 %v212, 16
      %v344 = vrot.slane %v342, 5
      %v345 = vsel %vm249, %v340, %v344
      %v347 = vshrl.u32 %v213, 16
      %v349 = vrot.slane %v347, 4
      %v350 = vshll.u32 %v213, 16
      %v352 = vrot.slane %v350, 5
      %v353 = vor.u32 %v349, %v352
      %v354 = vrot.slane %v353, 4
      %v356 = vshll.u32 %v214, 16
      %v358 = vrot.slane %v356, 5
      %v359 = vsel %vm249, %v354, %v358
      %v360 = vshrl.u32 %v214, 16
      %v362 = vrot.slane %v360, 4
      %v363 = vor.u32 %v362, %v358
      %v364 = vrot.slane %v363, 4
      %v366 = vshll.u32 %v215, 16
      %v368 = vrot.slane %v366, 5
      %v369 = vsel %vm249, %v364, %v368
      %v371 = vshrl.u32 %v216, 16
      %v373 = vrot.slane %v371, 4
      %v374 = vshll.u32 %v216, 16
      %v376 = vrot.slane %v374, 5
      %v377 = vor.u32 %v373, %v376
      %v378 = vrot.slane %v377, 4
      %v380 = vshll.u32 %v217, 16
      %v382 = vrot.slane %v380, 5
      %v383 = vsel %vm249, %v378, %v382
      %v384 = vshrl.u32 %v217, 16
      %v386 = vrot.slane %v384, 4
      %v387 = vor.u32 %v386, %v382
      %v388 = vrot.slane %v387, 4
      %v390 = vshll.u32 %v218, 16
      %v392 = vrot.slane %v390, 5
      %v393 = vsel %vm249, %v388, %v392
      %v395 = vshrl.u32 %v219, 16
      %v397 = vrot.slane %v395, 4
      %v398 = vshll.u32 %v219, 16
      %v400 = vrot.slane %v398, 5
      %v401 = vor.u32 %v397, %v400
      %v402 = vrot.slane %v401, 4
      %v404 = vshll.u32 %v220, 16
      %v406 = vrot.slane %v404, 5
      %v407 = vsel %vm249, %v402, %v406
      %v408 = vshrl.u32 %v220, 16
      %v410 = vrot.slane %v408, 4
      %v411 = vor.u32 %v410, %v406
      %v412 = vrot.slane %v411, 4
      %v414 = vshll.u32 %v221, 16
      %v416 = vrot.slane %v414, 5
      %v417 = vsel %vm249, %v412, %v416
      %v419 = vshrl.u32 %v222, 16
      %v421 = vrot.slane %v419, 4
      %v422 = vshll.u32 %v222, 16
      %v424 = vrot.slane %v422, 5
      %v425 = vor.u32 %v421, %v424
      %v426 = vrot.slane %v425, 4
      %v428 = vshll.u32 %v223, 16
      %v430 = vrot.slane %v428, 5
      %v431 = vsel %vm249, %v426, %v430
      %v432 = vshrl.u32 %v223, 16
      %v434 = vrot.slane %v432, 4
      %v435 = vor.u32 %v434, %v430
      %v436 = vrot.slane %v435, 4
      %v438 = vshll.u32 %v224, 16
      %v440 = vrot.slane %v438, 5
      %v441 = vsel %vm249, %v436, %v440
      %s442 = scalar_lea.vmem %s1, 64
      %v443 = vld [vmem:[%s442] sm:$0xf]
      %v444 = vld [vmem:[%s442 + $0x4] sm:$0xf]
      %v445 = vld [vmem:[%s442 + $0x8] sm:$0xf]
      %v446 = vld [vmem:[%s442 + $0xc] sm:$0xf]
      %v447 = vld [vmem:[%s442 + $0x10] sm:$0xf]
      %v448 = vld [vmem:[%s442 + $0x14] sm:$0xf]
      %v449 = vld [vmem:[%s442 + $0x18] sm:$0xf]
      %v450 = vld [vmem:[%s442 + $0x1c] sm:$0xf]
      %v451 = vld [vmem:[%s442 + $0x20] sm:$0xf]
      %v452 = vld [vmem:[%s442 + $0x24] sm:$0xf]
      %v453 = vld [vmem:[%s442 + $0x28] sm:$0xf]
      %v454 = vld [vmem:[%s442 + $0x2c] sm:$0xf]
      %v455 = vld [vmem:[%s442 + $0x30] sm:$0xf]
      %v456 = vld [vmem:[%s442 + $0x34] sm:$0xf]
      %v457 = vld [vmem:[%s442 + $0x38] sm:$0xf]
      %v458 = vld [vmem:[%s442 + $0x3c] sm:$0xf]
      %v459 = vunpack.c.l.b16 %v263
      %v460 = vunpack.c.l.b16 %v273
      %v461 = vunpack.c.l.b16 %v287
      %v462 = vunpack.c.l.b16 %v297
      %v463 = vunpack.c.l.b16 %v311
      %v464 = vunpack.c.l.b16 %v321
      %v465 = vunpack.c.l.b16 %v335
      %v466 = vunpack.c.l.b16 %v345
      %v467 = vunpack.c.l.b16 %v359
      %v468 = vunpack.c.l.b16 %v369
      %v469 = vunpack.c.l.b16 %v383
      %v470 = vunpack.c.l.b16 %v393
      %v471 = vunpack.c.l.b16 %v407
      %v472 = vunpack.c.l.b16 %v417
      %v473 = vunpack.c.l.b16 %v431
      %v474 = vunpack.c.l.b16 %v441
      %v475 = vpack.c.b16 %v460, %v459
      %v476 = vpack.c.b16 %v462, %v461
      %v477 = vpack.c.b16 %v464, %v463
      %v478 = vpack.c.b16 %v466, %v465
      %v479 = vpack.c.b16 %v468, %v467
      %v480 = vpack.c.b16 %v470, %v469
      %v481 = vpack.c.b16 %v472, %v471
      %v482 = vpack.c.b16 %v474, %v473
      %v507 = vunpack.c.l.b16 %v443
      %v508 = vunpack.c.l.b16 %v444
      %v509 = vunpack.c.l.b16 %v445
      %v510 = vunpack.c.l.b16 %v446
      %v511 = vunpack.c.l.b16 %v447
      %v512 = vunpack.c.l.b16 %v448
      %v513 = vunpack.c.l.b16 %v449
      %v514 = vunpack.c.l.b16 %v450
      %v515 = vunpack.c.l.b16 %v451
      %v516 = vunpack.c.l.b16 %v452
      %v517 = vunpack.c.l.b16 %v453
      %v518 = vunpack.c.l.b16 %v454
      %v519 = vunpack.c.l.b16 %v455
      %v520 = vunpack.c.l.b16 %v456
      %v521 = vunpack.c.l.b16 %v457
      %v522 = vunpack.c.l.b16 %v458
      %v523 = vpack.c.b16 %v508, %v507
      %v524 = vpack.c.b16 %v510, %v509
      %v525 = vpack.c.b16 %v512, %v511
      %v526 = vpack.c.b16 %v514, %v513
      %v527 = vpack.c.b16 %v516, %v515
      %v528 = vpack.c.b16 %v518, %v517
      %v529 = vpack.c.b16 %v520, %v519
      %v530 = vpack.c.b16 %v522, %v521
      %539 = vmatprep.subr.bf16.mxu0 0
      %540 = vmatpush1.bf16.msra.mxu0 %v523
      %541 = vmatprep.subr.bf16.mxu0 0
      %542 = vmatpush1.bf16.msra.mxu0 %v524
      %543 = vmatprep.subr.bf16.mxu0 0
      %544 = vmatpush1.bf16.msra.mxu0 %v525
      %545 = vmatprep.subr.bf16.mxu0 0
      %546 = vmatpush1.bf16.msra.mxu0 %v526
      %547 = vmatprep.subr.bf16.mxu0 0
      %548 = vmatpush1.bf16.msra.mxu0 %v527
      %549 = vmatprep.subr.bf16.mxu0 0
      %550 = vmatpush1.bf16.msra.mxu0 %v528
      %551 = vmatprep.subr.bf16.mxu0 0
      %552 = vmatpush1.bf16.msra.mxu0 %v529
      %553 = vmatprep.subr.bf16.mxu0 0
      %554 = vmatpush1.bf16.msra.mxu0 %v530
      %555 = vmatprep.subr.bf16.mxu0 0
      %556 = vmatpush1.bf16.msra.mxu0 0
      %557 = vmatprep.subr.bf16.mxu0 0
      %558 = vmatpush1.bf16.msra.mxu0 0
      %559 = vmatprep.subr.bf16.mxu0 0
      %560 = vmatpush1.bf16.msra.mxu0 0
      %561 = vmatprep.subr.bf16.mxu0 0
      %562 = vmatpush1.bf16.msra.mxu0 0
      %563 = vmatprep.subr.bf16.mxu0 0
      %564 = vmatpush1.bf16.msra.mxu0 0
      %565 = vmatprep.subr.bf16.mxu0 0
      %566 = vmatpush1.bf16.msra.mxu0 0
      %567 = vmatprep.subr.bf16.mxu0 0
      %568 = vmatpush1.bf16.msra.mxu0 0
      %569 = vmatprep.subr.bf16.mxu0 0
      %570 = vmatpush1.bf16.msra.mxu0 0
      %571 = vmatprep.mubr.bf16.mxu0 0
      %572 = vmatmul.mubr.bf16.gmra.mrb[0].mxu0 %v475
      %v573 = vpop.f32.mrb[0].mxu0
      %v574 = vadd.f32 0.0, %v573
      %v575 = vpop.f32.mrb[0].mxu0
      %v576 = vpop.f32.mrb[0].mxu0
      %v577 = vadd.f32 0.0, %v576
      %v578 = vpop.f32.mrb[0].mxu0
      %579 = vmatprep.mubr.bf16.mxu0 0
      %580 = vmatmul.mubr.bf16.gmra.mrb[0].mxu0 %v476
      %v581 = vpop.f32.mrb[0].mxu0
      %v582 = vadd.f32 0.0, %v581
      %v583 = vpop.f32.mrb[0].mxu0
      %v584 = vpop.f32.mrb[0].mxu0
      %v585 = vadd.f32 0.0, %v584
      %v586 = vpop.f32.mrb[0].mxu0
      %587 = vmatprep.mubr.bf16.mxu0 0
      %588 = vmatmul.mubr.bf16.gmra.mrb[0].mxu0 %v477
      %v589 = vpop.f32.mrb[0].mxu0
      %v590 = vadd.f32 0.0, %v589
      %v591 = vpop.f32.mrb[0].mxu0
      %v592 = vpop.f32.mrb[0].mxu0
      %v593 = vadd.f32 0.0, %v592
      %v594 = vpop.f32.mrb[0].mxu0
      %595 = vmatprep.mubr.bf16.mxu0 0
      %596 = vmatmul.mubr.bf16.gmra.mrb[0].mxu0 %v478
      %v597 = vpop.f32.mrb[0].mxu0
      %v598 = vadd.f32 0.0, %v597
      %v599 = vpop.f32.mrb[0].mxu0
      %v600 = vpop.f32.mrb[0].mxu0
      %v601 = vadd.f32 0.0, %v600
      %v602 = vpop.f32.mrb[0].mxu0
      %603 = vmatprep.mubr.bf16.mxu0 0
      %604 = vmatmul.mubr.bf16.gmra.mrb[0].mxu0 %v479
      %v605 = vpop.f32.mrb[0].mxu0
      %v606 = vadd.f32 0.0, %v605
      %v607 = vpop.f32.mrb[0].mxu0
      %v608 = vpop.f32.mrb[0].mxu0
      %v609 = vadd.f32 0.0, %v608
      %v610 = vpop.f32.mrb[0].mxu0
      %611 = vmatprep.mubr.bf16.mxu0 0
      %612 = vmatmul.mubr.bf16.gmra.mrb[0].mxu0 %v480
      %v613 = vpop.f32.mrb[0].mxu0
      %v614 = vadd.f32 0.0, %v613
      %v615 = vpop.f32.mrb[0].mxu0
      %v616 = vpop.f32.mrb[0].mxu0
      %v617 = vadd.f32 0.0, %v616
      %v618 = vpop.f32.mrb[0].mxu0
      %619 = vmatprep.mubr.bf16.mxu0 0
      %620 = vmatmul.mubr.bf16.gmra.mrb[0].mxu0 %v481
      %v621 = vpop.f32.mrb[0].mxu0
      %v622 = vadd.f32 0.0, %v621
      %v623 = vpop.f32.mrb[0].mxu0
      %v624 = vpop.f32.mrb[0].mxu0
      %v625 = vadd.f32 0.0, %v624
      %v626 = vpop.f32.mrb[0].mxu0
      %627 = vmatprep.mubr.bf16.mxu0 0
      %628 = vmatmul.mubr.bf16.gmra.mrb[0].mxu0 %v482
      %v629 = vpop.f32.mrb[0].mxu0
      %v630 = vadd.f32 0.0, %v629
      %v631 = vpop.f32.mrb[0].mxu0
      %v632 = vpop.f32.mrb[0].mxu0
      %v633 = vadd.f32 0.0, %v632
      %v634 = vpop.f32.mrb[0].mxu0
      %635 = vdwg.mxu0
      %v652 = vunpack.c.l.b16 %v201
      %v653 = vunpack.c.l.b16 %v202
      %v654 = vunpack.c.l.b16 %v204
      %v655 = vunpack.c.l.b16 %v205
      %v656 = vunpack.c.l.b16 %v207
      %v657 = vunpack.c.l.b16 %v208
      %v658 = vunpack.c.l.b16 %v210
      %v659 = vunpack.c.l.b16 %v211
      %v660 = vunpack.c.l.b16 %v213
      %v661 = vunpack.c.l.b16 %v214
      %v662 = vunpack.c.l.b16 %v216
      %v663 = vunpack.c.l.b16 %v217
      %v664 = vunpack.c.l.b16 %v219
      %v665 = vunpack.c.l.b16 %v220
      %v666 = vunpack.c.l.b16 %v222
      %v667 = vunpack.c.l.b16 %v223
      %v668 = vpack.c.b16 %v653, %v652
      %v669 = vpack.c.b16 %v655, %v654
      %v670 = vpack.c.b16 %v657, %v656
      %v671 = vpack.c.b16 %v659, %v658
      %v672 = vpack.c.b16 %v661, %v660
      %v673 = vpack.c.b16 %v663, %v662
      %v674 = vpack.c.b16 %v665, %v664
      %v675 = vpack.c.b16 %v667, %v666
      %v700 = vunpack.c.l.b16 %v231
      %v701 = vunpack.c.l.b16 %v232
      %v702 = vunpack.c.l.b16 %v233
      %v703 = vunpack.c.l.b16 %v234
      %v704 = vunpack.c.l.b16 %v235
      %v705 = vunpack.c.l.b16 %v236
      %v706 = vunpack.c.l.b16 %v237
      %v707 = vunpack.c.l.b16 %v238
      %v708 = vunpack.c.l.b16 %v239
      %v709 = vunpack.c.l.b16 %v240
      %v710 = vunpack.c.l.b16 %v241
      %v711 = vunpack.c.l.b16 %v242
      %v712 = vunpack.c.l.b16 %v243
      %v713 = vunpack.c.l.b16 %v244
      %v714 = vunpack.c.l.b16 %v245
      %v715 = vunpack.c.l.b16 %v246
      %v716 = vpack.c.b16 %v701, %v700
      %v717 = vpack.c.b16 %v703, %v702
      %v718 = vpack.c.b16 %v705, %v704
      %v719 = vpack.c.b16 %v707, %v706
      %v720 = vpack.c.b16 %v709, %v708
      %v721 = vpack.c.b16 %v711, %v710
      %v722 = vpack.c.b16 %v713, %v712
      %v723 = vpack.c.b16 %v715, %v714
      %732 = vmatprep.subr.bf16.mxu0 0
      %733 = vmatpush1.bf16.msra.mxu0 %v716
      %734 = vmatprep.subr.bf16.mxu0 0
      %735 = vmatpush1.bf16.msra.mxu0 %v717
      %736 = vmatprep.subr.bf16.mxu0 0
      %737 = vmatpush1.bf16.msra.mxu0 %v718
      %738 = vmatprep.subr.bf16.mxu0 0
      %739 = vmatpush1.bf16.msra.mxu0 %v719
      %740 = vmatprep.subr.bf16.mxu0 0
      %741 = vmatpush1.bf16.msra.mxu0 %v720
      %742 = vmatprep.subr.bf16.mxu0 0
      %743 = vmatpush1.bf16.msra.mxu0 %v721
      %744 = vmatprep.subr.bf16.mxu0 0
      %745 = vmatpush1.bf16.msra.mxu0 %v722
      %746 = vmatprep.subr.bf16.mxu0 0
      %747 = vmatpush1.bf16.msra.mxu0 %v723
      %748 = vmatprep.subr.bf16.mxu0 0
      %749 = vmatpush1.bf16.msra.mxu0 0
      %750 = vmatprep.subr.bf16.mxu0 0
      %751 = vmatpush1.bf16.msra.mxu0 0
      %752 = vmatprep.subr.bf16.mxu0 0
      %753 = vmatpush1.bf16.msra.mxu0 0
      %754 = vmatprep.subr.bf16.mxu0 0
      %755 = vmatpush1.bf16.msra.mxu0 0
      %756 = vmatprep.subr.bf16.mxu0 0
      %757 = vmatpush1.bf16.msra.mxu0 0
      %758 = vmatprep.subr.bf16.mxu0 0
      %759 = vmatpush1.bf16.msra.mxu0 0
      %760 = vmatprep.subr.bf16.mxu0 0
      %761 = vmatpush1.bf16.msra.mxu0 0
      %762 = vmatprep.subr.bf16.mxu0 0
      %763 = vmatpush1.bf16.msra.mxu0 0
      %764 = vmatprep.mubr.bf16.mxu0 0
      %765 = vmatmul.mubr.bf16.gmra.mrb[0].mxu0 %v668
      %v766 = vpop.f32.mrb[0].mxu0
      %v767 = vadd.f32 %v574, %v766
      %v768 = vpop.f32.mrb[0].mxu0
      %v769 = vpop.f32.mrb[0].mxu0
      %v770 = vadd.f32 %v577, %v769
      %v771 = vpop.f32.mrb[0].mxu0
      %772 = vmatprep.mubr.bf16.mxu0 0
      %773 = vmatmul.mubr.bf16.gmra.mrb[0].mxu0 %v669
      %v774 = vpop.f32.mrb[0].mxu0
      %v775 = vadd.f32 %v582, %v774
      %v776 = vpop.f32.mrb[0].mxu0
      %v777 = vpop.f32.mrb[0].mxu0
      %v778 = vadd.f32 %v585, %v777
      %v779 = vpop.f32.mrb[0].mxu0
      %780 = vmatprep.mubr.bf16.mxu0 0
      %781 = vmatmul.mubr.bf16.gmra.mrb[0].mxu0 %v670
      %v782 = vpop.f32.mrb[0].mxu0
      %v783 = vadd.f32 %v590, %v782
      %v784 = vpop.f32.mrb[0].mxu0
      %v785 = vpop.f32.mrb[0].mxu0
      %v786 = vadd.f32 %v593, %v785
      %v787 = vpop.f32.mrb[0].mxu0
      %788 = vmatprep.mubr.bf16.mxu0 0
      %789 = vmatmul.mubr.bf16.gmra.mrb[0].mxu0 %v671
      %v790 = vpop.f32.mrb[0].mxu0
      %v791 = vadd.f32 %v598, %v790
      %v792 = vpop.f32.mrb[0].mxu0
      %v793 = vpop.f32.mrb[0].mxu0
      %v794 = vadd.f32 %v601, %v793
      %v795 = vpop.f32.mrb[0].mxu0
      %796 = vmatprep.mubr.bf16.mxu0 0
      %797 = vmatmul.mubr.bf16.gmra.mrb[0].mxu0 %v672
      %v798 = vpop.f32.mrb[0].mxu0
      %v799 = vadd.f32 %v606, %v798
      %v800 = vpop.f32.mrb[0].mxu0
      %v801 = vpop.f32.mrb[0].mxu0
      %v802 = vadd.f32 %v609, %v801
      %v803 = vpop.f32.mrb[0].mxu0
      %804 = vmatprep.mubr.bf16.mxu0 0
      %805 = vmatmul.mubr.bf16.gmra.mrb[0].mxu0 %v673
      %v806 = vpop.f32.mrb[0].mxu0
      %v807 = vadd.f32 %v614, %v806
      %v808 = vpop.f32.mrb[0].mxu0
      %v809 = vpop.f32.mrb[0].mxu0
      %v810 = vadd.f32 %v617, %v809
      %v811 = vpop.f32.mrb[0].mxu0
      %812 = vmatprep.mubr.bf16.mxu0 0
      %813 = vmatmul.mubr.bf16.gmra.mrb[0].mxu0 %v674
      %v814 = vpop.f32.mrb[0].mxu0
      %v815 = vadd.f32 %v622, %v814
      %v816 = vpop.f32.mrb[0].mxu0
      %v817 = vpop.f32.mrb[0].mxu0
      %v818 = vadd.f32 %v625, %v817
      %v819 = vpop.f32.mrb[0].mxu0
      %820 = vmatprep.mubr.bf16.mxu0 0
      %821 = vmatmul.mubr.bf16.gmra.mrb[0].mxu0 %v675
      %v822 = vpop.f32.mrb[0].mxu0
      %v823 = vadd.f32 %v630, %v822
      %v824 = vpop.f32.mrb[0].mxu0
      %v825 = vpop.f32.mrb[0].mxu0
      %v826 = vadd.f32 %v633, %v825
      %v827 = vpop.f32.mrb[0].mxu0
      %828 = vdwg.mxu0
      %vm837 = vcmask 1042432
      %vm838 = vcmask 1046532
      %vm839 = vmor %vm837, %vm838
      %v840 = vrot.slane %v201, 5
      %v841 = vrot.slane %v840, 4
      %v842 = vrot.slane %v202, 5
      %v843 = vsel %vm839, %v841, %v842
      %v844 = vrot.slane %v842, 4
      %v845 = vrot.slane %v203, 5
      %v846 = vsel %vm839, %v844, %v845
      %v847 = vrot.slane %v204, 5
      %v848 = vrot.slane %v847, 4
      %v849 = vrot.slane %v205, 5
      %v850 = vsel %vm839, %v848, %v849
      %v851 = vrot.slane %v849, 4
      %v852 = vrot.slane %v206, 5
      %v853 = vsel %vm839, %v851, %v852
      %v854 = vrot.slane %v207, 5
      %v855 = vrot.slane %v854, 4
      %v856 = vrot.slane %v208, 5
      %v857 = vsel %vm839, %v855, %v856
      %v858 = vrot.slane %v856, 4
      %v859 = vrot.slane %v209, 5
      %v860 = vsel %vm839, %v858, %v859
      %v861 = vrot.slane %v210, 5
      %v862 = vrot.slane %v861, 4
      %v863 = vrot.slane %v211, 5
      %v864 = vsel %vm839, %v862, %v863
      %v865 = vrot.slane %v863, 4
      %v866 = vrot.slane %v212, 5
      %v867 = vsel %vm839, %v865, %v866
      %v868 = vrot.slane %v213, 5
      %v869 = vrot.slane %v868, 4
      %v870 = vrot.slane %v214, 5
      %v871 = vsel %vm839, %v869, %v870
      %v872 = vrot.slane %v870, 4
      %v873 = vrot.slane %v215, 5
      %v874 = vsel %vm839, %v872, %v873
      %v875 = vrot.slane %v216, 5
      %v876 = vrot.slane %v875, 4
      %v877 = vrot.slane %v217, 5
      %v878 = vsel %vm839, %v876, %v877
      %v879 = vrot.slane %v877, 4
      %v880 = vrot.slane %v218, 5
      %v881 = vsel %vm839, %v879, %v880
      %v882 = vrot.slane %v219, 5
      %v883 = vrot.slane %v882, 4
      %v884 = vrot.slane %v220, 5
      %v885 = vsel %vm839, %v883, %v884
      %v886 = vrot.slane %v884, 4
      %v887 = vrot.slane %v221, 5
      %v888 = vsel %vm839, %v886, %v887
      %v889 = vrot.slane %v222, 5
      %v890 = vrot.slane %v889, 4
      %v891 = vrot.slane %v223, 5
      %v892 = vsel %vm839, %v890, %v891
      %v893 = vrot.slane %v891, 4
      %v894 = vrot.slane %v224, 5
      %v895 = vsel %vm839, %v893, %v894
      %s896 = scalar_lea.vmem %s1, 128
      %v897 = vld [vmem:[%s896] sm:$0xf]
      %v898 = vld [vmem:[%s896 + $0x4] sm:$0xf]
      %v899 = vld [vmem:[%s896 + $0x8] sm:$0xf]
      %v900 = vld [vmem:[%s896 + $0xc] sm:$0xf]
      %v901 = vld [vmem:[%s896 + $0x10] sm:$0xf]
      %v902 = vld [vmem:[%s896 + $0x14] sm:$0xf]
      %v903 = vld [vmem:[%s896 + $0x18] sm:$0xf]
      %v904 = vld [vmem:[%s896 + $0x1c] sm:$0xf]
      %v905 = vld [vmem:[%s896 + $0x20] sm:$0xf]
      %v906 = vld [vmem:[%s896 + $0x24] sm:$0xf]
      %v907 = vld [vmem:[%s896 + $0x28] sm:$0xf]
      %v908 = vld [vmem:[%s896 + $0x2c] sm:$0xf]
      %v909 = vld [vmem:[%s896 + $0x30] sm:$0xf]
      %v910 = vld [vmem:[%s896 + $0x34] sm:$0xf]
      %v911 = vld [vmem:[%s896 + $0x38] sm:$0xf]
      %v912 = vld [vmem:[%s896 + $0x3c] sm:$0xf]
      %v913 = vunpack.c.l.b16 %v843
      %v914 = vunpack.c.l.b16 %v846
      %v915 = vunpack.c.l.b16 %v850
      %v916 = vunpack.c.l.b16 %v853
      %v917 = vunpack.c.l.b16 %v857
      %v918 = vunpack.c.l.b16 %v860
      %v919 = vunpack.c.l.b16 %v864
      %v920 = vunpack.c.l.b16 %v867
      %v921 = vunpack.c.l.b16 %v871
      %v922 = vunpack.c.l.b16 %v874
      %v923 = vunpack.c.l.b16 %v878
      %v924 = vunpack.c.l.b16 %v881
      %v925 = vunpack.c.l.b16 %v885
      %v926 = vunpack.c.l.b16 %v888
      %v927 = vunpack.c.l.b16 %v892
      %v928 = vunpack.c.l.b16 %v895
      %v929 = vpack.c.b16 %v914, %v913
      %v930 = vpack.c.b16 %v916, %v915
      %v931 = vpack.c.b16 %v918, %v917
      %v932 = vpack.c.b16 %v920, %v919
      %v933 = vpack.c.b16 %v922, %v921
      %v934 = vpack.c.b16 %v924, %v923
      %v935 = vpack.c.b16 %v926, %v925
      %v936 = vpack.c.b16 %v928, %v927
      %v961 = vunpack.c.l.b16 %v897
      %v962 = vunpack.c.l.b16 %v898
      %v963 = vunpack.c.l.b16 %v899
      %v964 = vunpack.c.l.b16 %v900
      %v965 = vunpack.c.l.b16 %v901
      %v966 = vunpack.c.l.b16 %v902
      %v967 = vunpack.c.l.b16 %v903
      %v968 = vunpack.c.l.b16 %v904
      %v969 = vunpack.c.l.b16 %v905
      %v970 = vunpack.c.l.b16 %v906
      %v971 = vunpack.c.l.b16 %v907
      %v972 = vunpack.c.l.b16 %v908
      %v973 = vunpack.c.l.b16 %v909
      %v974 = vunpack.c.l.b16 %v910
      %v975 = vunpack.c.l.b16 %v911
      %v976 = vunpack.c.l.b16 %v912
      %v977 = vpack.c.b16 %v962, %v961
      %v978 = vpack.c.b16 %v964, %v963
      %v979 = vpack.c.b16 %v966, %v965
      %v980 = vpack.c.b16 %v968, %v967
      %v981 = vpack.c.b16 %v970, %v969
      %v982 = vpack.c.b16 %v972, %v971
      %v983 = vpack.c.b16 %v974, %v973
      %v984 = vpack.c.b16 %v976, %v975
      %993 = vmatprep.subr.bf16.mxu0 0
      %994 = vmatpush1.bf16.msra.mxu0 %v977
      %995 = vmatprep.subr.bf16.mxu0 0
      %996 = vmatpush1.bf16.msra.mxu0 %v978
      %997 = vmatprep.subr.bf16.mxu0 0
      %998 = vmatpush1.bf16.msra.mxu0 %v979
      %999 = vmatprep.subr.bf16.mxu0 0
      %1000 = vmatpush1.bf16.msra.mxu0 %v980
      %1001 = vmatprep.subr.bf16.mxu0 0
      %1002 = vmatpush1.bf16.msra.mxu0 %v981
      %1003 = vmatprep.subr.bf16.mxu0 0
      %1004 = vmatpush1.bf16.msra.mxu0 %v982
      %1005 = vmatprep.subr.bf16.mxu0 0
      %1006 = vmatpush1.bf16.msra.mxu0 %v983
      %1007 = vmatprep.subr.bf16.mxu0 0
      %1008 = vmatpush1.bf16.msra.mxu0 %v984
      %1009 = vmatprep.subr.bf16.mxu0 0
      %1010 = vmatpush1.bf16.msra.mxu0 0
      %1011 = vmatprep.subr.bf16.mxu0 0
      %1012 = vmatpush1.bf16.msra.mxu0 0
      %1013 = vmatprep.subr.bf16.mxu0 0
      %1014 = vmatpush1.bf16.msra.mxu0 0
      %1015 = vmatprep.subr.bf16.mxu0 0
      %1016 = vmatpush1.bf16.msra.mxu0 0
      %1017 = vmatprep.subr.bf16.mxu0 0
      %1018 = vmatpush1.bf16.msra.mxu0 0
      %1019 = vmatprep.subr.bf16.mxu0 0
      %1020 = vmatpush1.bf16.msra.mxu0 0
      %1021 = vmatprep.subr.bf16.mxu0 0
      %1022 = vmatpush1.bf16.msra.mxu0 0
      %1023 = vmatprep.subr.bf16.mxu0 0
      %1024 = vmatpush1.bf16.msra.mxu0 0
      %1025 = vmatprep.mubr.bf16.mxu0 0
      %1026 = vmatmul.mubr.bf16.gmra.mrb[0].mxu0 %v929
      %v1027 = vpop.f32.mrb[0].mxu0
      %v1028 = vadd.f32 0.0, %v1027
      %v1029 = vpop.f32.mrb[0].mxu0
      %v1030 = vpop.f32.mrb[0].mxu0
      %v1031 = vadd.f32 0.0, %v1030
      %v1032 = vpop.f32.mrb[0].mxu0
      %1033 = vmatprep.mubr.bf16.mxu0 0
      %1034 = vmatmul.mubr.bf16.gmra.mrb[0].mxu0 %v930
      %v1035 = vpop.f32.mrb[0].mxu0
      %v1036 = vadd.f32 0.0, %v1035
      %v1037 = vpop.f32.mrb[0].mxu0
      %v1038 = vpop.f32.mrb[0].mxu0
      %v1039 = vadd.f32 0.0, %v1038
      %v1040 = vpop.f32.mrb[0].mxu0
      %1041 = vmatprep.mubr.bf16.mxu0 0
      %1042 = vmatmul.mubr.bf16.gmra.mrb[0].mxu0 %v931
      %v1043 = vpop.f32.mrb[0].mxu0
      %v1044 = vadd.f32 0.0, %v1043
      %v1045 = vpop.f32.mrb[0].mxu0
      %v1046 = vpop.f32.mrb[0].mxu0
      %v1047 = vadd.f32 0.0, %v1046
      %v1048 = vpop.f32.mrb[0].mxu0
      %1049 = vmatprep.mubr.bf16.mxu0 0
      %1050 = vmatmul.mubr.bf16.gmra.mrb[0].mxu0 %v932
      %v1051 = vpop.f32.mrb[0].mxu0
      %v1052 = vadd.f32 0.0, %v1051
      %v1053 = vpop.f32.mrb[0].mxu0
      %v1054 = vpop.f32.mrb[0].mxu0
      %v1055 = vadd.f32 0.0, %v1054
      %v1056 = vpop.f32.mrb[0].mxu0
      %1057 = vmatprep.mubr.bf16.mxu0 0
      %1058 = vmatmul.mubr.bf16.gmra.mrb[0].mxu0 %v933
      %v1059 = vpop.f32.mrb[0].mxu0
      %v1060 = vadd.f32 0.0, %v1059
      %v1061 = vpop.f32.mrb[0].mxu0
      %v1062 = vpop.f32.mrb[0].mxu0
      %v1063 = vadd.f32 0.0, %v1062
      %v1064 = vpop.f32.mrb[0].mxu0
      %1065 = vmatprep.mubr.bf16.mxu0 0
      %1066 = vmatmul.mubr.bf16.gmra.mrb[0].mxu0 %v934
      %v1067 = vpop.f32.mrb[0].mxu0
      %v1068 = vadd.f32 0.0, %v1067
      %v1069 = vpop.f32.mrb[0].mxu0
      %v1070 = vpop.f32.mrb[0].mxu0
      %v1071 = vadd.f32 0.0, %v1070
      %v1072 = vpop.f32.mrb[0].mxu0
      %1073 = vmatprep.mubr.bf16.mxu0 0
      %1074 = vmatmul.mubr.bf16.gmra.mrb[0].mxu0 %v935
      %v1075 = vpop.f32.mrb[0].mxu0
      %v1076 = vadd.f32 0.0, %v1075
      %v1077 = vpop.f32.mrb[0].mxu0
      %v1078 = vpop.f32.mrb[0].mxu0
      %v1079 = vadd.f32 0.0, %v1078
      %v1080 = vpop.f32.mrb[0].mxu0
      %1081 = vmatprep.mubr.bf16.mxu0 0
      %1082 = vmatmul.mubr.bf16.gmra.mrb[0].mxu0 %v936
      %v1083 = vpop.f32.mrb[0].mxu0
      %v1084 = vadd.f32 0.0, %v1083
      %v1085 = vpop.f32.mrb[0].mxu0
      %v1086 = vpop.f32.mrb[0].mxu0
      %v1087 = vadd.f32 0.0, %v1086
      %v1088 = vpop.f32.mrb[0].mxu0
      %1089 = vdwg.mxu0
      %v1090 = vadd.f32 %v767, %v1028
      %v1091 = vadd.f32 %v770, %v1031
      %v1092 = vadd.f32 %v775, %v1036
      %v1093 = vadd.f32 %v778, %v1039
      %v1094 = vadd.f32 %v783, %v1044
      %v1095 = vadd.f32 %v786, %v1047
      %v1096 = vadd.f32 %v791, %v1052
      %v1097 = vadd.f32 %v794, %v1055
      %v1098 = vadd.f32 %v799, %v1060
      %v1099 = vadd.f32 %v802, %v1063
      %v1100 = vadd.f32 %v807, %v1068
      %v1101 = vadd.f32 %v810, %v1071
      %v1102 = vadd.f32 %v815, %v1076
      %v1103 = vadd.f32 %v818, %v1079
      %v1104 = vadd.f32 %v823, %v1084
      %v1105 = vadd.f32 %v826, %v1087
      %s1106 = scalar_lea.vmem %s1, 192
      %v1107 = vld [vmem:[%s1106] sm:$0xf]
      %v1108 = vld [vmem:[%s1106 + $0x4] sm:$0xf]
      %v1109 = vld [vmem:[%s1106 + $0x8] sm:$0xf]
      %v1110 = vld [vmem:[%s1106 + $0xc] sm:$0xf]
      %v1111 = vld [vmem:[%s1106 + $0x10] sm:$0xf]
      %v1112 = vld [vmem:[%s1106 + $0x14] sm:$0xf]
      %v1113 = vld [vmem:[%s1106 + $0x18] sm:$0xf]
      %v1114 = vld [vmem:[%s1106 + $0x1c] sm:$0xf]
      %v1115 = vld [vmem:[%s1106 + $0x20] sm:$0xf]
      %v1116 = vld [vmem:[%s1106 + $0x24] sm:$0xf]
      %v1117 = vld [vmem:[%s1106 + $0x28] sm:$0xf]
      %v1118 = vld [vmem:[%s1106 + $0x2c] sm:$0xf]
      %v1119 = vld [vmem:[%s1106 + $0x30] sm:$0xf]
      %v1120 = vld [vmem:[%s1106 + $0x34] sm:$0xf]
      %v1121 = vld [vmem:[%s1106 + $0x38] sm:$0xf]
      %v1122 = vld [vmem:[%s1106 + $0x3c] sm:$0xf]
      %v1125 = vunpack.c.l.b16 %v225
      %v1126 = vunpack.c.l.b16 %v226
      %v1127 = vpack.c.b16 %v1126, %v1125
      %v1145 = vunpack.c.l.b16 %v1107
      %v1146 = vunpack.c.l.b16 %v1108
      %v1147 = vunpack.c.l.b16 %v1109
      %v1148 = vunpack.c.l.b16 %v1110
      %v1149 = vunpack.c.l.b16 %v1111
      %v1150 = vunpack.c.l.b16 %v1112
      %v1151 = vunpack.c.l.b16 %v1113
      %v1152 = vunpack.c.l.b16 %v1114
      %v1153 = vunpack.c.l.b16 %v1115
      %v1154 = vunpack.c.l.b16 %v1116
      %v1155 = vunpack.c.l.b16 %v1117
      %v1156 = vunpack.c.l.b16 %v1118
      %v1157 = vunpack.c.l.b16 %v1119
      %v1158 = vunpack.c.l.b16 %v1120
      %v1159 = vunpack.c.l.b16 %v1121
      %v1160 = vunpack.c.l.b16 %v1122
      %v1161 = vpack.c.b16 %v1146, %v1145
      %v1162 = vpack.c.b16 %v1148, %v1147
      %v1163 = vpack.c.b16 %v1150, %v1149
      %v1164 = vpack.c.b16 %v1152, %v1151
      %v1165 = vpack.c.b16 %v1154, %v1153
      %v1166 = vpack.c.b16 %v1156, %v1155
      %v1167 = vpack.c.b16 %v1158, %v1157
      %v1168 = vpack.c.b16 %v1160, %v1159
      %1177 = vmatprep.subr.bf16.mxu0 0
      %1178 = vmatpush1.bf16.msra.mxu0 %v1161
      %1179 = vmatprep.subr.bf16.mxu0 0
      %1180 = vmatpush1.bf16.msra.mxu0 %v1162
      %1181 = vmatprep.subr.bf16.mxu0 0
      %1182 = vmatpush1.bf16.msra.mxu0 %v1163
      %1183 = vmatprep.subr.bf16.mxu0 0
      %1184 = vmatpush1.bf16.msra.mxu0 %v1164
      %1185 = vmatprep.subr.bf16.mxu0 0
      %1186 = vmatpush1.bf16.msra.mxu0 %v1165
      %1187 = vmatprep.subr.bf16.mxu0 0
      %1188 = vmatpush1.bf16.msra.mxu0 %v1166
      %1189 = vmatprep.subr.bf16.mxu0 0
      %1190 = vmatpush1.bf16.msra.mxu0 %v1167
      %1191 = vmatprep.subr.bf16.mxu0 0
      %1192 = vmatpush1.bf16.msra.mxu0 %v1168
      %1193 = vmatprep.subr.bf16.mxu0 0
      %1194 = vmatpush1.bf16.msra.mxu0 0
      %1195 = vmatprep.subr.bf16.mxu0 0
      %1196 = vmatpush1.bf16.msra.mxu0 0
      %1197 = vmatprep.subr.bf16.mxu0 0
      %1198 = vmatpush1.bf16.msra.mxu0 0
      %1199 = vmatprep.subr.bf16.mxu0 0
      %1200 = vmatpush1.bf16.msra.mxu0 0
      %1201 = vmatprep.subr.bf16.mxu0 0
      %1202 = vmatpush1.bf16.msra.mxu0 0
      %1203 = vmatprep.subr.bf16.mxu0 0
      %1204 = vmatpush1.bf16.msra.mxu0 0
      %1205 = vmatprep.subr.bf16.mxu0 0
      %1206 = vmatpush1.bf16.msra.mxu0 0
      %1207 = vmatprep.subr.bf16.mxu0 0
      %1208 = vmatpush1.bf16.msra.mxu0 0
      %1209 = vmatprep.mubr.bf16.mxu0 0
      %1210 = vmatmul.mubr.bf16.gmra.mrb[0].mxu0 %v669
      %v1211 = vpop.f32.mrb[0].mxu0
      %v1212 = vadd.f32 0.0, %v1211
      %v1213 = vpop.f32.mrb[0].mxu0
      %v1214 = vpop.f32.mrb[0].mxu0
      %v1215 = vadd.f32 0.0, %v1214
      %v1216 = vpop.f32.mrb[0].mxu0
      %1217 = vmatprep.mubr.bf16.mxu0 0
      %1218 = vmatmul.mubr.bf16.gmra.mrb[0].mxu0 %v670
      %v1219 = vpop.f32.mrb[0].mxu0
      %v1220 = vadd.f32 0.0, %v1219
      %v1221 = vpop.f32.mrb[0].mxu0
      %v1222 = vpop.f32.mrb[0].mxu0
      %v1223 = vadd.f32 0.0, %v1222
      %v1224 = vpop.f32.mrb[0].mxu0
      %1225 = vmatprep.mubr.bf16.mxu0 0
      %1226 = vmatmul.mubr.bf16.gmra.mrb[0].mxu0 %v671
      %v1227 = vpop.f32.mrb[0].mxu0
      %v1228 = vadd.f32 0.0, %v1227
      %v1229 = vpop.f32.mrb[0].mxu0
      %v1230 = vpop.f32.mrb[0].mxu0
      %v1231 = vadd.f32 0.0, %v1230
      %v1232 = vpop.f32.mrb[0].mxu0
      %1233 = vmatprep.mubr.bf16.mxu0 0
      %1234 = vmatmul.mubr.bf16.gmra.mrb[0].mxu0 %v672
      %v1235 = vpop.f32.mrb[0].mxu0
      %v1236 = vadd.f32 0.0, %v1235
      %v1237 = vpop.f32.mrb[0].mxu0
      %v1238 = vpop.f32.mrb[0].mxu0
      %v1239 = vadd.f32 0.0, %v1238
      %v1240 = vpop.f32.mrb[0].mxu0
      %1241 = vmatprep.mubr.bf16.mxu0 0
      %1242 = vmatmul.mubr.bf16.gmra.mrb[0].mxu0 %v673
      %v1243 = vpop.f32.mrb[0].mxu0
      %v1244 = vadd.f32 0.0, %v1243
      %v1245 = vpop.f32.mrb[0].mxu0
      %v1246 = vpop.f32.mrb[0].mxu0
      %v1247 = vadd.f32 0.0, %v1246
      %v1248 = vpop.f32.mrb[0].mxu0
      %1249 = vmatprep.mubr.bf16.mxu0 0
      %1250 = vmatmul.mubr.bf16.gmra.mrb[0].mxu0 %v674
      %v1251 = vpop.f32.mrb[0].mxu0
      %v1252 = vadd.f32 0.0, %v1251
      %v1253 = vpop.f32.mrb[0].mxu0
      %v1254 = vpop.f32.mrb[0].mxu0
      %v1255 = vadd.f32 0.0, %v1254
      %v1256 = vpop.f32.mrb[0].mxu0
      %1257 = vmatprep.mubr.bf16.mxu0 0
      %1258 = vmatmul.mubr.bf16.gmra.mrb[0].mxu0 %v675
      %v1259 = vpop.f32.mrb[0].mxu0
      %v1260 = vadd.f32 0.0, %v1259
      %v1261 = vpop.f32.mrb[0].mxu0
      %v1262 = vpop.f32.mrb[0].mxu0
      %v1263 = vadd.f32 0.0, %v1262
      %v1264 = vpop.f32.mrb[0].mxu0
      %1265 = vmatprep.mubr.bf16.mxu0 0
      %1266 = vmatmul.mubr.bf16.gmra.mrb[0].mxu0 %v1127
      %v1267 = vpop.f32.mrb[0].mxu0
      %v1268 = vadd.f32 0.0, %v1267
      %v1269 = vpop.f32.mrb[0].mxu0
      %v1270 = vpop.f32.mrb[0].mxu0
      %v1271 = vadd.f32 0.0, %v1270
      %v1272 = vpop.f32.mrb[0].mxu0
      %1273 = vdwg.mxu0
      %v1274 = vadd.f32 %v1090, %v1212
      %v1275 = vadd.f32 %v1091, %v1215
      %v1276 = vadd.f32 %v1092, %v1220
      %v1277 = vadd.f32 %v1093, %v1223
      %v1278 = vadd.f32 %v1094, %v1228
      %v1279 = vadd.f32 %v1095, %v1231
      %v1280 = vadd.f32 %v1096, %v1236
      %v1281 = vadd.f32 %v1097, %v1239
      %v1282 = vadd.f32 %v1098, %v1244
      %v1283 = vadd.f32 %v1099, %v1247
      %v1284 = vadd.f32 %v1100, %v1252
      %v1285 = vadd.f32 %v1101, %v1255
      %v1286 = vadd.f32 %v1102, %v1260
      %v1287 = vadd.f32 %v1103, %v1263
      %v1288 = vadd.f32 %v1104, %v1268
      %v1289 = vadd.f32 %v1105, %v1271
      %v1291 = vshrl.u32 %v225, 16
      %v1293 = vrot.slane %v1291, 4
      %v1294 = vshll.u32 %v225, 16
      %v1296 = vrot.slane %v1294, 5
      %v1297 = vor.u32 %v1293, %v1296
      %v1298 = vrot.slane %v1297, 4
      %v1300 = vshll.u32 %v226, 16
      %v1302 = vrot.slane %v1300, 5
      %v1303 = vsel %vm249, %v1298, %v1302
      %v1304 = vshrl.u32 %v226, 16
      %v1306 = vrot.slane %v1304, 4
      %v1307 = vor.u32 %v1306, %v1302
      %v1308 = vrot.slane %v1307, 4
      %v1310 = vshll.u32 %v227, 16
      %v1312 = vrot.slane %v1310, 5
      %v1313 = vsel %vm249, %v1308, %v1312
      %s1314 = scalar_lea.vmem %s1, 256
      %v1315 = vld [vmem:[%s1314] sm:$0xf]
      %v1316 = vld [vmem:[%s1314 + $0x4] sm:$0xf]
      %v1317 = vld [vmem:[%s1314 + $0x8] sm:$0xf]
      %v1318 = vld [vmem:[%s1314 + $0xc] sm:$0xf]
      %v1319 = vld [vmem:[%s1314 + $0x10] sm:$0xf]
      %v1320 = vld [vmem:[%s1314 + $0x14] sm:$0xf]
      %v1321 = vld [vmem:[%s1314 + $0x18] sm:$0xf]
      %v1322 = vld [vmem:[%s1314 + $0x1c] sm:$0xf]
      %v1323 = vld [vmem:[%s1314 + $0x20] sm:$0xf]
      %v1324 = vld [vmem:[%s1314 + $0x24] sm:$0xf]
      %v1325 = vld [vmem:[%s1314 + $0x28] sm:$0xf]
      %v1326 = vld [vmem:[%s1314 + $0x2c] sm:$0xf]
      %v1327 = vld [vmem:[%s1314 + $0x30] sm:$0xf]
      %v1328 = vld [vmem:[%s1314 + $0x34] sm:$0xf]
      %v1329 = vld [vmem:[%s1314 + $0x38] sm:$0xf]
      %v1330 = vld [vmem:[%s1314 + $0x3c] sm:$0xf]
      %v1331 = vunpack.c.l.b16 %v1303
      %v1332 = vunpack.c.l.b16 %v1313
      %v1333 = vpack.c.b16 %v1332, %v1331
      %v1351 = vunpack.c.l.b16 %v1315
      %v1352 = vunpack.c.l.b16 %v1316
      %v1353 = vunpack.c.l.b16 %v1317
      %v1354 = vunpack.c.l.b16 %v1318
      %v1355 = vunpack.c.l.b16 %v1319
      %v1356 = vunpack.c.l.b16 %v1320
      %v1357 = vunpack.c.l.b16 %v1321
      %v1358 = vunpack.c.l.b16 %v1322
      %v1359 = vunpack.c.l.b16 %v1323
      %v1360 = vunpack.c.l.b16 %v1324
      %v1361 = vunpack.c.l.b16 %v1325
      %v1362 = vunpack.c.l.b16 %v1326
      %v1363 = vunpack.c.l.b16 %v1327
      %v1364 = vunpack.c.l.b16 %v1328
      %v1365 = vunpack.c.l.b16 %v1329
      %v1366 = vunpack.c.l.b16 %v1330
      %v1367 = vpack.c.b16 %v1352, %v1351
      %v1368 = vpack.c.b16 %v1354, %v1353
      %v1369 = vpack.c.b16 %v1356, %v1355
      %v1370 = vpack.c.b16 %v1358, %v1357
      %v1371 = vpack.c.b16 %v1360, %v1359
      %v1372 = vpack.c.b16 %v1362, %v1361
      %v1373 = vpack.c.b16 %v1364, %v1363
      %v1374 = vpack.c.b16 %v1366, %v1365
      %1383 = vmatprep.subr.bf16.mxu0 0
      %1384 = vmatpush1.bf16.msra.mxu0 %v1367
      %1385 = vmatprep.subr.bf16.mxu0 0
      %1386 = vmatpush1.bf16.msra.mxu0 %v1368
      %1387 = vmatprep.subr.bf16.mxu0 0
      %1388 = vmatpush1.bf16.msra.mxu0 %v1369
      %1389 = vmatprep.subr.bf16.mxu0 0
      %1390 = vmatpush1.bf16.msra.mxu0 %v1370
      %1391 = vmatprep.subr.bf16.mxu0 0
      %1392 = vmatpush1.bf16.msra.mxu0 %v1371
      %1393 = vmatprep.subr.bf16.mxu0 0
      %1394 = vmatpush1.bf16.msra.mxu0 %v1372
      %1395 = vmatprep.subr.bf16.mxu0 0
      %1396 = vmatpush1.bf16.msra.mxu0 %v1373
      %1397 = vmatprep.subr.bf16.mxu0 0
      %1398 = vmatpush1.bf16.msra.mxu0 %v1374
      %1399 = vmatprep.subr.bf16.mxu0 0
      %1400 = vmatpush1.bf16.msra.mxu0 0
      %1401 = vmatprep.subr.bf16.mxu0 0
      %1402 = vmatpush1.bf16.msra.mxu0 0
      %1403 = vmatprep.subr.bf16.mxu0 0
      %1404 = vmatpush1.bf16.msra.mxu0 0
      %1405 = vmatprep.subr.bf16.mxu0 0
      %1406 = vmatpush1.bf16.msra.mxu0 0
      %1407 = vmatprep.subr.bf16.mxu0 0
      %1408 = vmatpush1.bf16.msra.mxu0 0
      %1409 = vmatprep.subr.bf16.mxu0 0
      %1410 = vmatpush1.bf16.msra.mxu0 0
      %1411 = vmatprep.subr.bf16.mxu0 0
      %1412 = vmatpush1.bf16.msra.mxu0 0
      %1413 = vmatprep.subr.bf16.mxu0 0
      %1414 = vmatpush1.bf16.msra.mxu0 0
      %1415 = vmatprep.mubr.bf16.mxu0 0
      %1416 = vmatmul.mubr.bf16.gmra.mrb[0].mxu0 %v476
      %v1417 = vpop.f32.mrb[0].mxu0
      %v1418 = vadd.f32 0.0, %v1417
      %v1419 = vpop.f32.mrb[0].mxu0
      %v1420 = vpop.f32.mrb[0].mxu0
      %v1421 = vadd.f32 0.0, %v1420
      %v1422 = vpop.f32.mrb[0].mxu0
      %1423 = vmatprep.mubr.bf16.mxu0 0
      %1424 = vmatmul.mubr.bf16.gmra.mrb[0].mxu0 %v477
      %v1425 = vpop.f32.mrb[0].mxu0
      %v1426 = vadd.f32 0.0, %v1425
      %v1427 = vpop.f32.mrb[0].mxu0
      %v1428 = vpop.f32.mrb[0].mxu0
      %v1429 = vadd.f32 0.0, %v1428
      %v1430 = vpop.f32.mrb[0].mxu0
      %1431 = vmatprep.mubr.bf16.mxu0 0
      %1432 = vmatmul.mubr.bf16.gmra.mrb[0].mxu0 %v478
      %v1433 = vpop.f32.mrb[0].mxu0
      %v1434 = vadd.f32 0.0, %v1433
      %v1435 = vpop.f32.mrb[0].mxu0
      %v1436 = vpop.f32.mrb[0].mxu0
      %v1437 = vadd.f32 0.0, %v1436
      %v1438 = vpop.f32.mrb[0].mxu0
      %1439 = vmatprep.mubr.bf16.mxu0 0
      %1440 = vmatmul.mubr.bf16.gmra.mrb[0].mxu0 %v479
      %v1441 = vpop.f32.mrb[0].mxu0
      %v1442 = vadd.f32 0.0, %v1441
      %v1443 = vpop.f32.mrb[0].mxu0
      %v1444 = vpop.f32.mrb[0].mxu0
      %v1445 = vadd.f32 0.0, %v1444
      %v1446 = vpop.f32.mrb[0].mxu0
      %1447 = vmatprep.mubr.bf16.mxu0 0
      %1448 = vmatmul.mubr.bf16.gmra.mrb[0].mxu0 %v480
      %v1449 = vpop.f32.mrb[0].mxu0
      %v1450 = vadd.f32 0.0, %v1449
      %v1451 = vpop.f32.mrb[0].mxu0
      %v1452 = vpop.f32.mrb[0].mxu0
      %v1453 = vadd.f32 0.0, %v1452
      %v1454 = vpop.f32.mrb[0].mxu0
      %1455 = vmatprep.mubr.bf16.mxu0 0
      %1456 = vmatmul.mubr.bf16.gmra.mrb[0].mxu0 %v481
      %v1457 = vpop.f32.mrb[0].mxu0
      %v1458 = vadd.f32 0.0, %v1457
      %v1459 = vpop.f32.mrb[0].mxu0
      %v1460 = vpop.f32.mrb[0].mxu0
      %v1461 = vadd.f32 0.0, %v1460
      %v1462 = vpop.f32.mrb[0].mxu0
      %1463 = vmatprep.mubr.bf16.mxu0 0
      %1464 = vmatmul.mubr.bf16.gmra.mrb[0].mxu0 %v482
      %v1465 = vpop.f32.mrb[0].mxu0
      %v1466 = vadd.f32 0.0, %v1465
      %v1467 = vpop.f32.mrb[0].mxu0
      %v1468 = vpop.f32.mrb[0].mxu0
      %v1469 = vadd.f32 0.0, %v1468
      %v1470 = vpop.f32.mrb[0].mxu0
      %1471 = vmatprep.mubr.bf16.mxu0 0
      %1472 = vmatmul.mubr.bf16.gmra.mrb[0].mxu0 %v1333
      %v1473 = vpop.f32.mrb[0].mxu0
      %v1474 = vadd.f32 0.0, %v1473
      %v1475 = vpop.f32.mrb[0].mxu0
      %v1476 = vpop.f32.mrb[0].mxu0
      %v1477 = vadd.f32 0.0, %v1476
      %v1478 = vpop.f32.mrb[0].mxu0
      %1479 = vdwg.mxu0
      %v1480 = vadd.f32 %v1274, %v1418
      %v1481 = vadd.f32 %v1275, %v1421
      %v1482 = vadd.f32 %v1276, %v1426
      %v1483 = vadd.f32 %v1277, %v1429
      %v1484 = vadd.f32 %v1278, %v1434
      %v1485 = vadd.f32 %v1279, %v1437
      %v1486 = vadd.f32 %v1280, %v1442
      %v1487 = vadd.f32 %v1281, %v1445
      %v1488 = vadd.f32 %v1282, %v1450
      %v1489 = vadd.f32 %v1283, %v1453
      %v1490 = vadd.f32 %v1284, %v1458
      %v1491 = vadd.f32 %v1285, %v1461
      %v1492 = vadd.f32 %v1286, %v1466
      %v1493 = vadd.f32 %v1287, %v1469
      %v1494 = vadd.f32 %v1288, %v1474
      %v1495 = vadd.f32 %v1289, %v1477
      %v1497 = vrot.slane %v225, 5
      %v1498 = vrot.slane %v1497, 4
      %v1499 = vrot.slane %v226, 5
      %v1500 = vsel %vm839, %v1498, %v1499
      %v1501 = vrot.slane %v1499, 4
      %v1502 = vrot.slane %v227, 5
      %v1503 = vsel %vm839, %v1501, %v1502
      %s1504 = scalar_lea.vmem %s1, 320
      %v1505 = vld [vmem:[%s1504] sm:$0xf]
      %v1506 = vld [vmem:[%s1504 + $0x4] sm:$0xf]
      %v1507 = vld [vmem:[%s1504 + $0x8] sm:$0xf]
      %v1508 = vld [vmem:[%s1504 + $0xc] sm:$0xf]
      %v1509 = vld [vmem:[%s1504 + $0x10] sm:$0xf]
      %v1510 = vld [vmem:[%s1504 + $0x14] sm:$0xf]
      %v1511 = vld [vmem:[%s1504 + $0x18] sm:$0xf]
      %v1512 = vld [vmem:[%s1504 + $0x1c] sm:$0xf]
      %v1513 = vld [vmem:[%s1504 + $0x20] sm:$0xf]
      %v1514 = vld [vmem:[%s1504 + $0x24] sm:$0xf]
      %v1515 = vld [vmem:[%s1504 + $0x28] sm:$0xf]
      %v1516 = vld [vmem:[%s1504 + $0x2c] sm:$0xf]
      %v1517 = vld [vmem:[%s1504 + $0x30] sm:$0xf]
      %v1518 = vld [vmem:[%s1504 + $0x34] sm:$0xf]
      %v1519 = vld [vmem:[%s1504 + $0x38] sm:$0xf]
      %v1520 = vld [vmem:[%s1504 + $0x3c] sm:$0xf]
      %v1521 = vunpack.c.l.b16 %v1500
      %v1522 = vunpack.c.l.b16 %v1503
      %v1523 = vpack.c.b16 %v1522, %v1521
      %v1541 = vunpack.c.l.b16 %v1505
      %v1542 = vunpack.c.l.b16 %v1506
      %v1543 = vunpack.c.l.b16 %v1507
      %v1544 = vunpack.c.l.b16 %v1508
      %v1545 = vunpack.c.l.b16 %v1509
      %v1546 = vunpack.c.l.b16 %v1510
      %v1547 = vunpack.c.l.b16 %v1511
      %v1548 = vunpack.c.l.b16 %v1512
      %v1549 = vunpack.c.l.b16 %v1513
      %v1550 = vunpack.c.l.b16 %v1514
      %v1551 = vunpack.c.l.b16 %v1515
      %v1552 = vunpack.c.l.b16 %v1516
      %v1553 = vunpack.c.l.b16 %v1517
      %v1554 = vunpack.c.l.b16 %v1518
      %v1555 = vunpack.c.l.b16 %v1519
      %v1556 = vunpack.c.l.b16 %v1520
      %v1557 = vpack.c.b16 %v1542, %v1541
      %v1558 = vpack.c.b16 %v1544, %v1543
      %v1559 = vpack.c.b16 %v1546, %v1545
      %v1560 = vpack.c.b16 %v1548, %v1547
      %v1561 = vpack.c.b16 %v1550, %v1549
      %v1562 = vpack.c.b16 %v1552, %v1551
      %v1563 = vpack.c.b16 %v1554, %v1553
      %v1564 = vpack.c.b16 %v1556, %v1555
      %1573 = vmatprep.subr.bf16.mxu0 0
      %1574 = vmatpush1.bf16.msra.mxu0 %v1557
      %1575 = vmatprep.subr.bf16.mxu0 0
      %1576 = vmatpush1.bf16.msra.mxu0 %v1558
      %1577 = vmatprep.subr.bf16.mxu0 0
      %1578 = vmatpush1.bf16.msra.mxu0 %v1559
      %1579 = vmatprep.subr.bf16.mxu0 0
      %1580 = vmatpush1.bf16.msra.mxu0 %v1560
      %1581 = vmatprep.subr.bf16.mxu0 0
      %1582 = vmatpush1.bf16.msra.mxu0 %v1561
      %1583 = vmatprep.subr.bf16.mxu0 0
      %1584 = vmatpush1.bf16.msra.mxu0 %v1562
      %1585 = vmatprep.subr.bf16.mxu0 0
      %1586 = vmatpush1.bf16.msra.mxu0 %v1563
      %1587 = vmatprep.subr.bf16.mxu0 0
      %1588 = vmatpush1.bf16.msra.mxu0 %v1564
      %1589 = vmatprep.subr.bf16.mxu0 0
      %1590 = vmatpush1.bf16.msra.mxu0 0
      %1591 = vmatprep.subr.bf16.mxu0 0
      %1592 = vmatpush1.bf16.msra.mxu0 0
      %1593 = vmatprep.subr.bf16.mxu0 0
      %1594 = vmatpush1.bf16.msra.mxu0 0
      %1595 = vmatprep.subr.bf16.mxu0 0
      %1596 = vmatpush1.bf16.msra.mxu0 0
      %1597 = vmatprep.subr.bf16.mxu0 0
      %1598 = vmatpush1.bf16.msra.mxu0 0
      %1599 = vmatprep.subr.bf16.mxu0 0
      %1600 = vmatpush1.bf16.msra.mxu0 0
      %1601 = vmatprep.subr.bf16.mxu0 0
      %1602 = vmatpush1.bf16.msra.mxu0 0
      %1603 = vmatprep.subr.bf16.mxu0 0
      %1604 = vmatpush1.bf16.msra.mxu0 0
      %1605 = vmatprep.mubr.bf16.mxu0 0
      %1606 = vmatmul.mubr.bf16.gmra.mrb[0].mxu0 %v930
      %v1607 = vpop.f32.mrb[0].mxu0
      %v1608 = vadd.f32 0.0, %v1607
      %v1609 = vpop.f32.mrb[0].mxu0
      %v1610 = vpop.f32.mrb[0].mxu0
      %v1611 = vadd.f32 0.0, %v1610
      %v1612 = vpop.f32.mrb[0].mxu0
      %1613 = vmatprep.mubr.bf16.mxu0 0
      %1614 = vmatmul.mubr.bf16.gmra.mrb[0].mxu0 %v931
      %v1615 = vpop.f32.mrb[0].mxu0
      %v1616 = vadd.f32 0.0, %v1615
      %v1617 = vpop.f32.mrb[0].mxu0
      %v1618 = vpop.f32.mrb[0].mxu0
      %v1619 = vadd.f32 0.0, %v1618
      %v1620 = vpop.f32.mrb[0].mxu0
      %1621 = vmatprep.mubr.bf16.mxu0 0
      %1622 = vmatmul.mubr.bf16.gmra.mrb[0].mxu0 %v932
      %v1623 = vpop.f32.mrb[0].mxu0
      %v1624 = vadd.f32 0.0, %v1623
      %v1625 = vpop.f32.mrb[0].mxu0
      %v1626 = vpop.f32.mrb[0].mxu0
      %v1627 = vadd.f32 0.0, %v1626
      %v1628 = vpop.f32.mrb[0].mxu0
      %1629 = vmatprep.mubr.bf16.mxu0 0
      %1630 = vmatmul.mubr.bf16.gmra.mrb[0].mxu0 %v933
      %v1631 = vpop.f32.mrb[0].mxu0
      %v1632 = vadd.f32 0.0, %v1631
      %v1633 = vpop.f32.mrb[0].mxu0
      %v1634 = vpop.f32.mrb[0].mxu0
      %v1635 = vadd.f32 0.0, %v1634
      %v1636 = vpop.f32.mrb[0].mxu0
      %1637 = vmatprep.mubr.bf16.mxu0 0
      %1638 = vmatmul.mubr.bf16.gmra.mrb[0].mxu0 %v934
      %v1639 = vpop.f32.mrb[0].mxu0
      %v1640 = vadd.f32 0.0, %v1639
      %v1641 = vpop.f32.mrb[0].mxu0
      %v1642 = vpop.f32.mrb[0].mxu0
      %v1643 = vadd.f32 0.0, %v1642
      %v1644 = vpop.f32.mrb[0].mxu0
      %1645 = vmatprep.mubr.bf16.mxu0 0
      %1646 = vmatmul.mubr.bf16.gmra.mrb[0].mxu0 %v935
      %v1647 = vpop.f32.mrb[0].mxu0
      %v1648 = vadd.f32 0.0, %v1647
      %v1649 = vpop.f32.mrb[0].mxu0
      %v1650 = vpop.f32.mrb[0].mxu0
      %v1651 = vadd.f32 0.0, %v1650
      %v1652 = vpop.f32.mrb[0].mxu0
      %1653 = vmatprep.mubr.bf16.mxu0 0
      %1654 = vmatmul.mubr.bf16.gmra.mrb[0].mxu0 %v936
      %v1655 = vpop.f32.mrb[0].mxu0
      %v1656 = vadd.f32 0.0, %v1655
      %v1657 = vpop.f32.mrb[0].mxu0
      %v1658 = vpop.f32.mrb[0].mxu0
      %v1659 = vadd.f32 0.0, %v1658
      %v1660 = vpop.f32.mrb[0].mxu0
      %1661 = vmatprep.mubr.bf16.mxu0 0
      %1662 = vmatmul.mubr.bf16.gmra.mrb[0].mxu0 %v1523
      %v1663 = vpop.f32.mrb[0].mxu0
      %v1664 = vadd.f32 0.0, %v1663
      %v1665 = vpop.f32.mrb[0].mxu0
      %v1666 = vpop.f32.mrb[0].mxu0
      %v1667 = vadd.f32 0.0, %v1666
      %v1668 = vpop.f32.mrb[0].mxu0
      %1669 = vdwg.mxu0
      %v1670 = vadd.f32 %v1480, %v1608
      %v1671 = vadd.f32 %v1481, %v1611
      %v1672 = vadd.f32 %v1482, %v1616
      %v1673 = vadd.f32 %v1483, %v1619
      %v1674 = vadd.f32 %v1484, %v1624
      %v1675 = vadd.f32 %v1485, %v1627
      %v1676 = vadd.f32 %v1486, %v1632
      %v1677 = vadd.f32 %v1487, %v1635
      %v1678 = vadd.f32 %v1488, %v1640
      %v1679 = vadd.f32 %v1489, %v1643
      %v1680 = vadd.f32 %v1490, %v1648
      %v1681 = vadd.f32 %v1491, %v1651
      %v1682 = vadd.f32 %v1492, %v1656
      %v1683 = vadd.f32 %v1493, %v1659
      %v1684 = vadd.f32 %v1494, %v1664
      %v1685 = vadd.f32 %v1495, %v1667
      %s1686 = scalar_lea.vmem %s1, 384
      %v1687 = vld [vmem:[%s1686] sm:$0xf]
      %v1688 = vld [vmem:[%s1686 + $0x4] sm:$0xf]
      %v1689 = vld [vmem:[%s1686 + $0x8] sm:$0xf]
      %v1690 = vld [vmem:[%s1686 + $0xc] sm:$0xf]
      %v1691 = vld [vmem:[%s1686 + $0x10] sm:$0xf]
      %v1692 = vld [vmem:[%s1686 + $0x14] sm:$0xf]
      %v1693 = vld [vmem:[%s1686 + $0x18] sm:$0xf]
      %v1694 = vld [vmem:[%s1686 + $0x1c] sm:$0xf]
      %v1695 = vld [vmem:[%s1686 + $0x20] sm:$0xf]
      %v1696 = vld [vmem:[%s1686 + $0x24] sm:$0xf]
      %v1697 = vld [vmem:[%s1686 + $0x28] sm:$0xf]
      %v1698 = vld [vmem:[%s1686 + $0x2c] sm:$0xf]
      %v1699 = vld [vmem:[%s1686 + $0x30] sm:$0xf]
      %v1700 = vld [vmem:[%s1686 + $0x34] sm:$0xf]
      %v1701 = vld [vmem:[%s1686 + $0x38] sm:$0xf]
      %v1702 = vld [vmem:[%s1686 + $0x3c] sm:$0xf]
      %v1705 = vunpack.c.l.b16 %v228
      %v1706 = vunpack.c.l.b16 %v229
      %v1707 = vpack.c.b16 %v1706, %v1705
      %v1725 = vunpack.c.l.b16 %v1687
      %v1726 = vunpack.c.l.b16 %v1688
      %v1727 = vunpack.c.l.b16 %v1689
      %v1728 = vunpack.c.l.b16 %v1690
      %v1729 = vunpack.c.l.b16 %v1691
      %v1730 = vunpack.c.l.b16 %v1692
      %v1731 = vunpack.c.l.b16 %v1693
      %v1732 = vunpack.c.l.b16 %v1694
      %v1733 = vunpack.c.l.b16 %v1695
      %v1734 = vunpack.c.l.b16 %v1696
      %v1735 = vunpack.c.l.b16 %v1697
      %v1736 = vunpack.c.l.b16 %v1698
      %v1737 = vunpack.c.l.b16 %v1699
      %v1738 = vunpack.c.l.b16 %v1700
      %v1739 = vunpack.c.l.b16 %v1701
      %v1740 = vunpack.c.l.b16 %v1702
      %v1741 = vpack.c.b16 %v1726, %v1725
      %v1742 = vpack.c.b16 %v1728, %v1727
      %v1743 = vpack.c.b16 %v1730, %v1729
      %v1744 = vpack.c.b16 %v1732, %v1731
      %v1745 = vpack.c.b16 %v1734, %v1733
      %v1746 = vpack.c.b16 %v1736, %v1735
      %v1747 = vpack.c.b16 %v1738, %v1737
      %v1748 = vpack.c.b16 %v1740, %v1739
      %1757 = vmatprep.subr.bf16.mxu0 0
      %1758 = vmatpush1.bf16.msra.mxu0 %v1741
      %1759 = vmatprep.subr.bf16.mxu0 0
      %1760 = vmatpush1.bf16.msra.mxu0 %v1742
      %1761 = vmatprep.subr.bf16.mxu0 0
      %1762 = vmatpush1.bf16.msra.mxu0 %v1743
      %1763 = vmatprep.subr.bf16.mxu0 0
      %1764 = vmatpush1.bf16.msra.mxu0 %v1744
      %1765 = vmatprep.subr.bf16.mxu0 0
      %1766 = vmatpush1.bf16.msra.mxu0 %v1745
      %1767 = vmatprep.subr.bf16.mxu0 0
      %1768 = vmatpush1.bf16.msra.mxu0 %v1746
      %1769 = vmatprep.subr.bf16.mxu0 0
      %1770 = vmatpush1.bf16.msra.mxu0 %v1747
      %1771 = vmatprep.subr.bf16.mxu0 0
      %1772 = vmatpush1.bf16.msra.mxu0 %v1748
      %1773 = vmatprep.subr.bf16.mxu0 0
      %1774 = vmatpush1.bf16.msra.mxu0 0
      %1775 = vmatprep.subr.bf16.mxu0 0
      %1776 = vmatpush1.bf16.msra.mxu0 0
      %1777 = vmatprep.subr.bf16.mxu0 0
      %1778 = vmatpush1.bf16.msra.mxu0 0
      %1779 = vmatprep.subr.bf16.mxu0 0
      %1780 = vmatpush1.bf16.msra.mxu0 0
      %1781 = vmatprep.subr.bf16.mxu0 0
      %1782 = vmatpush1.bf16.msra.mxu0 0
      %1783 = vmatprep.subr.bf16.mxu0 0
      %1784 = vmatpush1.bf16.msra.mxu0 0
      %1785 = vmatprep.subr.bf16.mxu0 0
      %1786 = vmatpush1.bf16.msra.mxu0 0
      %1787 = vmatprep.subr.bf16.mxu0 0
      %1788 = vmatpush1.bf16.msra.mxu0 0
      %1789 = vmatprep.mubr.bf16.mxu0 0
      %1790 = vmatmul.mubr.bf16.gmra.mrb[0].mxu0 %v670
      %v1791 = vpop.f32.mrb[0].mxu0
      %v1792 = vadd.f32 0.0, %v1791
      %v1793 = vpop.f32.mrb[0].mxu0
      %v1794 = vpop.f32.mrb[0].mxu0
      %v1795 = vadd.f32 0.0, %v1794
      %v1796 = vpop.f32.mrb[0].mxu0
      %1797 = vmatprep.mubr.bf16.mxu0 0
      %1798 = vmatmul.mubr.bf16.gmra.mrb[0].mxu0 %v671
      %v1799 = vpop.f32.mrb[0].mxu0
      %v1800 = vadd.f32 0.0, %v1799
      %v1801 = vpop.f32.mrb[0].mxu0
      %v1802 = vpop.f32.mrb[0].mxu0
      %v1803 = vadd.f32 0.0, %v1802
      %v1804 = vpop.f32.mrb[0].mxu0
      %1805 = vmatprep.mubr.bf16.mxu0 0
      %1806 = vmatmul.mubr.bf16.gmra.mrb[0].mxu0 %v672
      %v1807 = vpop.f32.mrb[0].mxu0
      %v1808 = vadd.f32 0.0, %v1807
      %v1809 = vpop.f32.mrb[0].mxu0
      %v1810 = vpop.f32.mrb[0].mxu0
      %v1811 = vadd.f32 0.0, %v1810
      %v1812 = vpop.f32.mrb[0].mxu0
      %1813 = vmatprep.mubr.bf16.mxu0 0
      %1814 = vmatmul.mubr.bf16.gmra.mrb[0].mxu0 %v673
      %v1815 = vpop.f32.mrb[0].mxu0
      %v1816 = vadd.f32 0.0, %v1815
      %v1817 = vpop.f32.mrb[0].mxu0
      %v1818 = vpop.f32.mrb[0].mxu0
      %v1819 = vadd.f32 0.0, %v1818
      %v1820 = vpop.f32.mrb[0].mxu0
      %1821 = vmatprep.mubr.bf16.mxu0 0
      %1822 = vmatmul.mubr.bf16.gmra.mrb[0].mxu0 %v674
      %v1823 = vpop.f32.mrb[0].mxu0
      %v1824 = vadd.f32 0.0, %v1823
      %v1825 = vpop.f32.mrb[0].mxu0
      %v1826 = vpop.f32.mrb[0].mxu0
      %v1827 = vadd.f32 0.0, %v1826
      %v1828 = vpop.f32.mrb[0].mxu0
      %1829 = vmatprep.mubr.bf16.mxu0 0
      %1830 = vmatmul.mubr.bf16.gmra.mrb[0].mxu0 %v675
      %v1831 = vpop.f32.mrb[0].mxu0
      %v1832 = vadd.f32 0.0, %v1831
      %v1833 = vpop.f32.mrb[0].mxu0
      %v1834 = vpop.f32.mrb[0].mxu0
      %v1835 = vadd.f32 0.0, %v1834
      %v1836 = vpop.f32.mrb[0].mxu0
      %1837 = vmatprep.mubr.bf16.mxu0 0
      %1838 = vmatmul.mubr.bf16.gmra.mrb[0].mxu0 %v1127
      %v1839 = vpop.f32.mrb[0].mxu0
      %v1840 = vadd.f32 0.0, %v1839
      %v1841 = vpop.f32.mrb[0].mxu0
      %v1842 = vpop.f32.mrb[0].mxu0
      %v1843 = vadd.f32 0.0, %v1842
      %v1844 = vpop.f32.mrb[0].mxu0
      %1845 = vmatprep.mubr.bf16.mxu0 0
      %1846 = vmatmul.mubr.bf16.gmra.mrb[0].mxu0 %v1707
      %v1847 = vpop.f32.mrb[0].mxu0
      %v1848 = vadd.f32 0.0, %v1847
      %v1849 = vpop.f32.mrb[0].mxu0
      %v1850 = vpop.f32.mrb[0].mxu0
      %v1851 = vadd.f32 0.0, %v1850
      %v1852 = vpop.f32.mrb[0].mxu0
      %1853 = vdwg.mxu0
      %v1854 = vadd.f32 %v1670, %v1792
      %v1855 = vadd.f32 %v1671, %v1795
      %v1856 = vadd.f32 %v1672, %v1800
      %v1857 = vadd.f32 %v1673, %v1803
      %v1858 = vadd.f32 %v1674, %v1808
      %v1859 = vadd.f32 %v1675, %v1811
      %v1860 = vadd.f32 %v1676, %v1816
      %v1861 = vadd.f32 %v1677, %v1819
      %v1862 = vadd.f32 %v1678, %v1824
      %v1863 = vadd.f32 %v1679, %v1827
      %v1864 = vadd.f32 %v1680, %v1832
      %v1865 = vadd.f32 %v1681, %v1835
      %v1866 = vadd.f32 %v1682, %v1840
      %v1867 = vadd.f32 %v1683, %v1843
      %v1868 = vadd.f32 %v1684, %v1848
      %v1869 = vadd.f32 %v1685, %v1851
      %v1871 = vshrl.u32 %v228, 16
      %v1873 = vrot.slane %v1871, 4
      %v1874 = vshll.u32 %v228, 16
      %v1876 = vrot.slane %v1874, 5
      %v1877 = vor.u32 %v1873, %v1876
      %v1878 = vrot.slane %v1877, 4
      %v1880 = vshll.u32 %v229, 16
      %v1882 = vrot.slane %v1880, 5
      %v1883 = vsel %vm249, %v1878, %v1882
      %v1884 = vshrl.u32 %v229, 16
      %v1886 = vrot.slane %v1884, 4
      %v1887 = vor.u32 %v1886, %v1882
      %v1888 = vrot.slane %v1887, 4
      %v1890 = vshll.u32 %v230, 16
      %v1892 = vrot.slane %v1890, 5
      %v1893 = vsel %vm249, %v1888, %v1892
      %s1894 = scalar_lea.vmem %s1, 448
      %v1895 = vld [vmem:[%s1894] sm:$0xf]
      %v1896 = vld [vmem:[%s1894 + $0x4] sm:$0xf]
      %v1897 = vld [vmem:[%s1894 + $0x8] sm:$0xf]
      %v1898 = vld [vmem:[%s1894 + $0xc] sm:$0xf]
      %v1899 = vld [vmem:[%s1894 + $0x10] sm:$0xf]
      %v1900 = vld [vmem:[%s1894 + $0x14] sm:$0xf]
      %v1901 = vld [vmem:[%s1894 + $0x18] sm:$0xf]
      %v1902 = vld [vmem:[%s1894 + $0x1c] sm:$0xf]
      %v1903 = vld [vmem:[%s1894 + $0x20] sm:$0xf]
      %v1904 = vld [vmem:[%s1894 + $0x24] sm:$0xf]
      %v1905 = vld [vmem:[%s1894 + $0x28] sm:$0xf]
      %v1906 = vld [vmem:[%s1894 + $0x2c] sm:$0xf]
      %v1907 = vld [vmem:[%s1894 + $0x30] sm:$0xf]
      %v1908 = vld [vmem:[%s1894 + $0x34] sm:$0xf]
      %v1909 = vld [vmem:[%s1894 + $0x38] sm:$0xf]
      %v1910 = vld [vmem:[%s1894 + $0x3c] sm:$0xf]
      %v1911 = vunpack.c.l.b16 %v1883
      %v1912 = vunpack.c.l.b16 %v1893
      %v1913 = vpack.c.b16 %v1912, %v1911
      %v1931 = vunpack.c.l.b16 %v1895
      %v1932 = vunpack.c.l.b16 %v1896
      %v1933 = vunpack.c.l.b16 %v1897
      %v1934 = vunpack.c.l.b16 %v1898
      %v1935 = vunpack.c.l.b16 %v1899
      %v1936 = vunpack.c.l.b16 %v1900
      %v1937 = vunpack.c.l.b16 %v1901
      %v1938 = vunpack.c.l.b16 %v1902
      %v1939 = vunpack.c.l.b16 %v1903
      %v1940 = vunpack.c.l.b16 %v1904
      %v1941 = vunpack.c.l.b16 %v1905
      %v1942 = vunpack.c.l.b16 %v1906
      %v1943 = vunpack.c.l.b16 %v1907
      %v1944 = vunpack.c.l.b16 %v1908
      %v1945 = vunpack.c.l.b16 %v1909
      %v1946 = vunpack.c.l.b16 %v1910
      %v1947 = vpack.c.b16 %v1932, %v1931
      %v1948 = vpack.c.b16 %v1934, %v1933
      %v1949 = vpack.c.b16 %v1936, %v1935
      %v1950 = vpack.c.b16 %v1938, %v1937
      %v1951 = vpack.c.b16 %v1940, %v1939
      %v1952 = vpack.c.b16 %v1942, %v1941
      %v1953 = vpack.c.b16 %v1944, %v1943
      %v1954 = vpack.c.b16 %v1946, %v1945
      %1963 = vmatprep.subr.bf16.mxu0 0
      %1964 = vmatpush1.bf16.msra.mxu0 %v1947
      %1965 = vmatprep.subr.bf16.mxu0 0
      %1966 = vmatpush1.bf16.msra.mxu0 %v1948
      %1967 = vmatprep.subr.bf16.mxu0 0
      %1968 = vmatpush1.bf16.msra.mxu0 %v1949
      %1969 = vmatprep.subr.bf16.mxu0 0
      %1970 = vmatpush1.bf16.msra.mxu0 %v1950
      %1971 = vmatprep.subr.bf16.mxu0 0
      %1972 = vmatpush1.bf16.msra.mxu0 %v1951
      %1973 = vmatprep.subr.bf16.mxu0 0
      %1974 = vmatpush1.bf16.msra.mxu0 %v1952
      %1975 = vmatprep.subr.bf16.mxu0 0
      %1976 = vmatpush1.bf16.msra.mxu0 %v1953
      %1977 = vmatprep.subr.bf16.mxu0 0
      %1978 = vmatpush1.bf16.msra.mxu0 %v1954
      %1979 = vmatprep.subr.bf16.mxu0 0
      %1980 = vmatpush1.bf16.msra.mxu0 0
      %1981 = vmatprep.subr.bf16.mxu0 0
      %1982 = vmatpush1.bf16.msra.mxu0 0
      %1983 = vmatprep.subr.bf16.mxu0 0
      %1984 = vmatpush1.bf16.msra.mxu0 0
      %1985 = vmatprep.subr.bf16.mxu0 0
      %1986 = vmatpush1.bf16.msra.mxu0 0
      %1987 = vmatprep.subr.bf16.mxu0 0
      %1988 = vmatpush1.bf16.msra.mxu0 0
      %1989 = vmatprep.subr.bf16.mxu0 0
      %1990 = vmatpush1.bf16.msra.mxu0 0
      %1991 = vmatprep.subr.bf16.mxu0 0
      %1992 = vmatpush1.bf16.msra.mxu0 0
      %1993 = vmatprep.subr.bf16.mxu0 0
      %1994 = vmatpush1.bf16.msra.mxu0 0
      %1995 = vmatprep.mubr.bf16.mxu0 0
      %1996 = vmatmul.mubr.bf16.gmra.mrb[0].mxu0 %v477
      %v1997 = vpop.f32.mrb[0].mxu0
      %v1998 = vadd.f32 0.0, %v1997
      %v1999 = vpop.f32.mrb[0].mxu0
      %v2000 = vpop.f32.mrb[0].mxu0
      %v2001 = vadd.f32 0.0, %v2000
      %v2002 = vpop.f32.mrb[0].mxu0
      %2003 = vmatprep.mubr.bf16.mxu0 0
      %2004 = vmatmul.mubr.bf16.gmra.mrb[0].mxu0 %v478
      %v2005 = vpop.f32.mrb[0].mxu0
      %v2006 = vadd.f32 0.0, %v2005
      %v2007 = vpop.f32.mrb[0].mxu0
      %v2008 = vpop.f32.mrb[0].mxu0
      %v2009 = vadd.f32 0.0, %v2008
      %v2010 = vpop.f32.mrb[0].mxu0
      %2011 = vmatprep.mubr.bf16.mxu0 0
      %2012 = vmatmul.mubr.bf16.gmra.mrb[0].mxu0 %v479
      %v2013 = vpop.f32.mrb[0].mxu0
      %v2014 = vadd.f32 0.0, %v2013
      %v2015 = vpop.f32.mrb[0].mxu0
      %v2016 = vpop.f32.mrb[0].mxu0
      %v2017 = vadd.f32 0.0, %v2016
      %v2018 = vpop.f32.mrb[0].mxu0
      %2019 = vmatprep.mubr.bf16.mxu0 0
      %2020 = vmatmul.mubr.bf16.gmra.mrb[0].mxu0 %v480
      %v2021 = vpop.f32.mrb[0].mxu0
      %v2022 = vadd.f32 0.0, %v2021
      %v2023 = vpop.f32.mrb[0].mxu0
      %v2024 = vpop.f32.mrb[0].mxu0
      %v2025 = vadd.f32 0.0, %v2024
      %v2026 = vpop.f32.mrb[0].mxu0
      %2027 = vmatprep.mubr.bf16.mxu0 0
      %2028 = vmatmul.mubr.bf16.gmra.mrb[0].mxu0 %v481
      %v2029 = vpop.f32.mrb[0].mxu0
      %v2030 = vadd.f32 0.0, %v2029
      %v2031 = vpop.f32.mrb[0].mxu0
      %v2032 = vpop.f32.mrb[0].mxu0
      %v2033 = vadd.f32 0.0, %v2032
      %v2034 = vpop.f32.mrb[0].mxu0
      %2035 = vmatprep.mubr.bf16.mxu0 0
      %2036 = vmatmul.mubr.bf16.gmra.mrb[0].mxu0 %v482
      %v2037 = vpop.f32.mrb[0].mxu0
      %v2038 = vadd.f32 0.0, %v2037
      %v2039 = vpop.f32.mrb[0].mxu0
      %v2040 = vpop.f32.mrb[0].mxu0
      %v2041 = vadd.f32 0.0, %v2040
      %v2042 = vpop.f32.mrb[0].mxu0
      %2043 = vmatprep.mubr.bf16.mxu0 0
      %2044 = vmatmul.mubr.bf16.gmra.mrb[0].mxu0 %v1333
      %v2045 = vpop.f32.mrb[0].mxu0
      %v2046 = vadd.f32 0.0, %v2045
      %v2047 = vpop.f32.mrb[0].mxu0
      %v2048 = vpop.f32.mrb[0].mxu0
      %v2049 = vadd.f32 0.0, %v2048
      %v2050 = vpop.f32.mrb[0].mxu0
      %2051 = vmatprep.mubr.bf16.mxu0 0
      %2052 = vmatmul.mubr.bf16.gmra.mrb[0].mxu0 %v1913
      %v2053 = vpop.f32.mrb[0].mxu0
      %v2054 = vadd.f32 0.0, %v2053
      %v2055 = vpop.f32.mrb[0].mxu0
      %v2056 = vpop.f32.mrb[0].mxu0
      %v2057 = vadd.f32 0.0, %v2056
      %v2058 = vpop.f32.mrb[0].mxu0
      %2059 = vdwg.mxu0
      %v2060 = vadd.f32 %v1854, %v1998
      %v2061 = vadd.f32 %v1855, %v2001
      %v2062 = vadd.f32 %v1856, %v2006
      %v2063 = vadd.f32 %v1857, %v2009
      %v2064 = vadd.f32 %v1858, %v2014
      %v2065 = vadd.f32 %v1859, %v2017
      %v2066 = vadd.f32 %v1860, %v2022
      %v2067 = vadd.f32 %v1861, %v2025
      %v2068 = vadd.f32 %v1862, %v2030
      %v2069 = vadd.f32 %v1863, %v2033
      %v2070 = vadd.f32 %v1864, %v2038
      %v2071 = vadd.f32 %v1865, %v2041
      %v2072 = vadd.f32 %v1866, %v2046
      %v2073 = vadd.f32 %v1867, %v2049
      %v2074 = vadd.f32 %v1868, %v2054
      %v2075 = vadd.f32 %v1869, %v2057
      %v2077 = vrot.slane %v228, 5
      %v2078 = vrot.slane %v2077, 4
      %v2079 = vrot.slane %v229, 5
      %v2080 = vsel %vm839, %v2078, %v2079
      %v2081 = vrot.slane %v2079, 4
      %v2082 = vrot.slane %v230, 5
      %v2083 = vsel %vm839, %v2081, %v2082
      %s2084 = scalar_lea.vmem %s1, 512
      %v2085 = vld [vmem:[%s2084] sm:$0xf]
      %v2086 = vld [vmem:[%s2084 + $0x4] sm:$0xf]
      %v2087 = vld [vmem:[%s2084 + $0x8] sm:$0xf]
      %v2088 = vld [vmem:[%s2084 + $0xc] sm:$0xf]
      %v2089 = vld [vmem:[%s2084 + $0x10] sm:$0xf]
      %v2090 = vld [vmem:[%s2084 + $0x14] sm:$0xf]
      %v2091 = vld [vmem:[%s2084 + $0x18] sm:$0xf]
      %v2092 = vld [vmem:[%s2084 + $0x1c] sm:$0xf]
      %v2093 = vld [vmem:[%s2084 + $0x20] sm:$0xf]
      %v2094 = vld [vmem:[%s2084 + $0x24] sm:$0xf]
      %v2095 = vld [vmem:[%s2084 + $0x28] sm:$0xf]
      %v2096 = vld [vmem:[%s2084 + $0x2c] sm:$0xf]
      %v2097 = vld [vmem:[%s2084 + $0x30] sm:$0xf]
      %v2098 = vld [vmem:[%s2084 + $0x34] sm:$0xf]
      %v2099 = vld [vmem:[%s2084 + $0x38] sm:$0xf]
      %v2100 = vld [vmem:[%s2084 + $0x3c] sm:$0xf]
      %v2101 = vunpack.c.l.b16 %v2080
      %v2102 = vunpack.c.l.b16 %v2083
      %v2103 = vpack.c.b16 %v2102, %v2101
      %v2121 = vunpack.c.l.b16 %v2085
      %v2122 = vunpack.c.l.b16 %v2086
      %v2123 = vunpack.c.l.b16 %v2087
      %v2124 = vunpack.c.l.b16 %v2088
      %v2125 = vunpack.c.l.b16 %v2089
      %v2126 = vunpack.c.l.b16 %v2090
      %v2127 = vunpack.c.l.b16 %v2091
      %v2128 = vunpack.c.l.b16 %v2092
      %v2129 = vunpack.c.l.b16 %v2093
      %v2130 = vunpack.c.l.b16 %v2094
      %v2131 = vunpack.c.l.b16 %v2095
      %v2132 = vunpack.c.l.b16 %v2096
      %v2133 = vunpack.c.l.b16 %v2097
      %v2134 = vunpack.c.l.b16 %v2098
      %v2135 = vunpack.c.l.b16 %v2099
      %v2136 = vunpack.c.l.b16 %v2100
      %v2137 = vpack.c.b16 %v2122, %v2121
      %v2138 = vpack.c.b16 %v2124, %v2123
      %v2139 = vpack.c.b16 %v2126, %v2125
      %v2140 = vpack.c.b16 %v2128, %v2127
      %v2141 = vpack.c.b16 %v2130, %v2129
      %v2142 = vpack.c.b16 %v2132, %v2131
      %v2143 = vpack.c.b16 %v2134, %v2133
      %v2144 = vpack.c.b16 %v2136, %v2135
      %2153 = vmatprep.subr.bf16.mxu0 0
      %2154 = vmatpush1.bf16.msra.mxu0 %v2137
      %2155 = vmatprep.subr.bf16.mxu0 0
      %2156 = vmatpush1.bf16.msra.mxu0 %v2138
      %2157 = vmatprep.subr.bf16.mxu0 0
      %2158 = vmatpush1.bf16.msra.mxu0 %v2139
      %2159 = vmatprep.subr.bf16.mxu0 0
      %2160 = vmatpush1.bf16.msra.mxu0 %v2140
      %2161 = vmatprep.subr.bf16.mxu0 0
      %2162 = vmatpush1.bf16.msra.mxu0 %v2141
      %2163 = vmatprep.subr.bf16.mxu0 0
      %2164 = vmatpush1.bf16.msra.mxu0 %v2142
      %2165 = vmatprep.subr.bf16.mxu0 0
      %2166 = vmatpush1.bf16.msra.mxu0 %v2143
      %2167 = vmatprep.subr.bf16.mxu0 0
      %2168 = vmatpush1.bf16.msra.mxu0 %v2144
      %2169 = vmatprep.subr.bf16.mxu0 0
      %2170 = vmatpush1.bf16.msra.mxu0 0
      %2171 = vmatprep.subr.bf16.mxu0 0
      %2172 = vmatpush1.bf16.msra.mxu0 0
      %2173 = vmatprep.subr.bf16.mxu0 0
      %2174 = vmatpush1.bf16.msra.mxu0 0
      %2175 = vmatprep.subr.bf16.mxu0 0
      %2176 = vmatpush1.bf16.msra.mxu0 0
      %2177 = vmatprep.subr.bf16.mxu0 0
      %2178 = vmatpush1.bf16.msra.mxu0 0
      %2179 = vmatprep.subr.bf16.mxu0 0
      %2180 = vmatpush1.bf16.msra.mxu0 0
      %2181 = vmatprep.subr.bf16.mxu0 0
      %2182 = vmatpush1.bf16.msra.mxu0 0
      %2183 = vmatprep.subr.bf16.mxu0 0
      %2184 = vmatpush1.bf16.msra.mxu0 0
      %2185 = vmatprep.mubr.bf16.mxu0 0
      %2186 = vmatmul.mubr.bf16.gmra.mrb[0].mxu0 %v931
      %v2187 = vpop.f32.mrb[0].mxu0
      %v2188 = vadd.f32 0.0, %v2187
      %v2189 = vpop.f32.mrb[0].mxu0
      %v2190 = vpop.f32.mrb[0].mxu0
      %v2191 = vadd.f32 0.0, %v2190
      %v2192 = vpop.f32.mrb[0].mxu0
      %2193 = vmatprep.mubr.bf16.mxu0 0
      %2194 = vmatmul.mubr.bf16.gmra.mrb[0].mxu0 %v932
      %v2195 = vpop.f32.mrb[0].mxu0
      %v2196 = vadd.f32 0.0, %v2195
      %v2197 = vpop.f32.mrb[0].mxu0
      %v2198 = vpop.f32.mrb[0].mxu0
      %v2199 = vadd.f32 0.0, %v2198
      %v2200 = vpop.f32.mrb[0].mxu0
      %2201 = vmatprep.mubr.bf16.mxu0 0
      %2202 = vmatmul.mubr.bf16.gmra.mrb[0].mxu0 %v933
      %v2203 = vpop.f32.mrb[0].mxu0
      %v2204 = vadd.f32 0.0, %v2203
      %v2205 = vpop.f32.mrb[0].mxu0
      %v2206 = vpop.f32.mrb[0].mxu0
      %v2207 = vadd.f32 0.0, %v2206
      %v2208 = vpop.f32.mrb[0].mxu0
      %2209 = vmatprep.mubr.bf16.mxu0 0
      %2210 = vmatmul.mubr.bf16.gmra.mrb[0].mxu0 %v934
      %v2211 = vpop.f32.mrb[0].mxu0
      %v2212 = vadd.f32 0.0, %v2211
      %v2213 = vpop.f32.mrb[0].mxu0
      %v2214 = vpop.f32.mrb[0].mxu0
      %v2215 = vadd.f32 0.0, %v2214
      %v2216 = vpop.f32.mrb[0].mxu0
      %2217 = vmatprep.mubr.bf16.mxu0 0
      %2218 = vmatmul.mubr.bf16.gmra.mrb[0].mxu0 %v935
      %v2219 = vpop.f32.mrb[0].mxu0
      %v2220 = vadd.f32 0.0, %v2219
      %v2221 = vpop.f32.mrb[0].mxu0
      %v2222 = vpop.f32.mrb[0].mxu0
      %v2223 = vadd.f32 0.0, %v2222
      %v2224 = vpop.f32.mrb[0].mxu0
      %2225 = vmatprep.mubr.bf16.mxu0 0
      %2226 = vmatmul.mubr.bf16.gmra.mrb[0].mxu0 %v936
      %v2227 = vpop.f32.mrb[0].mxu0
      %v2228 = vadd.f32 0.0, %v2227
      %v2229 = vpop.f32.mrb[0].mxu0
      %v2230 = vpop.f32.mrb[0].mxu0
      %v2231 = vadd.f32 0.0, %v2230
      %v2232 = vpop.f32.mrb[0].mxu0
      %2233 = vmatprep.mubr.bf16.mxu0 0
      %2234 = vmatmul.mubr.bf16.gmra.mrb[0].mxu0 %v1523
      %v2235 = vpop.f32.mrb[0].mxu0
      %v2236 = vadd.f32 0.0, %v2235
      %v2237 = vpop.f32.mrb[0].mxu0
      %v2238 = vpop.f32.mrb[0].mxu0
      %v2239 = vadd.f32 0.0, %v2238
      %v2240 = vpop.f32.mrb[0].mxu0
      %2241 = vmatprep.mubr.bf16.mxu0 0
      %2242 = vmatmul.mubr.bf16.gmra.mrb[0].mxu0 %v2103
      %v2243 = vpop.f32.mrb[0].mxu0
      %v2244 = vadd.f32 0.0, %v2243
      %v2245 = vpop.f32.mrb[0].mxu0
      %v2246 = vpop.f32.mrb[0].mxu0
      %v2247 = vadd.f32 0.0, %v2246
      %v2248 = vpop.f32.mrb[0].mxu0
      %2249 = vdwg.mxu0
      %v2250 = vadd.f32 %v2060, %v2188
      %v2251 = vadd.f32 %v2061, %v2191
      %v2252 = vadd.f32 %v2062, %v2196
      %v2253 = vadd.f32 %v2063, %v2199
      %v2254 = vadd.f32 %v2064, %v2204
      %v2255 = vadd.f32 %v2065, %v2207
      %v2256 = vadd.f32 %v2066, %v2212
      %v2257 = vadd.f32 %v2067, %v2215
      %v2258 = vadd.f32 %v2068, %v2220
      %v2259 = vadd.f32 %v2069, %v2223
      %v2260 = vadd.f32 %v2070, %v2228
      %v2261 = vadd.f32 %v2071, %v2231
      %v2262 = vadd.f32 %v2072, %v2236
      %v2263 = vadd.f32 %v2073, %v2239
      %v2264 = vadd.f32 %v2074, %v2244
      %v2265 = vadd.f32 %v2075, %v2247
      %v2266 = vld [vmem:[%s2] sm:$0x1]
      %v2268 = vlaneseq
      %v2269 = vshrl.u32 %v2268, 7
      %v2270 = vsub.s32 0, %v2269
      %v2271 = vrot.slane %v2266, %v2270
      %v2273 = vadd.f32 %v2250, %v2271
      %v2274 = vadd.f32 %v2251, %v2271
      %v2275 = vadd.f32 %v2252, %v2271
      %v2276 = vadd.f32 %v2253, %v2271
      %v2277 = vadd.f32 %v2254, %v2271
      %v2278 = vadd.f32 %v2255, %v2271
      %v2279 = vadd.f32 %v2256, %v2271
      %v2280 = vadd.f32 %v2257, %v2271
      %v2281 = vadd.f32 %v2258, %v2271
      %v2282 = vadd.f32 %v2259, %v2271
      %v2283 = vadd.f32 %v2260, %v2271
      %v2284 = vadd.f32 %v2261, %v2271
      %v2285 = vadd.f32 %v2262, %v2271
      %v2286 = vadd.f32 %v2263, %v2271
      %v2287 = vadd.f32 %v2264, %v2271
      %v2288 = vadd.f32 %v2265, %v2271
      %v2289 = vpack.c.bf16 %v2274, %v2273
      %v2290 = vpack.c.bf16 %v2276, %v2275
      %v2291 = vpack.c.bf16 %v2278, %v2277
      %v2292 = vpack.c.bf16 %v2280, %v2279
      %v2293 = vpack.c.bf16 %v2282, %v2281
      %v2294 = vpack.c.bf16 %v2284, %v2283
      %v2295 = vpack.c.bf16 %v2286, %v2285
      %v2296 = vpack.c.bf16 %v2288, %v2287
      %v2305 = vunpack.c.l.b16 %v2289
      %v2306 = vunpack.c.h.b16 %v2289
      %v2307 = vunpack.c.l.b16 %v2290
      %v2308 = vunpack.c.h.b16 %v2290
      %v2309 = vunpack.c.l.b16 %v2291
      %v2310 = vunpack.c.h.b16 %v2291
      %v2311 = vunpack.c.l.b16 %v2292
      %v2312 = vunpack.c.h.b16 %v2292
      %v2313 = vunpack.c.l.b16 %v2293
      %v2314 = vunpack.c.h.b16 %v2293
      %v2315 = vunpack.c.l.b16 %v2294
      %v2316 = vunpack.c.h.b16 %v2294
      %v2317 = vunpack.c.l.b16 %v2295
      %v2318 = vunpack.c.h.b16 %v2295
      %v2319 = vunpack.c.l.b16 %v2296
      %v2320 = vunpack.c.h.b16 %v2296
      %v2321 = vpack.c.b16 %v2305, %v2305
      %v2322 = vpack.c.b16 %v2306, %v2306
      %v2323 = vpack.c.b16 %v2307, %v2307
      %v2324 = vpack.c.b16 %v2308, %v2308
      %v2325 = vpack.c.b16 %v2309, %v2309
      %v2326 = vpack.c.b16 %v2310, %v2310
      %v2327 = vpack.c.b16 %v2311, %v2311
      %v2328 = vpack.c.b16 %v2312, %v2312
      %v2329 = vpack.c.b16 %v2313, %v2313
      %v2330 = vpack.c.b16 %v2314, %v2314
      %v2331 = vpack.c.b16 %v2315, %v2315
      %v2332 = vpack.c.b16 %v2316, %v2316
      %v2333 = vpack.c.b16 %v2317, %v2317
      %v2334 = vpack.c.b16 %v2318, %v2318
      %v2335 = vpack.c.b16 %v2319, %v2319
      %v2336 = vpack.c.b16 %v2320, %v2320
      %2353 = vst [vmem:[%s194] sm:$0xf] %v2321
      %2354 = vst [vmem:[%s194 + $0x4] sm:$0xf] %v2322
      %2355 = vst [vmem:[%s194 + $0x8] sm:$0xf] %v2323
      %2356 = vst [vmem:[%s194 + $0xc] sm:$0xf] %v2324
      %2357 = vst [vmem:[%s194 + $0x10] sm:$0xf] %v2325
      %2358 = vst [vmem:[%s194 + $0x14] sm:$0xf] %v2326
      %2359 = vst [vmem:[%s194 + $0x18] sm:$0xf] %v2327
      %2360 = vst [vmem:[%s194 + $0x1c] sm:$0xf] %v2328
      %2361 = vst [vmem:[%s194 + $0x20] sm:$0xf] %v2329
      %2362 = vst [vmem:[%s194 + $0x24] sm:$0xf] %v2330
      %2363 = vst [vmem:[%s194 + $0x28] sm:$0xf] %v2331
      %2364 = vst [vmem:[%s194 + $0x2c] sm:$0xf] %v2332
      %2365 = vst [vmem:[%s194 + $0x30] sm:$0xf] %v2333
      %2366 = vst [vmem:[%s194 + $0x34] sm:$0xf] %v2334
      %2367 = vst [vmem:[%s194 + $0x38] sm:$0xf] %v2335
      %2368 = vst [vmem:[%s194 + $0x3c] sm:$0xf] %v2336
      %s2369 = smul.u32 8, %s19
      %p2370 = scmp.lt.s32.totalorder %s18, 1
      %s2371 = scalar_select %p2370, %s18, 1
      %p2372 = scmp.lt.s32.totalorder %s2369, 15
      %s2373 = scalar_select %p2372, %s2369, 15
      %s2374 = smul.addr %s2373, 2
      %s2375 = smul.addr %s2371, 32
      %s2376 = sadd.s32 %s2374, %s2375
      %s2377 = smul.addr %s2376, 4
      %s2378 = scalar_lea.vmem %s3, %s2377
      // Predicated region
      $region33: #{_lambda_.8} parent=31 // pred_check
        %p2379 = pneg %p114
      $region34: #{_lambda_.8} parent=31 // pred_check_branch
        %2381 = sbr.rel (%p2379) target = $region36
      $region35: #{_lambda_.8} parent=31 // pred_region
        %s2382 = smul.u32 8, %s19
      $region36: #{_lambda_.8} parent=31 // pred_fallthru
        _
    $region32: #{_lambda_.8} parent=5 // pred_fallthru
      _
    %p2383 = scmp.le.s32.totalorder 2, %s9
    // Predicated region
    $region37: #{_lambda_.8} parent=5 // pred_check
      %p2384 = pneg %p2383
    $region38: #{_lambda_.8} parent=5 // pred_check_branch
      %2386 = sbr.rel (%p2384) target = $region40
    $region39: #{_lambda_.8} parent=5 // pred_region
      %s2387 = ssub.s32 %s9, 2
      // Predicated region
      $region41: #{_lambda_.8} parent=39 // pred_check
        %p2388 = pneg %p120
      $region42: #{_lambda_.8} parent=39 // pred_check_branch
        %2390 = sbr.rel (%p2388) target = $region44
      $region43: #{_lambda_.8} parent=39 // pred_region
        %s2391 = smul.u32 8, %s21
        %p2392 = scmp.lt.s32.totalorder %s20, 1
        %s2393 = scalar_select %p2392, %s20, 1
        %p2394 = scmp.lt.s32.totalorder %s2391, 15
        %s2395 = scalar_select %p2394, %s2391, 15
        %s2396 = smul.addr %s2395, 2
        %s2397 = smul.addr %s2393, 32
        %s2398 = sadd.s32 %s2396, %s2397
        %s2399 = smul.addr %s2398, 4
        %s2400 = scalar_lea.vmem %s3, %s2399
      $region44: #{_lambda_.8} parent=39 // pred_fallthru
        _
    $region40: #{_lambda_.8} parent=5 // pred_fallthru
      _
  $region6: #{_lambda_.8} parent=0 // loop_footer
    %s13 = sadd.s32 1, %s9
  $region7: #{_lambda_.8} parent=0 // loop_footer_branch
    %8 = sbr.rel target = $region3
  $region8: #{_lambda_.8} parent=0 // loop_exit
    _

// kernel: _lambda_.9
$region0: #{_lambda_.9}
  #allocation0 [shape = 'u32[]', space=smem, size = 0x4, offset = 0x4, fixed_abs, tag = 'smem constant byte address 0x4 - core index']
  #allocation1 [shape = 'u32[144,128]{1,0:T(1,128)}', space=vmem, size = 0x12000, scoped, tag = 'internal scratch']
  %s0 = inlined_call_operand.vmem [shape: bf16[2,18,18,128], index: 0, kind: input, shape index: {}]
  %s1 = inlined_call_operand.vmem [shape: bf16[9,128,128], index: 1, kind: input, shape index: {}]
  %s2 = inlined_call_operand.vmem [shape: f32[1,128], index: 2, kind: input, shape index: {}]
  %s3 = inlined_call_operand.vmem [shape: f32[2,16,16,128], index: 3, kind: output, shape index: {}]
  %s4 = sld [smem:[#allocation0]]
  $region45: #{_lambda_.9} parent=0
    _
  %s6 = ssub.s32 1, %s4
  %s7 = scalar_select 0, %s6, %s4
  loop: start=0, step=1, limit=6
  $region2: #{_lambda_.9} parent=0 // loop_pre_header
    _
  $region3: #{_lambda_.9} parent=0 // loop_header
    %s9 = sphi 0, %s13
    %p10 = scmp.ge.s32.totalorder %s9, 6
    %s16 = sphi 0, %s28
    %s17 = sphi 0, %s24
    %s18 = sphi 0, %s16
    %s19 = sphi 0, %s17
    %s20 = sphi 0, %s18
    %s21 = sphi 0, %s19
    %s31 = sphi 0, %s33
    %s34 = sphi 0, %s31
    %s35 = sphi 0, %s34
    %s51 = sphi 0, %s35
    %s55 = sphi 0, %s55
    %s57 = sphi 0, %s55
    %s58 = sphi 0, %s57
    %s72 = sphi 0, %s58
    %s76 = sphi 0, %s76
    %s78 = sphi 0, %s76
    %s79 = sphi 0, %s78
    %s93 = sphi 0, %s79
    %s101 = sphi 0, %s103
    %s104 = sphi 0, %s101
    %s105 = sphi 0, %s104
    %s121 = sphi 0, %s105
  $region4: #{_lambda_.9} parent=0 // loop_header_branch
    %12 = sbr.rel (%p10) target = $region8
  $region5: #{_lambda_.9} parent=0 // loop_body
    %s14 = ssub.s32 %s9, 1
    %s15 = ssub.s32 %s9, 2
    %s22 = sadd.s32 1, %s17
    %p23 = scmp.ge.s32.totalorder %s22, 2
    %s24 = scalar_select %p23, 0, %s22
    %s25 = sadd.s32 1, %s16
    %s26 = scalar_select %p23, %s25, %s16
    %p27 = scmp.ge.s32.totalorder %s26, 2
    %s28 = scalar_select %p27, 0, %s26
    %s29 = ssub.s32 %s16, %s28
    %p30 = scmp.eq.s32.totalorder %s29, 0
    %s32 = sadd.s32 %s31, 1
    %s33 = scalar_select %p30, %s31, %s32
    %p36 = pneg %p30
    %p37 = scmp.eq.s32.totalorder %s9, 3
    %p38 = por %p36, %p37
    %p39 = scmp.ne.s32.totalorder %s31, %s34
    %p40 = scmp.eq.s32.totalorder %s9, 0
    %p41 = por %p39, %p40
    %p42 = scmp.ne.s32.totalorder %s31, %s34
    %p43 = scmp.eq.s32.totalorder %s14, 3
    %p44 = por %p42, %p43
    %p45 = scmp.ne.s32.totalorder %s34, %s35
    %p46 = scmp.eq.s32.totalorder %s14, 0
    %p47 = por %p45, %p46
    %p48 = scmp.ne.s32.totalorder %s34, %s35
    %p49 = scmp.eq.s32.totalorder %s15, 3
    %p50 = por %p48, %p49
    %p52 = scmp.ne.s32.totalorder %s35, %s51
    %p53 = scmp.eq.s32.totalorder %s15, 0
    %p54 = por %p52, %p53
    %s56 = sadd.s32 %s55, 1
    %p59 = scmp.eq.s32.totalorder %s9, 3
    %p60 = scmp.ne.s32.totalorder %s55, %s57
    %p61 = scmp.eq.s32.totalorder %s9, 0
    %p62 = por %p60, %p61
    %p63 = scmp.ne.s32.totalorder %s55, %s57
    %p64 = scmp.eq.s32.totalorder %s14, 3
    %p65 = por %p63, %p64
    %p66 = scmp.ne.s32.totalorder %s57, %s58
    %p67 = scmp.eq.s32.totalorder %s14, 0
    %p68 = por %p66, %p67
    %p69 = scmp.ne.s32.totalorder %s57, %s58
    %p70 = scmp.eq.s32.totalorder %s15, 3
    %p71 = por %p69, %p70
    %p73 = scmp.ne.s32.totalorder %s58, %s72
    %p74 = scmp.eq.s32.totalorder %s15, 0
    %p75 = por %p73, %p74
    %s77 = sadd.s32 %s76, 1
    %p80 = scmp.eq.s32.totalorder %s9, 3
    %p81 = scmp.ne.s32.totalorder %s76, %s78
    %p82 = scmp.eq.s32.totalorder %s9, 0
    %p83 = por %p81, %p82
    %p84 = scmp.ne.s32.totalorder %s76, %s78
    %p85 = scmp.eq.s32.totalorder %s14, 3
    %p86 = por %p84, %p85
    %p87 = scmp.ne.s32.totalorder %s78, %s79
    %p88 = scmp.eq.s32.totalorder %s14, 0
    %p89 = por %p87, %p88
    %p90 = scmp.ne.s32.totalorder %s78, %s79
    %p91 = scmp.eq.s32.totalorder %s15, 3
    %p92 = por %p90, %p91
    %p94 = scmp.ne.s32.totalorder %s79, %s93
    %p95 = scmp.eq.s32.totalorder %s15, 0
    %p96 = por %p94, %p95
    %s97 = ssub.s32 %s16, %s28
    %s98 = ssub.s32 %s17, %s24
    %s99 = sor.u32 %s97, %s98
    %p100 = scmp.eq.s32.totalorder %s99, 0
    %s102 = sadd.s32 %s101, 1
    %s103 = scalar_select %p100, %s101, %s102
    %p106 = pneg %p100
    %p107 = scmp.eq.s32.totalorder %s9, 3
    %p108 = por %p106, %p107
    %p109 = scmp.ne.s32.totalorder %s101, %s104
    %p110 = scmp.eq.s32.totalorder %s9, 0
    %p111 = por %p109, %p110
    %p112 = scmp.ne.s32.totalorder %s101, %s104
    %p113 = scmp.eq.s32.totalorder %s14, 3
    %p114 = por %p112, %p113
    %p115 = scmp.ne.s32.totalorder %s104, %s105
    %p116 = scmp.eq.s32.totalorder %s14, 0
    %p117 = por %p115, %p116
    %p118 = scmp.ne.s32.totalorder %s104, %s105
    %p119 = scmp.eq.s32.totalorder %s15, 3
    %p120 = por %p118, %p119
    %p122 = scmp.ne.s32.totalorder %s105, %s121
    %p123 = scmp.eq.s32.totalorder %s15, 0
    %p124 = por %p122, %p123
    %p125 = scmp.le.s32.totalorder 1, %s9
    %p126 = scmp.lt.s32.totalorder %s9, 5
    %p127 = pnand %p125, %p126
    %p128 = pneg %p127
    // Predicated region
    $region9: #{_lambda_.9} parent=5 // pred_check
      _
    $region10: #{_lambda_.9} parent=5 // pred_check_branch
      %130 = sbr.rel (%p127) target = $region12
    $region11: #{_lambda_.9} parent=5 // pred_region
      %s131 = ssub.s32 %s9, 1
      // Predicated region
      $region13: #{_lambda_.9} parent=11 // pred_check
        %p132 = pneg %p68
      $region14: #{_lambda_.9} parent=11 // pred_check_branch
        %134 = sbr.rel (%p132) target = $region16
      $region15: #{_lambda_.9} parent=11 // pred_region
        _
      $region16: #{_lambda_.9} parent=11 // pred_fallthru
        _
      // Predicated region
      $region17: #{_lambda_.9} parent=11 // pred_check
        %p135 = pneg %p89
      $region18: #{_lambda_.9} parent=11 // pred_check_branch
        %137 = sbr.rel (%p135) target = $region20
      $region19: #{_lambda_.9} parent=11 // pred_region
        _
      $region20: #{_lambda_.9} parent=11 // pred_fallthru
        _
    $region12: #{_lambda_.9} parent=5 // pred_fallthru
      _
    %p138 = scmp.lt.s32.totalorder %s9, 4
    // Predicated region
    $region21: #{_lambda_.9} parent=5 // pred_check
      %p139 = pneg %p138
    $region22: #{_lambda_.9} parent=5 // pred_check_branch
      %141 = sbr.rel (%p139) target = $region24
    $region23: #{_lambda_.9} parent=5 // pred_region
      // Predicated region
      $region25: #{_lambda_.9} parent=23 // pred_check
        %p142 = pneg %p41
      $region26: #{_lambda_.9} parent=23 // pred_check_branch
        %144 = sbr.rel (%p142) target = $region28
      $region27: #{_lambda_.9} parent=23 // pred_region
        %p145 = scmp.lt.s32.totalorder %s16, 1
        %s146 = scalar_select %p145, %s16, 1
        %s147 = smul.addr %s146, 54
        %s148 = smul.addr %s147, 4
        %s149 = scalar_lea.vmem %s0, %s148
      $region28: #{_lambda_.9} parent=23 // pred_fallthru
        _
    $region24: #{_lambda_.9} parent=5 // pred_fallthru
      _
    %p150 = scmp.le.s32.totalorder 1, %s9
    %p151 = scmp.lt.s32.totalorder %s9, 5
    %p152 = pnand %p150, %p151
    %p153 = pneg %p152
    // Predicated region
    $region29: #{_lambda_.9} parent=5 // pred_check
      _
    $region30: #{_lambda_.9} parent=5 // pred_check_branch
      %155 = sbr.rel (%p152) target = $region32
    $region31: #{_lambda_.9} parent=5 // pred_region
      %s156 = ssub.s32 %s9, 1
      %p157 = scmp.lt.s32.totalorder %s18, 1
      %s158 = scalar_select %p157, %s18, 1
      %s159 = smul.addr %s158, 54
      %s160 = smul.addr %s159, 4
      %s161 = scalar_lea.vmem %s0, %s160
      %p162 = pneg %p47
      %p163 = pneg %p44
      %p164 = pneg %p68
      %p165 = pneg %p65
      %p166 = pneg %p89
      %p167 = pneg %p86
      %p168 = pneg %p117
      %p169 = pneg %p114
      %s170 = smul.u32 8, %s19
      %p171 = scmp.lt.s32.totalorder %s18, 1
      %s172 = scalar_select %p171, %s18, 1
      %p173 = scmp.lt.s32.totalorder %s170, 15
      %s174 = scalar_select %p173, %s170, 15
      %s175 = smul.addr %s174, 2
      %s176 = smul.addr %s172, 32
      %s177 = sadd.s32 %s175, %s176
      %s178 = smul.addr %s177, 8
      %s179 = scalar_lea.vmem %s3, %s178
      %p180 = scmp.lt.s32.totalorder %s18, 1
      %s181 = scalar_select %p180, %s18, 1
      %s182 = smul.addr %s181, 54
      %s183 = smul.addr %s182, 4
      %s184 = scalar_lea.vmem %s0, %s183
      %s185 = smul.u32 8, %s19
      %p186 = scmp.lt.s32.totalorder %s18, 1
      %s187 = scalar_select %p186, %s18, 1
      %p188 = scmp.lt.s32.totalorder %s185, 15
      %s189 = scalar_select %p188, %s185, 15
      %s190 = smul.addr %s189, 2
      %s191 = smul.addr %s187, 32
      %s192 = sadd.s32 %s190, %s191
      %s193 = smul.addr %s192, 8
      %s194 = scalar_lea.vmem %s3, %s193
      %s195 = smul.u32 8, %s19
      %s197 = smul.u32 %s19, 8
      %s198 = smul.u32 %s197, 3
      %s199 = smul.addr %s198, 4
      %s200 = scalar_lea.vmem %s184, %s199
      %v201 = vld [vmem:[%s200] sm:$0xf]
      %v202 = vld [vmem:[%s200 + $0x4] sm:$0xf]
      %v203 = vld [vmem:[%s200 + $0x8] sm:$0x1]
      %v204 = vld [vmem:[%s200 + $0xc] sm:$0xf]
      %v205 = vld [vmem:[%s200 + $0x10] sm:$0xf]
      %v206 = vld [vmem:[%s200 + $0x14] sm:$0x1]
      %v207 = vld [vmem:[%s200 + $0x18] sm:$0xf]
      %v208 = vld [vmem:[%s200 + $0x1c] sm:$0xf]
      %v209 = vld [vmem:[%s200 + $0x20] sm:$0x1]
      %v210 = vld [vmem:[%s200 + $0x24] sm:$0xf]
      %v211 = vld [vmem:[%s200 + $0x28] sm:$0xf]
      %v212 = vld [vmem:[%s200 + $0x2c] sm:$0x1]
      %v213 = vld [vmem:[%s200 + $0x30] sm:$0xf]
      %v214 = vld [vmem:[%s200 + $0x34] sm:$0xf]
      %v215 = vld [vmem:[%s200 + $0x38] sm:$0x1]
      %v216 = vld [vmem:[%s200 + $0x3c] sm:$0xf]
      %v217 = vld [vmem:[%s200 + $0x40] sm:$0xf]
      %v218 = vld [vmem:[%s200 + $0x44] sm:$0x1]
      %v219 = vld [vmem:[%s200 + $0x48] sm:$0xf]
      %v220 = vld [vmem:[%s200 + $0x4c] sm:$0xf]
      %v221 = vld [vmem:[%s200 + $0x50] sm:$0x1]
      %v222 = vld [vmem:[%s200 + $0x54] sm:$0xf]
      %v223 = vld [vmem:[%s200 + $0x58] sm:$0xf]
      %v224 = vld [vmem:[%s200 + $0x5c] sm:$0x1]
      %v225 = vld [vmem:[%s200 + $0x60] sm:$0xf]
      %v226 = vld [vmem:[%s200 + $0x64] sm:$0xf]
      %v227 = vld [vmem:[%s200 + $0x68] sm:$0x1]
      %v228 = vld [vmem:[%s200 + $0x6c] sm:$0xf]
      %v229 = vld [vmem:[%s200 + $0x70] sm:$0xf]
      %v230 = vld [vmem:[%s200 + $0x74] sm:$0x1]
      %v231 = vld [vmem:[%s1] sm:$0xf]
      %v232 = vld [vmem:[%s1 + $0x4] sm:$0xf]
      %v233 = vld [vmem:[%s1 + $0x8] sm:$0xf]
      %v234 = vld [vmem:[%s1 + $0xc] sm:$0xf]
      %v235 = vld [vmem:[%s1 + $0x10] sm:$0xf]
      %v236 = vld [vmem:[%s1 + $0x14] sm:$0xf]
      %v237 = vld [vmem:[%s1 + $0x18] sm:$0xf]
      %v238 = vld [vmem:[%s1 + $0x1c] sm:$0xf]
      %v239 = vld [vmem:[%s1 + $0x20] sm:$0xf]
      %v240 = vld [vmem:[%s1 + $0x24] sm:$0xf]
      %v241 = vld [vmem:[%s1 + $0x28] sm:$0xf]
      %v242 = vld [vmem:[%s1 + $0x2c] sm:$0xf]
      %v243 = vld [vmem:[%s1 + $0x30] sm:$0xf]
      %v244 = vld [vmem:[%s1 + $0x34] sm:$0xf]
      %v245 = vld [vmem:[%s1 + $0x38] sm:$0xf]
      %v246 = vld [vmem:[%s1 + $0x3c] sm:$0xf]
      %vm247 = vsmask.f32 3328
      %vm248 = vsmask.f32 7440
      %vm249 = vmor %vm247, %vm248
      %v251 = vshrl.u32 %v201, 16
      %v253 = vrot.slane %v251, 4
      %v254 = vshll.u32 %v201, 16
      %v256 = vrot.slane %v254, 5
      %v257 = vor.u32 %v253, %v256
      %v258 = vrot.slane %v257, 4
      %v260 = vshll.u32 %v202, 16
      %v262 = vrot.slane %v260, 5
      %v263 = vsel %vm249, %v258, %v262
      %v264 = vshrl.u32 %v202, 16
      %v266 = vrot.slane %v264, 4
      %v267 = vor.u32 %v266, %v262
      %v268 = vrot.slane %v267, 4
      %v270 = vshll.u32 %v203, 16
      %v272 = vrot.slane %v270, 5
      %v273 = vsel %vm249, %v268, %v272
      %v275 = vshrl.u32 %v204, 16
      %v277 = vrot.slane %v275, 4
      %v278 = vshll.u32 %v204, 16
      %v280 = vrot.slane %v278, 5
      %v281 = vor.u32 %v277, %v280
      %v282 = vrot.slane %v281, 4
      %v284 = vshll.u32 %v205, 16
      %v286 = vrot.slane %v284, 5
      %v287 = vsel %vm249, %v282, %v286
      %v288 = vshrl.u32 %v205, 16
      %v290 = vrot.slane %v288, 4
      %v291 = vor.u32 %v290, %v286
      %v292 = vrot.slane %v291, 4
      %v294 = vshll.u32 %v206, 16
      %v296 = vrot.slane %v294, 5
      %v297 = vsel %vm249, %v292, %v296
      %v299 = vshrl.u32 %v207, 16
      %v301 = vrot.slane %v299, 4
      %v302 = vshll.u32 %v207, 16
      %v304 = vrot.slane %v302, 5
      %v305 = vor.u32 %v301, %v304
      %v306 = vrot.slane %v305, 4
      %v308 = vshll.u32 %v208, 16
      %v310 = vrot.slane %v308, 5
      %v311 = vsel %vm249, %v306, %v310
      %v312 = vshrl.u32 %v208, 16
      %v314 = vrot.slane %v312, 4
      %v315 = vor.u32 %v314, %v310
      %v316 = vrot.slane %v315, 4
      %v318 = vshll.u32 %v209, 16
      %v320 = vrot.slane %v318, 5
      %v321 = vsel %vm249, %v316, %v320
      %v323 = vshrl.u32 %v210, 16
      %v325 = vrot.slane %v323, 4
      %v326 = vshll.u32 %v210, 16
      %v328 = vrot.slane %v326, 5
      %v329 = vor.u32 %v325, %v328
      %v330 = vrot.slane %v329, 4
      %v332 = vshll.u32 %v211, 16
      %v334 = vrot.slane %v332, 5
      %v335 = vsel %vm249, %v330, %v334
      %v336 = vshrl.u32 %v211, 16
      %v338 = vrot.slane %v336, 4
      %v339 = vor.u32 %v338, %v334
      %v340 = vrot.slane %v339, 4
      %v342 = vshll.u32 %v212, 16
      %v344 = vrot.slane %v342, 5
      %v345 = vsel %vm249, %v340, %v344
      %v347 = vshrl.u32 %v213, 16
      %v349 = vrot.slane %v347, 4
      %v350 = vshll.u32 %v213, 16
      %v352 = vrot.slane %v350, 5
      %v353 = vor.u32 %v349, %v352
      %v354 = vrot.slane %v353, 4
      %v356 = vshll.u32 %v214, 16
      %v358 = vrot.slane %v356, 5
      %v359 = vsel %vm249, %v354, %v358
      %v360 = vshrl.u32 %v214, 16
      %v362 = vrot.slane %v360, 4
      %v363 = vor.u32 %v362, %v358
      %v364 = vrot.slane %v363, 4
      %v366 = vshll.u32 %v215, 16
      %v368 = vrot.slane %v366, 5
      %v369 = vsel %vm249, %v364, %v368
      %v371 = vshrl.u32 %v216, 16
      %v373 = vrot.slane %v371, 4
      %v374 = vshll.u32 %v216, 16
      %v376 = vrot.slane %v374, 5
      %v377 = vor.u32 %v373, %v376
      %v378 = vrot.slane %v377, 4
      %v380 = vshll.u32 %v217, 16
      %v382 = vrot.slane %v380, 5
      %v383 = vsel %vm249, %v378, %v382
      %v384 = vshrl.u32 %v217, 16
      %v386 = vrot.slane %v384, 4
      %v387 = vor.u32 %v386, %v382
      %v388 = vrot.slane %v387, 4
      %v390 = vshll.u32 %v218, 16
      %v392 = vrot.slane %v390, 5
      %v393 = vsel %vm249, %v388, %v392
      %v395 = vshrl.u32 %v219, 16
      %v397 = vrot.slane %v395, 4
      %v398 = vshll.u32 %v219, 16
      %v400 = vrot.slane %v398, 5
      %v401 = vor.u32 %v397, %v400
      %v402 = vrot.slane %v401, 4
      %v404 = vshll.u32 %v220, 16
      %v406 = vrot.slane %v404, 5
      %v407 = vsel %vm249, %v402, %v406
      %v408 = vshrl.u32 %v220, 16
      %v410 = vrot.slane %v408, 4
      %v411 = vor.u32 %v410, %v406
      %v412 = vrot.slane %v411, 4
      %v414 = vshll.u32 %v221, 16
      %v416 = vrot.slane %v414, 5
      %v417 = vsel %vm249, %v412, %v416
      %v419 = vshrl.u32 %v222, 16
      %v421 = vrot.slane %v419, 4
      %v422 = vshll.u32 %v222, 16
      %v424 = vrot.slane %v422, 5
      %v425 = vor.u32 %v421, %v424
      %v426 = vrot.slane %v425, 4
      %v428 = vshll.u32 %v223, 16
      %v430 = vrot.slane %v428, 5
      %v431 = vsel %vm249, %v426, %v430
      %v432 = vshrl.u32 %v223, 16
      %v434 = vrot.slane %v432, 4
      %v435 = vor.u32 %v434, %v430
      %v436 = vrot.slane %v435, 4
      %v438 = vshll.u32 %v224, 16
      %v440 = vrot.slane %v438, 5
      %v441 = vsel %vm249, %v436, %v440
      %s442 = scalar_lea.vmem %s1, 64
      %v443 = vld [vmem:[%s442] sm:$0xf]
      %v444 = vld [vmem:[%s442 + $0x4] sm:$0xf]
      %v445 = vld [vmem:[%s442 + $0x8] sm:$0xf]
      %v446 = vld [vmem:[%s442 + $0xc] sm:$0xf]
      %v447 = vld [vmem:[%s442 + $0x10] sm:$0xf]
      %v448 = vld [vmem:[%s442 + $0x14] sm:$0xf]
      %v449 = vld [vmem:[%s442 + $0x18] sm:$0xf]
      %v450 = vld [vmem:[%s442 + $0x1c] sm:$0xf]
      %v451 = vld [vmem:[%s442 + $0x20] sm:$0xf]
      %v452 = vld [vmem:[%s442 + $0x24] sm:$0xf]
      %v453 = vld [vmem:[%s442 + $0x28] sm:$0xf]
      %v454 = vld [vmem:[%s442 + $0x2c] sm:$0xf]
      %v455 = vld [vmem:[%s442 + $0x30] sm:$0xf]
      %v456 = vld [vmem:[%s442 + $0x34] sm:$0xf]
      %v457 = vld [vmem:[%s442 + $0x38] sm:$0xf]
      %v458 = vld [vmem:[%s442 + $0x3c] sm:$0xf]
      %v459 = vunpack.c.l.b16 %v263
      %v460 = vunpack.c.l.b16 %v273
      %v461 = vunpack.c.l.b16 %v287
      %v462 = vunpack.c.l.b16 %v297
      %v463 = vunpack.c.l.b16 %v311
      %v464 = vunpack.c.l.b16 %v321
      %v465 = vunpack.c.l.b16 %v335
      %v466 = vunpack.c.l.b16 %v345
      %v467 = vunpack.c.l.b16 %v359
      %v468 = vunpack.c.l.b16 %v369
      %v469 = vunpack.c.l.b16 %v383
      %v470 = vunpack.c.l.b16 %v393
      %v471 = vunpack.c.l.b16 %v407
      %v472 = vunpack.c.l.b16 %v417
      %v473 = vunpack.c.l.b16 %v431
      %v474 = vunpack.c.l.b16 %v441
      %v475 = vpack.c.b16 %v460, %v459
      %v476 = vpack.c.b16 %v462, %v461
      %v477 = vpack.c.b16 %v464, %v463
      %v478 = vpack.c.b16 %v466, %v465
      %v479 = vpack.c.b16 %v468, %v467
      %v480 = vpack.c.b16 %v470, %v469
      %v481 = vpack.c.b16 %v472, %v471
      %v482 = vpack.c.b16 %v474, %v473
      %v507 = vunpack.c.l.b16 %v443
      %v508 = vunpack.c.l.b16 %v444
      %v509 = vunpack.c.l.b16 %v445
      %v510 = vunpack.c.l.b16 %v446
      %v511 = vunpack.c.l.b16 %v447
      %v512 = vunpack.c.l.b16 %v448
      %v513 = vunpack.c.l.b16 %v449
      %v514 = vunpack.c.l.b16 %v450
      %v515 = vunpack.c.l.b16 %v451
      %v516 = vunpack.c.l.b16 %v452
      %v517 = vunpack.c.l.b16 %v453
      %v518 = vunpack.c.l.b16 %v454
      %v519 = vunpack.c.l.b16 %v455
      %v520 = vunpack.c.l.b16 %v456
      %v521 = vunpack.c.l.b16 %v457
      %v522 = vunpack.c.l.b16 %v458
      %v523 = vpack.c.b16 %v508, %v507
      %v524 = vpack.c.b16 %v510, %v509
      %v525 = vpack.c.b16 %v512, %v511
      %v526 = vpack.c.b16 %v514, %v513
      %v527 = vpack.c.b16 %v516, %v515
      %v528 = vpack.c.b16 %v518, %v517
      %v529 = vpack.c.b16 %v520, %v519
      %v530 = vpack.c.b16 %v522, %v521
      %539 = vmatprep.subr.bf16.mxu0 0
      %540 = vmatpush1.bf16.msra.mxu0 %v523
      %541 = vmatprep.subr.bf16.mxu0 0
      %542 = vmatpush1.bf16.msra.mxu0 %v524
      %543 = vmatprep.subr.bf16.mxu0 0
      %544 = vmatpush1.bf16.msra.mxu0 %v525
      %545 = vmatprep.subr.bf16.mxu0 0
      %546 = vmatpush1.bf16.msra.mxu0 %v526
      %547 = vmatprep.subr.bf16.mxu0 0
      %548 = vmatpush1.bf16.msra.mxu0 %v527
      %549 = vmatprep.subr.bf16.mxu0 0
      %550 = vmatpush1.bf16.msra.mxu0 %v528
      %551 = vmatprep.subr.bf16.mxu0 0
      %552 = vmatpush1.bf16.msra.mxu0 %v529
      %553 = vmatprep.subr.bf16.mxu0 0
      %554 = vmatpush1.bf16.msra.mxu0 %v530
      %555 = vmatprep.subr.bf16.mxu0 0
      %556 = vmatpush1.bf16.msra.mxu0 0
      %557 = vmatprep.subr.bf16.mxu0 0
      %558 = vmatpush1.bf16.msra.mxu0 0
      %559 = vmatprep.subr.bf16.mxu0 0
      %560 = vmatpush1.bf16.msra.mxu0 0
      %561 = vmatprep.subr.bf16.mxu0 0
      %562 = vmatpush1.bf16.msra.mxu0 0
      %563 = vmatprep.subr.bf16.mxu0 0
      %564 = vmatpush1.bf16.msra.mxu0 0
      %565 = vmatprep.subr.bf16.mxu0 0
      %566 = vmatpush1.bf16.msra.mxu0 0
      %567 = vmatprep.subr.bf16.mxu0 0
      %568 = vmatpush1.bf16.msra.mxu0 0
      %569 = vmatprep.subr.bf16.mxu0 0
      %570 = vmatpush1.bf16.msra.mxu0 0
      %571 = vmatprep.mubr.bf16.mxu0 0
      %572 = vmatmul.mubr.bf16.gmra.mrb[0].mxu0 %v475
      %v573 = vpop.f32.mrb[0].mxu0
      %v574 = vadd.f32 0.0, %v573
      %v575 = vpop.f32.mrb[0].mxu0
      %v576 = vpop.f32.mrb[0].mxu0
      %v577 = vadd.f32 0.0, %v576
      %v578 = vpop.f32.mrb[0].mxu0
      %579 = vmatprep.mubr.bf16.mxu0 0
      %580 = vmatmul.mubr.bf16.gmra.mrb[0].mxu0 %v476
      %v581 = vpop.f32.mrb[0].mxu0
      %v582 = vadd.f32 0.0, %v581
      %v583 = vpop.f32.mrb[0].mxu0
      %v584 = vpop.f32.mrb[0].mxu0
      %v585 = vadd.f32 0.0, %v584
      %v586 = vpop.f32.mrb[0].mxu0
      %587 = vmatprep.mubr.bf16.mxu0 0
      %588 = vmatmul.mubr.bf16.gmra.mrb[0].mxu0 %v477
      %v589 = vpop.f32.mrb[0].mxu0
      %v590 = vadd.f32 0.0, %v589
      %v591 = vpop.f32.mrb[0].mxu0
      %v592 = vpop.f32.mrb[0].mxu0
      %v593 = vadd.f32 0.0, %v592
      %v594 = vpop.f32.mrb[0].mxu0
      %595 = vmatprep.mubr.bf16.mxu0 0
      %596 = vmatmul.mubr.bf16.gmra.mrb[0].mxu0 %v478
      %v597 = vpop.f32.mrb[0].mxu0
      %v598 = vadd.f32 0.0, %v597
      %v599 = vpop.f32.mrb[0].mxu0
      %v600 = vpop.f32.mrb[0].mxu0
      %v601 = vadd.f32 0.0, %v600
      %v602 = vpop.f32.mrb[0].mxu0
      %603 = vmatprep.mubr.bf16.mxu0 0
      %604 = vmatmul.mubr.bf16.gmra.mrb[0].mxu0 %v479
      %v605 = vpop.f32.mrb[0].mxu0
      %v606 = vadd.f32 0.0, %v605
      %v607 = vpop.f32.mrb[0].mxu0
      %v608 = vpop.f32.mrb[0].mxu0
      %v609 = vadd.f32 0.0, %v608
      %v610 = vpop.f32.mrb[0].mxu0
      %611 = vmatprep.mubr.bf16.mxu0 0
      %612 = vmatmul.mubr.bf16.gmra.mrb[0].mxu0 %v480
      %v613 = vpop.f32.mrb[0].mxu0
      %v614 = vadd.f32 0.0, %v613
      %v615 = vpop.f32.mrb[0].mxu0
      %v616 = vpop.f32.mrb[0].mxu0
      %v617 = vadd.f32 0.0, %v616
      %v618 = vpop.f32.mrb[0].mxu0
      %619 = vmatprep.mubr.bf16.mxu0 0
      %620 = vmatmul.mubr.bf16.gmra.mrb[0].mxu0 %v481
      %v621 = vpop.f32.mrb[0].mxu0
      %v622 = vadd.f32 0.0, %v621
      %v623 = vpop.f32.mrb[0].mxu0
      %v624 = vpop.f32.mrb[0].mxu0
      %v625 = vadd.f32 0.0, %v624
      %v626 = vpop.f32.mrb[0].mxu0
      %627 = vmatprep.mubr.bf16.mxu0 0
      %628 = vmatmul.mubr.bf16.gmra.mrb[0].mxu0 %v482
      %v629 = vpop.f32.mrb[0].mxu0
      %v630 = vadd.f32 0.0, %v629
      %v631 = vpop.f32.mrb[0].mxu0
      %v632 = vpop.f32.mrb[0].mxu0
      %v633 = vadd.f32 0.0, %v632
      %v634 = vpop.f32.mrb[0].mxu0
      %635 = vdwg.mxu0
      %v652 = vunpack.c.l.b16 %v201
      %v653 = vunpack.c.l.b16 %v202
      %v654 = vunpack.c.l.b16 %v204
      %v655 = vunpack.c.l.b16 %v205
      %v656 = vunpack.c.l.b16 %v207
      %v657 = vunpack.c.l.b16 %v208
      %v658 = vunpack.c.l.b16 %v210
      %v659 = vunpack.c.l.b16 %v211
      %v660 = vunpack.c.l.b16 %v213
      %v661 = vunpack.c.l.b16 %v214
      %v662 = vunpack.c.l.b16 %v216
      %v663 = vunpack.c.l.b16 %v217
      %v664 = vunpack.c.l.b16 %v219
      %v665 = vunpack.c.l.b16 %v220
      %v666 = vunpack.c.l.b16 %v222
      %v667 = vunpack.c.l.b16 %v223
      %v668 = vpack.c.b16 %v653, %v652
      %v669 = vpack.c.b16 %v655, %v654
      %v670 = vpack.c.b16 %v657, %v656
      %v671 = vpack.c.b16 %v659, %v658
      %v672 = vpack.c.b16 %v661, %v660
      %v673 = vpack.c.b16 %v663, %v662
      %v674 = vpack.c.b16 %v665, %v664
      %v675 = vpack.c.b16 %v667, %v666
      %v700 = vunpack.c.l.b16 %v231
      %v701 = vunpack.c.l.b16 %v232
      %v702 = vunpack.c.l.b16 %v233
      %v703 = vunpack.c.l.b16 %v234
      %v704 = vunpack.c.l.b16 %v235
      %v705 = vunpack.c.l.b16 %v236
      %v706 = vunpack.c.l.b16 %v237
      %v707 = vunpack.c.l.b16 %v238
      %v708 = vunpack.c.l.b16 %v239
      %v709 = vunpack.c.l.b16 %v240
      %v710 = vunpack.c.l.b16 %v241
      %v711 = vunpack.c.l.b16 %v242
      %v712 = vunpack.c.l.b16 %v243
      %v713 = vunpack.c.l.b16 %v244
      %v714 = vunpack.c.l.b16 %v245
      %v715 = vunpack.c.l.b16 %v246
      %v716 = vpack.c.b16 %v701, %v700
      %v717 = vpack.c.b16 %v703, %v702
      %v718 = vpack.c.b16 %v705, %v704
      %v719 = vpack.c.b16 %v707, %v706
      %v720 = vpack.c.b16 %v709, %v708
      %v721 = vpack.c.b16 %v711, %v710
      %v722 = vpack.c.b16 %v713, %v712
      %v723 = vpack.c.b16 %v715, %v714
      %732 = vmatprep.subr.bf16.mxu0 0
      %733 = vmatpush1.bf16.msra.mxu0 %v716
      %734 = vmatprep.subr.bf16.mxu0 0
      %735 = vmatpush1.bf16.msra.mxu0 %v717
      %736 = vmatprep.subr.bf16.mxu0 0
      %737 = vmatpush1.bf16.msra.mxu0 %v718
      %738 = vmatprep.subr.bf16.mxu0 0
      %739 = vmatpush1.bf16.msra.mxu0 %v719
      %740 = vmatprep.subr.bf16.mxu0 0
      %741 = vmatpush1.bf16.msra.mxu0 %v720
      %742 = vmatprep.subr.bf16.mxu0 0
      %743 = vmatpush1.bf16.msra.mxu0 %v721
      %744 = vmatprep.subr.bf16.mxu0 0
      %745 = vmatpush1.bf16.msra.mxu0 %v722
      %746 = vmatprep.subr.bf16.mxu0 0
      %747 = vmatpush1.bf16.msra.mxu0 %v723
      %748 = vmatprep.subr.bf16.mxu0 0
      %749 = vmatpush1.bf16.msra.mxu0 0
      %750 = vmatprep.subr.bf16.mxu0 0
      %751 = vmatpush1.bf16.msra.mxu0 0
      %752 = vmatprep.subr.bf16.mxu0 0
      %753 = vmatpush1.bf16.msra.mxu0 0
      %754 = vmatprep.subr.bf16.mxu0 0
      %755 = vmatpush1.bf16.msra.mxu0 0
      %756 = vmatprep.subr.bf16.mxu0 0
      %757 = vmatpush1.bf16.msra.mxu0 0
      %758 = vmatprep.subr.bf16.mxu0 0
      %759 = vmatpush1.bf16.msra.mxu0 0
      %760 = vmatprep.subr.bf16.mxu0 0
      %761 = vmatpush1.bf16.msra.mxu0 0
      %762 = vmatprep.subr.bf16.mxu0 0
      %763 = vmatpush1.bf16.msra.mxu0 0
      %764 = vmatprep.mubr.bf16.mxu0 0
      %765 = vmatmul.mubr.bf16.gmra.mrb[0].mxu0 %v668
      %v766 = vpop.f32.mrb[0].mxu0
      %v767 = vadd.f32 %v574, %v766
      %v768 = vpop.f32.mrb[0].mxu0
      %v769 = vpop.f32.mrb[0].mxu0
      %v770 = vadd.f32 %v577, %v769
      %v771 = vpop.f32.mrb[0].mxu0
      %772 = vmatprep.mubr.bf16.mxu0 0
      %773 = vmatmul.mubr.bf16.gmra.mrb[0].mxu0 %v669
      %v774 = vpop.f32.mrb[0].mxu0
      %v775 = vadd.f32 %v582, %v774
      %v776 = vpop.f32.mrb[0].mxu0
      %v777 = vpop.f32.mrb[0].mxu0
      %v778 = vadd.f32 %v585, %v777
      %v779 = vpop.f32.mrb[0].mxu0
      %780 = vmatprep.mubr.bf16.mxu0 0
      %781 = vmatmul.mubr.bf16.gmra.mrb[0].mxu0 %v670
      %v782 = vpop.f32.mrb[0].mxu0
      %v783 = vadd.f32 %v590, %v782
      %v784 = vpop.f32.mrb[0].mxu0
      %v785 = vpop.f32.mrb[0].mxu0
      %v786 = vadd.f32 %v593, %v785
      %v787 = vpop.f32.mrb[0].mxu0
      %788 = vmatprep.mubr.bf16.mxu0 0
      %789 = vmatmul.mubr.bf16.gmra.mrb[0].mxu0 %v671
      %v790 = vpop.f32.mrb[0].mxu0
      %v791 = vadd.f32 %v598, %v790
      %v792 = vpop.f32.mrb[0].mxu0
      %v793 = vpop.f32.mrb[0].mxu0
      %v794 = vadd.f32 %v601, %v793
      %v795 = vpop.f32.mrb[0].mxu0
      %796 = vmatprep.mubr.bf16.mxu0 0
      %797 = vmatmul.mubr.bf16.gmra.mrb[0].mxu0 %v672
      %v798 = vpop.f32.mrb[0].mxu0
      %v799 = vadd.f32 %v606, %v798
      %v800 = vpop.f32.mrb[0].mxu0
      %v801 = vpop.f32.mrb[0].mxu0
      %v802 = vadd.f32 %v609, %v801
      %v803 = vpop.f32.mrb[0].mxu0
      %804 = vmatprep.mubr.bf16.mxu0 0
      %805 = vmatmul.mubr.bf16.gmra.mrb[0].mxu0 %v673
      %v806 = vpop.f32.mrb[0].mxu0
      %v807 = vadd.f32 %v614, %v806
      %v808 = vpop.f32.mrb[0].mxu0
      %v809 = vpop.f32.mrb[0].mxu0
      %v810 = vadd.f32 %v617, %v809
      %v811 = vpop.f32.mrb[0].mxu0
      %812 = vmatprep.mubr.bf16.mxu0 0
      %813 = vmatmul.mubr.bf16.gmra.mrb[0].mxu0 %v674
      %v814 = vpop.f32.mrb[0].mxu0
      %v815 = vadd.f32 %v622, %v814
      %v816 = vpop.f32.mrb[0].mxu0
      %v817 = vpop.f32.mrb[0].mxu0
      %v818 = vadd.f32 %v625, %v817
      %v819 = vpop.f32.mrb[0].mxu0
      %820 = vmatprep.mubr.bf16.mxu0 0
      %821 = vmatmul.mubr.bf16.gmra.mrb[0].mxu0 %v675
      %v822 = vpop.f32.mrb[0].mxu0
      %v823 = vadd.f32 %v630, %v822
      %v824 = vpop.f32.mrb[0].mxu0
      %v825 = vpop.f32.mrb[0].mxu0
      %v826 = vadd.f32 %v633, %v825
      %v827 = vpop.f32.mrb[0].mxu0
      %828 = vdwg.mxu0
      %vm837 = vcmask 1042432
      %vm838 = vcmask 1046532
      %vm839 = vmor %vm837, %vm838
      %v840 = vrot.slane %v201, 5
      %v841 = vrot.slane %v840, 4
      %v842 = vrot.slane %v202, 5
      %v843 = vsel %vm839, %v841, %v842
      %v844 = vrot.slane %v842, 4
      %v845 = vrot.slane %v203, 5
      %v846 = vsel %vm839, %v844, %v845
      %v847 = vrot.slane %v204, 5
      %v848 = vrot.slane %v847, 4
      %v849 = vrot.slane %v205, 5
      %v850 = vsel %vm839, %v848, %v849
      %v851 = vrot.slane %v849, 4
      %v852 = vrot.slane %v206, 5
      %v853 = vsel %vm839, %v851, %v852
      %v854 = vrot.slane %v207, 5
      %v855 = vrot.slane %v854, 4
      %v856 = vrot.slane %v208, 5
      %v857 = vsel %vm839, %v855, %v856
      %v858 = vrot.slane %v856, 4
      %v859 = vrot.slane %v209, 5
      %v860 = vsel %vm839, %v858, %v859
      %v861 = vrot.slane %v210, 5
      %v862 = vrot.slane %v861, 4
      %v863 = vrot.slane %v211, 5
      %v864 = vsel %vm839, %v862, %v863
      %v865 = vrot.slane %v863, 4
      %v866 = vrot.slane %v212, 5
      %v867 = vsel %vm839, %v865, %v866
      %v868 = vrot.slane %v213, 5
      %v869 = vrot.slane %v868, 4
      %v870 = vrot.slane %v214, 5
      %v871 = vsel %vm839, %v869, %v870
      %v872 = vrot.slane %v870, 4
      %v873 = vrot.slane %v215, 5
      %v874 = vsel %vm839, %v872, %v873
      %v875 = vrot.slane %v216, 5
      %v876 = vrot.slane %v875, 4
      %v877 = vrot.slane %v217, 5
      %v878 = vsel %vm839, %v876, %v877
      %v879 = vrot.slane %v877, 4
      %v880 = vrot.slane %v218, 5
      %v881 = vsel %vm839, %v879, %v880
      %v882 = vrot.slane %v219, 5
      %v883 = vrot.slane %v882, 4
      %v884 = vrot.slane %v220, 5
      %v885 = vsel %vm839, %v883, %v884
      %v886 = vrot.slane %v884, 4
      %v887 = vrot.slane %v221, 5
      %v888 = vsel %vm839, %v886, %v887
      %v889 = vrot.slane %v222, 5
      %v890 = vrot.slane %v889, 4
      %v891 = vrot.slane %v223, 5
      %v892 = vsel %vm839, %v890, %v891
      %v893 = vrot.slane %v891, 4
      %v894 = vrot.slane %v224, 5
      %v895 = vsel %vm839, %v893, %v894
      %s896 = scalar_lea.vmem %s1, 128
      %v897 = vld [vmem:[%s896] sm:$0xf]
      %v898 = vld [vmem:[%s896 + $0x4] sm:$0xf]
      %v899 = vld [vmem:[%s896 + $0x8] sm:$0xf]
      %v900 = vld [vmem:[%s896 + $0xc] sm:$0xf]
      %v901 = vld [vmem:[%s896 + $0x10] sm:$0xf]
      %v902 = vld [vmem:[%s896 + $0x14] sm:$0xf]
      %v903 = vld [vmem:[%s896 + $0x18] sm:$0xf]
      %v904 = vld [vmem:[%s896 + $0x1c] sm:$0xf]
      %v905 = vld [vmem:[%s896 + $0x20] sm:$0xf]
      %v906 = vld [vmem:[%s896 + $0x24] sm:$0xf]
      %v907 = vld [vmem:[%s896 + $0x28] sm:$0xf]
      %v908 = vld [vmem:[%s896 + $0x2c] sm:$0xf]
      %v909 = vld [vmem:[%s896 + $0x30] sm:$0xf]
      %v910 = vld [vmem:[%s896 + $0x34] sm:$0xf]
      %v911 = vld [vmem:[%s896 + $0x38] sm:$0xf]
      %v912 = vld [vmem:[%s896 + $0x3c] sm:$0xf]
      %v913 = vunpack.c.l.b16 %v843
      %v914 = vunpack.c.l.b16 %v846
      %v915 = vunpack.c.l.b16 %v850
      %v916 = vunpack.c.l.b16 %v853
      %v917 = vunpack.c.l.b16 %v857
      %v918 = vunpack.c.l.b16 %v860
      %v919 = vunpack.c.l.b16 %v864
      %v920 = vunpack.c.l.b16 %v867
      %v921 = vunpack.c.l.b16 %v871
      %v922 = vunpack.c.l.b16 %v874
      %v923 = vunpack.c.l.b16 %v878
      %v924 = vunpack.c.l.b16 %v881
      %v925 = vunpack.c.l.b16 %v885
      %v926 = vunpack.c.l.b16 %v888
      %v927 = vunpack.c.l.b16 %v892
      %v928 = vunpack.c.l.b16 %v895
      %v929 = vpack.c.b16 %v914, %v913
      %v930 = vpack.c.b16 %v916, %v915
      %v931 = vpack.c.b16 %v918, %v917
      %v932 = vpack.c.b16 %v920, %v919
      %v933 = vpack.c.b16 %v922, %v921
      %v934 = vpack.c.b16 %v924, %v923
      %v935 = vpack.c.b16 %v926, %v925
      %v936 = vpack.c.b16 %v928, %v927
      %v961 = vunpack.c.l.b16 %v897
      %v962 = vunpack.c.l.b16 %v898
      %v963 = vunpack.c.l.b16 %v899
      %v964 = vunpack.c.l.b16 %v900
      %v965 = vunpack.c.l.b16 %v901
      %v966 = vunpack.c.l.b16 %v902
      %v967 = vunpack.c.l.b16 %v903
      %v968 = vunpack.c.l.b16 %v904
      %v969 = vunpack.c.l.b16 %v905
      %v970 = vunpack.c.l.b16 %v906
      %v971 = vunpack.c.l.b16 %v907
      %v972 = vunpack.c.l.b16 %v908
      %v973 = vunpack.c.l.b16 %v909
      %v974 = vunpack.c.l.b16 %v910
      %v975 = vunpack.c.l.b16 %v911
      %v976 = vunpack.c.l.b16 %v912
      %v977 = vpack.c.b16 %v962, %v961
      %v978 = vpack.c.b16 %v964, %v963
      %v979 = vpack.c.b16 %v966, %v965
      %v980 = vpack.c.b16 %v968, %v967
      %v981 = vpack.c.b16 %v970, %v969
      %v982 = vpack.c.b16 %v972, %v971
      %v983 = vpack.c.b16 %v974, %v973
      %v984 = vpack.c.b16 %v976, %v975
      %993 = vmatprep.subr.bf16.mxu0 0
      %994 = vmatpush1.bf16.msra.mxu0 %v977
      %995 = vmatprep.subr.bf16.mxu0 0
      %996 = vmatpush1.bf16.msra.mxu0 %v978
      %997 = vmatprep.subr.bf16.mxu0 0
      %998 = vmatpush1.bf16.msra.mxu0 %v979
      %999 = vmatprep.subr.bf16.mxu0 0
      %1000 = vmatpush1.bf16.msra.mxu0 %v980
      %1001 = vmatprep.subr.bf16.mxu0 0
      %1002 = vmatpush1.bf16.msra.mxu0 %v981
      %1003 = vmatprep.subr.bf16.mxu0 0
      %1004 = vmatpush1.bf16.msra.mxu0 %v982
      %1005 = vmatprep.subr.bf16.mxu0 0
      %1006 = vmatpush1.bf16.msra.mxu0 %v983
      %1007 = vmatprep.subr.bf16.mxu0 0
      %1008 = vmatpush1.bf16.msra.mxu0 %v984
      %1009 = vmatprep.subr.bf16.mxu0 0
      %1010 = vmatpush1.bf16.msra.mxu0 0
      %1011 = vmatprep.subr.bf16.mxu0 0
      %1012 = vmatpush1.bf16.msra.mxu0 0
      %1013 = vmatprep.subr.bf16.mxu0 0
      %1014 = vmatpush1.bf16.msra.mxu0 0
      %1015 = vmatprep.subr.bf16.mxu0 0
      %1016 = vmatpush1.bf16.msra.mxu0 0
      %1017 = vmatprep.subr.bf16.mxu0 0
      %1018 = vmatpush1.bf16.msra.mxu0 0
      %1019 = vmatprep.subr.bf16.mxu0 0
      %1020 = vmatpush1.bf16.msra.mxu0 0
      %1021 = vmatprep.subr.bf16.mxu0 0
      %1022 = vmatpush1.bf16.msra.mxu0 0
      %1023 = vmatprep.subr.bf16.mxu0 0
      %1024 = vmatpush1.bf16.msra.mxu0 0
      %1025 = vmatprep.mubr.bf16.mxu0 0
      %1026 = vmatmul.mubr.bf16.gmra.mrb[0].mxu0 %v929
      %v1027 = vpop.f32.mrb[0].mxu0
      %v1028 = vadd.f32 0.0, %v1027
      %v1029 = vpop.f32.mrb[0].mxu0
      %v1030 = vpop.f32.mrb[0].mxu0
      %v1031 = vadd.f32 0.0, %v1030
      %v1032 = vpop.f32.mrb[0].mxu0
      %1033 = vmatprep.mubr.bf16.mxu0 0
      %1034 = vmatmul.mubr.bf16.gmra.mrb[0].mxu0 %v930
      %v1035 = vpop.f32.mrb[0].mxu0
      %v1036 = vadd.f32 0.0, %v1035
      %v1037 = vpop.f32.mrb[0].mxu0
      %v1038 = vpop.f32.mrb[0].mxu0
      %v1039 = vadd.f32 0.0, %v1038
      %v1040 = vpop.f32.mrb[0].mxu0
      %1041 = vmatprep.mubr.bf16.mxu0 0
      %1042 = vmatmul.mubr.bf16.gmra.mrb[0].mxu0 %v931
      %v1043 = vpop.f32.mrb[0].mxu0
      %v1044 = vadd.f32 0.0, %v1043
      %v1045 = vpop.f32.mrb[0].mxu0
      %v1046 = vpop.f32.mrb[0].mxu0
      %v1047 = vadd.f32 0.0, %v1046
      %v1048 = vpop.f32.mrb[0].mxu0
      %1049 = vmatprep.mubr.bf16.mxu0 0
      %1050 = vmatmul.mubr.bf16.gmra.mrb[0].mxu0 %v932
      %v1051 = vpop.f32.mrb[0].mxu0
      %v1052 = vadd.f32 0.0, %v1051
      %v1053 = vpop.f32.mrb[0].mxu0
      %v1054 = vpop.f32.mrb[0].mxu0
      %v1055 = vadd.f32 0.0, %v1054
      %v1056 = vpop.f32.mrb[0].mxu0
      %1057 = vmatprep.mubr.bf16.mxu0 0
      %1058 = vmatmul.mubr.bf16.gmra.mrb[0].mxu0 %v933
      %v1059 = vpop.f32.mrb[0].mxu0
      %v1060 = vadd.f32 0.0, %v1059
      %v1061 = vpop.f32.mrb[0].mxu0
      %v1062 = vpop.f32.mrb[0].mxu0
      %v1063 = vadd.f32 0.0, %v1062
      %v1064 = vpop.f32.mrb[0].mxu0
      %1065 = vmatprep.mubr.bf16.mxu0 0
      %1066 = vmatmul.mubr.bf16.gmra.mrb[0].mxu0 %v934
      %v1067 = vpop.f32.mrb[0].mxu0
      %v1068 = vadd.f32 0.0, %v1067
      %v1069 = vpop.f32.mrb[0].mxu0
      %v1070 = vpop.f32.mrb[0].mxu0
      %v1071 = vadd.f32 0.0, %v1070
      %v1072 = vpop.f32.mrb[0].mxu0
      %1073 = vmatprep.mubr.bf16.mxu0 0
      %1074 = vmatmul.mubr.bf16.gmra.mrb[0].mxu0 %v935
      %v1075 = vpop.f32.mrb[0].mxu0
      %v1076 = vadd.f32 0.0, %v1075
      %v1077 = vpop.f32.mrb[0].mxu0
      %v1078 = vpop.f32.mrb[0].mxu0
      %v1079 = vadd.f32 0.0, %v1078
      %v1080 = vpop.f32.mrb[0].mxu0
      %1081 = vmatprep.mubr.bf16.mxu0 0
      %1082 = vmatmul.mubr.bf16.gmra.mrb[0].mxu0 %v936
      %v1083 = vpop.f32.mrb[0].mxu0
      %v1084 = vadd.f32 0.0, %v1083
      %v1085 = vpop.f32.mrb[0].mxu0
      %v1086 = vpop.f32.mrb[0].mxu0
      %v1087 = vadd.f32 0.0, %v1086
      %v1088 = vpop.f32.mrb[0].mxu0
      %1089 = vdwg.mxu0
      %v1090 = vadd.f32 %v767, %v1028
      %v1091 = vadd.f32 %v770, %v1031
      %v1092 = vadd.f32 %v775, %v1036
      %v1093 = vadd.f32 %v778, %v1039
      %v1094 = vadd.f32 %v783, %v1044
      %v1095 = vadd.f32 %v786, %v1047
      %v1096 = vadd.f32 %v791, %v1052
      %v1097 = vadd.f32 %v794, %v1055
      %v1098 = vadd.f32 %v799, %v1060
      %v1099 = vadd.f32 %v802, %v1063
      %v1100 = vadd.f32 %v807, %v1068
      %v1101 = vadd.f32 %v810, %v1071
      %v1102 = vadd.f32 %v815, %v1076
      %v1103 = vadd.f32 %v818, %v1079
      %v1104 = vadd.f32 %v823, %v1084
      %v1105 = vadd.f32 %v826, %v1087
      %s1106 = scalar_lea.vmem %s1, 192
      %v1107 = vld [vmem:[%s1106] sm:$0xf]
      %v1108 = vld [vmem:[%s1106 + $0x4] sm:$0xf]
      %v1109 = vld [vmem:[%s1106 + $0x8] sm:$0xf]
      %v1110 = vld [vmem:[%s1106 + $0xc] sm:$0xf]
      %v1111 = vld [vmem:[%s1106 + $0x10] sm:$0xf]
      %v1112 = vld [vmem:[%s1106 + $0x14] sm:$0xf]
      %v1113 = vld [vmem:[%s1106 + $0x18] sm:$0xf]
      %v1114 = vld [vmem:[%s1106 + $0x1c] sm:$0xf]
      %v1115 = vld [vmem:[%s1106 + $0x20] sm:$0xf]
      %v1116 = vld [vmem:[%s1106 + $0x24] sm:$0xf]
      %v1117 = vld [vmem:[%s1106 + $0x28] sm:$0xf]
      %v1118 = vld [vmem:[%s1106 + $0x2c] sm:$0xf]
      %v1119 = vld [vmem:[%s1106 + $0x30] sm:$0xf]
      %v1120 = vld [vmem:[%s1106 + $0x34] sm:$0xf]
      %v1121 = vld [vmem:[%s1106 + $0x38] sm:$0xf]
      %v1122 = vld [vmem:[%s1106 + $0x3c] sm:$0xf]
      %v1125 = vunpack.c.l.b16 %v225
      %v1126 = vunpack.c.l.b16 %v226
      %v1127 = vpack.c.b16 %v1126, %v1125
      %v1145 = vunpack.c.l.b16 %v1107
      %v1146 = vunpack.c.l.b16 %v1108
      %v1147 = vunpack.c.l.b16 %v1109
      %v1148 = vunpack.c.l.b16 %v1110
      %v1149 = vunpack.c.l.b16 %v1111
      %v1150 = vunpack.c.l.b16 %v1112
      %v1151 = vunpack.c.l.b16 %v1113
      %v1152 = vunpack.c.l.b16 %v1114
      %v1153 = vunpack.c.l.b16 %v1115
      %v1154 = vunpack.c.l.b16 %v1116
      %v1155 = vunpack.c.l.b16 %v1117
      %v1156 = vunpack.c.l.b16 %v1118
      %v1157 = vunpack.c.l.b16 %v1119
      %v1158 = vunpack.c.l.b16 %v1120
      %v1159 = vunpack.c.l.b16 %v1121
      %v1160 = vunpack.c.l.b16 %v1122
      %v1161 = vpack.c.b16 %v1146, %v1145
      %v1162 = vpack.c.b16 %v1148, %v1147
      %v1163 = vpack.c.b16 %v1150, %v1149
      %v1164 = vpack.c.b16 %v1152, %v1151
      %v1165 = vpack.c.b16 %v1154, %v1153
      %v1166 = vpack.c.b16 %v1156, %v1155
      %v1167 = vpack.c.b16 %v1158, %v1157
      %v1168 = vpack.c.b16 %v1160, %v1159
      %1177 = vmatprep.subr.bf16.mxu0 0
      %1178 = vmatpush1.bf16.msra.mxu0 %v1161
      %1179 = vmatprep.subr.bf16.mxu0 0
      %1180 = vmatpush1.bf16.msra.mxu0 %v1162
      %1181 = vmatprep.subr.bf16.mxu0 0
      %1182 = vmatpush1.bf16.msra.mxu0 %v1163
      %1183 = vmatprep.subr.bf16.mxu0 0
      %1184 = vmatpush1.bf16.msra.mxu0 %v1164
      %1185 = vmatprep.subr.bf16.mxu0 0
      %1186 = vmatpush1.bf16.msra.mxu0 %v1165
      %1187 = vmatprep.subr.bf16.mxu0 0
      %1188 = vmatpush1.bf16.msra.mxu0 %v1166
      %1189 = vmatprep.subr.bf16.mxu0 0
      %1190 = vmatpush1.bf16.msra.mxu0 %v1167
      %1191 = vmatprep.subr.bf16.mxu0 0
      %1192 = vmatpush1.bf16.msra.mxu0 %v1168
      %1193 = vmatprep.subr.bf16.mxu0 0
      %1194 = vmatpush1.bf16.msra.mxu0 0
      %1195 = vmatprep.subr.bf16.mxu0 0
      %1196 = vmatpush1.bf16.msra.mxu0 0
      %1197 = vmatprep.subr.bf16.mxu0 0
      %1198 = vmatpush1.bf16.msra.mxu0 0
      %1199 = vmatprep.subr.bf16.mxu0 0
      %1200 = vmatpush1.bf16.msra.mxu0 0
      %1201 = vmatprep.subr.bf16.mxu0 0
      %1202 = vmatpush1.bf16.msra.mxu0 0
      %1203 = vmatprep.subr.bf16.mxu0 0
      %1204 = vmatpush1.bf16.msra.mxu0 0
      %1205 = vmatprep.subr.bf16.mxu0 0
      %1206 = vmatpush1.bf16.msra.mxu0 0
      %1207 = vmatprep.subr.bf16.mxu0 0
      %1208 = vmatpush1.bf16.msra.mxu0 0
      %1209 = vmatprep.mubr.bf16.mxu0 0
      %1210 = vmatmul.mubr.bf16.gmra.mrb[0].mxu0 %v669
      %v1211 = vpop.f32.mrb[0].mxu0
      %v1212 = vadd.f32 0.0, %v1211
      %v1213 = vpop.f32.mrb[0].mxu0
      %v1214 = vpop.f32.mrb[0].mxu0
      %v1215 = vadd.f32 0.0, %v1214
      %v1216 = vpop.f32.mrb[0].mxu0
      %1217 = vmatprep.mubr.bf16.mxu0 0
      %1218 = vmatmul.mubr.bf16.gmra.mrb[0].mxu0 %v670
      %v1219 = vpop.f32.mrb[0].mxu0
      %v1220 = vadd.f32 0.0, %v1219
      %v1221 = vpop.f32.mrb[0].mxu0
      %v1222 = vpop.f32.mrb[0].mxu0
      %v1223 = vadd.f32 0.0, %v1222
      %v1224 = vpop.f32.mrb[0].mxu0
      %1225 = vmatprep.mubr.bf16.mxu0 0
      %1226 = vmatmul.mubr.bf16.gmra.mrb[0].mxu0 %v671
      %v1227 = vpop.f32.mrb[0].mxu0
      %v1228 = vadd.f32 0.0, %v1227
      %v1229 = vpop.f32.mrb[0].mxu0
      %v1230 = vpop.f32.mrb[0].mxu0
      %v1231 = vadd.f32 0.0, %v1230
      %v1232 = vpop.f32.mrb[0].mxu0
      %1233 = vmatprep.mubr.bf16.mxu0 0
      %1234 = vmatmul.mubr.bf16.gmra.mrb[0].mxu0 %v672
      %v1235 = vpop.f32.mrb[0].mxu0
      %v1236 = vadd.f32 0.0, %v1235
      %v1237 = vpop.f32.mrb[0].mxu0
      %v1238 = vpop.f32.mrb[0].mxu0
      %v1239 = vadd.f32 0.0, %v1238
      %v1240 = vpop.f32.mrb[0].mxu0
      %1241 = vmatprep.mubr.bf16.mxu0 0
      %1242 = vmatmul.mubr.bf16.gmra.mrb[0].mxu0 %v673
      %v1243 = vpop.f32.mrb[0].mxu0
      %v1244 = vadd.f32 0.0, %v1243
      %v1245 = vpop.f32.mrb[0].mxu0
      %v1246 = vpop.f32.mrb[0].mxu0
      %v1247 = vadd.f32 0.0, %v1246
      %v1248 = vpop.f32.mrb[0].mxu0
      %1249 = vmatprep.mubr.bf16.mxu0 0
      %1250 = vmatmul.mubr.bf16.gmra.mrb[0].mxu0 %v674
      %v1251 = vpop.f32.mrb[0].mxu0
      %v1252 = vadd.f32 0.0, %v1251
      %v1253 = vpop.f32.mrb[0].mxu0
      %v1254 = vpop.f32.mrb[0].mxu0
      %v1255 = vadd.f32 0.0, %v1254
      %v1256 = vpop.f32.mrb[0].mxu0
      %1257 = vmatprep.mubr.bf16.mxu0 0
      %1258 = vmatmul.mubr.bf16.gmra.mrb[0].mxu0 %v675
      %v1259 = vpop.f32.mrb[0].mxu0
      %v1260 = vadd.f32 0.0, %v1259
      %v1261 = vpop.f32.mrb[0].mxu0
      %v1262 = vpop.f32.mrb[0].mxu0
      %v1263 = vadd.f32 0.0, %v1262
      %v1264 = vpop.f32.mrb[0].mxu0
      %1265 = vmatprep.mubr.bf16.mxu0 0
      %1266 = vmatmul.mubr.bf16.gmra.mrb[0].mxu0 %v1127
      %v1267 = vpop.f32.mrb[0].mxu0
      %v1268 = vadd.f32 0.0, %v1267
      %v1269 = vpop.f32.mrb[0].mxu0
      %v1270 = vpop.f32.mrb[0].mxu0
      %v1271 = vadd.f32 0.0, %v1270
      %v1272 = vpop.f32.mrb[0].mxu0
      %1273 = vdwg.mxu0
      %v1274 = vadd.f32 %v1090, %v1212
      %v1275 = vadd.f32 %v1091, %v1215
      %v1276 = vadd.f32 %v1092, %v1220
      %v1277 = vadd.f32 %v1093, %v1223
      %v1278 = vadd.f32 %v1094, %v1228
      %v1279 = vadd.f32 %v1095, %v1231
      %v1280 = vadd.f32 %v1096, %v1236
      %v1281 = vadd.f32 %v1097, %v1239
      %v1282 = vadd.f32 %v1098, %v1244
      %v1283 = vadd.f32 %v1099, %v1247
      %v1284 = vadd.f32 %v1100, %v1252
      %v1285 = vadd.f32 %v1101, %v1255
      %v1286 = vadd.f32 %v1102, %v1260
      %v1287 = vadd.f32 %v1103, %v1263
      %v1288 = vadd.f32 %v1104, %v1268
      %v1289 = vadd.f32 %v1105, %v1271
      %v1291 = vshrl.u32 %v225, 16
      %v1293 = vrot.slane %v1291, 4
      %v1294 = vshll.u32 %v225, 16
      %v1296 = vrot.slane %v1294, 5
      %v1297 = vor.u32 %v1293, %v1296
      %v1298 = vrot.slane %v1297, 4
      %v1300 = vshll.u32 %v226, 16
      %v1302 = vrot.slane %v1300, 5
      %v1303 = vsel %vm249, %v1298, %v1302
      %v1304 = vshrl.u32 %v226, 16
      %v1306 = vrot.slane %v1304, 4
      %v1307 = vor.u32 %v1306, %v1302
      %v1308 = vrot.slane %v1307, 4
      %v1310 = vshll.u32 %v227, 16
      %v1312 = vrot.slane %v1310, 5
      %v1313 = vsel %vm249, %v1308, %v1312
      %s1314 = scalar_lea.vmem %s1, 256
      %v1315 = vld [vmem:[%s1314] sm:$0xf]
      %v1316 = vld [vmem:[%s1314 + $0x4] sm:$0xf]
      %v1317 = vld [vmem:[%s1314 + $0x8] sm:$0xf]
      %v1318 = vld [vmem:[%s1314 + $0xc] sm:$0xf]
      %v1319 = vld [vmem:[%s1314 + $0x10] sm:$0xf]
      %v1320 = vld [vmem:[%s1314 + $0x14] sm:$0xf]
      %v1321 = vld [vmem:[%s1314 + $0x18] sm:$0xf]
      %v1322 = vld [vmem:[%s1314 + $0x1c] sm:$0xf]
      %v1323 = vld [vmem:[%s1314 + $0x20] sm:$0xf]
      %v1324 = vld [vmem:[%s1314 + $0x24] sm:$0xf]
      %v1325 = vld [vmem:[%s1314 + $0x28] sm:$0xf]
      %v1326 = vld [vmem:[%s1314 + $0x2c] sm:$0xf]
      %v1327 = vld [vmem:[%s1314 + $0x30] sm:$0xf]
      %v1328 = vld [vmem:[%s1314 + $0x34] sm:$0xf]
      %v1329 = vld [vmem:[%s1314 + $0x38] sm:$0xf]
      %v1330 = vld [vmem:[%s1314 + $0x3c] sm:$0xf]
      %v1331 = vunpack.c.l.b16 %v1303
      %v1332 = vunpack.c.l.b16 %v1313
      %v1333 = vpack.c.b16 %v1332, %v1331
      %v1351 = vunpack.c.l.b16 %v1315
      %v1352 = vunpack.c.l.b16 %v1316
      %v1353 = vunpack.c.l.b16 %v1317
      %v1354 = vunpack.c.l.b16 %v1318
      %v1355 = vunpack.c.l.b16 %v1319
      %v1356 = vunpack.c.l.b16 %v1320
      %v1357 = vunpack.c.l.b16 %v1321
      %v1358 = vunpack.c.l.b16 %v1322
      %v1359 = vunpack.c.l.b16 %v1323
      %v1360 = vunpack.c.l.b16 %v1324
      %v1361 = vunpack.c.l.b16 %v1325
      %v1362 = vunpack.c.l.b16 %v1326
      %v1363 = vunpack.c.l.b16 %v1327
      %v1364 = vunpack.c.l.b16 %v1328
      %v1365 = vunpack.c.l.b16 %v1329
      %v1366 = vunpack.c.l.b16 %v1330
      %v1367 = vpack.c.b16 %v1352, %v1351
      %v1368 = vpack.c.b16 %v1354, %v1353
      %v1369 = vpack.c.b16 %v1356, %v1355
      %v1370 = vpack.c.b16 %v1358, %v1357
      %v1371 = vpack.c.b16 %v1360, %v1359
      %v1372 = vpack.c.b16 %v1362, %v1361
      %v1373 = vpack.c.b16 %v1364, %v1363
      %v1374 = vpack.c.b16 %v1366, %v1365
      %1383 = vmatprep.subr.bf16.mxu0 0
      %1384 = vmatpush1.bf16.msra.mxu0 %v1367
      %1385 = vmatprep.subr.bf16.mxu0 0
      %1386 = vmatpush1.bf16.msra.mxu0 %v1368
      %1387 = vmatprep.subr.bf16.mxu0 0
      %1388 = vmatpush1.bf16.msra.mxu0 %v1369
      %1389 = vmatprep.subr.bf16.mxu0 0
      %1390 = vmatpush1.bf16.msra.mxu0 %v1370
      %1391 = vmatprep.subr.bf16.mxu0 0
      %1392 = vmatpush1.bf16.msra.mxu0 %v1371
      %1393 = vmatprep.subr.bf16.mxu0 0
      %1394 = vmatpush1.bf16.msra.mxu0 %v1372
      %1395 = vmatprep.subr.bf16.mxu0 0
      %1396 = vmatpush1.bf16.msra.mxu0 %v1373
      %1397 = vmatprep.subr.bf16.mxu0 0
      %1398 = vmatpush1.bf16.msra.mxu0 %v1374
      %1399 = vmatprep.subr.bf16.mxu0 0
      %1400 = vmatpush1.bf16.msra.mxu0 0
      %1401 = vmatprep.subr.bf16.mxu0 0
      %1402 = vmatpush1.bf16.msra.mxu0 0
      %1403 = vmatprep.subr.bf16.mxu0 0
      %1404 = vmatpush1.bf16.msra.mxu0 0
      %1405 = vmatprep.subr.bf16.mxu0 0
      %1406 = vmatpush1.bf16.msra.mxu0 0
      %1407 = vmatprep.subr.bf16.mxu0 0
      %1408 = vmatpush1.bf16.msra.mxu0 0
      %1409 = vmatprep.subr.bf16.mxu0 0
      %1410 = vmatpush1.bf16.msra.mxu0 0
      %1411 = vmatprep.subr.bf16.mxu0 0
      %1412 = vmatpush1.bf16.msra.mxu0 0
      %1413 = vmatprep.subr.bf16.mxu0 0
      %1414 = vmatpush1.bf16.msra.mxu0 0
      %1415 = vmatprep.mubr.bf16.mxu0 0
      %1416 = vmatmul.mubr.bf16.gmra.mrb[0].mxu0 %v476
      %v1417 = vpop.f32.mrb[0].mxu0
      %v1418 = vadd.f32 0.0, %v1417
      %v1419 = vpop.f32.mrb[0].mxu0
      %v1420 = vpop.f32.mrb[0].mxu0
      %v1421 = vadd.f32 0.0, %v1420
      %v1422 = vpop.f32.mrb[0].mxu0
      %1423 = vmatprep.mubr.bf16.mxu0 0
      %1424 = vmatmul.mubr.bf16.gmra.mrb[0].mxu0 %v477
      %v1425 = vpop.f32.mrb[0].mxu0
      %v1426 = vadd.f32 0.0, %v1425
      %v1427 = vpop.f32.mrb[0].mxu0
      %v1428 = vpop.f32.mrb[0].mxu0
      %v1429 = vadd.f32 0.0, %v1428
      %v1430 = vpop.f32.mrb[0].mxu0
      %1431 = vmatprep.mubr.bf16.mxu0 0
      %1432 = vmatmul.mubr.bf16.gmra.mrb[0].mxu0 %v478
      %v1433 = vpop.f32.mrb[0].mxu0
      %v1434 = vadd.f32 0.0, %v1433
      %v1435 = vpop.f32.mrb[0].mxu0
      %v1436 = vpop.f32.mrb[0].mxu0
      %v1437 = vadd.f32 0.0, %v1436
      %v1438 = vpop.f32.mrb[0].mxu0
      %1439 = vmatprep.mubr.bf16.mxu0 0
      %1440 = vmatmul.mubr.bf16.gmra.mrb[0].mxu0 %v479
      %v1441 = vpop.f32.mrb[0].mxu0
      %v1442 = vadd.f32 0.0, %v1441
      %v1443 = vpop.f32.mrb[0].mxu0
      %v1444 = vpop.f32.mrb[0].mxu0
      %v1445 = vadd.f32 0.0, %v1444
      %v1446 = vpop.f32.mrb[0].mxu0
      %1447 = vmatprep.mubr.bf16.mxu0 0
      %1448 = vmatmul.mubr.bf16.gmra.mrb[0].mxu0 %v480
      %v1449 = vpop.f32.mrb[0].mxu0
      %v1450 = vadd.f32 0.0, %v1449
      %v1451 = vpop.f32.mrb[0].mxu0
      %v1452 = vpop.f32.mrb[0].mxu0
      %v1453 = vadd.f32 0.0, %v1452
      %v1454 = vpop.f32.mrb[0].mxu0
      %1455 = vmatprep.mubr.bf16.mxu0 0
      %1456 = vmatmul.mubr.bf16.gmra.mrb[0].mxu0 %v481
      %v1457 = vpop.f32.mrb[0].mxu0
      %v1458 = vadd.f32 0.0, %v1457
      %v1459 = vpop.f32.mrb[0].mxu0
      %v1460 = vpop.f32.mrb[0].mxu0
      %v1461 = vadd.f32 0.0, %v1460
      %v1462 = vpop.f32.mrb[0].mxu0
      %1463 = vmatprep.mubr.bf16.mxu0 0
      %1464 = vmatmul.mubr.bf16.gmra.mrb[0].mxu0 %v482
      %v1465 = vpop.f32.mrb[0].mxu0
      %v1466 = vadd.f32 0.0, %v1465
      %v1467 = vpop.f32.mrb[0].mxu0
      %v1468 = vpop.f32.mrb[0].mxu0
      %v1469 = vadd.f32 0.0, %v1468
      %v1470 = vpop.f32.mrb[0].mxu0
      %1471 = vmatprep.mubr.bf16.mxu0 0
      %1472 = vmatmul.mubr.bf16.gmra.mrb[0].mxu0 %v1333
      %v1473 = vpop.f32.mrb[0].mxu0
      %v1474 = vadd.f32 0.0, %v1473
      %v1475 = vpop.f32.mrb[0].mxu0
      %v1476 = vpop.f32.mrb[0].mxu0
      %v1477 = vadd.f32 0.0, %v1476
      %v1478 = vpop.f32.mrb[0].mxu0
      %1479 = vdwg.mxu0
      %v1480 = vadd.f32 %v1274, %v1418
      %v1481 = vadd.f32 %v1275, %v1421
      %v1482 = vadd.f32 %v1276, %v1426
      %v1483 = vadd.f32 %v1277, %v1429
      %v1484 = vadd.f32 %v1278, %v1434
      %v1485 = vadd.f32 %v1279, %v1437
      %v1486 = vadd.f32 %v1280, %v1442
      %v1487 = vadd.f32 %v1281, %v1445
      %v1488 = vadd.f32 %v1282, %v1450
      %v1489 = vadd.f32 %v1283, %v1453
      %v1490 = vadd.f32 %v1284, %v1458
      %v1491 = vadd.f32 %v1285, %v1461
      %v1492 = vadd.f32 %v1286, %v1466
      %v1493 = vadd.f32 %v1287, %v1469
      %v1494 = vadd.f32 %v1288, %v1474
      %v1495 = vadd.f32 %v1289, %v1477
      %v1497 = vrot.slane %v225, 5
      %v1498 = vrot.slane %v1497, 4
      %v1499 = vrot.slane %v226, 5
      %v1500 = vsel %vm839, %v1498, %v1499
      %v1501 = vrot.slane %v1499, 4
      %v1502 = vrot.slane %v227, 5
      %v1503 = vsel %vm839, %v1501, %v1502
      %s1504 = scalar_lea.vmem %s1, 320
      %v1505 = vld [vmem:[%s1504] sm:$0xf]
      %v1506 = vld [vmem:[%s1504 + $0x4] sm:$0xf]
      %v1507 = vld [vmem:[%s1504 + $0x8] sm:$0xf]
      %v1508 = vld [vmem:[%s1504 + $0xc] sm:$0xf]
      %v1509 = vld [vmem:[%s1504 + $0x10] sm:$0xf]
      %v1510 = vld [vmem:[%s1504 + $0x14] sm:$0xf]
      %v1511 = vld [vmem:[%s1504 + $0x18] sm:$0xf]
      %v1512 = vld [vmem:[%s1504 + $0x1c] sm:$0xf]
      %v1513 = vld [vmem:[%s1504 + $0x20] sm:$0xf]
      %v1514 = vld [vmem:[%s1504 + $0x24] sm:$0xf]
      %v1515 = vld [vmem:[%s1504 + $0x28] sm:$0xf]
      %v1516 = vld [vmem:[%s1504 + $0x2c] sm:$0xf]
      %v1517 = vld [vmem:[%s1504 + $0x30] sm:$0xf]
      %v1518 = vld [vmem:[%s1504 + $0x34] sm:$0xf]
      %v1519 = vld [vmem:[%s1504 + $0x38] sm:$0xf]
      %v1520 = vld [vmem:[%s1504 + $0x3c] sm:$0xf]
      %v1521 = vunpack.c.l.b16 %v1500
      %v1522 = vunpack.c.l.b16 %v1503
      %v1523 = vpack.c.b16 %v1522, %v1521
      %v1541 = vunpack.c.l.b16 %v1505
      %v1542 = vunpack.c.l.b16 %v1506
      %v1543 = vunpack.c.l.b16 %v1507
      %v1544 = vunpack.c.l.b16 %v1508
      %v1545 = vunpack.c.l.b16 %v1509
      %v1546 = vunpack.c.l.b16 %v1510
      %v1547 = vunpack.c.l.b16 %v1511
      %v1548 = vunpack.c.l.b16 %v1512
      %v1549 = vunpack.c.l.b16 %v1513
      %v1550 = vunpack.c.l.b16 %v1514
      %v1551 = vunpack.c.l.b16 %v1515
      %v1552 = vunpack.c.l.b16 %v1516
      %v1553 = vunpack.c.l.b16 %v1517
      %v1554 = vunpack.c.l.b16 %v1518
      %v1555 = vunpack.c.l.b16 %v1519
      %v1556 = vunpack.c.l.b16 %v1520
      %v1557 = vpack.c.b16 %v1542, %v1541
      %v1558 = vpack.c.b16 %v1544, %v1543
      %v1559 = vpack.c.b16 %v1546, %v1545
      %v1560 = vpack.c.b16 %v1548, %v1547
      %v1561 = vpack.c.b16 %v1550, %v1549
      %v1562 = vpack.c.b16 %v1552, %v1551
      %v1563 = vpack.c.b16 %v1554, %v1553
      %v1564 = vpack.c.b16 %v1556, %v1555
      %1573 = vmatprep.subr.bf16.mxu0 0
      %1574 = vmatpush1.bf16.msra.mxu0 %v1557
      %1575 = vmatprep.subr.bf16.mxu0 0
      %1576 = vmatpush1.bf16.msra.mxu0 %v1558
      %1577 = vmatprep.subr.bf16.mxu0 0
      %1578 = vmatpush1.bf16.msra.mxu0 %v1559
      %1579 = vmatprep.subr.bf16.mxu0 0
      %1580 = vmatpush1.bf16.msra.mxu0 %v1560
      %1581 = vmatprep.subr.bf16.mxu0 0
      %1582 = vmatpush1.bf16.msra.mxu0 %v1561
      %1583 = vmatprep.subr.bf16.mxu0 0
      %1584 = vmatpush1.bf16.msra.mxu0 %v1562
      %1585 = vmatprep.subr.bf16.mxu0 0
      %1586 = vmatpush1.bf16.msra.mxu0 %v1563
      %1587 = vmatprep.subr.bf16.mxu0 0
      %1588 = vmatpush1.bf16.msra.mxu0 %v1564
      %1589 = vmatprep.subr.bf16.mxu0 0
      %1590 = vmatpush1.bf16.msra.mxu0 0
      %1591 = vmatprep.subr.bf16.mxu0 0
      %1592 = vmatpush1.bf16.msra.mxu0 0
      %1593 = vmatprep.subr.bf16.mxu0 0
      %1594 = vmatpush1.bf16.msra.mxu0 0
      %1595 = vmatprep.subr.bf16.mxu0 0
      %1596 = vmatpush1.bf16.msra.mxu0 0
      %1597 = vmatprep.subr.bf16.mxu0 0
      %1598 = vmatpush1.bf16.msra.mxu0 0
      %1599 = vmatprep.subr.bf16.mxu0 0
      %1600 = vmatpush1.bf16.msra.mxu0 0
      %1601 = vmatprep.subr.bf16.mxu0 0
      %1602 = vmatpush1.bf16.msra.mxu0 0
      %1603 = vmatprep.subr.bf16.mxu0 0
      %1604 = vmatpush1.bf16.msra.mxu0 0
      %1605 = vmatprep.mubr.bf16.mxu0 0
      %1606 = vmatmul.mubr.bf16.gmra.mrb[0].mxu0 %v930
      %v1607 = vpop.f32.mrb[0].mxu0
      %v1608 = vadd.f32 0.0, %v1607
      %v1609 = vpop.f32.mrb[0].mxu0
      %v1610 = vpop.f32.mrb[0].mxu0
      %v1611 = vadd.f32 0.0, %v1610
      %v1612 = vpop.f32.mrb[0].mxu0
      %1613 = vmatprep.mubr.bf16.mxu0 0
      %1614 = vmatmul.mubr.bf16.gmra.mrb[0].mxu0 %v931
      %v1615 = vpop.f32.mrb[0].mxu0
      %v1616 = vadd.f32 0.0, %v1615
      %v1617 = vpop.f32.mrb[0].mxu0
      %v1618 = vpop.f32.mrb[0].mxu0
      %v1619 = vadd.f32 0.0, %v1618
      %v1620 = vpop.f32.mrb[0].mxu0
      %1621 = vmatprep.mubr.bf16.mxu0 0
      %1622 = vmatmul.mubr.bf16.gmra.mrb[0].mxu0 %v932
      %v1623 = vpop.f32.mrb[0].mxu0
      %v1624 = vadd.f32 0.0, %v1623
      %v1625 = vpop.f32.mrb[0].mxu0
      %v1626 = vpop.f32.mrb[0].mxu0
      %v1627 = vadd.f32 0.0, %v1626
      %v1628 = vpop.f32.mrb[0].mxu0
      %1629 = vmatprep.mubr.bf16.mxu0 0
      %1630 = vmatmul.mubr.bf16.gmra.mrb[0].mxu0 %v933
      %v1631 = vpop.f32.mrb[0].mxu0
      %v1632 = vadd.f32 0.0, %v1631
      %v1633 = vpop.f32.mrb[0].mxu0
      %v1634 = vpop.f32.mrb[0].mxu0
      %v1635 = vadd.f32 0.0, %v1634
      %v1636 = vpop.f32.mrb[0].mxu0
      %1637 = vmatprep.mubr.bf16.mxu0 0
      %1638 = vmatmul.mubr.bf16.gmra.mrb[0].mxu0 %v934
      %v1639 = vpop.f32.mrb[0].mxu0
      %v1640 = vadd.f32 0.0, %v1639
      %v1641 = vpop.f32.mrb[0].mxu0
      %v1642 = vpop.f32.mrb[0].mxu0
      %v1643 = vadd.f32 0.0, %v1642
      %v1644 = vpop.f32.mrb[0].mxu0
      %1645 = vmatprep.mubr.bf16.mxu0 0
      %1646 = vmatmul.mubr.bf16.gmra.mrb[0].mxu0 %v935
      %v1647 = vpop.f32.mrb[0].mxu0
      %v1648 = vadd.f32 0.0, %v1647
      %v1649 = vpop.f32.mrb[0].mxu0
      %v1650 = vpop.f32.mrb[0].mxu0
      %v1651 = vadd.f32 0.0, %v1650
      %v1652 = vpop.f32.mrb[0].mxu0
      %1653 = vmatprep.mubr.bf16.mxu0 0
      %1654 = vmatmul.mubr.bf16.gmra.mrb[0].mxu0 %v936
      %v1655 = vpop.f32.mrb[0].mxu0
      %v1656 = vadd.f32 0.0, %v1655
      %v1657 = vpop.f32.mrb[0].mxu0
      %v1658 = vpop.f32.mrb[0].mxu0
      %v1659 = vadd.f32 0.0, %v1658
      %v1660 = vpop.f32.mrb[0].mxu0
      %1661 = vmatprep.mubr.bf16.mxu0 0
      %1662 = vmatmul.mubr.bf16.gmra.mrb[0].mxu0 %v1523
      %v1663 = vpop.f32.mrb[0].mxu0
      %v1664 = vadd.f32 0.0, %v1663
      %v1665 = vpop.f32.mrb[0].mxu0
      %v1666 = vpop.f32.mrb[0].mxu0
      %v1667 = vadd.f32 0.0, %v1666
      %v1668 = vpop.f32.mrb[0].mxu0
      %1669 = vdwg.mxu0
      %v1670 = vadd.f32 %v1480, %v1608
      %v1671 = vadd.f32 %v1481, %v1611
      %v1672 = vadd.f32 %v1482, %v1616
      %v1673 = vadd.f32 %v1483, %v1619
      %v1674 = vadd.f32 %v1484, %v1624
      %v1675 = vadd.f32 %v1485, %v1627
      %v1676 = vadd.f32 %v1486, %v1632
      %v1677 = vadd.f32 %v1487, %v1635
      %v1678 = vadd.f32 %v1488, %v1640
      %v1679 = vadd.f32 %v1489, %v1643
      %v1680 = vadd.f32 %v1490, %v1648
      %v1681 = vadd.f32 %v1491, %v1651
      %v1682 = vadd.f32 %v1492, %v1656
      %v1683 = vadd.f32 %v1493, %v1659
      %v1684 = vadd.f32 %v1494, %v1664
      %v1685 = vadd.f32 %v1495, %v1667
      %s1686 = scalar_lea.vmem %s1, 384
      %v1687 = vld [vmem:[%s1686] sm:$0xf]
      %v1688 = vld [vmem:[%s1686 + $0x4] sm:$0xf]
      %v1689 = vld [vmem:[%s1686 + $0x8] sm:$0xf]
      %v1690 = vld [vmem:[%s1686 + $0xc] sm:$0xf]
      %v1691 = vld [vmem:[%s1686 + $0x10] sm:$0xf]
      %v1692 = vld [vmem:[%s1686 + $0x14] sm:$0xf]
      %v1693 = vld [vmem:[%s1686 + $0x18] sm:$0xf]
      %v1694 = vld [vmem:[%s1686 + $0x1c] sm:$0xf]
      %v1695 = vld [vmem:[%s1686 + $0x20] sm:$0xf]
      %v1696 = vld [vmem:[%s1686 + $0x24] sm:$0xf]
      %v1697 = vld [vmem:[%s1686 + $0x28] sm:$0xf]
      %v1698 = vld [vmem:[%s1686 + $0x2c] sm:$0xf]
      %v1699 = vld [vmem:[%s1686 + $0x30] sm:$0xf]
      %v1700 = vld [vmem:[%s1686 + $0x34] sm:$0xf]
      %v1701 = vld [vmem:[%s1686 + $0x38] sm:$0xf]
      %v1702 = vld [vmem:[%s1686 + $0x3c] sm:$0xf]
      %v1705 = vunpack.c.l.b16 %v228
      %v1706 = vunpack.c.l.b16 %v229
      %v1707 = vpack.c.b16 %v1706, %v1705
      %v1725 = vunpack.c.l.b16 %v1687
      %v1726 = vunpack.c.l.b16 %v1688
      %v1727 = vunpack.c.l.b16 %v1689
      %v1728 = vunpack.c.l.b16 %v1690
      %v1729 = vunpack.c.l.b16 %v1691
      %v1730 = vunpack.c.l.b16 %v1692
      %v1731 = vunpack.c.l.b16 %v1693
      %v1732 = vunpack.c.l.b16 %v1694
      %v1733 = vunpack.c.l.b16 %v1695
      %v1734 = vunpack.c.l.b16 %v1696
      %v1735 = vunpack.c.l.b16 %v1697
      %v1736 = vunpack.c.l.b16 %v1698
      %v1737 = vunpack.c.l.b16 %v1699
      %v1738 = vunpack.c.l.b16 %v1700
      %v1739 = vunpack.c.l.b16 %v1701
      %v1740 = vunpack.c.l.b16 %v1702
      %v1741 = vpack.c.b16 %v1726, %v1725
      %v1742 = vpack.c.b16 %v1728, %v1727
      %v1743 = vpack.c.b16 %v1730, %v1729
      %v1744 = vpack.c.b16 %v1732, %v1731
      %v1745 = vpack.c.b16 %v1734, %v1733
      %v1746 = vpack.c.b16 %v1736, %v1735
      %v1747 = vpack.c.b16 %v1738, %v1737
      %v1748 = vpack.c.b16 %v1740, %v1739
      %1757 = vmatprep.subr.bf16.mxu0 0
      %1758 = vmatpush1.bf16.msra.mxu0 %v1741
      %1759 = vmatprep.subr.bf16.mxu0 0
      %1760 = vmatpush1.bf16.msra.mxu0 %v1742
      %1761 = vmatprep.subr.bf16.mxu0 0
      %1762 = vmatpush1.bf16.msra.mxu0 %v1743
      %1763 = vmatprep.subr.bf16.mxu0 0
      %1764 = vmatpush1.bf16.msra.mxu0 %v1744
      %1765 = vmatprep.subr.bf16.mxu0 0
      %1766 = vmatpush1.bf16.msra.mxu0 %v1745
      %1767 = vmatprep.subr.bf16.mxu0 0
      %1768 = vmatpush1.bf16.msra.mxu0 %v1746
      %1769 = vmatprep.subr.bf16.mxu0 0
      %1770 = vmatpush1.bf16.msra.mxu0 %v1747
      %1771 = vmatprep.subr.bf16.mxu0 0
      %1772 = vmatpush1.bf16.msra.mxu0 %v1748
      %1773 = vmatprep.subr.bf16.mxu0 0
      %1774 = vmatpush1.bf16.msra.mxu0 0
      %1775 = vmatprep.subr.bf16.mxu0 0
      %1776 = vmatpush1.bf16.msra.mxu0 0
      %1777 = vmatprep.subr.bf16.mxu0 0
      %1778 = vmatpush1.bf16.msra.mxu0 0
      %1779 = vmatprep.subr.bf16.mxu0 0
      %1780 = vmatpush1.bf16.msra.mxu0 0
      %1781 = vmatprep.subr.bf16.mxu0 0
      %1782 = vmatpush1.bf16.msra.mxu0 0
      %1783 = vmatprep.subr.bf16.mxu0 0
      %1784 = vmatpush1.bf16.msra.mxu0 0
      %1785 = vmatprep.subr.bf16.mxu0 0
      %1786 = vmatpush1.bf16.msra.mxu0 0
      %1787 = vmatprep.subr.bf16.mxu0 0
      %1788 = vmatpush1.bf16.msra.mxu0 0
      %1789 = vmatprep.mubr.bf16.mxu0 0
      %1790 = vmatmul.mubr.bf16.gmra.mrb[0].mxu0 %v670
      %v1791 = vpop.f32.mrb[0].mxu0
      %v1792 = vadd.f32 0.0, %v1791
      %v1793 = vpop.f32.mrb[0].mxu0
      %v1794 = vpop.f32.mrb[0].mxu0
      %v1795 = vadd.f32 0.0, %v1794
      %v1796 = vpop.f32.mrb[0].mxu0
      %1797 = vmatprep.mubr.bf16.mxu0 0
      %1798 = vmatmul.mubr.bf16.gmra.mrb[0].mxu0 %v671
      %v1799 = vpop.f32.mrb[0].mxu0
      %v1800 = vadd.f32 0.0, %v1799
      %v1801 = vpop.f32.mrb[0].mxu0
      %v1802 = vpop.f32.mrb[0].mxu0
      %v1803 = vadd.f32 0.0, %v1802
      %v1804 = vpop.f32.mrb[0].mxu0
      %1805 = vmatprep.mubr.bf16.mxu0 0
      %1806 = vmatmul.mubr.bf16.gmra.mrb[0].mxu0 %v672
      %v1807 = vpop.f32.mrb[0].mxu0
      %v1808 = vadd.f32 0.0, %v1807
      %v1809 = vpop.f32.mrb[0].mxu0
      %v1810 = vpop.f32.mrb[0].mxu0
      %v1811 = vadd.f32 0.0, %v1810
      %v1812 = vpop.f32.mrb[0].mxu0
      %1813 = vmatprep.mubr.bf16.mxu0 0
      %1814 = vmatmul.mubr.bf16.gmra.mrb[0].mxu0 %v673
      %v1815 = vpop.f32.mrb[0].mxu0
      %v1816 = vadd.f32 0.0, %v1815
      %v1817 = vpop.f32.mrb[0].mxu0
      %v1818 = vpop.f32.mrb[0].mxu0
      %v1819 = vadd.f32 0.0, %v1818
      %v1820 = vpop.f32.mrb[0].mxu0
      %1821 = vmatprep.mubr.bf16.mxu0 0
      %1822 = vmatmul.mubr.bf16.gmra.mrb[0].mxu0 %v674
      %v1823 = vpop.f32.mrb[0].mxu0
      %v1824 = vadd.f32 0.0, %v1823
      %v1825 = vpop.f32.mrb[0].mxu0
      %v1826 = vpop.f32.mrb[0].mxu0
      %v1827 = vadd.f32 0.0, %v1826
      %v1828 = vpop.f32.mrb[0].mxu0
      %1829 = vmatprep.mubr.bf16.mxu0 0
      %1830 = vmatmul.mubr.bf16.gmra.mrb[0].mxu0 %v675
      %v1831 = vpop.f32.mrb[0].mxu0
      %v1832 = vadd.f32 0.0, %v1831
      %v1833 = vpop.f32.mrb[0].mxu0
      %v1834 = vpop.f32.mrb[0].mxu0
      %v1835 = vadd.f32 0.0, %v1834
      %v1836 = vpop.f32.mrb[0].mxu0
      %1837 = vmatprep.mubr.bf16.mxu0 0
      %1838 = vmatmul.mubr.bf16.gmra.mrb[0].mxu0 %v1127
      %v1839 = vpop.f32.mrb[0].mxu0
      %v1840 = vadd.f32 0.0, %v1839
      %v1841 = vpop.f32.mrb[0].mxu0
      %v1842 = vpop.f32.mrb[0].mxu0
      %v1843 = vadd.f32 0.0, %v1842
      %v1844 = vpop.f32.mrb[0].mxu0
      %1845 = vmatprep.mubr.bf16.mxu0 0
      %1846 = vmatmul.mubr.bf16.gmra.mrb[0].mxu0 %v1707
      %v1847 = vpop.f32.mrb[0].mxu0
      %v1848 = vadd.f32 0.0, %v1847
      %v1849 = vpop.f32.mrb[0].mxu0
      %v1850 = vpop.f32.mrb[0].mxu0
      %v1851 = vadd.f32 0.0, %v1850
      %v1852 = vpop.f32.mrb[0].mxu0
      %1853 = vdwg.mxu0
      %v1854 = vadd.f32 %v1670, %v1792
      %v1855 = vadd.f32 %v1671, %v1795
      %v1856 = vadd.f32 %v1672, %v1800
      %v1857 = vadd.f32 %v1673, %v1803
      %v1858 = vadd.f32 %v1674, %v1808
      %v1859 = vadd.f32 %v1675, %v1811
      %v1860 = vadd.f32 %v1676, %v1816
      %v1861 = vadd.f32 %v1677, %v1819
      %v1862 = vadd.f32 %v1678, %v1824
      %v1863 = vadd.f32 %v1679, %v1827
      %v1864 = vadd.f32 %v1680, %v1832
      %v1865 = vadd.f32 %v1681, %v1835
      %v1866 = vadd.f32 %v1682, %v1840
      %v1867 = vadd.f32 %v1683, %v1843
      %v1868 = vadd.f32 %v1684, %v1848
      %v1869 = vadd.f32 %v1685, %v1851
      %v1871 = vshrl.u32 %v228, 16
      %v1873 = vrot.slane %v1871, 4
      %v1874 = vshll.u32 %v228, 16
      %v1876 = vrot.slane %v1874, 5
      %v1877 = vor.u32 %v1873, %v1876
      %v1878 = vrot.slane %v1877, 4
      %v1880 = vshll.u32 %v229, 16
      %v1882 = vrot.slane %v1880, 5
      %v1883 = vsel %vm249, %v1878, %v1882
      %v1884 = vshrl.u32 %v229, 16
      %v1886 = vrot.slane %v1884, 4
      %v1887 = vor.u32 %v1886, %v1882
      %v1888 = vrot.slane %v1887, 4
      %v1890 = vshll.u32 %v230, 16
      %v1892 = vrot.slane %v1890, 5
      %v1893 = vsel %vm249, %v1888, %v1892
      %s1894 = scalar_lea.vmem %s1, 448
      %v1895 = vld [vmem:[%s1894] sm:$0xf]
      %v1896 = vld [vmem:[%s1894 + $0x4] sm:$0xf]
      %v1897 = vld [vmem:[%s1894 + $0x8] sm:$0xf]
      %v1898 = vld [vmem:[%s1894 + $0xc] sm:$0xf]
      %v1899 = vld [vmem:[%s1894 + $0x10] sm:$0xf]
      %v1900 = vld [vmem:[%s1894 + $0x14] sm:$0xf]
      %v1901 = vld [vmem:[%s1894 + $0x18] sm:$0xf]
      %v1902 = vld [vmem:[%s1894 + $0x1c] sm:$0xf]
      %v1903 = vld [vmem:[%s1894 + $0x20] sm:$0xf]
      %v1904 = vld [vmem:[%s1894 + $0x24] sm:$0xf]
      %v1905 = vld [vmem:[%s1894 + $0x28] sm:$0xf]
      %v1906 = vld [vmem:[%s1894 + $0x2c] sm:$0xf]
      %v1907 = vld [vmem:[%s1894 + $0x30] sm:$0xf]
      %v1908 = vld [vmem:[%s1894 + $0x34] sm:$0xf]
      %v1909 = vld [vmem:[%s1894 + $0x38] sm:$0xf]
      %v1910 = vld [vmem:[%s1894 + $0x3c] sm:$0xf]
      %v1911 = vunpack.c.l.b16 %v1883
      %v1912 = vunpack.c.l.b16 %v1893
      %v1913 = vpack.c.b16 %v1912, %v1911
      %v1931 = vunpack.c.l.b16 %v1895
      %v1932 = vunpack.c.l.b16 %v1896
      %v1933 = vunpack.c.l.b16 %v1897
      %v1934 = vunpack.c.l.b16 %v1898
      %v1935 = vunpack.c.l.b16 %v1899
      %v1936 = vunpack.c.l.b16 %v1900
      %v1937 = vunpack.c.l.b16 %v1901
      %v1938 = vunpack.c.l.b16 %v1902
      %v1939 = vunpack.c.l.b16 %v1903
      %v1940 = vunpack.c.l.b16 %v1904
      %v1941 = vunpack.c.l.b16 %v1905
      %v1942 = vunpack.c.l.b16 %v1906
      %v1943 = vunpack.c.l.b16 %v1907
      %v1944 = vunpack.c.l.b16 %v1908
      %v1945 = vunpack.c.l.b16 %v1909
      %v1946 = vunpack.c.l.b16 %v1910
      %v1947 = vpack.c.b16 %v1932, %v1931
      %v1948 = vpack.c.b16 %v1934, %v1933
      %v1949 = vpack.c.b16 %v1936, %v1935
      %v1950 = vpack.c.b16 %v1938, %v1937
      %v1951 = vpack.c.b16 %v1940, %v1939
      %v1952 = vpack.c.b16 %v1942, %v1941
      %v1953 = vpack.c.b16 %v1944, %v1943
      %v1954 = vpack.c.b16 %v1946, %v1945
      %1963 = vmatprep.subr.bf16.mxu0 0
      %1964 = vmatpush1.bf16.msra.mxu0 %v1947
      %1965 = vmatprep.subr.bf16.mxu0 0
      %1966 = vmatpush1.bf16.msra.mxu0 %v1948
      %1967 = vmatprep.subr.bf16.mxu0 0
      %1968 = vmatpush1.bf16.msra.mxu0 %v1949
      %1969 = vmatprep.subr.bf16.mxu0 0
      %1970 = vmatpush1.bf16.msra.mxu0 %v1950
      %1971 = vmatprep.subr.bf16.mxu0 0
      %1972 = vmatpush1.bf16.msra.mxu0 %v1951
      %1973 = vmatprep.subr.bf16.mxu0 0
      %1974 = vmatpush1.bf16.msra.mxu0 %v1952
      %1975 = vmatprep.subr.bf16.mxu0 0
      %1976 = vmatpush1.bf16.msra.mxu0 %v1953
      %1977 = vmatprep.subr.bf16.mxu0 0
      %1978 = vmatpush1.bf16.msra.mxu0 %v1954
      %1979 = vmatprep.subr.bf16.mxu0 0
      %1980 = vmatpush1.bf16.msra.mxu0 0
      %1981 = vmatprep.subr.bf16.mxu0 0
      %1982 = vmatpush1.bf16.msra.mxu0 0
      %1983 = vmatprep.subr.bf16.mxu0 0
      %1984 = vmatpush1.bf16.msra.mxu0 0
      %1985 = vmatprep.subr.bf16.mxu0 0
      %1986 = vmatpush1.bf16.msra.mxu0 0
      %1987 = vmatprep.subr.bf16.mxu0 0
      %1988 = vmatpush1.bf16.msra.mxu0 0
      %1989 = vmatprep.subr.bf16.mxu0 0
      %1990 = vmatpush1.bf16.msra.mxu0 0
      %1991 = vmatprep.subr.bf16.mxu0 0
      %1992 = vmatpush1.bf16.msra.mxu0 0
      %1993 = vmatprep.subr.bf16.mxu0 0
      %1994 = vmatpush1.bf16.msra.mxu0 0
      %1995 = vmatprep.mubr.bf16.mxu0 0
      %1996 = vmatmul.mubr.bf16.gmra.mrb[0].mxu0 %v477
      %v1997 = vpop.f32.mrb[0].mxu0
      %v1998 = vadd.f32 0.0, %v1997
      %v1999 = vpop.f32.mrb[0].mxu0
      %v2000 = vpop.f32.mrb[0].mxu0
      %v2001 = vadd.f32 0.0, %v2000
      %v2002 = vpop.f32.mrb[0].mxu0
      %2003 = vmatprep.mubr.bf16.mxu0 0
      %2004 = vmatmul.mubr.bf16.gmra.mrb[0].mxu0 %v478
      %v2005 = vpop.f32.mrb[0].mxu0
      %v2006 = vadd.f32 0.0, %v2005
      %v2007 = vpop.f32.mrb[0].mxu0
      %v2008 = vpop.f32.mrb[0].mxu0
      %v2009 = vadd.f32 0.0, %v2008
      %v2010 = vpop.f32.mrb[0].mxu0
      %2011 = vmatprep.mubr.bf16.mxu0 0
      %2012 = vmatmul.mubr.bf16.gmra.mrb[0].mxu0 %v479
      %v2013 = vpop.f32.mrb[0].mxu0
      %v2014 = vadd.f32 0.0, %v2013
      %v2015 = vpop.f32.mrb[0].mxu0
      %v2016 = vpop.f32.mrb[0].mxu0
      %v2017 = vadd.f32 0.0, %v2016
      %v2018 = vpop.f32.mrb[0].mxu0
      %2019 = vmatprep.mubr.bf16.mxu0 0
      %2020 = vmatmul.mubr.bf16.gmra.mrb[0].mxu0 %v480
      %v2021 = vpop.f32.mrb[0].mxu0
      %v2022 = vadd.f32 0.0, %v2021
      %v2023 = vpop.f32.mrb[0].mxu0
      %v2024 = vpop.f32.mrb[0].mxu0
      %v2025 = vadd.f32 0.0, %v2024
      %v2026 = vpop.f32.mrb[0].mxu0
      %2027 = vmatprep.mubr.bf16.mxu0 0
      %2028 = vmatmul.mubr.bf16.gmra.mrb[0].mxu0 %v481
      %v2029 = vpop.f32.mrb[0].mxu0
      %v2030 = vadd.f32 0.0, %v2029
      %v2031 = vpop.f32.mrb[0].mxu0
      %v2032 = vpop.f32.mrb[0].mxu0
      %v2033 = vadd.f32 0.0, %v2032
      %v2034 = vpop.f32.mrb[0].mxu0
      %2035 = vmatprep.mubr.bf16.mxu0 0
      %2036 = vmatmul.mubr.bf16.gmra.mrb[0].mxu0 %v482
      %v2037 = vpop.f32.mrb[0].mxu0
      %v2038 = vadd.f32 0.0, %v2037
      %v2039 = vpop.f32.mrb[0].mxu0
      %v2040 = vpop.f32.mrb[0].mxu0
      %v2041 = vadd.f32 0.0, %v2040
      %v2042 = vpop.f32.mrb[0].mxu0
      %2043 = vmatprep.mubr.bf16.mxu0 0
      %2044 = vmatmul.mubr.bf16.gmra.mrb[0].mxu0 %v1333
      %v2045 = vpop.f32.mrb[0].mxu0
      %v2046 = vadd.f32 0.0, %v2045
      %v2047 = vpop.f32.mrb[0].mxu0
      %v2048 = vpop.f32.mrb[0].mxu0
      %v2049 = vadd.f32 0.0, %v2048
      %v2050 = vpop.f32.mrb[0].mxu0
      %2051 = vmatprep.mubr.bf16.mxu0 0
      %2052 = vmatmul.mubr.bf16.gmra.mrb[0].mxu0 %v1913
      %v2053 = vpop.f32.mrb[0].mxu0
      %v2054 = vadd.f32 0.0, %v2053
      %v2055 = vpop.f32.mrb[0].mxu0
      %v2056 = vpop.f32.mrb[0].mxu0
      %v2057 = vadd.f32 0.0, %v2056
      %v2058 = vpop.f32.mrb[0].mxu0
      %2059 = vdwg.mxu0
      %v2060 = vadd.f32 %v1854, %v1998
      %v2061 = vadd.f32 %v1855, %v2001
      %v2062 = vadd.f32 %v1856, %v2006
      %v2063 = vadd.f32 %v1857, %v2009
      %v2064 = vadd.f32 %v1858, %v2014
      %v2065 = vadd.f32 %v1859, %v2017
      %v2066 = vadd.f32 %v1860, %v2022
      %v2067 = vadd.f32 %v1861, %v2025
      %v2068 = vadd.f32 %v1862, %v2030
      %v2069 = vadd.f32 %v1863, %v2033
      %v2070 = vadd.f32 %v1864, %v2038
      %v2071 = vadd.f32 %v1865, %v2041
      %v2072 = vadd.f32 %v1866, %v2046
      %v2073 = vadd.f32 %v1867, %v2049
      %v2074 = vadd.f32 %v1868, %v2054
      %v2075 = vadd.f32 %v1869, %v2057
      %v2077 = vrot.slane %v228, 5
      %v2078 = vrot.slane %v2077, 4
      %v2079 = vrot.slane %v229, 5
      %v2080 = vsel %vm839, %v2078, %v2079
      %v2081 = vrot.slane %v2079, 4
      %v2082 = vrot.slane %v230, 5
      %v2083 = vsel %vm839, %v2081, %v2082
      %s2084 = scalar_lea.vmem %s1, 512
      %v2085 = vld [vmem:[%s2084] sm:$0xf]
      %v2086 = vld [vmem:[%s2084 + $0x4] sm:$0xf]
      %v2087 = vld [vmem:[%s2084 + $0x8] sm:$0xf]
      %v2088 = vld [vmem:[%s2084 + $0xc] sm:$0xf]
      %v2089 = vld [vmem:[%s2084 + $0x10] sm:$0xf]
      %v2090 = vld [vmem:[%s2084 + $0x14] sm:$0xf]
      %v2091 = vld [vmem:[%s2084 + $0x18] sm:$0xf]
      %v2092 = vld [vmem:[%s2084 + $0x1c] sm:$0xf]
      %v2093 = vld [vmem:[%s2084 + $0x20] sm:$0xf]
      %v2094 = vld [vmem:[%s2084 + $0x24] sm:$0xf]
      %v2095 = vld [vmem:[%s2084 + $0x28] sm:$0xf]
      %v2096 = vld [vmem:[%s2084 + $0x2c] sm:$0xf]
      %v2097 = vld [vmem:[%s2084 + $0x30] sm:$0xf]
      %v2098 = vld [vmem:[%s2084 + $0x34] sm:$0xf]
      %v2099 = vld [vmem:[%s2084 + $0x38] sm:$0xf]
      %v2100 = vld [vmem:[%s2084 + $0x3c] sm:$0xf]
      %v2101 = vunpack.c.l.b16 %v2080
      %v2102 = vunpack.c.l.b16 %v2083
      %v2103 = vpack.c.b16 %v2102, %v2101
      %v2121 = vunpack.c.l.b16 %v2085
      %v2122 = vunpack.c.l.b16 %v2086
      %v2123 = vunpack.c.l.b16 %v2087
      %v2124 = vunpack.c.l.b16 %v2088
      %v2125 = vunpack.c.l.b16 %v2089
      %v2126 = vunpack.c.l.b16 %v2090
      %v2127 = vunpack.c.l.b16 %v2091
      %v2128 = vunpack.c.l.b16 %v2092
      %v2129 = vunpack.c.l.b16 %v2093
      %v2130 = vunpack.c.l.b16 %v2094
      %v2131 = vunpack.c.l.b16 %v2095
      %v2132 = vunpack.c.l.b16 %v2096
      %v2133 = vunpack.c.l.b16 %v2097
      %v2134 = vunpack.c.l.b16 %v2098
      %v2135 = vunpack.c.l.b16 %v2099
      %v2136 = vunpack.c.l.b16 %v2100
      %v2137 = vpack.c.b16 %v2122, %v2121
      %v2138 = vpack.c.b16 %v2124, %v2123
      %v2139 = vpack.c.b16 %v2126, %v2125
      %v2140 = vpack.c.b16 %v2128, %v2127
      %v2141 = vpack.c.b16 %v2130, %v2129
      %v2142 = vpack.c.b16 %v2132, %v2131
      %v2143 = vpack.c.b16 %v2134, %v2133
      %v2144 = vpack.c.b16 %v2136, %v2135
      %2153 = vmatprep.subr.bf16.mxu0 0
      %2154 = vmatpush1.bf16.msra.mxu0 %v2137
      %2155 = vmatprep.subr.bf16.mxu0 0
      %2156 = vmatpush1.bf16.msra.mxu0 %v2138
      %2157 = vmatprep.subr.bf16.mxu0 0
      %2158 = vmatpush1.bf16.msra.mxu0 %v2139
      %2159 = vmatprep.subr.bf16.mxu0 0
      %2160 = vmatpush1.bf16.msra.mxu0 %v2140
      %2161 = vmatprep.subr.bf16.mxu0 0
      %2162 = vmatpush1.bf16.msra.mxu0 %v2141
      %2163 = vmatprep.subr.bf16.mxu0 0
      %2164 = vmatpush1.bf16.msra.mxu0 %v2142
      %2165 = vmatprep.subr.bf16.mxu0 0
      %2166 = vmatpush1.bf16.msra.mxu0 %v2143
      %2167 = vmatprep.subr.bf16.mxu0 0
      %2168 = vmatpush1.bf16.msra.mxu0 %v2144
      %2169 = vmatprep.subr.bf16.mxu0 0
      %2170 = vmatpush1.bf16.msra.mxu0 0
      %2171 = vmatprep.subr.bf16.mxu0 0
      %2172 = vmatpush1.bf16.msra.mxu0 0
      %2173 = vmatprep.subr.bf16.mxu0 0
      %2174 = vmatpush1.bf16.msra.mxu0 0
      %2175 = vmatprep.subr.bf16.mxu0 0
      %2176 = vmatpush1.bf16.msra.mxu0 0
      %2177 = vmatprep.subr.bf16.mxu0 0
      %2178 = vmatpush1.bf16.msra.mxu0 0
      %2179 = vmatprep.subr.bf16.mxu0 0
      %2180 = vmatpush1.bf16.msra.mxu0 0
      %2181 = vmatprep.subr.bf16.mxu0 0
      %2182 = vmatpush1.bf16.msra.mxu0 0
      %2183 = vmatprep.subr.bf16.mxu0 0
      %2184 = vmatpush1.bf16.msra.mxu0 0
      %2185 = vmatprep.mubr.bf16.mxu0 0
      %2186 = vmatmul.mubr.bf16.gmra.mrb[0].mxu0 %v931
      %v2187 = vpop.f32.mrb[0].mxu0
      %v2188 = vadd.f32 0.0, %v2187
      %v2189 = vpop.f32.mrb[0].mxu0
      %v2190 = vpop.f32.mrb[0].mxu0
      %v2191 = vadd.f32 0.0, %v2190
      %v2192 = vpop.f32.mrb[0].mxu0
      %2193 = vmatprep.mubr.bf16.mxu0 0
      %2194 = vmatmul.mubr.bf16.gmra.mrb[0].mxu0 %v932
      %v2195 = vpop.f32.mrb[0].mxu0
      %v2196 = vadd.f32 0.0, %v2195
      %v2197 = vpop.f32.mrb[0].mxu0
      %v2198 = vpop.f32.mrb[0].mxu0
      %v2199 = vadd.f32 0.0, %v2198
      %v2200 = vpop.f32.mrb[0].mxu0
      %2201 = vmatprep.mubr.bf16.mxu0 0
      %2202 = vmatmul.mubr.bf16.gmra.mrb[0].mxu0 %v933
      %v2203 = vpop.f32.mrb[0].mxu0
      %v2204 = vadd.f32 0.0, %v2203
      %v2205 = vpop.f32.mrb[0].mxu0
      %v2206 = vpop.f32.mrb[0].mxu0
      %v2207 = vadd.f32 0.0, %v2206
      %v2208 = vpop.f32.mrb[0].mxu0
      %2209 = vmatprep.mubr.bf16.mxu0 0
      %2210 = vmatmul.mubr.bf16.gmra.mrb[0].mxu0 %v934
      %v2211 = vpop.f32.mrb[0].mxu0
      %v2212 = vadd.f32 0.0, %v2211
      %v2213 = vpop.f32.mrb[0].mxu0
      %v2214 = vpop.f32.mrb[0].mxu0
      %v2215 = vadd.f32 0.0, %v2214
      %v2216 = vpop.f32.mrb[0].mxu0
      %2217 = vmatprep.mubr.bf16.mxu0 0
      %2218 = vmatmul.mubr.bf16.gmra.mrb[0].mxu0 %v935
      %v2219 = vpop.f32.mrb[0].mxu0
      %v2220 = vadd.f32 0.0, %v2219
      %v2221 = vpop.f32.mrb[0].mxu0
      %v2222 = vpop.f32.mrb[0].mxu0
      %v2223 = vadd.f32 0.0, %v2222
      %v2224 = vpop.f32.mrb[0].mxu0
      %2225 = vmatprep.mubr.bf16.mxu0 0
      %2226 = vmatmul.mubr.bf16.gmra.mrb[0].mxu0 %v936
      %v2227 = vpop.f32.mrb[0].mxu0
      %v2228 = vadd.f32 0.0, %v2227
      %v2229 = vpop.f32.mrb[0].mxu0
      %v2230 = vpop.f32.mrb[0].mxu0
      %v2231 = vadd.f32 0.0, %v2230
      %v2232 = vpop.f32.mrb[0].mxu0
      %2233 = vmatprep.mubr.bf16.mxu0 0
      %2234 = vmatmul.mubr.bf16.gmra.mrb[0].mxu0 %v1523
      %v2235 = vpop.f32.mrb[0].mxu0
      %v2236 = vadd.f32 0.0, %v2235
      %v2237 = vpop.f32.mrb[0].mxu0
      %v2238 = vpop.f32.mrb[0].mxu0
      %v2239 = vadd.f32 0.0, %v2238
      %v2240 = vpop.f32.mrb[0].mxu0
      %2241 = vmatprep.mubr.bf16.mxu0 0
      %2242 = vmatmul.mubr.bf16.gmra.mrb[0].mxu0 %v2103
      %v2243 = vpop.f32.mrb[0].mxu0
      %v2244 = vadd.f32 0.0, %v2243
      %v2245 = vpop.f32.mrb[0].mxu0
      %v2246 = vpop.f32.mrb[0].mxu0
      %v2247 = vadd.f32 0.0, %v2246
      %v2248 = vpop.f32.mrb[0].mxu0
      %2249 = vdwg.mxu0
      %v2250 = vadd.f32 %v2060, %v2188
      %v2251 = vadd.f32 %v2061, %v2191
      %v2252 = vadd.f32 %v2062, %v2196
      %v2253 = vadd.f32 %v2063, %v2199
      %v2254 = vadd.f32 %v2064, %v2204
      %v2255 = vadd.f32 %v2065, %v2207
      %v2256 = vadd.f32 %v2066, %v2212
      %v2257 = vadd.f32 %v2067, %v2215
      %v2258 = vadd.f32 %v2068, %v2220
      %v2259 = vadd.f32 %v2069, %v2223
      %v2260 = vadd.f32 %v2070, %v2228
      %v2261 = vadd.f32 %v2071, %v2231
      %v2262 = vadd.f32 %v2072, %v2236
      %v2263 = vadd.f32 %v2073, %v2239
      %v2264 = vadd.f32 %v2074, %v2244
      %v2265 = vadd.f32 %v2075, %v2247
      %v2266 = vld [vmem:[%s2] sm:$0x1]
      %v2268 = vlaneseq
      %v2269 = vshrl.u32 %v2268, 7
      %v2270 = vsub.s32 0, %v2269
      %v2271 = vrot.slane %v2266, %v2270
      %v2273 = vadd.f32 %v2250, %v2271
      %v2274 = vadd.f32 %v2251, %v2271
      %v2275 = vadd.f32 %v2252, %v2271
      %v2276 = vadd.f32 %v2253, %v2271
      %v2277 = vadd.f32 %v2254, %v2271
      %v2278 = vadd.f32 %v2255, %v2271
      %v2279 = vadd.f32 %v2256, %v2271
      %v2280 = vadd.f32 %v2257, %v2271
      %v2281 = vadd.f32 %v2258, %v2271
      %v2282 = vadd.f32 %v2259, %v2271
      %v2283 = vadd.f32 %v2260, %v2271
      %v2284 = vadd.f32 %v2261, %v2271
      %v2285 = vadd.f32 %v2262, %v2271
      %v2286 = vadd.f32 %v2263, %v2271
      %v2287 = vadd.f32 %v2264, %v2271
      %v2288 = vadd.f32 %v2265, %v2271
      %2289 = vst [vmem:[%s194] sm:$0xff] %v2273
      %2290 = vst [vmem:[%s194 + $0x8] sm:$0xff] %v2274
      %2291 = vst [vmem:[%s194 + $0x10] sm:$0xff] %v2275
      %2292 = vst [vmem:[%s194 + $0x18] sm:$0xff] %v2276
      %2293 = vst [vmem:[%s194 + $0x20] sm:$0xff] %v2277
      %2294 = vst [vmem:[%s194 + $0x28] sm:$0xff] %v2278
      %2295 = vst [vmem:[%s194 + $0x30] sm:$0xff] %v2279
      %2296 = vst [vmem:[%s194 + $0x38] sm:$0xff] %v2280
      %2297 = vst [vmem:[%s194 + $0x40] sm:$0xff] %v2281
      %2298 = vst [vmem:[%s194 + $0x48] sm:$0xff] %v2282
      %2299 = vst [vmem:[%s194 + $0x50] sm:$0xff] %v2283
      %2300 = vst [vmem:[%s194 + $0x58] sm:$0xff] %v2284
      %2301 = vst [vmem:[%s194 + $0x60] sm:$0xff] %v2285
      %2302 = vst [vmem:[%s194 + $0x68] sm:$0xff] %v2286
      %2303 = vst [vmem:[%s194 + $0x70] sm:$0xff] %v2287
      %2304 = vst [vmem:[%s194 + $0x78] sm:$0xff] %v2288
      %s2305 = smul.u32 8, %s19
      %p2306 = scmp.lt.s32.totalorder %s18, 1
      %s2307 = scalar_select %p2306, %s18, 1
      %p2308 = scmp.lt.s32.totalorder %s2305, 15
      %s2309 = scalar_select %p2308, %s2305, 15
      %s2310 = smul.addr %s2309, 2
      %s2311 = smul.addr %s2307, 32
      %s2312 = sadd.s32 %s2310, %s2311
      %s2313 = smul.addr %s2312, 8
      %s2314 = scalar_lea.vmem %s3, %s2313
      // Predicated region
      $region33: #{_lambda_.9} parent=31 // pred_check
        %p2315 = pneg %p114
      $region34: #{_lambda_.9} parent=31 // pred_check_branch
        %2317 = sbr.rel (%p2315) target = $region36
      $region35: #{_lambda_.9} parent=31 // pred_region
        %s2318 = smul.u32 8, %s19
      $region36: #{_lambda_.9} parent=31 // pred_fallthru
        _
    $region32: #{_lambda_.9} parent=5 // pred_fallthru
      _
    %p2319 = scmp.le.s32.totalorder 2, %s9
    // Predicated region
    $region37: #{_lambda_.9} parent=5 // pred_check
      %p2320 = pneg %p2319
    $region38: #{_lambda_.9} parent=5 // pred_check_branch
      %2322 = sbr.rel (%p2320) target = $region40
    $region39: #{_lambda_.9} parent=5 // pred_region
      %s2323 = ssub.s32 %s9, 2
      // Predicated region
      $region41: #{_lambda_.9} parent=39 // pred_check
        %p2324 = pneg %p120
      $region42: #{_lambda_.9} parent=39 // pred_check_branch
        %2326 = sbr.rel (%p2324) target = $region44
      $region43: #{_lambda_.9} parent=39 // pred_region
        %s2327 = smul.u32 8, %s21
        %p2328 = scmp.lt.s32.totalorder %s20, 1
        %s2329 = scalar_select %p2328, %s20, 1
        %p2330 = scmp.lt.s32.totalorder %s2327, 15
        %s2331 = scalar_select %p2330, %s2327, 15
        %s2332 = smul.addr %s2331, 2
        %s2333 = smul.addr %s2329, 32
        %s2334 = sadd.s32 %s2332, %s2333
        %s2335 = smul.addr %s2334, 8
        %s2336 = scalar_lea.vmem %s3, %s2335
      $region44: #{_lambda_.9} parent=39 // pred_fallthru
        _
    $region40: #{_lambda_.9} parent=5 // pred_fallthru
      _
  $region6: #{_lambda_.9} parent=0 // loop_footer
    %s13 = sadd.s32 1, %s9
  $region7: #{_lambda_.9} parent=0 // loop_footer_branch
    %8 = sbr.rel target = $region3
  $region8: #{_lambda_.9} parent=0 // loop_exit
    _

</llo_original>
